<compile_context>
chip_gen: v7x
topology: tpu7x:2x2x1
jax: 0.10.0
libtpu: 0.0.40
codegen_flags: <defaults>
</compile_context>

<pallas_src>
import math

import jax
import jax.numpy as jnp
from jax.experimental import pallas as pl
from jax.experimental.pallas import tpu as pltpu


def layer_dims(input_size):
    return [input_size, 512, 512 + 256, 256 + 128, 128, 64, 16, 1]


def mlp_kernel(x_ref,
               w0, b0, w1, b1, w2, b2, w3, b3, w4, b4, w5, b5, w6, b6,
               o_ref):
    """Fused MLP forward for one batch tile.

    Activations are feature-major: (features, block_m), batch tile on lanes.
    w0..w5: (out, in) bf16, b0..b5: (out, 1) f32, w6: (16, 1) f32, b6: (1, 1) f32.
    Dropout layers are identity (eval-mode semantics).
    """
    h = x_ref[...].astype(jnp.float32)                       # (d_in, block_m)

    def dense_leaky(h, w_ref, b_ref):
        # bf16 operands on the MXU, f32 accumulation; bias + LeakyReLU(0.2) in f32.
        y = jnp.dot(w_ref[...], h.astype(jnp.bfloat16),
                    preferred_element_type=jnp.float32) + b_ref[...]
        return jnp.where(y >= 0, y, 0.2 * y)

    h = dense_leaky(h, w0, b0)    # (512, bm)
    h = dense_leaky(h, w1, b1)    # (768, bm)
    h = dense_leaky(h, w2, b2)    # (384, bm)
    h = dense_leaky(h, w3, b3)    # (128, bm)
    h = dense_leaky(h, w4, b4)    # (64,  bm)
    h = dense_leaky(h, w5, b5)    # (16,  bm)

    # Final Linear(16, 1): VPU multiply + sublane reduction in f32; output is already
    # lane-dense (1, block_m).
    y = jnp.sum(h * w6[...], axis=0, keepdims=True) + b6[...]   # (1, bm)
    o_ref[...] = y.astype(o_ref.dtype)


def classifier_net_forward(x, params, *, block_m=256):
    """ClassifierNet forward (eval mode).

    x      : (B, input_size) float32
    params : list of 7 (W, b) pairs, W of shape (in, out) f32, b of shape (1, out) f32
    returns: (B, 1) float32
    """
    assert block_m % 128 == 0, "block_m must be a multiple of 128 (use 256+ on v6e/v7x)"
    B, d_in = x.shape
    n_layers = len(params)
    dims = [d_in] + [w.shape[1] for (w, _) in params]

    # Pad the batch to a multiple of the tile; padded rows are sliced off at the end.
    padded_b = block_m * pl.cdiv(B, block_m)
    if padded_b != B:
        x = jnp.pad(x, ((0, padded_b - B), (0, 0)))
    num_tiles = padded_b // block_m

    # Feature-major input: batch on the lane axis.
    x_t = x.T                                                 # (d_in, padded_b)

    in_specs = [pl.BlockSpec((d_in, block_m), lambda i: (0, i))]
    flat_params = []
    for li, (w, b) in enumerate(params):
        if li < n_layers - 1:
            wk = w.T.astype(jnp.bfloat16)                     # (out, in) bf16
            bk = b.T.astype(jnp.float32)                      # (out, 1)  f32
        else:
            wk = w.astype(jnp.float32)                        # (16, 1)   f32
            bk = b.astype(jnp.float32)                        # (1, 1)    f32
        # Grid-invariant full-array blocks: weights stay resident in VMEM.
        in_specs.append(pl.BlockSpec(wk.shape, lambda i: (0, 0)))
        in_specs.append(pl.BlockSpec(bk.shape, lambda i: (0, 0)))
        flat_params += [wk, bk]

    # Lane-dense output: one (1, block_m) row per grid step.
    out_specs = pl.BlockSpec((1, block_m), lambda i: (0, i))
    out_shape = jax.ShapeDtypeStruct((1, padded_b), jnp.float32)

    param_bytes = sum(int(a.size) * a.dtype.itemsize for a in flat_params)
    flops = 2 * padded_b * sum(di * do for di, do in zip(dims[:-1], dims[1:]))
    bytes_accessed = padded_b * d_in * 4 + padded_b * 4 + param_bytes

    out = pl.pallas_call(
        mlp_kernel,
        out_shape=out_shape,
        grid_spec=pltpu.PrefetchScalarGridSpec(
            num_scalar_prefetch=0,
            grid=(num_tiles,),
            in_specs=in_specs,
            out_specs=out_specs,
        ),
        compiler_params=pltpu.CompilerParams(
            # Batch tiles are independent -> shard grid steps across TensorCores.
            dimension_semantics=("parallel",),
            # Actual need: ~1.5 MB bf16 weights (x2 buffers) + a few MB of activation
            # temporaries; 32 MiB leaves headroom below v7x's 64 MiB physical VMEM.
            vmem_limit_bytes=32 << 20,
        ),
        cost_estimate=pl.CostEstimate(
            flops=flops, transcendentals=0, bytes_accessed=bytes_accessed),
    )(x_t, *flat_params)

    return out.reshape(padded_b, 1)[:B]


def init_params(input_size, key):
    """PyTorch-Linear-style init; weights stored (in, out), biases (1, out), f32."""
    dims = layer_dims(input_size)
    params = []
    for fan_in, fan_out in zip(dims[:-1], dims[1:]):
        key, kw, kb = jax.random.split(key, 3)
        bound = 1.0 / math.sqrt(fan_in)
        w = jax.random.uniform(kw, (fan_in, fan_out), jnp.float32, -bound, bound)
        b = jax.random.uniform(kb, (1, fan_out), jnp.float32, -bound, bound)
        params.append((w, b))
    return params


def reference_forward(x, params):
    """Pure-JAX reference mirroring the kernel's numerics (bf16 matmuls, f32 accum)."""
    h = x.astype(jnp.float32)
    for w, b in params[:-1]:
        y = jnp.dot(h.astype(jnp.bfloat16), w.astype(jnp.bfloat16),
                    preferred_element_type=jnp.float32) + b
        h = jnp.where(y >= 0, y, 0.2 * y)
    w_last, b_last = params[-1]                               # (16, 1), (1, 1)
    return jnp.sum(h * w_last.T, axis=-1, keepdims=True) + b_last


if __name__ == "__main__":
    input_size = 32
    batch = 16

    key = jax.random.PRNGKey(0)
    kx, kp = jax.random.split(key)
    x = jax.random.normal(kx, (batch, input_size), jnp.float32)
    params = init_params(input_size, kp)

    out = classifier_net_forward(x, params, block_m=256)
    out = jax.block_until_ready(out)

    ref = reference_forward(x, params)
    assert out.shape == (batch, 1)
    max_err = float(jnp.max(jnp.abs(out - ref)))
    assert jnp.allclose(out, ref, atol=2e-3, rtol=2e-3), f"mismatch vs reference: {max_err}"

    print("KERNEL_OK")
</pallas_src>

<mosaic_0001>
module attributes {stable_mosaic.version = 11 : i64} {
  func.func @mlp_kernel(%arg0: i32, %arg1: memref<32x256xf32, #tpu.memory_space<vmem>>, %arg2: memref<512x32xbf16, #tpu.memory_space<vmem>>, %arg3: memref<512x1xf32, #tpu.memory_space<vmem>>, %arg4: memref<768x512xbf16, #tpu.memory_space<vmem>>, %arg5: memref<768x1xf32, #tpu.memory_space<vmem>>, %arg6: memref<384x768xbf16, #tpu.memory_space<vmem>>, %arg7: memref<384x1xf32, #tpu.memory_space<vmem>>, %arg8: memref<128x384xbf16, #tpu.memory_space<vmem>>, %arg9: memref<128x1xf32, #tpu.memory_space<vmem>>, %arg10: memref<64x128xbf16, #tpu.memory_space<vmem>>, %arg11: memref<64x1xf32, #tpu.memory_space<vmem>>, %arg12: memref<16x64xbf16, #tpu.memory_space<vmem>>, %arg13: memref<16x1xf32, #tpu.memory_space<vmem>>, %arg14: memref<16x1xf32, #tpu.memory_space<vmem>>, %arg15: memref<1x1xf32, #tpu.memory_space<vmem>>, %arg16: memref<1x256xf32, #tpu.memory_space<vmem>>) attributes {dimension_semantics = [#tpu.dimension_semantics<parallel>], iteration_bounds = array<i64: 1>, scalar_prefetch = 0 : i64, scratch_operands = 0 : i64, tpu.core_type = #tpu.core_type<tc>, window_params = [{transform_indices = @transform_0, window_bounds = array<i64: 32, 256>}, {pipeline_mode = #tpu.pipeline_mode<synchronous>, transform_indices = @transform_1, window_bounds = array<i64: 512, 32>}, {pipeline_mode = #tpu.pipeline_mode<synchronous>, transform_indices = @transform_2, window_bounds = array<i64: 512, 1>}, {pipeline_mode = #tpu.pipeline_mode<synchronous>, transform_indices = @transform_3, window_bounds = array<i64: 768, 512>}, {pipeline_mode = #tpu.pipeline_mode<synchronous>, transform_indices = @transform_4, window_bounds = array<i64: 768, 1>}, {pipeline_mode = #tpu.pipeline_mode<synchronous>, transform_indices = @transform_5, window_bounds = array<i64: 384, 768>}, {pipeline_mode = #tpu.pipeline_mode<synchronous>, transform_indices = @transform_6, window_bounds = array<i64: 384, 1>}, {pipeline_mode = #tpu.pipeline_mode<synchronous>, transform_indices = @transform_7, window_bounds = array<i64: 128, 384>}, {pipeline_mode = #tpu.pipeline_mode<synchronous>, transform_indices = @transform_8, window_bounds = array<i64: 128, 1>}, {pipeline_mode = #tpu.pipeline_mode<synchronous>, transform_indices = @transform_9, window_bounds = array<i64: 64, 128>}, {pipeline_mode = #tpu.pipeline_mode<synchronous>, transform_indices = @transform_10, window_bounds = array<i64: 64, 1>}, {pipeline_mode = #tpu.pipeline_mode<synchronous>, transform_indices = @transform_11, window_bounds = array<i64: 16, 64>}, {pipeline_mode = #tpu.pipeline_mode<synchronous>, transform_indices = @transform_12, window_bounds = array<i64: 16, 1>}, {pipeline_mode = #tpu.pipeline_mode<synchronous>, transform_indices = @transform_13, window_bounds = array<i64: 16, 1>}, {pipeline_mode = #tpu.pipeline_mode<synchronous>, transform_indices = @transform_14, window_bounds = array<i64: 1, 1>}, {transform_indices = @transform_15, window_bounds = array<i64: 1, 256>}]} {
    %c0 = arith.constant 0 : index
    %c0_0 = arith.constant 0 : index
    %0 = vector.load %arg1[%c0, %c0_0] : memref<32x256xf32, #tpu.memory_space<vmem>>, vector<32x256xf32>
    %c0_1 = arith.constant 0 : index
    %c0_2 = arith.constant 0 : index
    %1 = vector.load %arg2[%c0_1, %c0_2] : memref<512x32xbf16, #tpu.memory_space<vmem>>, vector<512x32xbf16>
    %2 = arith.truncf %0 : vector<32x256xf32> to vector<32x256xbf16>
    %cst = arith.constant dense<0.000000e+00> : vector<512x256xf32>
    %3 = tpu.matmul %1, %2, %cst {dimension_numbers = #tpu.dot_dimension_numbers<[1], [0], [0], [1], [0, 0, 1, 1], [], []>} : vector<512x32xbf16>, vector<32x256xbf16>, vector<512x256xf32> -> vector<512x256xf32>
    %c0_3 = arith.constant 0 : index
    %c0_4 = arith.constant 0 : index
    %4 = vector.load %arg3[%c0_3, %c0_4] : memref<512x1xf32, #tpu.memory_space<vmem>>, vector<512x1xf32>
    %5 = vector.broadcast %4 : vector<512x1xf32> to vector<512x256xf32>
    %6 = arith.addf %3, %5 : vector<512x256xf32>
    %cst_5 = arith.constant 0.000000e+00 : f32
    %7 = vector.broadcast %cst_5 : f32 to vector<512x256xf32>
    %8 = arith.cmpf oge, %6, %7 : vector<512x256xf32>
    %cst_6 = arith.constant 2.000000e-01 : f32
    %9 = vector.broadcast %cst_6 : f32 to vector<512x256xf32>
    %10 = arith.mulf %9, %6 : vector<512x256xf32>
    %11 = arith.select %8, %6, %10 : vector<512x256xi1>, vector<512x256xf32>
    %c0_7 = arith.constant 0 : index
    %c0_8 = arith.constant 0 : index
    %12 = vector.load %arg4[%c0_7, %c0_8] : memref<768x512xbf16, #tpu.memory_space<vmem>>, vector<768x512xbf16>
    %13 = arith.truncf %11 : vector<512x256xf32> to vector<512x256xbf16>
    %cst_9 = arith.constant dense<0.000000e+00> : vector<768x256xf32>
    %14 = tpu.matmul %12, %13, %cst_9 {dimension_numbers = #tpu.dot_dimension_numbers<[1], [0], [0], [1], [0, 0, 1, 1], [], []>} : vector<768x512xbf16>, vector<512x256xbf16>, vector<768x256xf32> -> vector<768x256xf32>
    %c0_10 = arith.constant 0 : index
    %c0_11 = arith.constant 0 : index
    %15 = vector.load %arg5[%c0_10, %c0_11] : memref<768x1xf32, #tpu.memory_space<vmem>>, vector<768x1xf32>
    %16 = vector.broadcast %15 : vector<768x1xf32> to vector<768x256xf32>
    %17 = arith.addf %14, %16 : vector<768x256xf32>
    %cst_12 = arith.constant 0.000000e+00 : f32
    %18 = vector.broadcast %cst_12 : f32 to vector<768x256xf32>
    %19 = arith.cmpf oge, %17, %18 : vector<768x256xf32>
    %cst_13 = arith.constant 2.000000e-01 : f32
    %20 = vector.broadcast %cst_13 : f32 to vector<768x256xf32>
    %21 = arith.mulf %20, %17 : vector<768x256xf32>
    %22 = arith.select %19, %17, %21 : vector<768x256xi1>, vector<768x256xf32>
    %c0_14 = arith.constant 0 : index
    %c0_15 = arith.constant 0 : index
    %23 = vector.load %arg6[%c0_14, %c0_15] : memref<384x768xbf16, #tpu.memory_space<vmem>>, vector<384x768xbf16>
    %24 = arith.truncf %22 : vector<768x256xf32> to vector<768x256xbf16>
    %cst_16 = arith.constant dense<0.000000e+00> : vector<384x256xf32>
    %25 = tpu.matmul %23, %24, %cst_16 {dimension_numbers = #tpu.dot_dimension_numbers<[1], [0], [0], [1], [0, 0, 1, 1], [], []>} : vector<384x768xbf16>, vector<768x256xbf16>, vector<384x256xf32> -> vector<384x256xf32>
    %c0_17 = arith.constant 0 : index
    %c0_18 = arith.constant 0 : index
    %26 = vector.load %arg7[%c0_17, %c0_18] : memref<384x1xf32, #tpu.memory_space<vmem>>, vector<384x1xf32>
    %27 = vector.broadcast %26 : vector<384x1xf32> to vector<384x256xf32>
    %28 = arith.addf %25, %27 : vector<384x256xf32>
    %cst_19 = arith.constant 0.000000e+00 : f32
    %29 = vector.broadcast %cst_19 : f32 to vector<384x256xf32>
    %30 = arith.cmpf oge, %28, %29 : vector<384x256xf32>
    %cst_20 = arith.constant 2.000000e-01 : f32
    %31 = vector.broadcast %cst_20 : f32 to vector<384x256xf32>
    %32 = arith.mulf %31, %28 : vector<384x256xf32>
    %33 = arith.select %30, %28, %32 : vector<384x256xi1>, vector<384x256xf32>
    %c0_21 = arith.constant 0 : index
    %c0_22 = arith.constant 0 : index
    %34 = vector.load %arg8[%c0_21, %c0_22] : memref<128x384xbf16, #tpu.memory_space<vmem>>, vector<128x384xbf16>
    %35 = arith.truncf %33 : vector<384x256xf32> to vector<384x256xbf16>
    %cst_23 = arith.constant dense<0.000000e+00> : vector<128x256xf32>
    %36 = tpu.matmul %34, %35, %cst_23 {dimension_numbers = #tpu.dot_dimension_numbers<[1], [0], [0], [1], [0, 0, 1, 1], [], []>} : vector<128x384xbf16>, vector<384x256xbf16>, vector<128x256xf32> -> vector<128x256xf32>
    %c0_24 = arith.constant 0 : index
    %c0_25 = arith.constant 0 : index
    %37 = vector.load %arg9[%c0_24, %c0_25] : memref<128x1xf32, #tpu.memory_space<vmem>>, vector<128x1xf32>
    %38 = vector.broadcast %37 : vector<128x1xf32> to vector<128x256xf32>
    %39 = arith.addf %36, %38 : vector<128x256xf32>
    %cst_26 = arith.constant 0.000000e+00 : f32
    %40 = vector.broadcast %cst_26 : f32 to vector<128x256xf32>
    %41 = arith.cmpf oge, %39, %40 : vector<128x256xf32>
    %cst_27 = arith.constant 2.000000e-01 : f32
    %42 = vector.broadcast %cst_27 : f32 to vector<128x256xf32>
    %43 = arith.mulf %42, %39 : vector<128x256xf32>
    %44 = arith.select %41, %39, %43 : vector<128x256xi1>, vector<128x256xf32>
    %c0_28 = arith.constant 0 : index
    %c0_29 = arith.constant 0 : index
    %45 = vector.load %arg10[%c0_28, %c0_29] : memref<64x128xbf16, #tpu.memory_space<vmem>>, vector<64x128xbf16>
    %46 = arith.truncf %44 : vector<128x256xf32> to vector<128x256xbf16>
    %cst_30 = arith.constant dense<0.000000e+00> : vector<64x256xf32>
    %47 = tpu.matmul %45, %46, %cst_30 {dimension_numbers = #tpu.dot_dimension_numbers<[1], [0], [0], [1], [0, 0, 1, 1], [], []>} : vector<64x128xbf16>, vector<128x256xbf16>, vector<64x256xf32> -> vector<64x256xf32>
    %c0_31 = arith.constant 0 : index
    %c0_32 = arith.constant 0 : index
    %48 = vector.load %arg11[%c0_31, %c0_32] : memref<64x1xf32, #tpu.memory_space<vmem>>, vector<64x1xf32>
    %49 = vector.broadcast %48 : vector<64x1xf32> to vector<64x256xf32>
    %50 = arith.addf %47, %49 : vector<64x256xf32>
    %cst_33 = arith.constant 0.000000e+00 : f32
    %51 = vector.broadcast %cst_33 : f32 to vector<64x256xf32>
    %52 = arith.cmpf oge, %50, %51 : vector<64x256xf32>
    %cst_34 = arith.constant 2.000000e-01 : f32
    %53 = vector.broadcast %cst_34 : f32 to vector<64x256xf32>
    %54 = arith.mulf %53, %50 : vector<64x256xf32>
    %55 = arith.select %52, %50, %54 : vector<64x256xi1>, vector<64x256xf32>
    %c0_35 = arith.constant 0 : index
    %c0_36 = arith.constant 0 : index
    %56 = vector.load %arg12[%c0_35, %c0_36] : memref<16x64xbf16, #tpu.memory_space<vmem>>, vector<16x64xbf16>
    %57 = arith.truncf %55 : vector<64x256xf32> to vector<64x256xbf16>
    %cst_37 = arith.constant dense<0.000000e+00> : vector<16x256xf32>
    %58 = tpu.matmul %56, %57, %cst_37 {dimension_numbers = #tpu.dot_dimension_numbers<[1], [0], [0], [1], [0, 0, 1, 1], [], []>} : vector<16x64xbf16>, vector<64x256xbf16>, vector<16x256xf32> -> vector<16x256xf32>
    %c0_38 = arith.constant 0 : index
    %c0_39 = arith.constant 0 : index
    %59 = vector.load %arg13[%c0_38, %c0_39] : memref<16x1xf32, #tpu.memory_space<vmem>>, vector<16x1xf32>
    %60 = vector.broadcast %59 : vector<16x1xf32> to vector<16x256xf32>
    %61 = arith.addf %58, %60 : vector<16x256xf32>
    %cst_40 = arith.constant 0.000000e+00 : f32
    %62 = vector.broadcast %cst_40 : f32 to vector<16x256xf32>
    %63 = arith.cmpf oge, %61, %62 : vector<16x256xf32>
    %cst_41 = arith.constant 2.000000e-01 : f32
    %64 = vector.broadcast %cst_41 : f32 to vector<16x256xf32>
    %65 = arith.mulf %64, %61 : vector<16x256xf32>
    %66 = arith.select %63, %61, %65 : vector<16x256xi1>, vector<16x256xf32>
    %c0_42 = arith.constant 0 : index
    %c0_43 = arith.constant 0 : index
    %67 = vector.load %arg14[%c0_42, %c0_43] : memref<16x1xf32, #tpu.memory_space<vmem>>, vector<16x1xf32>
    %68 = vector.broadcast %67 : vector<16x1xf32> to vector<16x256xf32>
    %69 = arith.mulf %66, %68 : vector<16x256xf32>
    %cst_44 = arith.constant dense<0.000000e+00> : vector<256xf32>
    %70 = vector.multi_reduction <add>, %69, %cst_44 [0] : vector<16x256xf32> to vector<256xf32>
    %71 = vector.shape_cast %70 : vector<256xf32> to vector<1x256xf32>
    %c0_45 = arith.constant 0 : index
    %c0_46 = arith.constant 0 : index
    %72 = vector.load %arg15[%c0_45, %c0_46] : memref<1x1xf32, #tpu.memory_space<vmem>>, vector<1x1xf32>
    %73 = vector.broadcast %72 : vector<1x1xf32> to vector<1x256xf32>
    %74 = arith.addf %71, %73 : vector<1x256xf32>
    %c0_47 = arith.constant 0 : index
    %c0_48 = arith.constant 0 : index
    %75 = vector.load %arg16[%c0_47, %c0_48] : memref<1x256xf32, #tpu.memory_space<vmem>>, vector<1x256xf32>
    tpu.vector_store %arg16[%c0_47, %c0_48], %74 {strides = array<i32>} : memref<1x256xf32, #tpu.memory_space<vmem>>, vector<1x256xf32>,
    return
  }
  func.func @transform_0(%arg0: i32) -> (i32, i32) {
    %c0_i32 = arith.constant 0 : i32
    %c0_i32_0 = arith.constant 0 : i32
    return %c0_i32, %arg0 : i32, i32
  }
  func.func @transform_1(%arg0: i32) -> (i32, i32) {
    %c0_i32 = arith.constant 0 : i32
    %c0_i32_0 = arith.constant 0 : i32
    %c0_i32_1 = arith.constant 0 : i32
    return %c0_i32, %c0_i32_0 : i32, i32
  }
  func.func @transform_2(%arg0: i32) -> (i32, i32) {
    %c0_i32 = arith.constant 0 : i32
    %c0_i32_0 = arith.constant 0 : i32
    %c0_i32_1 = arith.constant 0 : i32
    return %c0_i32, %c0_i32_0 : i32, i32
  }
  func.func @transform_3(%arg0: i32) -> (i32, i32) {
    %c0_i32 = arith.constant 0 : i32
    %c0_i32_0 = arith.constant 0 : i32
    %c0_i32_1 = arith.constant 0 : i32
    return %c0_i32, %c0_i32_0 : i32, i32
  }
  func.func @transform_4(%arg0: i32) -> (i32, i32) {
    %c0_i32 = arith.constant 0 : i32
    %c0_i32_0 = arith.constant 0 : i32
    %c0_i32_1 = arith.constant 0 : i32
    return %c0_i32, %c0_i32_0 : i32, i32
  }
  func.func @transform_5(%arg0: i32) -> (i32, i32) {
    %c0_i32 = arith.constant 0 : i32
    %c0_i32_0 = arith.constant 0 : i32
    %c0_i32_1 = arith.constant 0 : i32
    return %c0_i32, %c0_i32_0 : i32, i32
  }
  func.func @transform_6(%arg0: i32) -> (i32, i32) {
    %c0_i32 = arith.constant 0 : i32
    %c0_i32_0 = arith.constant 0 : i32
    %c0_i32_1 = arith.constant 0 : i32
    return %c0_i32, %c0_i32_0 : i32, i32
  }
  func.func @transform_7(%arg0: i32) -> (i32, i32) {
    %c0_i32 = arith.constant 0 : i32
    %c0_i32_0 = arith.constant 0 : i32
    %c0_i32_1 = arith.constant 0 : i32
    return %c0_i32, %c0_i32_0 : i32, i32
  }
  func.func @transform_8(%arg0: i32) -> (i32, i32) {
    %c0_i32 = arith.constant 0 : i32
    %c0_i32_0 = arith.constant 0 : i32
    %c0_i32_1 = arith.constant 0 : i32
    return %c0_i32, %c0_i32_0 : i32, i32
  }
  func.func @transform_9(%arg0: i32) -> (i32, i32) {
    %c0_i32 = arith.constant 0 : i32
    %c0_i32_0 = arith.constant 0 : i32
    %c0_i32_1 = arith.constant 0 : i32
    return %c0_i32, %c0_i32_0 : i32, i32
  }
  func.func @transform_10(%arg0: i32) -> (i32, i32) {
    %c0_i32 = arith.constant 0 : i32
    %c0_i32_0 = arith.constant 0 : i32
    %c0_i32_1 = arith.constant 0 : i32
    return %c0_i32, %c0_i32_0 : i32, i32
  }
  func.func @transform_11(%arg0: i32) -> (i32, i32) {
    %c0_i32 = arith.constant 0 : i32
    %c0_i32_0 = arith.constant 0 : i32
    %c0_i32_1 = arith.constant 0 : i32
    return %c0_i32, %c0_i32_0 : i32, i32
  }
  func.func @transform_12(%arg0: i32) -> (i32, i32) {
    %c0_i32 = arith.constant 0 : i32
    %c0_i32_0 = arith.constant 0 : i32
    %c0_i32_1 = arith.constant 0 : i32
    return %c0_i32, %c0_i32_0 : i32, i32
  }
  func.func @transform_13(%arg0: i32) -> (i32, i32) {
    %c0_i32 = arith.constant 0 : i32
    %c0_i32_0 = arith.constant 0 : i32
    %c0_i32_1 = arith.constant 0 : i32
    return %c0_i32, %c0_i32_0 : i32, i32
  }
  func.func @transform_14(%arg0: i32) -> (i32, i32) {
    %c0_i32 = arith.constant 0 : i32
    %c0_i32_0 = arith.constant 0 : i32
    %c0_i32_1 = arith.constant 0 : i32
    return %c0_i32, %c0_i32_0 : i32, i32
  }
  func.func @transform_15(%arg0: i32) -> (i32, i32) {
    %c0_i32 = arith.constant 0 : i32
    %c0_i32_0 = arith.constant 0 : i32
    return %c0_i32, %arg0 : i32, i32
  }
}

</mosaic_0001>

<llo_original>
// kernel: tpu_custom_call.1
$region0: #{tpu_custom_call.1}
  #allocation0 [shape = 'u32[]', space=smem, size = 0x4, offset = 0x4, fixed_abs, tag = 'smem constant byte address 0x4 - core index']
  #allocation1 [shape = 'u32[144,128]{1,0:T(1,128)}', space=vmem, size = 0x12000, scoped, tag = 'internal scratch']
  #allocation2 [shape = 'f32[1,1]{1,0:T(1,128)S(1)}', space=vmem, size = 0x200, scoped, tag = 'scoped memory for tpu_custom_call.1']
  %s0 = inlined_call_operand.vmem [shape: f32[32,256], index: 0, kind: input, shape index: {}]
  %s1 = inlined_call_operand.vmem [shape: bf16[512,32], index: 1, kind: input, shape index: {}]
  %s2 = inlined_call_operand.vmem [shape: f32[512,1], index: 2, kind: input, shape index: {}]
  %s3 = inlined_call_operand.vmem [shape: bf16[768,512], index: 3, kind: input, shape index: {}]
  %s4 = inlined_call_operand.vmem [shape: f32[768,1], index: 4, kind: input, shape index: {}]
  %s5 = inlined_call_operand.hbm [shape: bf16[384,768], index: 5, kind: input, shape index: {}]
  %s6 = inlined_call_operand.vmem [shape: f32[384,1], index: 6, kind: input, shape index: {}]
  %s7 = inlined_call_operand.vmem [shape: bf16[128,384], index: 7, kind: input, shape index: {}]
  %s8 = inlined_call_operand.vmem [shape: f32[128,1], index: 8, kind: input, shape index: {}]
  %s9 = inlined_call_operand.vmem [shape: bf16[64,128], index: 9, kind: input, shape index: {}]
  %s10 = inlined_call_operand.vmem [shape: f32[64,1], index: 10, kind: input, shape index: {}]
  %s11 = inlined_call_operand.vmem [shape: bf16[16,64], index: 11, kind: input, shape index: {}]
  %s12 = inlined_call_operand.vmem [shape: f32[16,1], index: 12, kind: input, shape index: {}]
  %s13 = inlined_call_operand.vmem [shape: f32[16,1], index: 13, kind: input, shape index: {}]
  %s14 = inlined_call_operand.<no memory space> [shape: f32[1,1], index: 14, kind: input, shape index: {}]
  %s15 = inlined_call_operand.hbm [shape: f32[1,256], index: 15, kind: output, shape index: {}]
  %s16 = sld [smem:[#allocation0]]
  $region74: #{tpu_custom_call.1} parent=0
    _
  %s18 = ssub.s32 1, %s16
  %s19 = scalar_select 0, %s18, %s16
  %v20 = vstv %s14
  %21 = vst [vmem:[#allocation2] sm:$0x1] %v20
  $region1: #{tpu_custom_call.1} parent=0
    #allocation3 [shape = 'u8[589824]{0}', space=vmem, size = 0x90000, scoped, tag = 'input window, operand 5, single buffered']
    #allocation4 [shape = 's32[1]{0}', space=sflag, size = 0x4, scoped, tag = 'scoped memory for tpu_custom_call.1']
    #allocation5 [shape = 's32[1]{0}', space=sflag, size = 0x4, scoped, tag = 'scoped memory for tpu_custom_call.1']
    #allocation6 [shape = 'u8[1024]{0}', space=vmem, size = 0x400, scoped, tag = 'output window, operand 0, single buffered']
    %22 = vsyncpa [#allocation4], 0
    %23 = vsyncpa [#allocation5], 0
    // Predicated region
    $region2: #{tpu_custom_call.1} parent=1 // pred_check
      _
    $region3: #{tpu_custom_call.1} parent=1 // pred_check_branch
      %25 = sbr.rel (0) target = $region5
    $region4: #{tpu_custom_call.1} parent=1 // pred_region
      _
    $region5: #{tpu_custom_call.1} parent=1 // pred_fallthru
      _
    // Predicated region
    $region6: #{tpu_custom_call.1} parent=1 // pred_check
      _
    $region7: #{tpu_custom_call.1} parent=1 // pred_check_branch
      %27 = sbr.rel (0) target = $region9
    $region8: #{tpu_custom_call.1} parent=1 // pred_region
      _
    $region9: #{tpu_custom_call.1} parent=1 // pred_fallthru
      _
    // Predicated region
    $region10: #{tpu_custom_call.1} parent=1 // pred_check
      _
    $region11: #{tpu_custom_call.1} parent=1 // pred_check_branch
      %29 = sbr.rel (0) target = $region13
    $region12: #{tpu_custom_call.1} parent=1 // pred_region
      _
    $region13: #{tpu_custom_call.1} parent=1 // pred_fallthru
      _
    // Predicated region
    $region14: #{tpu_custom_call.1} parent=1 // pred_check
      _
    $region15: #{tpu_custom_call.1} parent=1 // pred_check_branch
      %31 = sbr.rel (0) target = $region17
    $region16: #{tpu_custom_call.1} parent=1 // pred_region
      _
    $region17: #{tpu_custom_call.1} parent=1 // pred_fallthru
      _
    // Predicated region
    $region18: #{tpu_custom_call.1} parent=1 // pred_check
      _
    $region19: #{tpu_custom_call.1} parent=1 // pred_check_branch
      %33 = sbr.rel (0) target = $region21
    $region20: #{tpu_custom_call.1} parent=1 // pred_region
      _
    $region21: #{tpu_custom_call.1} parent=1 // pred_fallthru
      _
    // Predicated region
    $region22: #{tpu_custom_call.1} parent=1 // pred_check
      _
    $region23: #{tpu_custom_call.1} parent=1 // pred_check_branch
      %35 = sbr.rel (0) target = $region25
    $region24: #{tpu_custom_call.1} parent=1 // pred_region
      %s37 = ssub.s32 18432, 18432
      %38 = vsyncadd [#allocation4], %s37
      %s39 = sshll.u32 [#allocation3], 4
      %s40 = int_to_ptr.vmem [resolvable:$true] %s39
      %45 = dma.hbm_to_vmem [thread:$0]  %s5, 18432, %s40, [#allocation4], 384, 384, 24
    $region25: #{tpu_custom_call.1} parent=1 // pred_fallthru
      _
    // Predicated region
    $region26: #{tpu_custom_call.1} parent=1 // pred_check
      _
    $region27: #{tpu_custom_call.1} parent=1 // pred_check_branch
      %47 = sbr.rel (0) target = $region29
    $region28: #{tpu_custom_call.1} parent=1 // pred_region
      _
    $region29: #{tpu_custom_call.1} parent=1 // pred_fallthru
      _
    // Predicated region
    $region30: #{tpu_custom_call.1} parent=1 // pred_check
      _
    $region31: #{tpu_custom_call.1} parent=1 // pred_check_branch
      %49 = sbr.rel (0) target = $region33
    $region32: #{tpu_custom_call.1} parent=1 // pred_region
      _
    $region33: #{tpu_custom_call.1} parent=1 // pred_fallthru
      _
    // Predicated region
    $region34: #{tpu_custom_call.1} parent=1 // pred_check
      _
    $region35: #{tpu_custom_call.1} parent=1 // pred_check_branch
      %51 = sbr.rel (0) target = $region37
    $region36: #{tpu_custom_call.1} parent=1 // pred_region
      _
    $region37: #{tpu_custom_call.1} parent=1 // pred_fallthru
      _
    // Predicated region
    $region38: #{tpu_custom_call.1} parent=1 // pred_check
      _
    $region39: #{tpu_custom_call.1} parent=1 // pred_check_branch
      %53 = sbr.rel (0) target = $region41
    $region40: #{tpu_custom_call.1} parent=1 // pred_region
      _
    $region41: #{tpu_custom_call.1} parent=1 // pred_fallthru
      _
    // Predicated region
    $region42: #{tpu_custom_call.1} parent=1 // pred_check
      _
    $region43: #{tpu_custom_call.1} parent=1 // pred_check_branch
      %55 = sbr.rel (0) target = $region45
    $region44: #{tpu_custom_call.1} parent=1 // pred_region
      _
    $region45: #{tpu_custom_call.1} parent=1 // pred_fallthru
      _
    // Predicated region
    $region46: #{tpu_custom_call.1} parent=1 // pred_check
      _
    $region47: #{tpu_custom_call.1} parent=1 // pred_check_branch
      %57 = sbr.rel (0) target = $region49
    $region48: #{tpu_custom_call.1} parent=1 // pred_region
      _
    $region49: #{tpu_custom_call.1} parent=1 // pred_fallthru
      _
    // Predicated region
    $region50: #{tpu_custom_call.1} parent=1 // pred_check
      _
    $region51: #{tpu_custom_call.1} parent=1 // pred_check_branch
      %59 = sbr.rel (0) target = $region53
    $region52: #{tpu_custom_call.1} parent=1 // pred_region
      _
    $region53: #{tpu_custom_call.1} parent=1 // pred_fallthru
      _
    // Predicated region
    $region54: #{tpu_custom_call.1} parent=1 // pred_check
      _
    $region55: #{tpu_custom_call.1} parent=1 // pred_check_branch
      %61 = sbr.rel (0) target = $region57
    $region56: #{tpu_custom_call.1} parent=1 // pred_region
      _
    $region57: #{tpu_custom_call.1} parent=1 // pred_fallthru
      _
    // Predicated region
    $region58: #{tpu_custom_call.1} parent=1 // pred_check
      _
    $region59: #{tpu_custom_call.1} parent=1 // pred_check_branch
      %63 = sbr.rel (0) target = $region61
    $region60: #{tpu_custom_call.1} parent=1 // pred_region
      _
    $region61: #{tpu_custom_call.1} parent=1 // pred_fallthru
      _
    // Predicated region
    $region62: #{tpu_custom_call.1} parent=1 // pred_check
      _
    $region63: #{tpu_custom_call.1} parent=1 // pred_check_branch
      %65 = sbr.rel (0) target = $region65
    $region64: #{tpu_custom_call.1} parent=1 // pred_region
      %66 = dma.done [#allocation4], 18432
    $region65: #{tpu_custom_call.1} parent=1 // pred_fallthru
      _
    %v68 = vld [vmem:[%s0] sm:$0xff]
    %v69 = vld [vmem:[%s0 + $0x8] sm:$0xff]
    %v70 = vld [vmem:[%s0 + $0x10] sm:$0xff]
    %v71 = vld [vmem:[%s0 + $0x18] sm:$0xff]
    %v72 = vld [vmem:[%s0 + $0x20] sm:$0xff]
    %v73 = vld [vmem:[%s0 + $0x28] sm:$0xff]
    %v74 = vld [vmem:[%s0 + $0x30] sm:$0xff]
    %v75 = vld [vmem:[%s0 + $0x38] sm:$0xff]
    %v76 = vld [vmem:[%s1] sm:$0xf]
    %v77 = vld [vmem:[%s1 + $0x4] sm:$0xf]
    %v78 = vld [vmem:[%s1 + $0x8] sm:$0xf]
    %v79 = vld [vmem:[%s1 + $0xc] sm:$0xf]
    %v80 = vld [vmem:[%s1 + $0x10] sm:$0xf]
    %v81 = vld [vmem:[%s1 + $0x14] sm:$0xf]
    %v82 = vld [vmem:[%s1 + $0x18] sm:$0xf]
    %v83 = vld [vmem:[%s1 + $0x1c] sm:$0xf]
    %v84 = vld [vmem:[%s1 + $0x20] sm:$0xf]
    %v85 = vld [vmem:[%s1 + $0x24] sm:$0xf]
    %v86 = vld [vmem:[%s1 + $0x28] sm:$0xf]
    %v87 = vld [vmem:[%s1 + $0x2c] sm:$0xf]
    %v88 = vld [vmem:[%s1 + $0x30] sm:$0xf]
    %v89 = vld [vmem:[%s1 + $0x34] sm:$0xf]
    %v90 = vld [vmem:[%s1 + $0x38] sm:$0xf]
    %v91 = vld [vmem:[%s1 + $0x3c] sm:$0xf]
    %v92 = vld [vmem:[%s1 + $0x40] sm:$0xf]
    %v93 = vld [vmem:[%s1 + $0x44] sm:$0xf]
    %v94 = vld [vmem:[%s1 + $0x48] sm:$0xf]
    %v95 = vld [vmem:[%s1 + $0x4c] sm:$0xf]
    %v96 = vld [vmem:[%s1 + $0x50] sm:$0xf]
    %v97 = vld [vmem:[%s1 + $0x54] sm:$0xf]
    %v98 = vld [vmem:[%s1 + $0x58] sm:$0xf]
    %v99 = vld [vmem:[%s1 + $0x5c] sm:$0xf]
    %v100 = vld [vmem:[%s1 + $0x60] sm:$0xf]
    %v101 = vld [vmem:[%s1 + $0x64] sm:$0xf]
    %v102 = vld [vmem:[%s1 + $0x68] sm:$0xf]
    %v103 = vld [vmem:[%s1 + $0x6c] sm:$0xf]
    %v104 = vld [vmem:[%s1 + $0x70] sm:$0xf]
    %v105 = vld [vmem:[%s1 + $0x74] sm:$0xf]
    %v106 = vld [vmem:[%s1 + $0x78] sm:$0xf]
    %v107 = vld [vmem:[%s1 + $0x7c] sm:$0xf]
    %v108 = vld [vmem:[%s1 + $0x80] sm:$0xf]
    %v109 = vld [vmem:[%s1 + $0x84] sm:$0xf]
    %v110 = vld [vmem:[%s1 + $0x88] sm:$0xf]
    %v111 = vld [vmem:[%s1 + $0x8c] sm:$0xf]
    %v112 = vld [vmem:[%s1 + $0x90] sm:$0xf]
    %v113 = vld [vmem:[%s1 + $0x94] sm:$0xf]
    %v114 = vld [vmem:[%s1 + $0x98] sm:$0xf]
    %v115 = vld [vmem:[%s1 + $0x9c] sm:$0xf]
    %v116 = vld [vmem:[%s1 + $0xa0] sm:$0xf]
    %v117 = vld [vmem:[%s1 + $0xa4] sm:$0xf]
    %v118 = vld [vmem:[%s1 + $0xa8] sm:$0xf]
    %v119 = vld [vmem:[%s1 + $0xac] sm:$0xf]
    %v120 = vld [vmem:[%s1 + $0xb0] sm:$0xf]
    %v121 = vld [vmem:[%s1 + $0xb4] sm:$0xf]
    %v122 = vld [vmem:[%s1 + $0xb8] sm:$0xf]
    %v123 = vld [vmem:[%s1 + $0xbc] sm:$0xf]
    %v124 = vld [vmem:[%s1 + $0xc0] sm:$0xf]
    %v125 = vld [vmem:[%s1 + $0xc4] sm:$0xf]
    %v126 = vld [vmem:[%s1 + $0xc8] sm:$0xf]
    %v127 = vld [vmem:[%s1 + $0xcc] sm:$0xf]
    %v128 = vld [vmem:[%s1 + $0xd0] sm:$0xf]
    %v129 = vld [vmem:[%s1 + $0xd4] sm:$0xf]
    %v130 = vld [vmem:[%s1 + $0xd8] sm:$0xf]
    %v131 = vld [vmem:[%s1 + $0xdc] sm:$0xf]
    %v132 = vld [vmem:[%s1 + $0xe0] sm:$0xf]
    %v133 = vld [vmem:[%s1 + $0xe4] sm:$0xf]
    %v134 = vld [vmem:[%s1 + $0xe8] sm:$0xf]
    %v135 = vld [vmem:[%s1 + $0xec] sm:$0xf]
    %v136 = vld [vmem:[%s1 + $0xf0] sm:$0xf]
    %v137 = vld [vmem:[%s1 + $0xf4] sm:$0xf]
    %v138 = vld [vmem:[%s1 + $0xf8] sm:$0xf]
    %v139 = vld [vmem:[%s1 + $0xfc] sm:$0xf]
    %v140 = vpack.c.bf16 %v70, %v68
    %v141 = vpack.c.bf16 %v71, %v69
    %v142 = vpack.c.bf16 %v74, %v72
    %v143 = vpack.c.bf16 %v75, %v73
    %v144 = vld [vmem:[%s2] sm:$0xff]
    %v145 = vld [vmem:[%s2 + $0x8] sm:$0xff]
    %v146 = vld [vmem:[%s2 + $0x10] sm:$0xff]
    %v147 = vld [vmem:[%s2 + $0x18] sm:$0xff]
    %v148 = vld [vmem:[%s2 + $0x20] sm:$0xff]
    %v149 = vld [vmem:[%s2 + $0x28] sm:$0xff]
    %v150 = vld [vmem:[%s2 + $0x30] sm:$0xff]
    %v151 = vld [vmem:[%s2 + $0x38] sm:$0xff]
    %v152 = vld [vmem:[%s2 + $0x40] sm:$0xff]
    %v153 = vld [vmem:[%s2 + $0x48] sm:$0xff]
    %v154 = vld [vmem:[%s2 + $0x50] sm:$0xff]
    %v155 = vld [vmem:[%s2 + $0x58] sm:$0xff]
    %v156 = vld [vmem:[%s2 + $0x60] sm:$0xff]
    %v157 = vld [vmem:[%s2 + $0x68] sm:$0xff]
    %v158 = vld [vmem:[%s2 + $0x70] sm:$0xff]
    %v159 = vld [vmem:[%s2 + $0x78] sm:$0xff]
    %v160 = vld [vmem:[%s2 + $0x80] sm:$0xff]
    %v161 = vld [vmem:[%s2 + $0x88] sm:$0xff]
    %v162 = vld [vmem:[%s2 + $0x90] sm:$0xff]
    %v163 = vld [vmem:[%s2 + $0x98] sm:$0xff]
    %v164 = vld [vmem:[%s2 + $0xa0] sm:$0xff]
    %v165 = vld [vmem:[%s2 + $0xa8] sm:$0xff]
    %v166 = vld [vmem:[%s2 + $0xb0] sm:$0xff]
    %v167 = vld [vmem:[%s2 + $0xb8] sm:$0xff]
    %v168 = vld [vmem:[%s2 + $0xc0] sm:$0xff]
    %v169 = vld [vmem:[%s2 + $0xc8] sm:$0xff]
    %v170 = vld [vmem:[%s2 + $0xd0] sm:$0xff]
    %v171 = vld [vmem:[%s2 + $0xd8] sm:$0xff]
    %v172 = vld [vmem:[%s2 + $0xe0] sm:$0xff]
    %v173 = vld [vmem:[%s2 + $0xe8] sm:$0xff]
    %v174 = vld [vmem:[%s2 + $0xf0] sm:$0xff]
    %v175 = vld [vmem:[%s2 + $0xf8] sm:$0xff]
    %v176 = vld [vmem:[%s2 + $0x100] sm:$0xff]
    %v177 = vld [vmem:[%s2 + $0x108] sm:$0xff]
    %v178 = vld [vmem:[%s2 + $0x110] sm:$0xff]
    %v179 = vld [vmem:[%s2 + $0x118] sm:$0xff]
    %v180 = vld [vmem:[%s2 + $0x120] sm:$0xff]
    %v181 = vld [vmem:[%s2 + $0x128] sm:$0xff]
    %v182 = vld [vmem:[%s2 + $0x130] sm:$0xff]
    %v183 = vld [vmem:[%s2 + $0x138] sm:$0xff]
    %v184 = vld [vmem:[%s2 + $0x140] sm:$0xff]
    %v185 = vld [vmem:[%s2 + $0x148] sm:$0xff]
    %v186 = vld [vmem:[%s2 + $0x150] sm:$0xff]
    %v187 = vld [vmem:[%s2 + $0x158] sm:$0xff]
    %v188 = vld [vmem:[%s2 + $0x160] sm:$0xff]
    %v189 = vld [vmem:[%s2 + $0x168] sm:$0xff]
    %v190 = vld [vmem:[%s2 + $0x170] sm:$0xff]
    %v191 = vld [vmem:[%s2 + $0x178] sm:$0xff]
    %v192 = vld [vmem:[%s2 + $0x180] sm:$0xff]
    %v193 = vld [vmem:[%s2 + $0x188] sm:$0xff]
    %v194 = vld [vmem:[%s2 + $0x190] sm:$0xff]
    %v195 = vld [vmem:[%s2 + $0x198] sm:$0xff]
    %v196 = vld [vmem:[%s2 + $0x1a0] sm:$0xff]
    %v197 = vld [vmem:[%s2 + $0x1a8] sm:$0xff]
    %v198 = vld [vmem:[%s2 + $0x1b0] sm:$0xff]
    %v199 = vld [vmem:[%s2 + $0x1b8] sm:$0xff]
    %v200 = vld [vmem:[%s2 + $0x1c0] sm:$0xff]
    %v201 = vld [vmem:[%s2 + $0x1c8] sm:$0xff]
    %v202 = vld [vmem:[%s2 + $0x1d0] sm:$0xff]
    %v203 = vld [vmem:[%s2 + $0x1d8] sm:$0xff]
    %v204 = vld [vmem:[%s2 + $0x1e0] sm:$0xff]
    %v205 = vld [vmem:[%s2 + $0x1e8] sm:$0xff]
    %v206 = vld [vmem:[%s2 + $0x1f0] sm:$0xff]
    %v207 = vld [vmem:[%s2 + $0x1f8] sm:$0xff]
    %209 = vset.pattern.permute.xlu0 0
    %210 = vperm.xlu0 %209, %v144
    %v211 = vpop.permute.xlu0 %210
    %214 = vset.pattern.permute.xlu0 0
    %215 = vperm.xlu0 %214, %v145
    %v216 = vpop.permute.xlu0 %215
    %219 = vset.pattern.permute.xlu0 0
    %220 = vperm.xlu0 %219, %v146
    %v221 = vpop.permute.xlu0 %220
    %224 = vset.pattern.permute.xlu0 0
    %225 = vperm.xlu0 %224, %v147
    %v226 = vpop.permute.xlu0 %225
    %229 = vset.pattern.permute.xlu0 0
    %230 = vperm.xlu0 %229, %v148
    %v231 = vpop.permute.xlu0 %230
    %234 = vset.pattern.permute.xlu0 0
    %235 = vperm.xlu0 %234, %v149
    %v236 = vpop.permute.xlu0 %235
    %239 = vset.pattern.permute.xlu0 0
    %240 = vperm.xlu0 %239, %v150
    %v241 = vpop.permute.xlu0 %240
    %244 = vset.pattern.permute.xlu0 0
    %245 = vperm.xlu0 %244, %v151
    %v246 = vpop.permute.xlu0 %245
    %249 = vset.pattern.permute.xlu0 0
    %250 = vperm.xlu0 %249, %v152
    %v251 = vpop.permute.xlu0 %250
    %254 = vset.pattern.permute.xlu0 0
    %255 = vperm.xlu0 %254, %v153
    %v256 = vpop.permute.xlu0 %255
    %259 = vset.pattern.permute.xlu0 0
    %260 = vperm.xlu0 %259, %v154
    %v261 = vpop.permute.xlu0 %260
    %264 = vset.pattern.permute.xlu0 0
    %265 = vperm.xlu0 %264, %v155
    %v266 = vpop.permute.xlu0 %265
    %269 = vset.pattern.permute.xlu0 0
    %270 = vperm.xlu0 %269, %v156
    %v271 = vpop.permute.xlu0 %270
    %274 = vset.pattern.permute.xlu0 0
    %275 = vperm.xlu0 %274, %v157
    %v276 = vpop.permute.xlu0 %275
    %279 = vset.pattern.permute.xlu0 0
    %280 = vperm.xlu0 %279, %v158
    %v281 = vpop.permute.xlu0 %280
    %284 = vset.pattern.permute.xlu0 0
    %285 = vperm.xlu0 %284, %v159
    %v286 = vpop.permute.xlu0 %285
    %289 = vset.pattern.permute.xlu0 0
    %290 = vperm.xlu0 %289, %v160
    %v291 = vpop.permute.xlu0 %290
    %294 = vset.pattern.permute.xlu0 0
    %295 = vperm.xlu0 %294, %v161
    %v296 = vpop.permute.xlu0 %295
    %299 = vset.pattern.permute.xlu0 0
    %300 = vperm.xlu0 %299, %v162
    %v301 = vpop.permute.xlu0 %300
    %304 = vset.pattern.permute.xlu0 0
    %305 = vperm.xlu0 %304, %v163
    %v306 = vpop.permute.xlu0 %305
    %309 = vset.pattern.permute.xlu0 0
    %310 = vperm.xlu0 %309, %v164
    %v311 = vpop.permute.xlu0 %310
    %314 = vset.pattern.permute.xlu0 0
    %315 = vperm.xlu0 %314, %v165
    %v316 = vpop.permute.xlu0 %315
    %319 = vset.pattern.permute.xlu0 0
    %320 = vperm.xlu0 %319, %v166
    %v321 = vpop.permute.xlu0 %320
    %324 = vset.pattern.permute.xlu0 0
    %325 = vperm.xlu0 %324, %v167
    %v326 = vpop.permute.xlu0 %325
    %329 = vset.pattern.permute.xlu0 0
    %330 = vperm.xlu0 %329, %v168
    %v331 = vpop.permute.xlu0 %330
    %334 = vset.pattern.permute.xlu0 0
    %335 = vperm.xlu0 %334, %v169
    %v336 = vpop.permute.xlu0 %335
    %339 = vset.pattern.permute.xlu0 0
    %340 = vperm.xlu0 %339, %v170
    %v341 = vpop.permute.xlu0 %340
    %344 = vset.pattern.permute.xlu0 0
    %345 = vperm.xlu0 %344, %v171
    %v346 = vpop.permute.xlu0 %345
    %349 = vset.pattern.permute.xlu0 0
    %350 = vperm.xlu0 %349, %v172
    %v351 = vpop.permute.xlu0 %350
    %354 = vset.pattern.permute.xlu0 0
    %355 = vperm.xlu0 %354, %v173
    %v356 = vpop.permute.xlu0 %355
    %359 = vset.pattern.permute.xlu0 0
    %360 = vperm.xlu0 %359, %v174
    %v361 = vpop.permute.xlu0 %360
    %364 = vset.pattern.permute.xlu0 0
    %365 = vperm.xlu0 %364, %v175
    %v366 = vpop.permute.xlu0 %365
    %369 = vset.pattern.permute.xlu0 0
    %370 = vperm.xlu0 %369, %v176
    %v371 = vpop.permute.xlu0 %370
    %374 = vset.pattern.permute.xlu0 0
    %375 = vperm.xlu0 %374, %v177
    %v376 = vpop.permute.xlu0 %375
    %379 = vset.pattern.permute.xlu0 0
    %380 = vperm.xlu0 %379, %v178
    %v381 = vpop.permute.xlu0 %380
    %384 = vset.pattern.permute.xlu0 0
    %385 = vperm.xlu0 %384, %v179
    %v386 = vpop.permute.xlu0 %385
    %389 = vset.pattern.permute.xlu0 0
    %390 = vperm.xlu0 %389, %v180
    %v391 = vpop.permute.xlu0 %390
    %394 = vset.pattern.permute.xlu0 0
    %395 = vperm.xlu0 %394, %v181
    %v396 = vpop.permute.xlu0 %395
    %399 = vset.pattern.permute.xlu0 0
    %400 = vperm.xlu0 %399, %v182
    %v401 = vpop.permute.xlu0 %400
    %404 = vset.pattern.permute.xlu0 0
    %405 = vperm.xlu0 %404, %v183
    %v406 = vpop.permute.xlu0 %405
    %409 = vset.pattern.permute.xlu0 0
    %410 = vperm.xlu0 %409, %v184
    %v411 = vpop.permute.xlu0 %410
    %414 = vset.pattern.permute.xlu0 0
    %415 = vperm.xlu0 %414, %v185
    %v416 = vpop.permute.xlu0 %415
    %419 = vset.pattern.permute.xlu0 0
    %420 = vperm.xlu0 %419, %v186
    %v421 = vpop.permute.xlu0 %420
    %424 = vset.pattern.permute.xlu0 0
    %425 = vperm.xlu0 %424, %v187
    %v426 = vpop.permute.xlu0 %425
    %429 = vset.pattern.permute.xlu0 0
    %430 = vperm.xlu0 %429, %v188
    %v431 = vpop.permute.xlu0 %430
    %434 = vset.pattern.permute.xlu0 0
    %435 = vperm.xlu0 %434, %v189
    %v436 = vpop.permute.xlu0 %435
    %439 = vset.pattern.permute.xlu0 0
    %440 = vperm.xlu0 %439, %v190
    %v441 = vpop.permute.xlu0 %440
    %444 = vset.pattern.permute.xlu0 0
    %445 = vperm.xlu0 %444, %v191
    %v446 = vpop.permute.xlu0 %445
    %449 = vset.pattern.permute.xlu0 0
    %450 = vperm.xlu0 %449, %v192
    %v451 = vpop.permute.xlu0 %450
    %454 = vset.pattern.permute.xlu0 0
    %455 = vperm.xlu0 %454, %v193
    %v456 = vpop.permute.xlu0 %455
    %459 = vset.pattern.permute.xlu0 0
    %460 = vperm.xlu0 %459, %v194
    %v461 = vpop.permute.xlu0 %460
    %464 = vset.pattern.permute.xlu0 0
    %465 = vperm.xlu0 %464, %v195
    %v466 = vpop.permute.xlu0 %465
    %469 = vset.pattern.permute.xlu0 0
    %470 = vperm.xlu0 %469, %v196
    %v471 = vpop.permute.xlu0 %470
    %474 = vset.pattern.permute.xlu0 0
    %475 = vperm.xlu0 %474, %v197
    %v476 = vpop.permute.xlu0 %475
    %479 = vset.pattern.permute.xlu0 0
    %480 = vperm.xlu0 %479, %v198
    %v481 = vpop.permute.xlu0 %480
    %484 = vset.pattern.permute.xlu0 0
    %485 = vperm.xlu0 %484, %v199
    %v486 = vpop.permute.xlu0 %485
    %489 = vset.pattern.permute.xlu0 0
    %490 = vperm.xlu0 %489, %v200
    %v491 = vpop.permute.xlu0 %490
    %494 = vset.pattern.permute.xlu0 0
    %495 = vperm.xlu0 %494, %v201
    %v496 = vpop.permute.xlu0 %495
    %499 = vset.pattern.permute.xlu0 0
    %500 = vperm.xlu0 %499, %v202
    %v501 = vpop.permute.xlu0 %500
    %504 = vset.pattern.permute.xlu0 0
    %505 = vperm.xlu0 %504, %v203
    %v506 = vpop.permute.xlu0 %505
    %509 = vset.pattern.permute.xlu0 0
    %510 = vperm.xlu0 %509, %v204
    %v511 = vpop.permute.xlu0 %510
    %514 = vset.pattern.permute.xlu0 0
    %515 = vperm.xlu0 %514, %v205
    %v516 = vpop.permute.xlu0 %515
    %519 = vset.pattern.permute.xlu0 0
    %520 = vperm.xlu0 %519, %v206
    %v521 = vpop.permute.xlu0 %520
    %524 = vset.pattern.permute.xlu0 0
    %525 = vperm.xlu0 %524, %v207
    %v526 = vpop.permute.xlu0 %525
    %v592 = vunpack.c.l.b16 %v76
    %v593 = vunpack.c.l.b16 %v77
    %v594 = vunpack.c.l.b16 %v78
    %v595 = vunpack.c.l.b16 %v79
    %v596 = vunpack.c.l.b16 %v80
    %v597 = vunpack.c.l.b16 %v81
    %v598 = vunpack.c.l.b16 %v82
    %v599 = vunpack.c.l.b16 %v83
    %v600 = vunpack.c.l.b16 %v84
    %v601 = vunpack.c.l.b16 %v85
    %v602 = vunpack.c.l.b16 %v86
    %v603 = vunpack.c.l.b16 %v87
    %v604 = vunpack.c.l.b16 %v88
    %v605 = vunpack.c.l.b16 %v89
    %v606 = vunpack.c.l.b16 %v90
    %v607 = vunpack.c.l.b16 %v91
    %v608 = vunpack.c.l.b16 %v92
    %v609 = vunpack.c.l.b16 %v93
    %v610 = vunpack.c.l.b16 %v94
    %v611 = vunpack.c.l.b16 %v95
    %v612 = vunpack.c.l.b16 %v96
    %v613 = vunpack.c.l.b16 %v97
    %v614 = vunpack.c.l.b16 %v98
    %v615 = vunpack.c.l.b16 %v99
    %v616 = vunpack.c.l.b16 %v100
    %v617 = vunpack.c.l.b16 %v101
    %v618 = vunpack.c.l.b16 %v102
    %v619 = vunpack.c.l.b16 %v103
    %v620 = vunpack.c.l.b16 %v104
    %v621 = vunpack.c.l.b16 %v105
    %v622 = vunpack.c.l.b16 %v106
    %v623 = vunpack.c.l.b16 %v107
    %v624 = vunpack.c.l.b16 %v108
    %v625 = vunpack.c.l.b16 %v109
    %v626 = vunpack.c.l.b16 %v110
    %v627 = vunpack.c.l.b16 %v111
    %v628 = vunpack.c.l.b16 %v112
    %v629 = vunpack.c.l.b16 %v113
    %v630 = vunpack.c.l.b16 %v114
    %v631 = vunpack.c.l.b16 %v115
    %v632 = vunpack.c.l.b16 %v116
    %v633 = vunpack.c.l.b16 %v117
    %v634 = vunpack.c.l.b16 %v118
    %v635 = vunpack.c.l.b16 %v119
    %v636 = vunpack.c.l.b16 %v120
    %v637 = vunpack.c.l.b16 %v121
    %v638 = vunpack.c.l.b16 %v122
    %v639 = vunpack.c.l.b16 %v123
    %v640 = vunpack.c.l.b16 %v124
    %v641 = vunpack.c.l.b16 %v125
    %v642 = vunpack.c.l.b16 %v126
    %v643 = vunpack.c.l.b16 %v127
    %v644 = vunpack.c.l.b16 %v128
    %v645 = vunpack.c.l.b16 %v129
    %v646 = vunpack.c.l.b16 %v130
    %v647 = vunpack.c.l.b16 %v131
    %v648 = vunpack.c.l.b16 %v132
    %v649 = vunpack.c.l.b16 %v133
    %v650 = vunpack.c.l.b16 %v134
    %v651 = vunpack.c.l.b16 %v135
    %v652 = vunpack.c.l.b16 %v136
    %v653 = vunpack.c.l.b16 %v137
    %v654 = vunpack.c.l.b16 %v138
    %v655 = vunpack.c.l.b16 %v139
    %v656 = vpack.c.b16 %v593, %v592
    %v657 = vpack.c.b16 %v595, %v594
    %v658 = vpack.c.b16 %v597, %v596
    %v659 = vpack.c.b16 %v599, %v598
    %v660 = vpack.c.b16 %v601, %v600
    %v661 = vpack.c.b16 %v603, %v602
    %v662 = vpack.c.b16 %v605, %v604
    %v663 = vpack.c.b16 %v607, %v606
    %v664 = vpack.c.b16 %v609, %v608
    %v665 = vpack.c.b16 %v611, %v610
    %v666 = vpack.c.b16 %v613, %v612
    %v667 = vpack.c.b16 %v615, %v614
    %v668 = vpack.c.b16 %v617, %v616
    %v669 = vpack.c.b16 %v619, %v618
    %v670 = vpack.c.b16 %v621, %v620
    %v671 = vpack.c.b16 %v623, %v622
    %v672 = vpack.c.b16 %v625, %v624
    %v673 = vpack.c.b16 %v627, %v626
    %v674 = vpack.c.b16 %v629, %v628
    %v675 = vpack.c.b16 %v631, %v630
    %v676 = vpack.c.b16 %v633, %v632
    %v677 = vpack.c.b16 %v635, %v634
    %v678 = vpack.c.b16 %v637, %v636
    %v679 = vpack.c.b16 %v639, %v638
    %v680 = vpack.c.b16 %v641, %v640
    %v681 = vpack.c.b16 %v643, %v642
    %v682 = vpack.c.b16 %v645, %v644
    %v683 = vpack.c.b16 %v647, %v646
    %v684 = vpack.c.b16 %v649, %v648
    %v685 = vpack.c.b16 %v651, %v650
    %v686 = vpack.c.b16 %v653, %v652
    %v687 = vpack.c.b16 %v655, %v654
    %vm688 = vcmask 261120
    %v690 = vsel %vm688, %v656, 0
    %v693 = vsel %vm688, %v657, 0
    %v696 = vsel %vm688, %v658, 0
    %v699 = vsel %vm688, %v659, 0
    %v702 = vsel %vm688, %v660, 0
    %v705 = vsel %vm688, %v661, 0
    %v708 = vsel %vm688, %v662, 0
    %v711 = vsel %vm688, %v663, 0
    %v714 = vsel %vm688, %v664, 0
    %v717 = vsel %vm688, %v665, 0
    %v720 = vsel %vm688, %v666, 0
    %v723 = vsel %vm688, %v667, 0
    %v726 = vsel %vm688, %v668, 0
    %v729 = vsel %vm688, %v669, 0
    %v732 = vsel %vm688, %v670, 0
    %v735 = vsel %vm688, %v671, 0
    %v738 = vsel %vm688, %v672, 0
    %v741 = vsel %vm688, %v673, 0
    %v744 = vsel %vm688, %v674, 0
    %v747 = vsel %vm688, %v675, 0
    %v750 = vsel %vm688, %v676, 0
    %v753 = vsel %vm688, %v677, 0
    %v756 = vsel %vm688, %v678, 0
    %v759 = vsel %vm688, %v679, 0
    %v762 = vsel %vm688, %v680, 0
    %v765 = vsel %vm688, %v681, 0
    %v768 = vsel %vm688, %v682, 0
    %v771 = vsel %vm688, %v683, 0
    %v774 = vsel %vm688, %v684, 0
    %v777 = vsel %vm688, %v685, 0
    %v780 = vsel %vm688, %v686, 0
    %v783 = vsel %vm688, %v687, 0
    %785 = vmatprep.subr.bf16.mxu0 %v141
    %786 = vmatpush1.bf16.msra.mxu0 %v140
    %787 = vmatprep.subr.bf16.mxu0 %v143
    %788 = vmatpush1.bf16.msra.mxu0 %v142
    %789 = vmatprep.subr.bf16.mxu0 0
    %790 = vmatpush1.bf16.msra.mxu0 0
    %791 = vmatprep.subr.bf16.mxu0 0
    %792 = vmatpush1.bf16.msra.mxu0 0
    %793 = vmatprep.subr.bf16.mxu0 0
    %794 = vmatpush1.bf16.msra.mxu0 0
    %795 = vmatprep.subr.bf16.mxu0 0
    %796 = vmatpush1.bf16.msra.mxu0 0
    %797 = vmatprep.subr.bf16.mxu0 0
    %798 = vmatpush1.bf16.msra.mxu0 0
    %799 = vmatprep.subr.bf16.mxu0 0
    %800 = vmatpush1.bf16.msra.mxu0 0
    %801 = vmatprep.subr.bf16.mxu0 0
    %802 = vmatpush1.bf16.msra.mxu0 0
    %803 = vmatprep.subr.bf16.mxu0 0
    %804 = vmatpush1.bf16.msra.mxu0 0
    %805 = vmatprep.subr.bf16.mxu0 0
    %806 = vmatpush1.bf16.msra.mxu0 0
    %807 = vmatprep.subr.bf16.mxu0 0
    %808 = vmatpush1.bf16.msra.mxu0 0
    %809 = vmatprep.subr.bf16.mxu0 0
    %810 = vmatpush1.bf16.msra.mxu0 0
    %811 = vmatprep.subr.bf16.mxu0 0
    %812 = vmatpush1.bf16.msra.mxu0 0
    %813 = vmatprep.subr.bf16.mxu0 0
    %814 = vmatpush1.bf16.msra.mxu0 0
    %815 = vmatprep.subr.bf16.mxu0 0
    %816 = vmatpush1.bf16.msra.mxu0 0
    %817 = vmatprep.mubr.bf16.mxu0 0
    %818 = vmatmul.mubr.bf16.gmra.mrb[0].mxu0 %v690
    %v819 = vpop.f32.mrb[0].mxu0
    %v820 = vadd.f32 %v211, %v819
    %v821 = vpop.f32.mrb[0].mxu0
    %v822 = vadd.f32 %v211, %v821
    %v823 = vpop.f32.mrb[0].mxu0
    %v824 = vadd.f32 %v216, %v823
    %v825 = vpop.f32.mrb[0].mxu0
    %v826 = vadd.f32 %v216, %v825
    %827 = vmatprep.mubr.bf16.mxu0 0
    %828 = vmatmul.mubr.bf16.gmra.mrb[0].mxu0 %v693
    %v829 = vpop.f32.mrb[0].mxu0
    %v830 = vadd.f32 %v221, %v829
    %v831 = vpop.f32.mrb[0].mxu0
    %v832 = vadd.f32 %v221, %v831
    %v833 = vpop.f32.mrb[0].mxu0
    %v834 = vadd.f32 %v226, %v833
    %v835 = vpop.f32.mrb[0].mxu0
    %v836 = vadd.f32 %v226, %v835
    %837 = vmatprep.mubr.bf16.mxu0 0
    %838 = vmatmul.mubr.bf16.gmra.mrb[0].mxu0 %v696
    %v839 = vpop.f32.mrb[0].mxu0
    %v840 = vadd.f32 %v231, %v839
    %v841 = vpop.f32.mrb[0].mxu0
    %v842 = vadd.f32 %v231, %v841
    %v843 = vpop.f32.mrb[0].mxu0
    %v844 = vadd.f32 %v236, %v843
    %v845 = vpop.f32.mrb[0].mxu0
    %v846 = vadd.f32 %v236, %v845
    %847 = vmatprep.mubr.bf16.mxu0 0
    %848 = vmatmul.mubr.bf16.gmra.mrb[0].mxu0 %v699
    %v849 = vpop.f32.mrb[0].mxu0
    %v850 = vadd.f32 %v241, %v849
    %v851 = vpop.f32.mrb[0].mxu0
    %v852 = vadd.f32 %v241, %v851
    %v853 = vpop.f32.mrb[0].mxu0
    %v854 = vadd.f32 %v246, %v853
    %v855 = vpop.f32.mrb[0].mxu0
    %v856 = vadd.f32 %v246, %v855
    %857 = vmatprep.mubr.bf16.mxu0 0
    %858 = vmatmul.mubr.bf16.gmra.mrb[0].mxu0 %v702
    %v859 = vpop.f32.mrb[0].mxu0
    %v860 = vadd.f32 %v251, %v859
    %v861 = vpop.f32.mrb[0].mxu0
    %v862 = vadd.f32 %v251, %v861
    %v863 = vpop.f32.mrb[0].mxu0
    %v864 = vadd.f32 %v256, %v863
    %v865 = vpop.f32.mrb[0].mxu0
    %v866 = vadd.f32 %v256, %v865
    %867 = vmatprep.mubr.bf16.mxu0 0
    %868 = vmatmul.mubr.bf16.gmra.mrb[0].mxu0 %v705
    %v869 = vpop.f32.mrb[0].mxu0
    %v870 = vadd.f32 %v261, %v869
    %v871 = vpop.f32.mrb[0].mxu0
    %v872 = vadd.f32 %v261, %v871
    %v873 = vpop.f32.mrb[0].mxu0
    %v874 = vadd.f32 %v266, %v873
    %v875 = vpop.f32.mrb[0].mxu0
    %v876 = vadd.f32 %v266, %v875
    %877 = vmatprep.mubr.bf16.mxu0 0
    %878 = vmatmul.mubr.bf16.gmra.mrb[0].mxu0 %v708
    %v879 = vpop.f32.mrb[0].mxu0
    %v880 = vadd.f32 %v271, %v879
    %v881 = vpop.f32.mrb[0].mxu0
    %v882 = vadd.f32 %v271, %v881
    %v883 = vpop.f32.mrb[0].mxu0
    %v884 = vadd.f32 %v276, %v883
    %v885 = vpop.f32.mrb[0].mxu0
    %v886 = vadd.f32 %v276, %v885
    %887 = vmatprep.mubr.bf16.mxu0 0
    %888 = vmatmul.mubr.bf16.gmra.mrb[0].mxu0 %v711
    %v889 = vpop.f32.mrb[0].mxu0
    %v890 = vadd.f32 %v281, %v889
    %v891 = vpop.f32.mrb[0].mxu0
    %v892 = vadd.f32 %v281, %v891
    %v893 = vpop.f32.mrb[0].mxu0
    %v894 = vadd.f32 %v286, %v893
    %v895 = vpop.f32.mrb[0].mxu0
    %v896 = vadd.f32 %v286, %v895
    %897 = vmatprep.mubr.bf16.mxu0 0
    %898 = vmatmul.mubr.bf16.gmra.mrb[0].mxu0 %v714
    %v899 = vpop.f32.mrb[0].mxu0
    %v900 = vadd.f32 %v291, %v899
    %v901 = vpop.f32.mrb[0].mxu0
    %v902 = vadd.f32 %v291, %v901
    %v903 = vpop.f32.mrb[0].mxu0
    %v904 = vadd.f32 %v296, %v903
    %v905 = vpop.f32.mrb[0].mxu0
    %v906 = vadd.f32 %v296, %v905
    %907 = vmatprep.mubr.bf16.mxu0 0
    %908 = vmatmul.mubr.bf16.gmra.mrb[0].mxu0 %v717
    %v909 = vpop.f32.mrb[0].mxu0
    %v910 = vadd.f32 %v301, %v909
    %v911 = vpop.f32.mrb[0].mxu0
    %v912 = vadd.f32 %v301, %v911
    %v913 = vpop.f32.mrb[0].mxu0
    %v914 = vadd.f32 %v306, %v913
    %v915 = vpop.f32.mrb[0].mxu0
    %v916 = vadd.f32 %v306, %v915
    %917 = vmatprep.mubr.bf16.mxu0 0
    %918 = vmatmul.mubr.bf16.gmra.mrb[0].mxu0 %v720
    %v919 = vpop.f32.mrb[0].mxu0
    %v920 = vadd.f32 %v311, %v919
    %v921 = vpop.f32.mrb[0].mxu0
    %v922 = vadd.f32 %v311, %v921
    %v923 = vpop.f32.mrb[0].mxu0
    %v924 = vadd.f32 %v316, %v923
    %v925 = vpop.f32.mrb[0].mxu0
    %v926 = vadd.f32 %v316, %v925
    %927 = vmatprep.mubr.bf16.mxu0 0
    %928 = vmatmul.mubr.bf16.gmra.mrb[0].mxu0 %v723
    %v929 = vpop.f32.mrb[0].mxu0
    %v930 = vadd.f32 %v321, %v929
    %v931 = vpop.f32.mrb[0].mxu0
    %v932 = vadd.f32 %v321, %v931
    %v933 = vpop.f32.mrb[0].mxu0
    %v934 = vadd.f32 %v326, %v933
    %v935 = vpop.f32.mrb[0].mxu0
    %v936 = vadd.f32 %v326, %v935
    %937 = vmatprep.mubr.bf16.mxu0 0
    %938 = vmatmul.mubr.bf16.gmra.mrb[0].mxu0 %v726
    %v939 = vpop.f32.mrb[0].mxu0
    %v940 = vadd.f32 %v331, %v939
    %v941 = vpop.f32.mrb[0].mxu0
    %v942 = vadd.f32 %v331, %v941
    %v943 = vpop.f32.mrb[0].mxu0
    %v944 = vadd.f32 %v336, %v943
    %v945 = vpop.f32.mrb[0].mxu0
    %v946 = vadd.f32 %v336, %v945
    %947 = vmatprep.mubr.bf16.mxu0 0
    %948 = vmatmul.mubr.bf16.gmra.mrb[0].mxu0 %v729
    %v949 = vpop.f32.mrb[0].mxu0
    %v950 = vadd.f32 %v341, %v949
    %v951 = vpop.f32.mrb[0].mxu0
    %v952 = vadd.f32 %v341, %v951
    %v953 = vpop.f32.mrb[0].mxu0
    %v954 = vadd.f32 %v346, %v953
    %v955 = vpop.f32.mrb[0].mxu0
    %v956 = vadd.f32 %v346, %v955
    %957 = vmatprep.mubr.bf16.mxu0 0
    %958 = vmatmul.mubr.bf16.gmra.mrb[0].mxu0 %v732
    %v959 = vpop.f32.mrb[0].mxu0
    %v960 = vadd.f32 %v351, %v959
    %v961 = vpop.f32.mrb[0].mxu0
    %v962 = vadd.f32 %v351, %v961
    %v963 = vpop.f32.mrb[0].mxu0
    %v964 = vadd.f32 %v356, %v963
    %v965 = vpop.f32.mrb[0].mxu0
    %v966 = vadd.f32 %v356, %v965
    %967 = vmatprep.mubr.bf16.mxu0 0
    %968 = vmatmul.mubr.bf16.gmra.mrb[0].mxu0 %v735
    %v969 = vpop.f32.mrb[0].mxu0
    %v970 = vadd.f32 %v361, %v969
    %v971 = vpop.f32.mrb[0].mxu0
    %v972 = vadd.f32 %v361, %v971
    %v973 = vpop.f32.mrb[0].mxu0
    %v974 = vadd.f32 %v366, %v973
    %v975 = vpop.f32.mrb[0].mxu0
    %v976 = vadd.f32 %v366, %v975
    %977 = vmatprep.mubr.bf16.mxu0 0
    %978 = vmatmul.mubr.bf16.gmra.mrb[0].mxu0 %v738
    %v979 = vpop.f32.mrb[0].mxu0
    %v980 = vadd.f32 %v371, %v979
    %v981 = vpop.f32.mrb[0].mxu0
    %v982 = vadd.f32 %v371, %v981
    %v983 = vpop.f32.mrb[0].mxu0
    %v984 = vadd.f32 %v376, %v983
    %v985 = vpop.f32.mrb[0].mxu0
    %v986 = vadd.f32 %v376, %v985
    %987 = vmatprep.mubr.bf16.mxu0 0
    %988 = vmatmul.mubr.bf16.gmra.mrb[0].mxu0 %v741
    %v989 = vpop.f32.mrb[0].mxu0
    %v990 = vadd.f32 %v381, %v989
    %v991 = vpop.f32.mrb[0].mxu0
    %v992 = vadd.f32 %v381, %v991
    %v993 = vpop.f32.mrb[0].mxu0
    %v994 = vadd.f32 %v386, %v993
    %v995 = vpop.f32.mrb[0].mxu0
    %v996 = vadd.f32 %v386, %v995
    %997 = vmatprep.mubr.bf16.mxu0 0
    %998 = vmatmul.mubr.bf16.gmra.mrb[0].mxu0 %v744
    %v999 = vpop.f32.mrb[0].mxu0
    %v1000 = vadd.f32 %v391, %v999
    %v1001 = vpop.f32.mrb[0].mxu0
    %v1002 = vadd.f32 %v391, %v1001
    %v1003 = vpop.f32.mrb[0].mxu0
    %v1004 = vadd.f32 %v396, %v1003
    %v1005 = vpop.f32.mrb[0].mxu0
    %v1006 = vadd.f32 %v396, %v1005
    %1007 = vmatprep.mubr.bf16.mxu0 0
    %1008 = vmatmul.mubr.bf16.gmra.mrb[0].mxu0 %v747
    %v1009 = vpop.f32.mrb[0].mxu0
    %v1010 = vadd.f32 %v401, %v1009
    %v1011 = vpop.f32.mrb[0].mxu0
    %v1012 = vadd.f32 %v401, %v1011
    %v1013 = vpop.f32.mrb[0].mxu0
    %v1014 = vadd.f32 %v406, %v1013
    %v1015 = vpop.f32.mrb[0].mxu0
    %v1016 = vadd.f32 %v406, %v1015
    %1017 = vmatprep.mubr.bf16.mxu0 0
    %1018 = vmatmul.mubr.bf16.gmra.mrb[0].mxu0 %v750
    %v1019 = vpop.f32.mrb[0].mxu0
    %v1020 = vadd.f32 %v411, %v1019
    %v1021 = vpop.f32.mrb[0].mxu0
    %v1022 = vadd.f32 %v411, %v1021
    %v1023 = vpop.f32.mrb[0].mxu0
    %v1024 = vadd.f32 %v416, %v1023
    %v1025 = vpop.f32.mrb[0].mxu0
    %v1026 = vadd.f32 %v416, %v1025
    %1027 = vmatprep.mubr.bf16.mxu0 0
    %1028 = vmatmul.mubr.bf16.gmra.mrb[0].mxu0 %v753
    %v1029 = vpop.f32.mrb[0].mxu0
    %v1030 = vadd.f32 %v421, %v1029
    %v1031 = vpop.f32.mrb[0].mxu0
    %v1032 = vadd.f32 %v421, %v1031
    %v1033 = vpop.f32.mrb[0].mxu0
    %v1034 = vadd.f32 %v426, %v1033
    %v1035 = vpop.f32.mrb[0].mxu0
    %v1036 = vadd.f32 %v426, %v1035
    %1037 = vmatprep.mubr.bf16.mxu0 0
    %1038 = vmatmul.mubr.bf16.gmra.mrb[0].mxu0 %v756
    %v1039 = vpop.f32.mrb[0].mxu0
    %v1040 = vadd.f32 %v431, %v1039
    %v1041 = vpop.f32.mrb[0].mxu0
    %v1042 = vadd.f32 %v431, %v1041
    %v1043 = vpop.f32.mrb[0].mxu0
    %v1044 = vadd.f32 %v436, %v1043
    %v1045 = vpop.f32.mrb[0].mxu0
    %v1046 = vadd.f32 %v436, %v1045
    %1047 = vmatprep.mubr.bf16.mxu0 0
    %1048 = vmatmul.mubr.bf16.gmra.mrb[0].mxu0 %v759
    %v1049 = vpop.f32.mrb[0].mxu0
    %v1050 = vadd.f32 %v441, %v1049
    %v1051 = vpop.f32.mrb[0].mxu0
    %v1052 = vadd.f32 %v441, %v1051
    %v1053 = vpop.f32.mrb[0].mxu0
    %v1054 = vadd.f32 %v446, %v1053
    %v1055 = vpop.f32.mrb[0].mxu0
    %v1056 = vadd.f32 %v446, %v1055
    %1057 = vmatprep.mubr.bf16.mxu0 0
    %1058 = vmatmul.mubr.bf16.gmra.mrb[0].mxu0 %v762
    %v1059 = vpop.f32.mrb[0].mxu0
    %v1060 = vadd.f32 %v451, %v1059
    %v1061 = vpop.f32.mrb[0].mxu0
    %v1062 = vadd.f32 %v451, %v1061
    %v1063 = vpop.f32.mrb[0].mxu0
    %v1064 = vadd.f32 %v456, %v1063
    %v1065 = vpop.f32.mrb[0].mxu0
    %v1066 = vadd.f32 %v456, %v1065
    %1067 = vmatprep.mubr.bf16.mxu0 0
    %1068 = vmatmul.mubr.bf16.gmra.mrb[0].mxu0 %v765
    %v1069 = vpop.f32.mrb[0].mxu0
    %v1070 = vadd.f32 %v461, %v1069
    %v1071 = vpop.f32.mrb[0].mxu0
    %v1072 = vadd.f32 %v461, %v1071
    %v1073 = vpop.f32.mrb[0].mxu0
    %v1074 = vadd.f32 %v466, %v1073
    %v1075 = vpop.f32.mrb[0].mxu0
    %v1076 = vadd.f32 %v466, %v1075
    %1077 = vmatprep.mubr.bf16.mxu0 0
    %1078 = vmatmul.mubr.bf16.gmra.mrb[0].mxu0 %v768
    %v1079 = vpop.f32.mrb[0].mxu0
    %v1080 = vadd.f32 %v471, %v1079
    %v1081 = vpop.f32.mrb[0].mxu0
    %v1082 = vadd.f32 %v471, %v1081
    %v1083 = vpop.f32.mrb[0].mxu0
    %v1084 = vadd.f32 %v476, %v1083
    %v1085 = vpop.f32.mrb[0].mxu0
    %v1086 = vadd.f32 %v476, %v1085
    %1087 = vmatprep.mubr.bf16.mxu0 0
    %1088 = vmatmul.mubr.bf16.gmra.mrb[0].mxu0 %v771
    %v1089 = vpop.f32.mrb[0].mxu0
    %v1090 = vadd.f32 %v481, %v1089
    %v1091 = vpop.f32.mrb[0].mxu0
    %v1092 = vadd.f32 %v481, %v1091
    %v1093 = vpop.f32.mrb[0].mxu0
    %v1094 = vadd.f32 %v486, %v1093
    %v1095 = vpop.f32.mrb[0].mxu0
    %v1096 = vadd.f32 %v486, %v1095
    %1097 = vmatprep.mubr.bf16.mxu0 0
    %1098 = vmatmul.mubr.bf16.gmra.mrb[0].mxu0 %v774
    %v1099 = vpop.f32.mrb[0].mxu0
    %v1100 = vadd.f32 %v491, %v1099
    %v1101 = vpop.f32.mrb[0].mxu0
    %v1102 = vadd.f32 %v491, %v1101
    %v1103 = vpop.f32.mrb[0].mxu0
    %v1104 = vadd.f32 %v496, %v1103
    %v1105 = vpop.f32.mrb[0].mxu0
    %v1106 = vadd.f32 %v496, %v1105
    %1107 = vmatprep.mubr.bf16.mxu0 0
    %1108 = vmatmul.mubr.bf16.gmra.mrb[0].mxu0 %v777
    %v1109 = vpop.f32.mrb[0].mxu0
    %v1110 = vadd.f32 %v501, %v1109
    %v1111 = vpop.f32.mrb[0].mxu0
    %v1112 = vadd.f32 %v501, %v1111
    %v1113 = vpop.f32.mrb[0].mxu0
    %v1114 = vadd.f32 %v506, %v1113
    %v1115 = vpop.f32.mrb[0].mxu0
    %v1116 = vadd.f32 %v506, %v1115
    %1117 = vmatprep.mubr.bf16.mxu0 0
    %1118 = vmatmul.mubr.bf16.gmra.mrb[0].mxu0 %v780
    %v1119 = vpop.f32.mrb[0].mxu0
    %v1120 = vadd.f32 %v511, %v1119
    %v1121 = vpop.f32.mrb[0].mxu0
    %v1122 = vadd.f32 %v511, %v1121
    %v1123 = vpop.f32.mrb[0].mxu0
    %v1124 = vadd.f32 %v516, %v1123
    %v1125 = vpop.f32.mrb[0].mxu0
    %v1126 = vadd.f32 %v516, %v1125
    %1127 = vmatprep.mubr.bf16.mxu0 0
    %1128 = vmatmul.mubr.bf16.gmra.mrb[0].mxu0 %v783
    %v1129 = vpop.f32.mrb[0].mxu0
    %v1130 = vadd.f32 %v521, %v1129
    %v1131 = vpop.f32.mrb[0].mxu0
    %v1132 = vadd.f32 %v521, %v1131
    %v1133 = vpop.f32.mrb[0].mxu0
    %v1134 = vadd.f32 %v526, %v1133
    %v1135 = vpop.f32.mrb[0].mxu0
    %v1136 = vadd.f32 %v526, %v1135
    %1137 = vdwg.mxu0
    %vm1138 = vcmp.ge.f32.partialorder %v820, 0.0
    %vm1139 = vcmp.ge.f32.partialorder %v822, 0.0
    %vm1140 = vcmp.ge.f32.partialorder %v824, 0.0
    %vm1141 = vcmp.ge.f32.partialorder %v826, 0.0
    %vm1142 = vcmp.ge.f32.partialorder %v830, 0.0
    %vm1143 = vcmp.ge.f32.partialorder %v832, 0.0
    %vm1144 = vcmp.ge.f32.partialorder %v834, 0.0
    %vm1145 = vcmp.ge.f32.partialorder %v836, 0.0
    %vm1146 = vcmp.ge.f32.partialorder %v840, 0.0
    %vm1147 = vcmp.ge.f32.partialorder %v842, 0.0
    %vm1148 = vcmp.ge.f32.partialorder %v844, 0.0
    %vm1149 = vcmp.ge.f32.partialorder %v846, 0.0
    %vm1150 = vcmp.ge.f32.partialorder %v850, 0.0
    %vm1151 = vcmp.ge.f32.partialorder %v852, 0.0
    %vm1152 = vcmp.ge.f32.partialorder %v854, 0.0
    %vm1153 = vcmp.ge.f32.partialorder %v856, 0.0
    %vm1154 = vcmp.ge.f32.partialorder %v860, 0.0
    %vm1155 = vcmp.ge.f32.partialorder %v862, 0.0
    %vm1156 = vcmp.ge.f32.partialorder %v864, 0.0
    %vm1157 = vcmp.ge.f32.partialorder %v866, 0.0
    %vm1158 = vcmp.ge.f32.partialorder %v870, 0.0
    %vm1159 = vcmp.ge.f32.partialorder %v872, 0.0
    %vm1160 = vcmp.ge.f32.partialorder %v874, 0.0
    %vm1161 = vcmp.ge.f32.partialorder %v876, 0.0
    %vm1162 = vcmp.ge.f32.partialorder %v880, 0.0
    %vm1163 = vcmp.ge.f32.partialorder %v882, 0.0
    %vm1164 = vcmp.ge.f32.partialorder %v884, 0.0
    %vm1165 = vcmp.ge.f32.partialorder %v886, 0.0
    %vm1166 = vcmp.ge.f32.partialorder %v890, 0.0
    %vm1167 = vcmp.ge.f32.partialorder %v892, 0.0
    %vm1168 = vcmp.ge.f32.partialorder %v894, 0.0
    %vm1169 = vcmp.ge.f32.partialorder %v896, 0.0
    %vm1170 = vcmp.ge.f32.partialorder %v900, 0.0
    %vm1171 = vcmp.ge.f32.partialorder %v902, 0.0
    %vm1172 = vcmp.ge.f32.partialorder %v904, 0.0
    %vm1173 = vcmp.ge.f32.partialorder %v906, 0.0
    %vm1174 = vcmp.ge.f32.partialorder %v910, 0.0
    %vm1175 = vcmp.ge.f32.partialorder %v912, 0.0
    %vm1176 = vcmp.ge.f32.partialorder %v914, 0.0
    %vm1177 = vcmp.ge.f32.partialorder %v916, 0.0
    %vm1178 = vcmp.ge.f32.partialorder %v920, 0.0
    %vm1179 = vcmp.ge.f32.partialorder %v922, 0.0
    %vm1180 = vcmp.ge.f32.partialorder %v924, 0.0
    %vm1181 = vcmp.ge.f32.partialorder %v926, 0.0
    %vm1182 = vcmp.ge.f32.partialorder %v930, 0.0
    %vm1183 = vcmp.ge.f32.partialorder %v932, 0.0
    %vm1184 = vcmp.ge.f32.partialorder %v934, 0.0
    %vm1185 = vcmp.ge.f32.partialorder %v936, 0.0
    %vm1186 = vcmp.ge.f32.partialorder %v940, 0.0
    %vm1187 = vcmp.ge.f32.partialorder %v942, 0.0
    %vm1188 = vcmp.ge.f32.partialorder %v944, 0.0
    %vm1189 = vcmp.ge.f32.partialorder %v946, 0.0
    %vm1190 = vcmp.ge.f32.partialorder %v950, 0.0
    %vm1191 = vcmp.ge.f32.partialorder %v952, 0.0
    %vm1192 = vcmp.ge.f32.partialorder %v954, 0.0
    %vm1193 = vcmp.ge.f32.partialorder %v956, 0.0
    %vm1194 = vcmp.ge.f32.partialorder %v960, 0.0
    %vm1195 = vcmp.ge.f32.partialorder %v962, 0.0
    %vm1196 = vcmp.ge.f32.partialorder %v964, 0.0
    %vm1197 = vcmp.ge.f32.partialorder %v966, 0.0
    %vm1198 = vcmp.ge.f32.partialorder %v970, 0.0
    %vm1199 = vcmp.ge.f32.partialorder %v972, 0.0
    %vm1200 = vcmp.ge.f32.partialorder %v974, 0.0
    %vm1201 = vcmp.ge.f32.partialorder %v976, 0.0
    %vm1202 = vcmp.ge.f32.partialorder %v980, 0.0
    %vm1203 = vcmp.ge.f32.partialorder %v982, 0.0
    %vm1204 = vcmp.ge.f32.partialorder %v984, 0.0
    %vm1205 = vcmp.ge.f32.partialorder %v986, 0.0
    %vm1206 = vcmp.ge.f32.partialorder %v990, 0.0
    %vm1207 = vcmp.ge.f32.partialorder %v992, 0.0
    %vm1208 = vcmp.ge.f32.partialorder %v994, 0.0
    %vm1209 = vcmp.ge.f32.partialorder %v996, 0.0
    %vm1210 = vcmp.ge.f32.partialorder %v1000, 0.0
    %vm1211 = vcmp.ge.f32.partialorder %v1002, 0.0
    %vm1212 = vcmp.ge.f32.partialorder %v1004, 0.0
    %vm1213 = vcmp.ge.f32.partialorder %v1006, 0.0
    %vm1214 = vcmp.ge.f32.partialorder %v1010, 0.0
    %vm1215 = vcmp.ge.f32.partialorder %v1012, 0.0
    %vm1216 = vcmp.ge.f32.partialorder %v1014, 0.0
    %vm1217 = vcmp.ge.f32.partialorder %v1016, 0.0
    %vm1218 = vcmp.ge.f32.partialorder %v1020, 0.0
    %vm1219 = vcmp.ge.f32.partialorder %v1022, 0.0
    %vm1220 = vcmp.ge.f32.partialorder %v1024, 0.0
    %vm1221 = vcmp.ge.f32.partialorder %v1026, 0.0
    %vm1222 = vcmp.ge.f32.partialorder %v1030, 0.0
    %vm1223 = vcmp.ge.f32.partialorder %v1032, 0.0
    %vm1224 = vcmp.ge.f32.partialorder %v1034, 0.0
    %vm1225 = vcmp.ge.f32.partialorder %v1036, 0.0
    %vm1226 = vcmp.ge.f32.partialorder %v1040, 0.0
    %vm1227 = vcmp.ge.f32.partialorder %v1042, 0.0
    %vm1228 = vcmp.ge.f32.partialorder %v1044, 0.0
    %vm1229 = vcmp.ge.f32.partialorder %v1046, 0.0
    %vm1230 = vcmp.ge.f32.partialorder %v1050, 0.0
    %vm1231 = vcmp.ge.f32.partialorder %v1052, 0.0
    %vm1232 = vcmp.ge.f32.partialorder %v1054, 0.0
    %vm1233 = vcmp.ge.f32.partialorder %v1056, 0.0
    %vm1234 = vcmp.ge.f32.partialorder %v1060, 0.0
    %vm1235 = vcmp.ge.f32.partialorder %v1062, 0.0
    %vm1236 = vcmp.ge.f32.partialorder %v1064, 0.0
    %vm1237 = vcmp.ge.f32.partialorder %v1066, 0.0
    %vm1238 = vcmp.ge.f32.partialorder %v1070, 0.0
    %vm1239 = vcmp.ge.f32.partialorder %v1072, 0.0
    %vm1240 = vcmp.ge.f32.partialorder %v1074, 0.0
    %vm1241 = vcmp.ge.f32.partialorder %v1076, 0.0
    %vm1242 = vcmp.ge.f32.partialorder %v1080, 0.0
    %vm1243 = vcmp.ge.f32.partialorder %v1082, 0.0
    %vm1244 = vcmp.ge.f32.partialorder %v1084, 0.0
    %vm1245 = vcmp.ge.f32.partialorder %v1086, 0.0
    %vm1246 = vcmp.ge.f32.partialorder %v1090, 0.0
    %vm1247 = vcmp.ge.f32.partialorder %v1092, 0.0
    %vm1248 = vcmp.ge.f32.partialorder %v1094, 0.0
    %vm1249 = vcmp.ge.f32.partialorder %v1096, 0.0
    %vm1250 = vcmp.ge.f32.partialorder %v1100, 0.0
    %vm1251 = vcmp.ge.f32.partialorder %v1102, 0.0
    %vm1252 = vcmp.ge.f32.partialorder %v1104, 0.0
    %vm1253 = vcmp.ge.f32.partialorder %v1106, 0.0
    %vm1254 = vcmp.ge.f32.partialorder %v1110, 0.0
    %vm1255 = vcmp.ge.f32.partialorder %v1112, 0.0
    %vm1256 = vcmp.ge.f32.partialorder %v1114, 0.0
    %vm1257 = vcmp.ge.f32.partialorder %v1116, 0.0
    %vm1258 = vcmp.ge.f32.partialorder %v1120, 0.0
    %vm1259 = vcmp.ge.f32.partialorder %v1122, 0.0
    %vm1260 = vcmp.ge.f32.partialorder %v1124, 0.0
    %vm1261 = vcmp.ge.f32.partialorder %v1126, 0.0
    %vm1262 = vcmp.ge.f32.partialorder %v1130, 0.0
    %vm1263 = vcmp.ge.f32.partialorder %v1132, 0.0
    %vm1264 = vcmp.ge.f32.partialorder %v1134, 0.0
    %vm1265 = vcmp.ge.f32.partialorder %v1136, 0.0
    %v1266 = vmul.f32 %v820, 0.2
    %v1267 = vmul.f32 %v822, 0.2
    %v1268 = vmul.f32 %v824, 0.2
    %v1269 = vmul.f32 %v826, 0.2
    %v1270 = vmul.f32 %v830, 0.2
    %v1271 = vmul.f32 %v832, 0.2
    %v1272 = vmul.f32 %v834, 0.2
    %v1273 = vmul.f32 %v836, 0.2
    %v1274 = vmul.f32 %v840, 0.2
    %v1275 = vmul.f32 %v842, 0.2
    %v1276 = vmul.f32 %v844, 0.2
    %v1277 = vmul.f32 %v846, 0.2
    %v1278 = vmul.f32 %v850, 0.2
    %v1279 = vmul.f32 %v852, 0.2
    %v1280 = vmul.f32 %v854, 0.2
    %v1281 = vmul.f32 %v856, 0.2
    %v1282 = vmul.f32 %v860, 0.2
    %v1283 = vmul.f32 %v862, 0.2
    %v1284 = vmul.f32 %v864, 0.2
    %v1285 = vmul.f32 %v866, 0.2
    %v1286 = vmul.f32 %v870, 0.2
    %v1287 = vmul.f32 %v872, 0.2
    %v1288 = vmul.f32 %v874, 0.2
    %v1289 = vmul.f32 %v876, 0.2
    %v1290 = vmul.f32 %v880, 0.2
    %v1291 = vmul.f32 %v882, 0.2
    %v1292 = vmul.f32 %v884, 0.2
    %v1293 = vmul.f32 %v886, 0.2
    %v1294 = vmul.f32 %v890, 0.2
    %v1295 = vmul.f32 %v892, 0.2
    %v1296 = vmul.f32 %v894, 0.2
    %v1297 = vmul.f32 %v896, 0.2
    %v1298 = vmul.f32 %v900, 0.2
    %v1299 = vmul.f32 %v902, 0.2
    %v1300 = vmul.f32 %v904, 0.2
    %v1301 = vmul.f32 %v906, 0.2
    %v1302 = vmul.f32 %v910, 0.2
    %v1303 = vmul.f32 %v912, 0.2
    %v1304 = vmul.f32 %v914, 0.2
    %v1305 = vmul.f32 %v916, 0.2
    %v1306 = vmul.f32 %v920, 0.2
    %v1307 = vmul.f32 %v922, 0.2
    %v1308 = vmul.f32 %v924, 0.2
    %v1309 = vmul.f32 %v926, 0.2
    %v1310 = vmul.f32 %v930, 0.2
    %v1311 = vmul.f32 %v932, 0.2
    %v1312 = vmul.f32 %v934, 0.2
    %v1313 = vmul.f32 %v936, 0.2
    %v1314 = vmul.f32 %v940, 0.2
    %v1315 = vmul.f32 %v942, 0.2
    %v1316 = vmul.f32 %v944, 0.2
    %v1317 = vmul.f32 %v946, 0.2
    %v1318 = vmul.f32 %v950, 0.2
    %v1319 = vmul.f32 %v952, 0.2
    %v1320 = vmul.f32 %v954, 0.2
    %v1321 = vmul.f32 %v956, 0.2
    %v1322 = vmul.f32 %v960, 0.2
    %v1323 = vmul.f32 %v962, 0.2
    %v1324 = vmul.f32 %v964, 0.2
    %v1325 = vmul.f32 %v966, 0.2
    %v1326 = vmul.f32 %v970, 0.2
    %v1327 = vmul.f32 %v972, 0.2
    %v1328 = vmul.f32 %v974, 0.2
    %v1329 = vmul.f32 %v976, 0.2
    %v1330 = vmul.f32 %v980, 0.2
    %v1331 = vmul.f32 %v982, 0.2
    %v1332 = vmul.f32 %v984, 0.2
    %v1333 = vmul.f32 %v986, 0.2
    %v1334 = vmul.f32 %v990, 0.2
    %v1335 = vmul.f32 %v992, 0.2
    %v1336 = vmul.f32 %v994, 0.2
    %v1337 = vmul.f32 %v996, 0.2
    %v1338 = vmul.f32 %v1000, 0.2
    %v1339 = vmul.f32 %v1002, 0.2
    %v1340 = vmul.f32 %v1004, 0.2
    %v1341 = vmul.f32 %v1006, 0.2
    %v1342 = vmul.f32 %v1010, 0.2
    %v1343 = vmul.f32 %v1012, 0.2
    %v1344 = vmul.f32 %v1014, 0.2
    %v1345 = vmul.f32 %v1016, 0.2
    %v1346 = vmul.f32 %v1020, 0.2
    %v1347 = vmul.f32 %v1022, 0.2
    %v1348 = vmul.f32 %v1024, 0.2
    %v1349 = vmul.f32 %v1026, 0.2
    %v1350 = vmul.f32 %v1030, 0.2
    %v1351 = vmul.f32 %v1032, 0.2
    %v1352 = vmul.f32 %v1034, 0.2
    %v1353 = vmul.f32 %v1036, 0.2
    %v1354 = vmul.f32 %v1040, 0.2
    %v1355 = vmul.f32 %v1042, 0.2
    %v1356 = vmul.f32 %v1044, 0.2
    %v1357 = vmul.f32 %v1046, 0.2
    %v1358 = vmul.f32 %v1050, 0.2
    %v1359 = vmul.f32 %v1052, 0.2
    %v1360 = vmul.f32 %v1054, 0.2
    %v1361 = vmul.f32 %v1056, 0.2
    %v1362 = vmul.f32 %v1060, 0.2
    %v1363 = vmul.f32 %v1062, 0.2
    %v1364 = vmul.f32 %v1064, 0.2
    %v1365 = vmul.f32 %v1066, 0.2
    %v1366 = vmul.f32 %v1070, 0.2
    %v1367 = vmul.f32 %v1072, 0.2
    %v1368 = vmul.f32 %v1074, 0.2
    %v1369 = vmul.f32 %v1076, 0.2
    %v1370 = vmul.f32 %v1080, 0.2
    %v1371 = vmul.f32 %v1082, 0.2
    %v1372 = vmul.f32 %v1084, 0.2
    %v1373 = vmul.f32 %v1086, 0.2
    %v1374 = vmul.f32 %v1090, 0.2
    %v1375 = vmul.f32 %v1092, 0.2
    %v1376 = vmul.f32 %v1094, 0.2
    %v1377 = vmul.f32 %v1096, 0.2
    %v1378 = vmul.f32 %v1100, 0.2
    %v1379 = vmul.f32 %v1102, 0.2
    %v1380 = vmul.f32 %v1104, 0.2
    %v1381 = vmul.f32 %v1106, 0.2
    %v1382 = vmul.f32 %v1110, 0.2
    %v1383 = vmul.f32 %v1112, 0.2
    %v1384 = vmul.f32 %v1114, 0.2
    %v1385 = vmul.f32 %v1116, 0.2
    %v1386 = vmul.f32 %v1120, 0.2
    %v1387 = vmul.f32 %v1122, 0.2
    %v1388 = vmul.f32 %v1124, 0.2
    %v1389 = vmul.f32 %v1126, 0.2
    %v1390 = vmul.f32 %v1130, 0.2
    %v1391 = vmul.f32 %v1132, 0.2
    %v1392 = vmul.f32 %v1134, 0.2
    %v1393 = vmul.f32 %v1136, 0.2
    %v1394 = vsel %vm1138, %v820, %v1266
    %v1395 = vsel %vm1139, %v822, %v1267
    %v1396 = vsel %vm1140, %v824, %v1268
    %v1397 = vsel %vm1141, %v826, %v1269
    %v1398 = vsel %vm1142, %v830, %v1270
    %v1399 = vsel %vm1143, %v832, %v1271
    %v1400 = vsel %vm1144, %v834, %v1272
    %v1401 = vsel %vm1145, %v836, %v1273
    %v1402 = vsel %vm1146, %v840, %v1274
    %v1403 = vsel %vm1147, %v842, %v1275
    %v1404 = vsel %vm1148, %v844, %v1276
    %v1405 = vsel %vm1149, %v846, %v1277
    %v1406 = vsel %vm1150, %v850, %v1278
    %v1407 = vsel %vm1151, %v852, %v1279
    %v1408 = vsel %vm1152, %v854, %v1280
    %v1409 = vsel %vm1153, %v856, %v1281
    %v1410 = vsel %vm1154, %v860, %v1282
    %v1411 = vsel %vm1155, %v862, %v1283
    %v1412 = vsel %vm1156, %v864, %v1284
    %v1413 = vsel %vm1157, %v866, %v1285
    %v1414 = vsel %vm1158, %v870, %v1286
    %v1415 = vsel %vm1159, %v872, %v1287
    %v1416 = vsel %vm1160, %v874, %v1288
    %v1417 = vsel %vm1161, %v876, %v1289
    %v1418 = vsel %vm1162, %v880, %v1290
    %v1419 = vsel %vm1163, %v882, %v1291
    %v1420 = vsel %vm1164, %v884, %v1292
    %v1421 = vsel %vm1165, %v886, %v1293
    %v1422 = vsel %vm1166, %v890, %v1294
    %v1423 = vsel %vm1167, %v892, %v1295
    %v1424 = vsel %vm1168, %v894, %v1296
    %v1425 = vsel %vm1169, %v896, %v1297
    %v1426 = vsel %vm1170, %v900, %v1298
    %v1427 = vsel %vm1171, %v902, %v1299
    %v1428 = vsel %vm1172, %v904, %v1300
    %v1429 = vsel %vm1173, %v906, %v1301
    %v1430 = vsel %vm1174, %v910, %v1302
    %v1431 = vsel %vm1175, %v912, %v1303
    %v1432 = vsel %vm1176, %v914, %v1304
    %v1433 = vsel %vm1177, %v916, %v1305
    %v1434 = vsel %vm1178, %v920, %v1306
    %v1435 = vsel %vm1179, %v922, %v1307
    %v1436 = vsel %vm1180, %v924, %v1308
    %v1437 = vsel %vm1181, %v926, %v1309
    %v1438 = vsel %vm1182, %v930, %v1310
    %v1439 = vsel %vm1183, %v932, %v1311
    %v1440 = vsel %vm1184, %v934, %v1312
    %v1441 = vsel %vm1185, %v936, %v1313
    %v1442 = vsel %vm1186, %v940, %v1314
    %v1443 = vsel %vm1187, %v942, %v1315
    %v1444 = vsel %vm1188, %v944, %v1316
    %v1445 = vsel %vm1189, %v946, %v1317
    %v1446 = vsel %vm1190, %v950, %v1318
    %v1447 = vsel %vm1191, %v952, %v1319
    %v1448 = vsel %vm1192, %v954, %v1320
    %v1449 = vsel %vm1193, %v956, %v1321
    %v1450 = vsel %vm1194, %v960, %v1322
    %v1451 = vsel %vm1195, %v962, %v1323
    %v1452 = vsel %vm1196, %v964, %v1324
    %v1453 = vsel %vm1197, %v966, %v1325
    %v1454 = vsel %vm1198, %v970, %v1326
    %v1455 = vsel %vm1199, %v972, %v1327
    %v1456 = vsel %vm1200, %v974, %v1328
    %v1457 = vsel %vm1201, %v976, %v1329
    %v1458 = vsel %vm1202, %v980, %v1330
    %v1459 = vsel %vm1203, %v982, %v1331
    %v1460 = vsel %vm1204, %v984, %v1332
    %v1461 = vsel %vm1205, %v986, %v1333
    %v1462 = vsel %vm1206, %v990, %v1334
    %v1463 = vsel %vm1207, %v992, %v1335
    %v1464 = vsel %vm1208, %v994, %v1336
    %v1465 = vsel %vm1209, %v996, %v1337
    %v1466 = vsel %vm1210, %v1000, %v1338
    %v1467 = vsel %vm1211, %v1002, %v1339
    %v1468 = vsel %vm1212, %v1004, %v1340
    %v1469 = vsel %vm1213, %v1006, %v1341
    %v1470 = vsel %vm1214, %v1010, %v1342
    %v1471 = vsel %vm1215, %v1012, %v1343
    %v1472 = vsel %vm1216, %v1014, %v1344
    %v1473 = vsel %vm1217, %v1016, %v1345
    %v1474 = vsel %vm1218, %v1020, %v1346
    %v1475 = vsel %vm1219, %v1022, %v1347
    %v1476 = vsel %vm1220, %v1024, %v1348
    %v1477 = vsel %vm1221, %v1026, %v1349
    %v1478 = vsel %vm1222, %v1030, %v1350
    %v1479 = vsel %vm1223, %v1032, %v1351
    %v1480 = vsel %vm1224, %v1034, %v1352
    %v1481 = vsel %vm1225, %v1036, %v1353
    %v1482 = vsel %vm1226, %v1040, %v1354
    %v1483 = vsel %vm1227, %v1042, %v1355
    %v1484 = vsel %vm1228, %v1044, %v1356
    %v1485 = vsel %vm1229, %v1046, %v1357
    %v1486 = vsel %vm1230, %v1050, %v1358
    %v1487 = vsel %vm1231, %v1052, %v1359
    %v1488 = vsel %vm1232, %v1054, %v1360
    %v1489 = vsel %vm1233, %v1056, %v1361
    %v1490 = vsel %vm1234, %v1060, %v1362
    %v1491 = vsel %vm1235, %v1062, %v1363
    %v1492 = vsel %vm1236, %v1064, %v1364
    %v1493 = vsel %vm1237, %v1066, %v1365
    %v1494 = vsel %vm1238, %v1070, %v1366
    %v1495 = vsel %vm1239, %v1072, %v1367
    %v1496 = vsel %vm1240, %v1074, %v1368
    %v1497 = vsel %vm1241, %v1076, %v1369
    %v1498 = vsel %vm1242, %v1080, %v1370
    %v1499 = vsel %vm1243, %v1082, %v1371
    %v1500 = vsel %vm1244, %v1084, %v1372
    %v1501 = vsel %vm1245, %v1086, %v1373
    %v1502 = vsel %vm1246, %v1090, %v1374
    %v1503 = vsel %vm1247, %v1092, %v1375
    %v1504 = vsel %vm1248, %v1094, %v1376
    %v1505 = vsel %vm1249, %v1096, %v1377
    %v1506 = vsel %vm1250, %v1100, %v1378
    %v1507 = vsel %vm1251, %v1102, %v1379
    %v1508 = vsel %vm1252, %v1104, %v1380
    %v1509 = vsel %vm1253, %v1106, %v1381
    %v1510 = vsel %vm1254, %v1110, %v1382
    %v1511 = vsel %vm1255, %v1112, %v1383
    %v1512 = vsel %vm1256, %v1114, %v1384
    %v1513 = vsel %vm1257, %v1116, %v1385
    %v1514 = vsel %vm1258, %v1120, %v1386
    %v1515 = vsel %vm1259, %v1122, %v1387
    %v1516 = vsel %vm1260, %v1124, %v1388
    %v1517 = vsel %vm1261, %v1126, %v1389
    %v1518 = vsel %vm1262, %v1130, %v1390
    %v1519 = vsel %vm1263, %v1132, %v1391
    %v1520 = vsel %vm1264, %v1134, %v1392
    %v1521 = vsel %vm1265, %v1136, %v1393
    %v1522 = vld [vmem:[%s3] sm:$0xff]
    %v1523 = vld [vmem:[%s3 + $0x8] sm:$0xff]
    %v1524 = vld [vmem:[%s3 + $0x10] sm:$0xff]
    %v1525 = vld [vmem:[%s3 + $0x18] sm:$0xff]
    %v1526 = vld [vmem:[%s3 + $0x20] sm:$0xff]
    %v1527 = vld [vmem:[%s3 + $0x28] sm:$0xff]
    %v1528 = vld [vmem:[%s3 + $0x30] sm:$0xff]
    %v1529 = vld [vmem:[%s3 + $0x38] sm:$0xff]
    %v1530 = vld [vmem:[%s3 + $0x40] sm:$0xff]
    %v1531 = vld [vmem:[%s3 + $0x48] sm:$0xff]
    %v1532 = vld [vmem:[%s3 + $0x50] sm:$0xff]
    %v1533 = vld [vmem:[%s3 + $0x58] sm:$0xff]
    %v1534 = vld [vmem:[%s3 + $0x60] sm:$0xff]
    %v1535 = vld [vmem:[%s3 + $0x68] sm:$0xff]
    %v1536 = vld [vmem:[%s3 + $0x70] sm:$0xff]
    %v1537 = vld [vmem:[%s3 + $0x78] sm:$0xff]
    %v1538 = vld [vmem:[%s3 + $0x80] sm:$0xff]
    %v1539 = vld [vmem:[%s3 + $0x88] sm:$0xff]
    %v1540 = vld [vmem:[%s3 + $0x90] sm:$0xff]
    %v1541 = vld [vmem:[%s3 + $0x98] sm:$0xff]
    %v1542 = vld [vmem:[%s3 + $0xa0] sm:$0xff]
    %v1543 = vld [vmem:[%s3 + $0xa8] sm:$0xff]
    %v1544 = vld [vmem:[%s3 + $0xb0] sm:$0xff]
    %v1545 = vld [vmem:[%s3 + $0xb8] sm:$0xff]
    %v1546 = vld [vmem:[%s3 + $0xc0] sm:$0xff]
    %v1547 = vld [vmem:[%s3 + $0xc8] sm:$0xff]
    %v1548 = vld [vmem:[%s3 + $0xd0] sm:$0xff]
    %v1549 = vld [vmem:[%s3 + $0xd8] sm:$0xff]
    %v1550 = vld [vmem:[%s3 + $0xe0] sm:$0xff]
    %v1551 = vld [vmem:[%s3 + $0xe8] sm:$0xff]
    %v1552 = vld [vmem:[%s3 + $0xf0] sm:$0xff]
    %v1553 = vld [vmem:[%s3 + $0xf8] sm:$0xff]
    %v1554 = vld [vmem:[%s3 + $0x100] sm:$0xff]
    %v1555 = vld [vmem:[%s3 + $0x108] sm:$0xff]
    %v1556 = vld [vmem:[%s3 + $0x110] sm:$0xff]
    %v1557 = vld [vmem:[%s3 + $0x118] sm:$0xff]
    %v1558 = vld [vmem:[%s3 + $0x120] sm:$0xff]
    %v1559 = vld [vmem:[%s3 + $0x128] sm:$0xff]
    %v1560 = vld [vmem:[%s3 + $0x130] sm:$0xff]
    %v1561 = vld [vmem:[%s3 + $0x138] sm:$0xff]
    %v1562 = vld [vmem:[%s3 + $0x140] sm:$0xff]
    %v1563 = vld [vmem:[%s3 + $0x148] sm:$0xff]
    %v1564 = vld [vmem:[%s3 + $0x150] sm:$0xff]
    %v1565 = vld [vmem:[%s3 + $0x158] sm:$0xff]
    %v1566 = vld [vmem:[%s3 + $0x160] sm:$0xff]
    %v1567 = vld [vmem:[%s3 + $0x168] sm:$0xff]
    %v1568 = vld [vmem:[%s3 + $0x170] sm:$0xff]
    %v1569 = vld [vmem:[%s3 + $0x178] sm:$0xff]
    %v1570 = vld [vmem:[%s3 + $0x180] sm:$0xff]
    %v1571 = vld [vmem:[%s3 + $0x188] sm:$0xff]
    %v1572 = vld [vmem:[%s3 + $0x190] sm:$0xff]
    %v1573 = vld [vmem:[%s3 + $0x198] sm:$0xff]
    %v1574 = vld [vmem:[%s3 + $0x1a0] sm:$0xff]
    %v1575 = vld [vmem:[%s3 + $0x1a8] sm:$0xff]
    %v1576 = vld [vmem:[%s3 + $0x1b0] sm:$0xff]
    %v1577 = vld [vmem:[%s3 + $0x1b8] sm:$0xff]
    %v1578 = vld [vmem:[%s3 + $0x1c0] sm:$0xff]
    %v1579 = vld [vmem:[%s3 + $0x1c8] sm:$0xff]
    %v1580 = vld [vmem:[%s3 + $0x1d0] sm:$0xff]
    %v1581 = vld [vmem:[%s3 + $0x1d8] sm:$0xff]
    %v1582 = vld [vmem:[%s3 + $0x1e0] sm:$0xff]
    %v1583 = vld [vmem:[%s3 + $0x1e8] sm:$0xff]
    %v1584 = vld [vmem:[%s3 + $0x1f0] sm:$0xff]
    %v1585 = vld [vmem:[%s3 + $0x1f8] sm:$0xff]
    %v1586 = vld [vmem:[%s3 + $0x200] sm:$0xff]
    %v1587 = vld [vmem:[%s3 + $0x208] sm:$0xff]
    %v1588 = vld [vmem:[%s3 + $0x210] sm:$0xff]
    %v1589 = vld [vmem:[%s3 + $0x218] sm:$0xff]
    %v1590 = vld [vmem:[%s3 + $0x220] sm:$0xff]
    %v1591 = vld [vmem:[%s3 + $0x228] sm:$0xff]
    %v1592 = vld [vmem:[%s3 + $0x230] sm:$0xff]
    %v1593 = vld [vmem:[%s3 + $0x238] sm:$0xff]
    %v1594 = vld [vmem:[%s3 + $0x240] sm:$0xff]
    %v1595 = vld [vmem:[%s3 + $0x248] sm:$0xff]
    %v1596 = vld [vmem:[%s3 + $0x250] sm:$0xff]
    %v1597 = vld [vmem:[%s3 + $0x258] sm:$0xff]
    %v1598 = vld [vmem:[%s3 + $0x260] sm:$0xff]
    %v1599 = vld [vmem:[%s3 + $0x268] sm:$0xff]
    %v1600 = vld [vmem:[%s3 + $0x270] sm:$0xff]
    %v1601 = vld [vmem:[%s3 + $0x278] sm:$0xff]
    %v1602 = vld [vmem:[%s3 + $0x280] sm:$0xff]
    %v1603 = vld [vmem:[%s3 + $0x288] sm:$0xff]
    %v1604 = vld [vmem:[%s3 + $0x290] sm:$0xff]
    %v1605 = vld [vmem:[%s3 + $0x298] sm:$0xff]
    %v1606 = vld [vmem:[%s3 + $0x2a0] sm:$0xff]
    %v1607 = vld [vmem:[%s3 + $0x2a8] sm:$0xff]
    %v1608 = vld [vmem:[%s3 + $0x2b0] sm:$0xff]
    %v1609 = vld [vmem:[%s3 + $0x2b8] sm:$0xff]
    %v1610 = vld [vmem:[%s3 + $0x2c0] sm:$0xff]
    %v1611 = vld [vmem:[%s3 + $0x2c8] sm:$0xff]
    %v1612 = vld [vmem:[%s3 + $0x2d0] sm:$0xff]
    %v1613 = vld [vmem:[%s3 + $0x2d8] sm:$0xff]
    %v1614 = vld [vmem:[%s3 + $0x2e0] sm:$0xff]
    %v1615 = vld [vmem:[%s3 + $0x2e8] sm:$0xff]
    %v1616 = vld [vmem:[%s3 + $0x2f0] sm:$0xff]
    %v1617 = vld [vmem:[%s3 + $0x2f8] sm:$0xff]
    %v1618 = vld [vmem:[%s3 + $0x300] sm:$0xff]
    %v1619 = vld [vmem:[%s3 + $0x308] sm:$0xff]
    %v1620 = vld [vmem:[%s3 + $0x310] sm:$0xff]
    %v1621 = vld [vmem:[%s3 + $0x318] sm:$0xff]
    %v1622 = vld [vmem:[%s3 + $0x320] sm:$0xff]
    %v1623 = vld [vmem:[%s3 + $0x328] sm:$0xff]
    %v1624 = vld [vmem:[%s3 + $0x330] sm:$0xff]
    %v1625 = vld [vmem:[%s3 + $0x338] sm:$0xff]
    %v1626 = vld [vmem:[%s3 + $0x340] sm:$0xff]
    %v1627 = vld [vmem:[%s3 + $0x348] sm:$0xff]
    %v1628 = vld [vmem:[%s3 + $0x350] sm:$0xff]
    %v1629 = vld [vmem:[%s3 + $0x358] sm:$0xff]
    %v1630 = vld [vmem:[%s3 + $0x360] sm:$0xff]
    %v1631 = vld [vmem:[%s3 + $0x368] sm:$0xff]
    %v1632 = vld [vmem:[%s3 + $0x370] sm:$0xff]
    %v1633 = vld [vmem:[%s3 + $0x378] sm:$0xff]
    %v1634 = vld [vmem:[%s3 + $0x380] sm:$0xff]
    %v1635 = vld [vmem:[%s3 + $0x388] sm:$0xff]
    %v1636 = vld [vmem:[%s3 + $0x390] sm:$0xff]
    %v1637 = vld [vmem:[%s3 + $0x398] sm:$0xff]
    %v1638 = vld [vmem:[%s3 + $0x3a0] sm:$0xff]
    %v1639 = vld [vmem:[%s3 + $0x3a8] sm:$0xff]
    %v1640 = vld [vmem:[%s3 + $0x3b0] sm:$0xff]
    %v1641 = vld [vmem:[%s3 + $0x3b8] sm:$0xff]
    %v1642 = vld [vmem:[%s3 + $0x3c0] sm:$0xff]
    %v1643 = vld [vmem:[%s3 + $0x3c8] sm:$0xff]
    %v1644 = vld [vmem:[%s3 + $0x3d0] sm:$0xff]
    %v1645 = vld [vmem:[%s3 + $0x3d8] sm:$0xff]
    %v1646 = vld [vmem:[%s3 + $0x3e0] sm:$0xff]
    %v1647 = vld [vmem:[%s3 + $0x3e8] sm:$0xff]
    %v1648 = vld [vmem:[%s3 + $0x3f0] sm:$0xff]
    %v1649 = vld [vmem:[%s3 + $0x3f8] sm:$0xff]
    %v1650 = vld [vmem:[%s3 + $0x400] sm:$0xff]
    %v1651 = vld [vmem:[%s3 + $0x408] sm:$0xff]
    %v1652 = vld [vmem:[%s3 + $0x410] sm:$0xff]
    %v1653 = vld [vmem:[%s3 + $0x418] sm:$0xff]
    %v1654 = vld [vmem:[%s3 + $0x420] sm:$0xff]
    %v1655 = vld [vmem:[%s3 + $0x428] sm:$0xff]
    %v1656 = vld [vmem:[%s3 + $0x430] sm:$0xff]
    %v1657 = vld [vmem:[%s3 + $0x438] sm:$0xff]
    %v1658 = vld [vmem:[%s3 + $0x440] sm:$0xff]
    %v1659 = vld [vmem:[%s3 + $0x448] sm:$0xff]
    %v1660 = vld [vmem:[%s3 + $0x450] sm:$0xff]
    %v1661 = vld [vmem:[%s3 + $0x458] sm:$0xff]
    %v1662 = vld [vmem:[%s3 + $0x460] sm:$0xff]
    %v1663 = vld [vmem:[%s3 + $0x468] sm:$0xff]
    %v1664 = vld [vmem:[%s3 + $0x470] sm:$0xff]
    %v1665 = vld [vmem:[%s3 + $0x478] sm:$0xff]
    %v1666 = vld [vmem:[%s3 + $0x480] sm:$0xff]
    %v1667 = vld [vmem:[%s3 + $0x488] sm:$0xff]
    %v1668 = vld [vmem:[%s3 + $0x490] sm:$0xff]
    %v1669 = vld [vmem:[%s3 + $0x498] sm:$0xff]
    %v1670 = vld [vmem:[%s3 + $0x4a0] sm:$0xff]
    %v1671 = vld [vmem:[%s3 + $0x4a8] sm:$0xff]
    %v1672 = vld [vmem:[%s3 + $0x4b0] sm:$0xff]
    %v1673 = vld [vmem:[%s3 + $0x4b8] sm:$0xff]
    %v1674 = vld [vmem:[%s3 + $0x4c0] sm:$0xff]
    %v1675 = vld [vmem:[%s3 + $0x4c8] sm:$0xff]
    %v1676 = vld [vmem:[%s3 + $0x4d0] sm:$0xff]
    %v1677 = vld [vmem:[%s3 + $0x4d8] sm:$0xff]
    %v1678 = vld [vmem:[%s3 + $0x4e0] sm:$0xff]
    %v1679 = vld [vmem:[%s3 + $0x4e8] sm:$0xff]
    %v1680 = vld [vmem:[%s3 + $0x4f0] sm:$0xff]
    %v1681 = vld [vmem:[%s3 + $0x4f8] sm:$0xff]
    %v1682 = vld [vmem:[%s3 + $0x500] sm:$0xff]
    %v1683 = vld [vmem:[%s3 + $0x508] sm:$0xff]
    %v1684 = vld [vmem:[%s3 + $0x510] sm:$0xff]
    %v1685 = vld [vmem:[%s3 + $0x518] sm:$0xff]
    %v1686 = vld [vmem:[%s3 + $0x520] sm:$0xff]
    %v1687 = vld [vmem:[%s3 + $0x528] sm:$0xff]
    %v1688 = vld [vmem:[%s3 + $0x530] sm:$0xff]
    %v1689 = vld [vmem:[%s3 + $0x538] sm:$0xff]
    %v1690 = vld [vmem:[%s3 + $0x540] sm:$0xff]
    %v1691 = vld [vmem:[%s3 + $0x548] sm:$0xff]
    %v1692 = vld [vmem:[%s3 + $0x550] sm:$0xff]
    %v1693 = vld [vmem:[%s3 + $0x558] sm:$0xff]
    %v1694 = vld [vmem:[%s3 + $0x560] sm:$0xff]
    %v1695 = vld [vmem:[%s3 + $0x568] sm:$0xff]
    %v1696 = vld [vmem:[%s3 + $0x570] sm:$0xff]
    %v1697 = vld [vmem:[%s3 + $0x578] sm:$0xff]
    %v1698 = vld [vmem:[%s3 + $0x580] sm:$0xff]
    %v1699 = vld [vmem:[%s3 + $0x588] sm:$0xff]
    %v1700 = vld [vmem:[%s3 + $0x590] sm:$0xff]
    %v1701 = vld [vmem:[%s3 + $0x598] sm:$0xff]
    %v1702 = vld [vmem:[%s3 + $0x5a0] sm:$0xff]
    %v1703 = vld [vmem:[%s3 + $0x5a8] sm:$0xff]
    %v1704 = vld [vmem:[%s3 + $0x5b0] sm:$0xff]
    %v1705 = vld [vmem:[%s3 + $0x5b8] sm:$0xff]
    %v1706 = vld [vmem:[%s3 + $0x5c0] sm:$0xff]
    %v1707 = vld [vmem:[%s3 + $0x5c8] sm:$0xff]
    %v1708 = vld [vmem:[%s3 + $0x5d0] sm:$0xff]
    %v1709 = vld [vmem:[%s3 + $0x5d8] sm:$0xff]
    %v1710 = vld [vmem:[%s3 + $0x5e0] sm:$0xff]
    %v1711 = vld [vmem:[%s3 + $0x5e8] sm:$0xff]
    %v1712 = vld [vmem:[%s3 + $0x5f0] sm:$0xff]
    %v1713 = vld [vmem:[%s3 + $0x5f8] sm:$0xff]
    %v1714 = vpack.c.bf16 %v1396, %v1394
    %v1715 = vpack.c.bf16 %v1397, %v1395
    %v1716 = vpack.c.bf16 %v1400, %v1398
    %v1717 = vpack.c.bf16 %v1401, %v1399
    %v1718 = vpack.c.bf16 %v1404, %v1402
    %v1719 = vpack.c.bf16 %v1405, %v1403
    %v1720 = vpack.c.bf16 %v1408, %v1406
    %v1721 = vpack.c.bf16 %v1409, %v1407
    %v1722 = vpack.c.bf16 %v1412, %v1410
    %v1723 = vpack.c.bf16 %v1413, %v1411
    %v1724 = vpack.c.bf16 %v1416, %v1414
    %v1725 = vpack.c.bf16 %v1417, %v1415
    %v1726 = vpack.c.bf16 %v1420, %v1418
    %v1727 = vpack.c.bf16 %v1421, %v1419
    %v1728 = vpack.c.bf16 %v1424, %v1422
    %v1729 = vpack.c.bf16 %v1425, %v1423
    %v1730 = vpack.c.bf16 %v1428, %v1426
    %v1731 = vpack.c.bf16 %v1429, %v1427
    %v1732 = vpack.c.bf16 %v1432, %v1430
    %v1733 = vpack.c.bf16 %v1433, %v1431
    %v1734 = vpack.c.bf16 %v1436, %v1434
    %v1735 = vpack.c.bf16 %v1437, %v1435
    %v1736 = vpack.c.bf16 %v1440, %v1438
    %v1737 = vpack.c.bf16 %v1441, %v1439
    %v1738 = vpack.c.bf16 %v1444, %v1442
    %v1739 = vpack.c.bf16 %v1445, %v1443
    %v1740 = vpack.c.bf16 %v1448, %v1446
    %v1741 = vpack.c.bf16 %v1449, %v1447
    %v1742 = vpack.c.bf16 %v1452, %v1450
    %v1743 = vpack.c.bf16 %v1453, %v1451
    %v1744 = vpack.c.bf16 %v1456, %v1454
    %v1745 = vpack.c.bf16 %v1457, %v1455
    %v1746 = vpack.c.bf16 %v1460, %v1458
    %v1747 = vpack.c.bf16 %v1461, %v1459
    %v1748 = vpack.c.bf16 %v1464, %v1462
    %v1749 = vpack.c.bf16 %v1465, %v1463
    %v1750 = vpack.c.bf16 %v1468, %v1466
    %v1751 = vpack.c.bf16 %v1469, %v1467
    %v1752 = vpack.c.bf16 %v1472, %v1470
    %v1753 = vpack.c.bf16 %v1473, %v1471
    %v1754 = vpack.c.bf16 %v1476, %v1474
    %v1755 = vpack.c.bf16 %v1477, %v1475
    %v1756 = vpack.c.bf16 %v1480, %v1478
    %v1757 = vpack.c.bf16 %v1481, %v1479
    %v1758 = vpack.c.bf16 %v1484, %v1482
    %v1759 = vpack.c.bf16 %v1485, %v1483
    %v1760 = vpack.c.bf16 %v1488, %v1486
    %v1761 = vpack.c.bf16 %v1489, %v1487
    %v1762 = vpack.c.bf16 %v1492, %v1490
    %v1763 = vpack.c.bf16 %v1493, %v1491
    %v1764 = vpack.c.bf16 %v1496, %v1494
    %v1765 = vpack.c.bf16 %v1497, %v1495
    %v1766 = vpack.c.bf16 %v1500, %v1498
    %v1767 = vpack.c.bf16 %v1501, %v1499
    %v1768 = vpack.c.bf16 %v1504, %v1502
    %v1769 = vpack.c.bf16 %v1505, %v1503
    %v1770 = vpack.c.bf16 %v1508, %v1506
    %v1771 = vpack.c.bf16 %v1509, %v1507
    %v1772 = vpack.c.bf16 %v1512, %v1510
    %v1773 = vpack.c.bf16 %v1513, %v1511
    %v1774 = vpack.c.bf16 %v1516, %v1514
    %v1775 = vpack.c.bf16 %v1517, %v1515
    %v1776 = vpack.c.bf16 %v1520, %v1518
    %v1777 = vpack.c.bf16 %v1521, %v1519
    %v1778 = vld [vmem:[%s4] sm:$0xff]
    %v1779 = vld [vmem:[%s4 + $0x8] sm:$0xff]
    %v1780 = vld [vmem:[%s4 + $0x10] sm:$0xff]
    %v1781 = vld [vmem:[%s4 + $0x18] sm:$0xff]
    %v1782 = vld [vmem:[%s4 + $0x20] sm:$0xff]
    %v1783 = vld [vmem:[%s4 + $0x28] sm:$0xff]
    %v1784 = vld [vmem:[%s4 + $0x30] sm:$0xff]
    %v1785 = vld [vmem:[%s4 + $0x38] sm:$0xff]
    %v1786 = vld [vmem:[%s4 + $0x40] sm:$0xff]
    %v1787 = vld [vmem:[%s4 + $0x48] sm:$0xff]
    %v1788 = vld [vmem:[%s4 + $0x50] sm:$0xff]
    %v1789 = vld [vmem:[%s4 + $0x58] sm:$0xff]
    %v1790 = vld [vmem:[%s4 + $0x60] sm:$0xff]
    %v1791 = vld [vmem:[%s4 + $0x68] sm:$0xff]
    %v1792 = vld [vmem:[%s4 + $0x70] sm:$0xff]
    %v1793 = vld [vmem:[%s4 + $0x78] sm:$0xff]
    %v1794 = vld [vmem:[%s4 + $0x80] sm:$0xff]
    %v1795 = vld [vmem:[%s4 + $0x88] sm:$0xff]
    %v1796 = vld [vmem:[%s4 + $0x90] sm:$0xff]
    %v1797 = vld [vmem:[%s4 + $0x98] sm:$0xff]
    %v1798 = vld [vmem:[%s4 + $0xa0] sm:$0xff]
    %v1799 = vld [vmem:[%s4 + $0xa8] sm:$0xff]
    %v1800 = vld [vmem:[%s4 + $0xb0] sm:$0xff]
    %v1801 = vld [vmem:[%s4 + $0xb8] sm:$0xff]
    %v1802 = vld [vmem:[%s4 + $0xc0] sm:$0xff]
    %v1803 = vld [vmem:[%s4 + $0xc8] sm:$0xff]
    %v1804 = vld [vmem:[%s4 + $0xd0] sm:$0xff]
    %v1805 = vld [vmem:[%s4 + $0xd8] sm:$0xff]
    %v1806 = vld [vmem:[%s4 + $0xe0] sm:$0xff]
    %v1807 = vld [vmem:[%s4 + $0xe8] sm:$0xff]
    %v1808 = vld [vmem:[%s4 + $0xf0] sm:$0xff]
    %v1809 = vld [vmem:[%s4 + $0xf8] sm:$0xff]
    %v1810 = vld [vmem:[%s4 + $0x100] sm:$0xff]
    %v1811 = vld [vmem:[%s4 + $0x108] sm:$0xff]
    %v1812 = vld [vmem:[%s4 + $0x110] sm:$0xff]
    %v1813 = vld [vmem:[%s4 + $0x118] sm:$0xff]
    %v1814 = vld [vmem:[%s4 + $0x120] sm:$0xff]
    %v1815 = vld [vmem:[%s4 + $0x128] sm:$0xff]
    %v1816 = vld [vmem:[%s4 + $0x130] sm:$0xff]
    %v1817 = vld [vmem:[%s4 + $0x138] sm:$0xff]
    %v1818 = vld [vmem:[%s4 + $0x140] sm:$0xff]
    %v1819 = vld [vmem:[%s4 + $0x148] sm:$0xff]
    %v1820 = vld [vmem:[%s4 + $0x150] sm:$0xff]
    %v1821 = vld [vmem:[%s4 + $0x158] sm:$0xff]
    %v1822 = vld [vmem:[%s4 + $0x160] sm:$0xff]
    %v1823 = vld [vmem:[%s4 + $0x168] sm:$0xff]
    %v1824 = vld [vmem:[%s4 + $0x170] sm:$0xff]
    %v1825 = vld [vmem:[%s4 + $0x178] sm:$0xff]
    %v1826 = vld [vmem:[%s4 + $0x180] sm:$0xff]
    %v1827 = vld [vmem:[%s4 + $0x188] sm:$0xff]
    %v1828 = vld [vmem:[%s4 + $0x190] sm:$0xff]
    %v1829 = vld [vmem:[%s4 + $0x198] sm:$0xff]
    %v1830 = vld [vmem:[%s4 + $0x1a0] sm:$0xff]
    %v1831 = vld [vmem:[%s4 + $0x1a8] sm:$0xff]
    %v1832 = vld [vmem:[%s4 + $0x1b0] sm:$0xff]
    %v1833 = vld [vmem:[%s4 + $0x1b8] sm:$0xff]
    %v1834 = vld [vmem:[%s4 + $0x1c0] sm:$0xff]
    %v1835 = vld [vmem:[%s4 + $0x1c8] sm:$0xff]
    %v1836 = vld [vmem:[%s4 + $0x1d0] sm:$0xff]
    %v1837 = vld [vmem:[%s4 + $0x1d8] sm:$0xff]
    %v1838 = vld [vmem:[%s4 + $0x1e0] sm:$0xff]
    %v1839 = vld [vmem:[%s4 + $0x1e8] sm:$0xff]
    %v1840 = vld [vmem:[%s4 + $0x1f0] sm:$0xff]
    %v1841 = vld [vmem:[%s4 + $0x1f8] sm:$0xff]
    %v1842 = vld [vmem:[%s4 + $0x200] sm:$0xff]
    %v1843 = vld [vmem:[%s4 + $0x208] sm:$0xff]
    %v1844 = vld [vmem:[%s4 + $0x210] sm:$0xff]
    %v1845 = vld [vmem:[%s4 + $0x218] sm:$0xff]
    %v1846 = vld [vmem:[%s4 + $0x220] sm:$0xff]
    %v1847 = vld [vmem:[%s4 + $0x228] sm:$0xff]
    %v1848 = vld [vmem:[%s4 + $0x230] sm:$0xff]
    %v1849 = vld [vmem:[%s4 + $0x238] sm:$0xff]
    %v1850 = vld [vmem:[%s4 + $0x240] sm:$0xff]
    %v1851 = vld [vmem:[%s4 + $0x248] sm:$0xff]
    %v1852 = vld [vmem:[%s4 + $0x250] sm:$0xff]
    %v1853 = vld [vmem:[%s4 + $0x258] sm:$0xff]
    %v1854 = vld [vmem:[%s4 + $0x260] sm:$0xff]
    %v1855 = vld [vmem:[%s4 + $0x268] sm:$0xff]
    %v1856 = vld [vmem:[%s4 + $0x270] sm:$0xff]
    %v1857 = vld [vmem:[%s4 + $0x278] sm:$0xff]
    %v1858 = vld [vmem:[%s4 + $0x280] sm:$0xff]
    %v1859 = vld [vmem:[%s4 + $0x288] sm:$0xff]
    %v1860 = vld [vmem:[%s4 + $0x290] sm:$0xff]
    %v1861 = vld [vmem:[%s4 + $0x298] sm:$0xff]
    %v1862 = vld [vmem:[%s4 + $0x2a0] sm:$0xff]
    %v1863 = vld [vmem:[%s4 + $0x2a8] sm:$0xff]
    %v1864 = vld [vmem:[%s4 + $0x2b0] sm:$0xff]
    %v1865 = vld [vmem:[%s4 + $0x2b8] sm:$0xff]
    %v1866 = vld [vmem:[%s4 + $0x2c0] sm:$0xff]
    %v1867 = vld [vmem:[%s4 + $0x2c8] sm:$0xff]
    %v1868 = vld [vmem:[%s4 + $0x2d0] sm:$0xff]
    %v1869 = vld [vmem:[%s4 + $0x2d8] sm:$0xff]
    %v1870 = vld [vmem:[%s4 + $0x2e0] sm:$0xff]
    %v1871 = vld [vmem:[%s4 + $0x2e8] sm:$0xff]
    %v1872 = vld [vmem:[%s4 + $0x2f0] sm:$0xff]
    %v1873 = vld [vmem:[%s4 + $0x2f8] sm:$0xff]
    %1875 = vset.pattern.permute.xlu0 0
    %1876 = vperm.xlu0 %1875, %v1778
    %v1877 = vpop.permute.xlu0 %1876
    %1880 = vset.pattern.permute.xlu0 0
    %1881 = vperm.xlu0 %1880, %v1779
    %v1882 = vpop.permute.xlu0 %1881
    %1885 = vset.pattern.permute.xlu0 0
    %1886 = vperm.xlu0 %1885, %v1780
    %v1887 = vpop.permute.xlu0 %1886
    %1890 = vset.pattern.permute.xlu0 0
    %1891 = vperm.xlu0 %1890, %v1781
    %v1892 = vpop.permute.xlu0 %1891
    %1895 = vset.pattern.permute.xlu0 0
    %1896 = vperm.xlu0 %1895, %v1782
    %v1897 = vpop.permute.xlu0 %1896
    %1900 = vset.pattern.permute.xlu0 0
    %1901 = vperm.xlu0 %1900, %v1783
    %v1902 = vpop.permute.xlu0 %1901
    %1905 = vset.pattern.permute.xlu0 0
    %1906 = vperm.xlu0 %1905, %v1784
    %v1907 = vpop.permute.xlu0 %1906
    %1910 = vset.pattern.permute.xlu0 0
    %1911 = vperm.xlu0 %1910, %v1785
    %v1912 = vpop.permute.xlu0 %1911
    %1915 = vset.pattern.permute.xlu0 0
    %1916 = vperm.xlu0 %1915, %v1786
    %v1917 = vpop.permute.xlu0 %1916
    %1920 = vset.pattern.permute.xlu0 0
    %1921 = vperm.xlu0 %1920, %v1787
    %v1922 = vpop.permute.xlu0 %1921
    %1925 = vset.pattern.permute.xlu0 0
    %1926 = vperm.xlu0 %1925, %v1788
    %v1927 = vpop.permute.xlu0 %1926
    %1930 = vset.pattern.permute.xlu0 0
    %1931 = vperm.xlu0 %1930, %v1789
    %v1932 = vpop.permute.xlu0 %1931
    %1935 = vset.pattern.permute.xlu0 0
    %1936 = vperm.xlu0 %1935, %v1790
    %v1937 = vpop.permute.xlu0 %1936
    %1940 = vset.pattern.permute.xlu0 0
    %1941 = vperm.xlu0 %1940, %v1791
    %v1942 = vpop.permute.xlu0 %1941
    %1945 = vset.pattern.permute.xlu0 0
    %1946 = vperm.xlu0 %1945, %v1792
    %v1947 = vpop.permute.xlu0 %1946
    %1950 = vset.pattern.permute.xlu0 0
    %1951 = vperm.xlu0 %1950, %v1793
    %v1952 = vpop.permute.xlu0 %1951
    %1955 = vset.pattern.permute.xlu0 0
    %1956 = vperm.xlu0 %1955, %v1794
    %v1957 = vpop.permute.xlu0 %1956
    %1960 = vset.pattern.permute.xlu0 0
    %1961 = vperm.xlu0 %1960, %v1795
    %v1962 = vpop.permute.xlu0 %1961
    %1965 = vset.pattern.permute.xlu0 0
    %1966 = vperm.xlu0 %1965, %v1796
    %v1967 = vpop.permute.xlu0 %1966
    %1970 = vset.pattern.permute.xlu0 0
    %1971 = vperm.xlu0 %1970, %v1797
    %v1972 = vpop.permute.xlu0 %1971
    %1975 = vset.pattern.permute.xlu0 0
    %1976 = vperm.xlu0 %1975, %v1798
    %v1977 = vpop.permute.xlu0 %1976
    %1980 = vset.pattern.permute.xlu0 0
    %1981 = vperm.xlu0 %1980, %v1799
    %v1982 = vpop.permute.xlu0 %1981
    %1985 = vset.pattern.permute.xlu0 0
    %1986 = vperm.xlu0 %1985, %v1800
    %v1987 = vpop.permute.xlu0 %1986
    %1990 = vset.pattern.permute.xlu0 0
    %1991 = vperm.xlu0 %1990, %v1801
    %v1992 = vpop.permute.xlu0 %1991
    %1995 = vset.pattern.permute.xlu0 0
    %1996 = vperm.xlu0 %1995, %v1802
    %v1997 = vpop.permute.xlu0 %1996
    %2000 = vset.pattern.permute.xlu0 0
    %2001 = vperm.xlu0 %2000, %v1803
    %v2002 = vpop.permute.xlu0 %2001
    %2005 = vset.pattern.permute.xlu0 0
    %2006 = vperm.xlu0 %2005, %v1804
    %v2007 = vpop.permute.xlu0 %2006
    %2010 = vset.pattern.permute.xlu0 0
    %2011 = vperm.xlu0 %2010, %v1805
    %v2012 = vpop.permute.xlu0 %2011
    %2015 = vset.pattern.permute.xlu0 0
    %2016 = vperm.xlu0 %2015, %v1806
    %v2017 = vpop.permute.xlu0 %2016
    %2020 = vset.pattern.permute.xlu0 0
    %2021 = vperm.xlu0 %2020, %v1807
    %v2022 = vpop.permute.xlu0 %2021
    %2025 = vset.pattern.permute.xlu0 0
    %2026 = vperm.xlu0 %2025, %v1808
    %v2027 = vpop.permute.xlu0 %2026
    %2030 = vset.pattern.permute.xlu0 0
    %2031 = vperm.xlu0 %2030, %v1809
    %v2032 = vpop.permute.xlu0 %2031
    %2035 = vset.pattern.permute.xlu0 0
    %2036 = vperm.xlu0 %2035, %v1810
    %v2037 = vpop.permute.xlu0 %2036
    %2040 = vset.pattern.permute.xlu0 0
    %2041 = vperm.xlu0 %2040, %v1811
    %v2042 = vpop.permute.xlu0 %2041
    %2045 = vset.pattern.permute.xlu0 0
    %2046 = vperm.xlu0 %2045, %v1812
    %v2047 = vpop.permute.xlu0 %2046
    %2050 = vset.pattern.permute.xlu0 0
    %2051 = vperm.xlu0 %2050, %v1813
    %v2052 = vpop.permute.xlu0 %2051
    %2055 = vset.pattern.permute.xlu0 0
    %2056 = vperm.xlu0 %2055, %v1814
    %v2057 = vpop.permute.xlu0 %2056
    %2060 = vset.pattern.permute.xlu0 0
    %2061 = vperm.xlu0 %2060, %v1815
    %v2062 = vpop.permute.xlu0 %2061
    %2065 = vset.pattern.permute.xlu0 0
    %2066 = vperm.xlu0 %2065, %v1816
    %v2067 = vpop.permute.xlu0 %2066
    %2070 = vset.pattern.permute.xlu0 0
    %2071 = vperm.xlu0 %2070, %v1817
    %v2072 = vpop.permute.xlu0 %2071
    %2075 = vset.pattern.permute.xlu0 0
    %2076 = vperm.xlu0 %2075, %v1818
    %v2077 = vpop.permute.xlu0 %2076
    %2080 = vset.pattern.permute.xlu0 0
    %2081 = vperm.xlu0 %2080, %v1819
    %v2082 = vpop.permute.xlu0 %2081
    %2085 = vset.pattern.permute.xlu0 0
    %2086 = vperm.xlu0 %2085, %v1820
    %v2087 = vpop.permute.xlu0 %2086
    %2090 = vset.pattern.permute.xlu0 0
    %2091 = vperm.xlu0 %2090, %v1821
    %v2092 = vpop.permute.xlu0 %2091
    %2095 = vset.pattern.permute.xlu0 0
    %2096 = vperm.xlu0 %2095, %v1822
    %v2097 = vpop.permute.xlu0 %2096
    %2100 = vset.pattern.permute.xlu0 0
    %2101 = vperm.xlu0 %2100, %v1823
    %v2102 = vpop.permute.xlu0 %2101
    %2105 = vset.pattern.permute.xlu0 0
    %2106 = vperm.xlu0 %2105, %v1824
    %v2107 = vpop.permute.xlu0 %2106
    %2110 = vset.pattern.permute.xlu0 0
    %2111 = vperm.xlu0 %2110, %v1825
    %v2112 = vpop.permute.xlu0 %2111
    %2115 = vset.pattern.permute.xlu0 0
    %2116 = vperm.xlu0 %2115, %v1826
    %v2117 = vpop.permute.xlu0 %2116
    %2120 = vset.pattern.permute.xlu0 0
    %2121 = vperm.xlu0 %2120, %v1827
    %v2122 = vpop.permute.xlu0 %2121
    %2125 = vset.pattern.permute.xlu0 0
    %2126 = vperm.xlu0 %2125, %v1828
    %v2127 = vpop.permute.xlu0 %2126
    %2130 = vset.pattern.permute.xlu0 0
    %2131 = vperm.xlu0 %2130, %v1829
    %v2132 = vpop.permute.xlu0 %2131
    %2135 = vset.pattern.permute.xlu0 0
    %2136 = vperm.xlu0 %2135, %v1830
    %v2137 = vpop.permute.xlu0 %2136
    %2140 = vset.pattern.permute.xlu0 0
    %2141 = vperm.xlu0 %2140, %v1831
    %v2142 = vpop.permute.xlu0 %2141
    %2145 = vset.pattern.permute.xlu0 0
    %2146 = vperm.xlu0 %2145, %v1832
    %v2147 = vpop.permute.xlu0 %2146
    %2150 = vset.pattern.permute.xlu0 0
    %2151 = vperm.xlu0 %2150, %v1833
    %v2152 = vpop.permute.xlu0 %2151
    %2155 = vset.pattern.permute.xlu0 0
    %2156 = vperm.xlu0 %2155, %v1834
    %v2157 = vpop.permute.xlu0 %2156
    %2160 = vset.pattern.permute.xlu0 0
    %2161 = vperm.xlu0 %2160, %v1835
    %v2162 = vpop.permute.xlu0 %2161
    %2165 = vset.pattern.permute.xlu0 0
    %2166 = vperm.xlu0 %2165, %v1836
    %v2167 = vpop.permute.xlu0 %2166
    %2170 = vset.pattern.permute.xlu0 0
    %2171 = vperm.xlu0 %2170, %v1837
    %v2172 = vpop.permute.xlu0 %2171
    %2175 = vset.pattern.permute.xlu0 0
    %2176 = vperm.xlu0 %2175, %v1838
    %v2177 = vpop.permute.xlu0 %2176
    %2180 = vset.pattern.permute.xlu0 0
    %2181 = vperm.xlu0 %2180, %v1839
    %v2182 = vpop.permute.xlu0 %2181
    %2185 = vset.pattern.permute.xlu0 0
    %2186 = vperm.xlu0 %2185, %v1840
    %v2187 = vpop.permute.xlu0 %2186
    %2190 = vset.pattern.permute.xlu0 0
    %2191 = vperm.xlu0 %2190, %v1841
    %v2192 = vpop.permute.xlu0 %2191
    %2195 = vset.pattern.permute.xlu0 0
    %2196 = vperm.xlu0 %2195, %v1842
    %v2197 = vpop.permute.xlu0 %2196
    %2200 = vset.pattern.permute.xlu0 0
    %2201 = vperm.xlu0 %2200, %v1843
    %v2202 = vpop.permute.xlu0 %2201
    %2205 = vset.pattern.permute.xlu0 0
    %2206 = vperm.xlu0 %2205, %v1844
    %v2207 = vpop.permute.xlu0 %2206
    %2210 = vset.pattern.permute.xlu0 0
    %2211 = vperm.xlu0 %2210, %v1845
    %v2212 = vpop.permute.xlu0 %2211
    %2215 = vset.pattern.permute.xlu0 0
    %2216 = vperm.xlu0 %2215, %v1846
    %v2217 = vpop.permute.xlu0 %2216
    %2220 = vset.pattern.permute.xlu0 0
    %2221 = vperm.xlu0 %2220, %v1847
    %v2222 = vpop.permute.xlu0 %2221
    %2225 = vset.pattern.permute.xlu0 0
    %2226 = vperm.xlu0 %2225, %v1848
    %v2227 = vpop.permute.xlu0 %2226
    %2230 = vset.pattern.permute.xlu0 0
    %2231 = vperm.xlu0 %2230, %v1849
    %v2232 = vpop.permute.xlu0 %2231
    %2235 = vset.pattern.permute.xlu0 0
    %2236 = vperm.xlu0 %2235, %v1850
    %v2237 = vpop.permute.xlu0 %2236
    %2240 = vset.pattern.permute.xlu0 0
    %2241 = vperm.xlu0 %2240, %v1851
    %v2242 = vpop.permute.xlu0 %2241
    %2245 = vset.pattern.permute.xlu0 0
    %2246 = vperm.xlu0 %2245, %v1852
    %v2247 = vpop.permute.xlu0 %2246
    %2250 = vset.pattern.permute.xlu0 0
    %2251 = vperm.xlu0 %2250, %v1853
    %v2252 = vpop.permute.xlu0 %2251
    %2255 = vset.pattern.permute.xlu0 0
    %2256 = vperm.xlu0 %2255, %v1854
    %v2257 = vpop.permute.xlu0 %2256
    %2260 = vset.pattern.permute.xlu0 0
    %2261 = vperm.xlu0 %2260, %v1855
    %v2262 = vpop.permute.xlu0 %2261
    %2265 = vset.pattern.permute.xlu0 0
    %2266 = vperm.xlu0 %2265, %v1856
    %v2267 = vpop.permute.xlu0 %2266
    %2270 = vset.pattern.permute.xlu0 0
    %2271 = vperm.xlu0 %2270, %v1857
    %v2272 = vpop.permute.xlu0 %2271
    %2275 = vset.pattern.permute.xlu0 0
    %2276 = vperm.xlu0 %2275, %v1858
    %v2277 = vpop.permute.xlu0 %2276
    %2280 = vset.pattern.permute.xlu0 0
    %2281 = vperm.xlu0 %2280, %v1859
    %v2282 = vpop.permute.xlu0 %2281
    %2285 = vset.pattern.permute.xlu0 0
    %2286 = vperm.xlu0 %2285, %v1860
    %v2287 = vpop.permute.xlu0 %2286
    %2290 = vset.pattern.permute.xlu0 0
    %2291 = vperm.xlu0 %2290, %v1861
    %v2292 = vpop.permute.xlu0 %2291
    %2295 = vset.pattern.permute.xlu0 0
    %2296 = vperm.xlu0 %2295, %v1862
    %v2297 = vpop.permute.xlu0 %2296
    %2300 = vset.pattern.permute.xlu0 0
    %2301 = vperm.xlu0 %2300, %v1863
    %v2302 = vpop.permute.xlu0 %2301
    %2305 = vset.pattern.permute.xlu0 0
    %2306 = vperm.xlu0 %2305, %v1864
    %v2307 = vpop.permute.xlu0 %2306
    %2310 = vset.pattern.permute.xlu0 0
    %2311 = vperm.xlu0 %2310, %v1865
    %v2312 = vpop.permute.xlu0 %2311
    %2315 = vset.pattern.permute.xlu0 0
    %2316 = vperm.xlu0 %2315, %v1866
    %v2317 = vpop.permute.xlu0 %2316
    %2320 = vset.pattern.permute.xlu0 0
    %2321 = vperm.xlu0 %2320, %v1867
    %v2322 = vpop.permute.xlu0 %2321
    %2325 = vset.pattern.permute.xlu0 0
    %2326 = vperm.xlu0 %2325, %v1868
    %v2327 = vpop.permute.xlu0 %2326
    %2330 = vset.pattern.permute.xlu0 0
    %2331 = vperm.xlu0 %2330, %v1869
    %v2332 = vpop.permute.xlu0 %2331
    %2335 = vset.pattern.permute.xlu0 0
    %2336 = vperm.xlu0 %2335, %v1870
    %v2337 = vpop.permute.xlu0 %2336
    %2340 = vset.pattern.permute.xlu0 0
    %2341 = vperm.xlu0 %2340, %v1871
    %v2342 = vpop.permute.xlu0 %2341
    %2345 = vset.pattern.permute.xlu0 0
    %2346 = vperm.xlu0 %2345, %v1872
    %v2347 = vpop.permute.xlu0 %2346
    %2350 = vset.pattern.permute.xlu0 0
    %2351 = vperm.xlu0 %2350, %v1873
    %v2352 = vpop.permute.xlu0 %2351
    %v2546 = vunpack.c.l.b16 %v1522
    %v2547 = vunpack.c.h.b16 %v1522
    %v2548 = vunpack.c.l.b16 %v1523
    %v2549 = vunpack.c.h.b16 %v1523
    %v2550 = vunpack.c.l.b16 %v1524
    %v2551 = vunpack.c.h.b16 %v1524
    %v2552 = vunpack.c.l.b16 %v1525
    %v2553 = vunpack.c.h.b16 %v1525
    %v2554 = vunpack.c.l.b16 %v1526
    %v2555 = vunpack.c.h.b16 %v1526
    %v2556 = vunpack.c.l.b16 %v1527
    %v2557 = vunpack.c.h.b16 %v1527
    %v2558 = vunpack.c.l.b16 %v1528
    %v2559 = vunpack.c.h.b16 %v1528
    %v2560 = vunpack.c.l.b16 %v1529
    %v2561 = vunpack.c.h.b16 %v1529
    %v2562 = vunpack.c.l.b16 %v1530
    %v2563 = vunpack.c.h.b16 %v1530
    %v2564 = vunpack.c.l.b16 %v1531
    %v2565 = vunpack.c.h.b16 %v1531
    %v2566 = vunpack.c.l.b16 %v1532
    %v2567 = vunpack.c.h.b16 %v1532
    %v2568 = vunpack.c.l.b16 %v1533
    %v2569 = vunpack.c.h.b16 %v1533
    %v2570 = vunpack.c.l.b16 %v1534
    %v2571 = vunpack.c.h.b16 %v1534
    %v2572 = vunpack.c.l.b16 %v1535
    %v2573 = vunpack.c.h.b16 %v1535
    %v2574 = vunpack.c.l.b16 %v1536
    %v2575 = vunpack.c.h.b16 %v1536
    %v2576 = vunpack.c.l.b16 %v1537
    %v2577 = vunpack.c.h.b16 %v1537
    %v2578 = vunpack.c.l.b16 %v1538
    %v2579 = vunpack.c.h.b16 %v1538
    %v2580 = vunpack.c.l.b16 %v1539
    %v2581 = vunpack.c.h.b16 %v1539
    %v2582 = vunpack.c.l.b16 %v1540
    %v2583 = vunpack.c.h.b16 %v1540
    %v2584 = vunpack.c.l.b16 %v1541
    %v2585 = vunpack.c.h.b16 %v1541
    %v2586 = vunpack.c.l.b16 %v1542
    %v2587 = vunpack.c.h.b16 %v1542
    %v2588 = vunpack.c.l.b16 %v1543
    %v2589 = vunpack.c.h.b16 %v1543
    %v2590 = vunpack.c.l.b16 %v1544
    %v2591 = vunpack.c.h.b16 %v1544
    %v2592 = vunpack.c.l.b16 %v1545
    %v2593 = vunpack.c.h.b16 %v1545
    %v2594 = vunpack.c.l.b16 %v1546
    %v2595 = vunpack.c.h.b16 %v1546
    %v2596 = vunpack.c.l.b16 %v1547
    %v2597 = vunpack.c.h.b16 %v1547
    %v2598 = vunpack.c.l.b16 %v1548
    %v2599 = vunpack.c.h.b16 %v1548
    %v2600 = vunpack.c.l.b16 %v1549
    %v2601 = vunpack.c.h.b16 %v1549
    %v2602 = vunpack.c.l.b16 %v1550
    %v2603 = vunpack.c.h.b16 %v1550
    %v2604 = vunpack.c.l.b16 %v1551
    %v2605 = vunpack.c.h.b16 %v1551
    %v2606 = vunpack.c.l.b16 %v1552
    %v2607 = vunpack.c.h.b16 %v1552
    %v2608 = vunpack.c.l.b16 %v1553
    %v2609 = vunpack.c.h.b16 %v1553
    %v2610 = vunpack.c.l.b16 %v1554
    %v2611 = vunpack.c.h.b16 %v1554
    %v2612 = vunpack.c.l.b16 %v1555
    %v2613 = vunpack.c.h.b16 %v1555
    %v2614 = vunpack.c.l.b16 %v1556
    %v2615 = vunpack.c.h.b16 %v1556
    %v2616 = vunpack.c.l.b16 %v1557
    %v2617 = vunpack.c.h.b16 %v1557
    %v2618 = vunpack.c.l.b16 %v1558
    %v2619 = vunpack.c.h.b16 %v1558
    %v2620 = vunpack.c.l.b16 %v1559
    %v2621 = vunpack.c.h.b16 %v1559
    %v2622 = vunpack.c.l.b16 %v1560
    %v2623 = vunpack.c.h.b16 %v1560
    %v2624 = vunpack.c.l.b16 %v1561
    %v2625 = vunpack.c.h.b16 %v1561
    %v2626 = vunpack.c.l.b16 %v1562
    %v2627 = vunpack.c.h.b16 %v1562
    %v2628 = vunpack.c.l.b16 %v1563
    %v2629 = vunpack.c.h.b16 %v1563
    %v2630 = vunpack.c.l.b16 %v1564
    %v2631 = vunpack.c.h.b16 %v1564
    %v2632 = vunpack.c.l.b16 %v1565
    %v2633 = vunpack.c.h.b16 %v1565
    %v2634 = vunpack.c.l.b16 %v1566
    %v2635 = vunpack.c.h.b16 %v1566
    %v2636 = vunpack.c.l.b16 %v1567
    %v2637 = vunpack.c.h.b16 %v1567
    %v2638 = vunpack.c.l.b16 %v1568
    %v2639 = vunpack.c.h.b16 %v1568
    %v2640 = vunpack.c.l.b16 %v1569
    %v2641 = vunpack.c.h.b16 %v1569
    %v2642 = vunpack.c.l.b16 %v1570
    %v2643 = vunpack.c.h.b16 %v1570
    %v2644 = vunpack.c.l.b16 %v1571
    %v2645 = vunpack.c.h.b16 %v1571
    %v2646 = vunpack.c.l.b16 %v1572
    %v2647 = vunpack.c.h.b16 %v1572
    %v2648 = vunpack.c.l.b16 %v1573
    %v2649 = vunpack.c.h.b16 %v1573
    %v2650 = vunpack.c.l.b16 %v1574
    %v2651 = vunpack.c.h.b16 %v1574
    %v2652 = vunpack.c.l.b16 %v1575
    %v2653 = vunpack.c.h.b16 %v1575
    %v2654 = vunpack.c.l.b16 %v1576
    %v2655 = vunpack.c.h.b16 %v1576
    %v2656 = vunpack.c.l.b16 %v1577
    %v2657 = vunpack.c.h.b16 %v1577
    %v2658 = vunpack.c.l.b16 %v1578
    %v2659 = vunpack.c.h.b16 %v1578
    %v2660 = vunpack.c.l.b16 %v1579
    %v2661 = vunpack.c.h.b16 %v1579
    %v2662 = vunpack.c.l.b16 %v1580
    %v2663 = vunpack.c.h.b16 %v1580
    %v2664 = vunpack.c.l.b16 %v1581
    %v2665 = vunpack.c.h.b16 %v1581
    %v2666 = vunpack.c.l.b16 %v1582
    %v2667 = vunpack.c.h.b16 %v1582
    %v2668 = vunpack.c.l.b16 %v1583
    %v2669 = vunpack.c.h.b16 %v1583
    %v2670 = vunpack.c.l.b16 %v1584
    %v2671 = vunpack.c.h.b16 %v1584
    %v2672 = vunpack.c.l.b16 %v1585
    %v2673 = vunpack.c.h.b16 %v1585
    %v2674 = vunpack.c.l.b16 %v1586
    %v2675 = vunpack.c.h.b16 %v1586
    %v2676 = vunpack.c.l.b16 %v1587
    %v2677 = vunpack.c.h.b16 %v1587
    %v2678 = vunpack.c.l.b16 %v1588
    %v2679 = vunpack.c.h.b16 %v1588
    %v2680 = vunpack.c.l.b16 %v1589
    %v2681 = vunpack.c.h.b16 %v1589
    %v2682 = vunpack.c.l.b16 %v1590
    %v2683 = vunpack.c.h.b16 %v1590
    %v2684 = vunpack.c.l.b16 %v1591
    %v2685 = vunpack.c.h.b16 %v1591
    %v2686 = vunpack.c.l.b16 %v1592
    %v2687 = vunpack.c.h.b16 %v1592
    %v2688 = vunpack.c.l.b16 %v1593
    %v2689 = vunpack.c.h.b16 %v1593
    %v2690 = vunpack.c.l.b16 %v1594
    %v2691 = vunpack.c.h.b16 %v1594
    %v2692 = vunpack.c.l.b16 %v1595
    %v2693 = vunpack.c.h.b16 %v1595
    %v2694 = vunpack.c.l.b16 %v1596
    %v2695 = vunpack.c.h.b16 %v1596
    %v2696 = vunpack.c.l.b16 %v1597
    %v2697 = vunpack.c.h.b16 %v1597
    %v2698 = vunpack.c.l.b16 %v1598
    %v2699 = vunpack.c.h.b16 %v1598
    %v2700 = vunpack.c.l.b16 %v1599
    %v2701 = vunpack.c.h.b16 %v1599
    %v2702 = vunpack.c.l.b16 %v1600
    %v2703 = vunpack.c.h.b16 %v1600
    %v2704 = vunpack.c.l.b16 %v1601
    %v2705 = vunpack.c.h.b16 %v1601
    %v2706 = vunpack.c.l.b16 %v1602
    %v2707 = vunpack.c.h.b16 %v1602
    %v2708 = vunpack.c.l.b16 %v1603
    %v2709 = vunpack.c.h.b16 %v1603
    %v2710 = vunpack.c.l.b16 %v1604
    %v2711 = vunpack.c.h.b16 %v1604
    %v2712 = vunpack.c.l.b16 %v1605
    %v2713 = vunpack.c.h.b16 %v1605
    %v2714 = vunpack.c.l.b16 %v1606
    %v2715 = vunpack.c.h.b16 %v1606
    %v2716 = vunpack.c.l.b16 %v1607
    %v2717 = vunpack.c.h.b16 %v1607
    %v2718 = vunpack.c.l.b16 %v1608
    %v2719 = vunpack.c.h.b16 %v1608
    %v2720 = vunpack.c.l.b16 %v1609
    %v2721 = vunpack.c.h.b16 %v1609
    %v2722 = vunpack.c.l.b16 %v1610
    %v2723 = vunpack.c.h.b16 %v1610
    %v2724 = vunpack.c.l.b16 %v1611
    %v2725 = vunpack.c.h.b16 %v1611
    %v2726 = vunpack.c.l.b16 %v1612
    %v2727 = vunpack.c.h.b16 %v1612
    %v2728 = vunpack.c.l.b16 %v1613
    %v2729 = vunpack.c.h.b16 %v1613
    %v2730 = vunpack.c.l.b16 %v1614
    %v2731 = vunpack.c.h.b16 %v1614
    %v2732 = vunpack.c.l.b16 %v1615
    %v2733 = vunpack.c.h.b16 %v1615
    %v2734 = vunpack.c.l.b16 %v1616
    %v2735 = vunpack.c.h.b16 %v1616
    %v2736 = vunpack.c.l.b16 %v1617
    %v2737 = vunpack.c.h.b16 %v1617
    %v2738 = vunpack.c.l.b16 %v1618
    %v2739 = vunpack.c.h.b16 %v1618
    %v2740 = vunpack.c.l.b16 %v1619
    %v2741 = vunpack.c.h.b16 %v1619
    %v2742 = vunpack.c.l.b16 %v1620
    %v2743 = vunpack.c.h.b16 %v1620
    %v2744 = vunpack.c.l.b16 %v1621
    %v2745 = vunpack.c.h.b16 %v1621
    %v2746 = vunpack.c.l.b16 %v1622
    %v2747 = vunpack.c.h.b16 %v1622
    %v2748 = vunpack.c.l.b16 %v1623
    %v2749 = vunpack.c.h.b16 %v1623
    %v2750 = vunpack.c.l.b16 %v1624
    %v2751 = vunpack.c.h.b16 %v1624
    %v2752 = vunpack.c.l.b16 %v1625
    %v2753 = vunpack.c.h.b16 %v1625
    %v2754 = vunpack.c.l.b16 %v1626
    %v2755 = vunpack.c.h.b16 %v1626
    %v2756 = vunpack.c.l.b16 %v1627
    %v2757 = vunpack.c.h.b16 %v1627
    %v2758 = vunpack.c.l.b16 %v1628
    %v2759 = vunpack.c.h.b16 %v1628
    %v2760 = vunpack.c.l.b16 %v1629
    %v2761 = vunpack.c.h.b16 %v1629
    %v2762 = vunpack.c.l.b16 %v1630
    %v2763 = vunpack.c.h.b16 %v1630
    %v2764 = vunpack.c.l.b16 %v1631
    %v2765 = vunpack.c.h.b16 %v1631
    %v2766 = vunpack.c.l.b16 %v1632
    %v2767 = vunpack.c.h.b16 %v1632
    %v2768 = vunpack.c.l.b16 %v1633
    %v2769 = vunpack.c.h.b16 %v1633
    %v2770 = vunpack.c.l.b16 %v1634
    %v2771 = vunpack.c.h.b16 %v1634
    %v2772 = vunpack.c.l.b16 %v1635
    %v2773 = vunpack.c.h.b16 %v1635
    %v2774 = vunpack.c.l.b16 %v1636
    %v2775 = vunpack.c.h.b16 %v1636
    %v2776 = vunpack.c.l.b16 %v1637
    %v2777 = vunpack.c.h.b16 %v1637
    %v2778 = vunpack.c.l.b16 %v1638
    %v2779 = vunpack.c.h.b16 %v1638
    %v2780 = vunpack.c.l.b16 %v1639
    %v2781 = vunpack.c.h.b16 %v1639
    %v2782 = vunpack.c.l.b16 %v1640
    %v2783 = vunpack.c.h.b16 %v1640
    %v2784 = vunpack.c.l.b16 %v1641
    %v2785 = vunpack.c.h.b16 %v1641
    %v2786 = vunpack.c.l.b16 %v1642
    %v2787 = vunpack.c.h.b16 %v1642
    %v2788 = vunpack.c.l.b16 %v1643
    %v2789 = vunpack.c.h.b16 %v1643
    %v2790 = vunpack.c.l.b16 %v1644
    %v2791 = vunpack.c.h.b16 %v1644
    %v2792 = vunpack.c.l.b16 %v1645
    %v2793 = vunpack.c.h.b16 %v1645
    %v2794 = vunpack.c.l.b16 %v1646
    %v2795 = vunpack.c.h.b16 %v1646
    %v2796 = vunpack.c.l.b16 %v1647
    %v2797 = vunpack.c.h.b16 %v1647
    %v2798 = vunpack.c.l.b16 %v1648
    %v2799 = vunpack.c.h.b16 %v1648
    %v2800 = vunpack.c.l.b16 %v1649
    %v2801 = vunpack.c.h.b16 %v1649
    %v2802 = vunpack.c.l.b16 %v1650
    %v2803 = vunpack.c.h.b16 %v1650
    %v2804 = vunpack.c.l.b16 %v1651
    %v2805 = vunpack.c.h.b16 %v1651
    %v2806 = vunpack.c.l.b16 %v1652
    %v2807 = vunpack.c.h.b16 %v1652
    %v2808 = vunpack.c.l.b16 %v1653
    %v2809 = vunpack.c.h.b16 %v1653
    %v2810 = vunpack.c.l.b16 %v1654
    %v2811 = vunpack.c.h.b16 %v1654
    %v2812 = vunpack.c.l.b16 %v1655
    %v2813 = vunpack.c.h.b16 %v1655
    %v2814 = vunpack.c.l.b16 %v1656
    %v2815 = vunpack.c.h.b16 %v1656
    %v2816 = vunpack.c.l.b16 %v1657
    %v2817 = vunpack.c.h.b16 %v1657
    %v2818 = vunpack.c.l.b16 %v1658
    %v2819 = vunpack.c.h.b16 %v1658
    %v2820 = vunpack.c.l.b16 %v1659
    %v2821 = vunpack.c.h.b16 %v1659
    %v2822 = vunpack.c.l.b16 %v1660
    %v2823 = vunpack.c.h.b16 %v1660
    %v2824 = vunpack.c.l.b16 %v1661
    %v2825 = vunpack.c.h.b16 %v1661
    %v2826 = vunpack.c.l.b16 %v1662
    %v2827 = vunpack.c.h.b16 %v1662
    %v2828 = vunpack.c.l.b16 %v1663
    %v2829 = vunpack.c.h.b16 %v1663
    %v2830 = vunpack.c.l.b16 %v1664
    %v2831 = vunpack.c.h.b16 %v1664
    %v2832 = vunpack.c.l.b16 %v1665
    %v2833 = vunpack.c.h.b16 %v1665
    %v2834 = vunpack.c.l.b16 %v1666
    %v2835 = vunpack.c.h.b16 %v1666
    %v2836 = vunpack.c.l.b16 %v1667
    %v2837 = vunpack.c.h.b16 %v1667
    %v2838 = vunpack.c.l.b16 %v1668
    %v2839 = vunpack.c.h.b16 %v1668
    %v2840 = vunpack.c.l.b16 %v1669
    %v2841 = vunpack.c.h.b16 %v1669
    %v2842 = vunpack.c.l.b16 %v1670
    %v2843 = vunpack.c.h.b16 %v1670
    %v2844 = vunpack.c.l.b16 %v1671
    %v2845 = vunpack.c.h.b16 %v1671
    %v2846 = vunpack.c.l.b16 %v1672
    %v2847 = vunpack.c.h.b16 %v1672
    %v2848 = vunpack.c.l.b16 %v1673
    %v2849 = vunpack.c.h.b16 %v1673
    %v2850 = vunpack.c.l.b16 %v1674
    %v2851 = vunpack.c.h.b16 %v1674
    %v2852 = vunpack.c.l.b16 %v1675
    %v2853 = vunpack.c.h.b16 %v1675
    %v2854 = vunpack.c.l.b16 %v1676
    %v2855 = vunpack.c.h.b16 %v1676
    %v2856 = vunpack.c.l.b16 %v1677
    %v2857 = vunpack.c.h.b16 %v1677
    %v2858 = vunpack.c.l.b16 %v1678
    %v2859 = vunpack.c.h.b16 %v1678
    %v2860 = vunpack.c.l.b16 %v1679
    %v2861 = vunpack.c.h.b16 %v1679
    %v2862 = vunpack.c.l.b16 %v1680
    %v2863 = vunpack.c.h.b16 %v1680
    %v2864 = vunpack.c.l.b16 %v1681
    %v2865 = vunpack.c.h.b16 %v1681
    %v2866 = vunpack.c.l.b16 %v1682
    %v2867 = vunpack.c.h.b16 %v1682
    %v2868 = vunpack.c.l.b16 %v1683
    %v2869 = vunpack.c.h.b16 %v1683
    %v2870 = vunpack.c.l.b16 %v1684
    %v2871 = vunpack.c.h.b16 %v1684
    %v2872 = vunpack.c.l.b16 %v1685
    %v2873 = vunpack.c.h.b16 %v1685
    %v2874 = vunpack.c.l.b16 %v1686
    %v2875 = vunpack.c.h.b16 %v1686
    %v2876 = vunpack.c.l.b16 %v1687
    %v2877 = vunpack.c.h.b16 %v1687
    %v2878 = vunpack.c.l.b16 %v1688
    %v2879 = vunpack.c.h.b16 %v1688
    %v2880 = vunpack.c.l.b16 %v1689
    %v2881 = vunpack.c.h.b16 %v1689
    %v2882 = vunpack.c.l.b16 %v1690
    %v2883 = vunpack.c.h.b16 %v1690
    %v2884 = vunpack.c.l.b16 %v1691
    %v2885 = vunpack.c.h.b16 %v1691
    %v2886 = vunpack.c.l.b16 %v1692
    %v2887 = vunpack.c.h.b16 %v1692
    %v2888 = vunpack.c.l.b16 %v1693
    %v2889 = vunpack.c.h.b16 %v1693
    %v2890 = vunpack.c.l.b16 %v1694
    %v2891 = vunpack.c.h.b16 %v1694
    %v2892 = vunpack.c.l.b16 %v1695
    %v2893 = vunpack.c.h.b16 %v1695
    %v2894 = vunpack.c.l.b16 %v1696
    %v2895 = vunpack.c.h.b16 %v1696
    %v2896 = vunpack.c.l.b16 %v1697
    %v2897 = vunpack.c.h.b16 %v1697
    %v2898 = vunpack.c.l.b16 %v1698
    %v2899 = vunpack.c.h.b16 %v1698
    %v2900 = vunpack.c.l.b16 %v1699
    %v2901 = vunpack.c.h.b16 %v1699
    %v2902 = vunpack.c.l.b16 %v1700
    %v2903 = vunpack.c.h.b16 %v1700
    %v2904 = vunpack.c.l.b16 %v1701
    %v2905 = vunpack.c.h.b16 %v1701
    %v2906 = vunpack.c.l.b16 %v1702
    %v2907 = vunpack.c.h.b16 %v1702
    %v2908 = vunpack.c.l.b16 %v1703
    %v2909 = vunpack.c.h.b16 %v1703
    %v2910 = vunpack.c.l.b16 %v1704
    %v2911 = vunpack.c.h.b16 %v1704
    %v2912 = vunpack.c.l.b16 %v1705
    %v2913 = vunpack.c.h.b16 %v1705
    %v2914 = vunpack.c.l.b16 %v1706
    %v2915 = vunpack.c.h.b16 %v1706
    %v2916 = vunpack.c.l.b16 %v1707
    %v2917 = vunpack.c.h.b16 %v1707
    %v2918 = vunpack.c.l.b16 %v1708
    %v2919 = vunpack.c.h.b16 %v1708
    %v2920 = vunpack.c.l.b16 %v1709
    %v2921 = vunpack.c.h.b16 %v1709
    %v2922 = vunpack.c.l.b16 %v1710
    %v2923 = vunpack.c.h.b16 %v1710
    %v2924 = vunpack.c.l.b16 %v1711
    %v2925 = vunpack.c.h.b16 %v1711
    %v2926 = vunpack.c.l.b16 %v1712
    %v2927 = vunpack.c.h.b16 %v1712
    %v2928 = vunpack.c.l.b16 %v1713
    %v2929 = vunpack.c.h.b16 %v1713
    %v2930 = vpack.c.b16 %v2550, %v2546
    %v2931 = vpack.c.b16 %v2551, %v2547
    %v2932 = vpack.c.b16 %v2552, %v2548
    %v2933 = vpack.c.b16 %v2553, %v2549
    %v2934 = vpack.c.b16 %v2558, %v2554
    %v2935 = vpack.c.b16 %v2559, %v2555
    %v2936 = vpack.c.b16 %v2560, %v2556
    %v2937 = vpack.c.b16 %v2561, %v2557
    %v2938 = vpack.c.b16 %v2566, %v2562
    %v2939 = vpack.c.b16 %v2567, %v2563
    %v2940 = vpack.c.b16 %v2568, %v2564
    %v2941 = vpack.c.b16 %v2569, %v2565
    %v2942 = vpack.c.b16 %v2574, %v2570
    %v2943 = vpack.c.b16 %v2575, %v2571
    %v2944 = vpack.c.b16 %v2576, %v2572
    %v2945 = vpack.c.b16 %v2577, %v2573
    %v2946 = vpack.c.b16 %v2582, %v2578
    %v2947 = vpack.c.b16 %v2583, %v2579
    %v2948 = vpack.c.b16 %v2584, %v2580
    %v2949 = vpack.c.b16 %v2585, %v2581
    %v2950 = vpack.c.b16 %v2590, %v2586
    %v2951 = vpack.c.b16 %v2591, %v2587
    %v2952 = vpack.c.b16 %v2592, %v2588
    %v2953 = vpack.c.b16 %v2593, %v2589
    %v2954 = vpack.c.b16 %v2598, %v2594
    %v2955 = vpack.c.b16 %v2599, %v2595
    %v2956 = vpack.c.b16 %v2600, %v2596
    %v2957 = vpack.c.b16 %v2601, %v2597
    %v2958 = vpack.c.b16 %v2606, %v2602
    %v2959 = vpack.c.b16 %v2607, %v2603
    %v2960 = vpack.c.b16 %v2608, %v2604
    %v2961 = vpack.c.b16 %v2609, %v2605
    %v2962 = vpack.c.b16 %v2614, %v2610
    %v2963 = vpack.c.b16 %v2615, %v2611
    %v2964 = vpack.c.b16 %v2616, %v2612
    %v2965 = vpack.c.b16 %v2617, %v2613
    %v2966 = vpack.c.b16 %v2622, %v2618
    %v2967 = vpack.c.b16 %v2623, %v2619
    %v2968 = vpack.c.b16 %v2624, %v2620
    %v2969 = vpack.c.b16 %v2625, %v2621
    %v2970 = vpack.c.b16 %v2630, %v2626
    %v2971 = vpack.c.b16 %v2631, %v2627
    %v2972 = vpack.c.b16 %v2632, %v2628
    %v2973 = vpack.c.b16 %v2633, %v2629
    %v2974 = vpack.c.b16 %v2638, %v2634
    %v2975 = vpack.c.b16 %v2639, %v2635
    %v2976 = vpack.c.b16 %v2640, %v2636
    %v2977 = vpack.c.b16 %v2641, %v2637
    %v2978 = vpack.c.b16 %v2646, %v2642
    %v2979 = vpack.c.b16 %v2647, %v2643
    %v2980 = vpack.c.b16 %v2648, %v2644
    %v2981 = vpack.c.b16 %v2649, %v2645
    %v2982 = vpack.c.b16 %v2654, %v2650
    %v2983 = vpack.c.b16 %v2655, %v2651
    %v2984 = vpack.c.b16 %v2656, %v2652
    %v2985 = vpack.c.b16 %v2657, %v2653
    %v2986 = vpack.c.b16 %v2662, %v2658
    %v2987 = vpack.c.b16 %v2663, %v2659
    %v2988 = vpack.c.b16 %v2664, %v2660
    %v2989 = vpack.c.b16 %v2665, %v2661
    %v2990 = vpack.c.b16 %v2670, %v2666
    %v2991 = vpack.c.b16 %v2671, %v2667
    %v2992 = vpack.c.b16 %v2672, %v2668
    %v2993 = vpack.c.b16 %v2673, %v2669
    %v2994 = vpack.c.b16 %v2678, %v2674
    %v2995 = vpack.c.b16 %v2679, %v2675
    %v2996 = vpack.c.b16 %v2680, %v2676
    %v2997 = vpack.c.b16 %v2681, %v2677
    %v2998 = vpack.c.b16 %v2686, %v2682
    %v2999 = vpack.c.b16 %v2687, %v2683
    %v3000 = vpack.c.b16 %v2688, %v2684
    %v3001 = vpack.c.b16 %v2689, %v2685
    %v3002 = vpack.c.b16 %v2694, %v2690
    %v3003 = vpack.c.b16 %v2695, %v2691
    %v3004 = vpack.c.b16 %v2696, %v2692
    %v3005 = vpack.c.b16 %v2697, %v2693
    %v3006 = vpack.c.b16 %v2702, %v2698
    %v3007 = vpack.c.b16 %v2703, %v2699
    %v3008 = vpack.c.b16 %v2704, %v2700
    %v3009 = vpack.c.b16 %v2705, %v2701
    %v3010 = vpack.c.b16 %v2710, %v2706
    %v3011 = vpack.c.b16 %v2711, %v2707
    %v3012 = vpack.c.b16 %v2712, %v2708
    %v3013 = vpack.c.b16 %v2713, %v2709
    %v3014 = vpack.c.b16 %v2718, %v2714
    %v3015 = vpack.c.b16 %v2719, %v2715
    %v3016 = vpack.c.b16 %v2720, %v2716
    %v3017 = vpack.c.b16 %v2721, %v2717
    %v3018 = vpack.c.b16 %v2726, %v2722
    %v3019 = vpack.c.b16 %v2727, %v2723
    %v3020 = vpack.c.b16 %v2728, %v2724
    %v3021 = vpack.c.b16 %v2729, %v2725
    %v3022 = vpack.c.b16 %v2734, %v2730
    %v3023 = vpack.c.b16 %v2735, %v2731
    %v3024 = vpack.c.b16 %v2736, %v2732
    %v3025 = vpack.c.b16 %v2737, %v2733
    %v3026 = vpack.c.b16 %v2742, %v2738
    %v3027 = vpack.c.b16 %v2743, %v2739
    %v3028 = vpack.c.b16 %v2744, %v2740
    %v3029 = vpack.c.b16 %v2745, %v2741
    %v3030 = vpack.c.b16 %v2750, %v2746
    %v3031 = vpack.c.b16 %v2751, %v2747
    %v3032 = vpack.c.b16 %v2752, %v2748
    %v3033 = vpack.c.b16 %v2753, %v2749
    %v3034 = vpack.c.b16 %v2758, %v2754
    %v3035 = vpack.c.b16 %v2759, %v2755
    %v3036 = vpack.c.b16 %v2760, %v2756
    %v3037 = vpack.c.b16 %v2761, %v2757
    %v3038 = vpack.c.b16 %v2766, %v2762
    %v3039 = vpack.c.b16 %v2767, %v2763
    %v3040 = vpack.c.b16 %v2768, %v2764
    %v3041 = vpack.c.b16 %v2769, %v2765
    %v3042 = vpack.c.b16 %v2774, %v2770
    %v3043 = vpack.c.b16 %v2775, %v2771
    %v3044 = vpack.c.b16 %v2776, %v2772
    %v3045 = vpack.c.b16 %v2777, %v2773
    %v3046 = vpack.c.b16 %v2782, %v2778
    %v3047 = vpack.c.b16 %v2783, %v2779
    %v3048 = vpack.c.b16 %v2784, %v2780
    %v3049 = vpack.c.b16 %v2785, %v2781
    %v3050 = vpack.c.b16 %v2790, %v2786
    %v3051 = vpack.c.b16 %v2791, %v2787
    %v3052 = vpack.c.b16 %v2792, %v2788
    %v3053 = vpack.c.b16 %v2793, %v2789
    %v3054 = vpack.c.b16 %v2798, %v2794
    %v3055 = vpack.c.b16 %v2799, %v2795
    %v3056 = vpack.c.b16 %v2800, %v2796
    %v3057 = vpack.c.b16 %v2801, %v2797
    %v3058 = vpack.c.b16 %v2806, %v2802
    %v3059 = vpack.c.b16 %v2807, %v2803
    %v3060 = vpack.c.b16 %v2808, %v2804
    %v3061 = vpack.c.b16 %v2809, %v2805
    %v3062 = vpack.c.b16 %v2814, %v2810
    %v3063 = vpack.c.b16 %v2815, %v2811
    %v3064 = vpack.c.b16 %v2816, %v2812
    %v3065 = vpack.c.b16 %v2817, %v2813
    %v3066 = vpack.c.b16 %v2822, %v2818
    %v3067 = vpack.c.b16 %v2823, %v2819
    %v3068 = vpack.c.b16 %v2824, %v2820
    %v3069 = vpack.c.b16 %v2825, %v2821
    %v3070 = vpack.c.b16 %v2830, %v2826
    %v3071 = vpack.c.b16 %v2831, %v2827
    %v3072 = vpack.c.b16 %v2832, %v2828
    %v3073 = vpack.c.b16 %v2833, %v2829
    %v3074 = vpack.c.b16 %v2838, %v2834
    %v3075 = vpack.c.b16 %v2839, %v2835
    %v3076 = vpack.c.b16 %v2840, %v2836
    %v3077 = vpack.c.b16 %v2841, %v2837
    %v3078 = vpack.c.b16 %v2846, %v2842
    %v3079 = vpack.c.b16 %v2847, %v2843
    %v3080 = vpack.c.b16 %v2848, %v2844
    %v3081 = vpack.c.b16 %v2849, %v2845
    %v3082 = vpack.c.b16 %v2854, %v2850
    %v3083 = vpack.c.b16 %v2855, %v2851
    %v3084 = vpack.c.b16 %v2856, %v2852
    %v3085 = vpack.c.b16 %v2857, %v2853
    %v3086 = vpack.c.b16 %v2862, %v2858
    %v3087 = vpack.c.b16 %v2863, %v2859
    %v3088 = vpack.c.b16 %v2864, %v2860
    %v3089 = vpack.c.b16 %v2865, %v2861
    %v3090 = vpack.c.b16 %v2870, %v2866
    %v3091 = vpack.c.b16 %v2871, %v2867
    %v3092 = vpack.c.b16 %v2872, %v2868
    %v3093 = vpack.c.b16 %v2873, %v2869
    %v3094 = vpack.c.b16 %v2878, %v2874
    %v3095 = vpack.c.b16 %v2879, %v2875
    %v3096 = vpack.c.b16 %v2880, %v2876
    %v3097 = vpack.c.b16 %v2881, %v2877
    %v3098 = vpack.c.b16 %v2886, %v2882
    %v3099 = vpack.c.b16 %v2887, %v2883
    %v3100 = vpack.c.b16 %v2888, %v2884
    %v3101 = vpack.c.b16 %v2889, %v2885
    %v3102 = vpack.c.b16 %v2894, %v2890
    %v3103 = vpack.c.b16 %v2895, %v2891
    %v3104 = vpack.c.b16 %v2896, %v2892
    %v3105 = vpack.c.b16 %v2897, %v2893
    %v3106 = vpack.c.b16 %v2902, %v2898
    %v3107 = vpack.c.b16 %v2903, %v2899
    %v3108 = vpack.c.b16 %v2904, %v2900
    %v3109 = vpack.c.b16 %v2905, %v2901
    %v3110 = vpack.c.b16 %v2910, %v2906
    %v3111 = vpack.c.b16 %v2911, %v2907
    %v3112 = vpack.c.b16 %v2912, %v2908
    %v3113 = vpack.c.b16 %v2913, %v2909
    %v3114 = vpack.c.b16 %v2918, %v2914
    %v3115 = vpack.c.b16 %v2919, %v2915
    %v3116 = vpack.c.b16 %v2920, %v2916
    %v3117 = vpack.c.b16 %v2921, %v2917
    %v3118 = vpack.c.b16 %v2926, %v2922
    %v3119 = vpack.c.b16 %v2927, %v2923
    %v3120 = vpack.c.b16 %v2928, %v2924
    %v3121 = vpack.c.b16 %v2929, %v2925
    %3314 = vmatprep.subr.bf16.mxu0 %v1715
    %3315 = vmatpush1.bf16.msra.mxu0 %v1714
    %3316 = vmatprep.subr.bf16.mxu0 %v1717
    %3317 = vmatpush1.bf16.msra.mxu0 %v1716
    %3318 = vmatprep.subr.bf16.mxu0 %v1719
    %3319 = vmatpush1.bf16.msra.mxu0 %v1718
    %3320 = vmatprep.subr.bf16.mxu0 %v1721
    %3321 = vmatpush1.bf16.msra.mxu0 %v1720
    %3322 = vmatprep.subr.bf16.mxu0 %v1723
    %3323 = vmatpush1.bf16.msra.mxu0 %v1722
    %3324 = vmatprep.subr.bf16.mxu0 %v1725
    %3325 = vmatpush1.bf16.msra.mxu0 %v1724
    %3326 = vmatprep.subr.bf16.mxu0 %v1727
    %3327 = vmatpush1.bf16.msra.mxu0 %v1726
    %3328 = vmatprep.subr.bf16.mxu0 %v1729
    %3329 = vmatpush1.bf16.msra.mxu0 %v1728
    %3330 = vmatprep.subr.bf16.mxu0 %v1731
    %3331 = vmatpush1.bf16.msra.mxu0 %v1730
    %3332 = vmatprep.subr.bf16.mxu0 %v1733
    %3333 = vmatpush1.bf16.msra.mxu0 %v1732
    %3334 = vmatprep.subr.bf16.mxu0 %v1735
    %3335 = vmatpush1.bf16.msra.mxu0 %v1734
    %3336 = vmatprep.subr.bf16.mxu0 %v1737
    %3337 = vmatpush1.bf16.msra.mxu0 %v1736
    %3338 = vmatprep.subr.bf16.mxu0 %v1739
    %3339 = vmatpush1.bf16.msra.mxu0 %v1738
    %3340 = vmatprep.subr.bf16.mxu0 %v1741
    %3341 = vmatpush1.bf16.msra.mxu0 %v1740
    %3342 = vmatprep.subr.bf16.mxu0 %v1743
    %3343 = vmatpush1.bf16.msra.mxu0 %v1742
    %3344 = vmatprep.subr.bf16.mxu0 %v1745
    %3345 = vmatpush1.bf16.msra.mxu0 %v1744
    %3346 = vmatprep.mubr.bf16.mxu0 %v2931
    %3347 = vmatmul.mubr.bf16.gmra.mrb[0].mxu0 %v2930
    %v3348 = vpop.f32.mrb[0].mxu0
    %v3349 = vadd.f32 %v1877, %v3348
    %v3350 = vpop.f32.mrb[0].mxu0
    %v3351 = vadd.f32 %v1877, %v3350
    %v3352 = vpop.f32.mrb[0].mxu0
    %v3353 = vadd.f32 %v1882, %v3352
    %v3354 = vpop.f32.mrb[0].mxu0
    %v3355 = vadd.f32 %v1882, %v3354
    %3356 = vmatprep.mubr.bf16.mxu0 %v2935
    %3357 = vmatmul.mubr.bf16.gmra.mrb[0].mxu0 %v2934
    %v3358 = vpop.f32.mrb[0].mxu0
    %v3359 = vadd.f32 %v1887, %v3358
    %v3360 = vpop.f32.mrb[0].mxu0
    %v3361 = vadd.f32 %v1887, %v3360
    %v3362 = vpop.f32.mrb[0].mxu0
    %v3363 = vadd.f32 %v1892, %v3362
    %v3364 = vpop.f32.mrb[0].mxu0
    %v3365 = vadd.f32 %v1892, %v3364
    %3366 = vmatprep.mubr.bf16.mxu0 %v2939
    %3367 = vmatmul.mubr.bf16.gmra.mrb[0].mxu0 %v2938
    %v3368 = vpop.f32.mrb[0].mxu0
    %v3369 = vadd.f32 %v1897, %v3368
    %v3370 = vpop.f32.mrb[0].mxu0
    %v3371 = vadd.f32 %v1897, %v3370
    %v3372 = vpop.f32.mrb[0].mxu0
    %v3373 = vadd.f32 %v1902, %v3372
    %v3374 = vpop.f32.mrb[0].mxu0
    %v3375 = vadd.f32 %v1902, %v3374
    %3376 = vmatprep.mubr.bf16.mxu0 %v2943
    %3377 = vmatmul.mubr.bf16.gmra.mrb[0].mxu0 %v2942
    %v3378 = vpop.f32.mrb[0].mxu0
    %v3379 = vadd.f32 %v1907, %v3378
    %v3380 = vpop.f32.mrb[0].mxu0
    %v3381 = vadd.f32 %v1907, %v3380
    %v3382 = vpop.f32.mrb[0].mxu0
    %v3383 = vadd.f32 %v1912, %v3382
    %v3384 = vpop.f32.mrb[0].mxu0
    %v3385 = vadd.f32 %v1912, %v3384
    %3386 = vmatprep.mubr.bf16.mxu0 %v2947
    %3387 = vmatmul.mubr.bf16.gmra.mrb[0].mxu0 %v2946
    %v3388 = vpop.f32.mrb[0].mxu0
    %v3389 = vadd.f32 %v1917, %v3388
    %v3390 = vpop.f32.mrb[0].mxu0
    %v3391 = vadd.f32 %v1917, %v3390
    %v3392 = vpop.f32.mrb[0].mxu0
    %v3393 = vadd.f32 %v1922, %v3392
    %v3394 = vpop.f32.mrb[0].mxu0
    %v3395 = vadd.f32 %v1922, %v3394
    %3396 = vmatprep.mubr.bf16.mxu0 %v2951
    %3397 = vmatmul.mubr.bf16.gmra.mrb[0].mxu0 %v2950
    %v3398 = vpop.f32.mrb[0].mxu0
    %v3399 = vadd.f32 %v1927, %v3398
    %v3400 = vpop.f32.mrb[0].mxu0
    %v3401 = vadd.f32 %v1927, %v3400
    %v3402 = vpop.f32.mrb[0].mxu0
    %v3403 = vadd.f32 %v1932, %v3402
    %v3404 = vpop.f32.mrb[0].mxu0
    %v3405 = vadd.f32 %v1932, %v3404
    %3406 = vmatprep.mubr.bf16.mxu0 %v2955
    %3407 = vmatmul.mubr.bf16.gmra.mrb[0].mxu0 %v2954
    %v3408 = vpop.f32.mrb[0].mxu0
    %v3409 = vadd.f32 %v1937, %v3408
    %v3410 = vpop.f32.mrb[0].mxu0
    %v3411 = vadd.f32 %v1937, %v3410
    %v3412 = vpop.f32.mrb[0].mxu0
    %v3413 = vadd.f32 %v1942, %v3412
    %v3414 = vpop.f32.mrb[0].mxu0
    %v3415 = vadd.f32 %v1942, %v3414
    %3416 = vmatprep.mubr.bf16.mxu0 %v2959
    %3417 = vmatmul.mubr.bf16.gmra.mrb[0].mxu0 %v2958
    %v3418 = vpop.f32.mrb[0].mxu0
    %v3419 = vadd.f32 %v1947, %v3418
    %v3420 = vpop.f32.mrb[0].mxu0
    %v3421 = vadd.f32 %v1947, %v3420
    %v3422 = vpop.f32.mrb[0].mxu0
    %v3423 = vadd.f32 %v1952, %v3422
    %v3424 = vpop.f32.mrb[0].mxu0
    %v3425 = vadd.f32 %v1952, %v3424
    %3426 = vmatprep.mubr.bf16.mxu0 %v2963
    %3427 = vmatmul.mubr.bf16.gmra.mrb[0].mxu0 %v2962
    %v3428 = vpop.f32.mrb[0].mxu0
    %v3429 = vadd.f32 %v1957, %v3428
    %v3430 = vpop.f32.mrb[0].mxu0
    %v3431 = vadd.f32 %v1957, %v3430
    %v3432 = vpop.f32.mrb[0].mxu0
    %v3433 = vadd.f32 %v1962, %v3432
    %v3434 = vpop.f32.mrb[0].mxu0
    %v3435 = vadd.f32 %v1962, %v3434
    %3436 = vmatprep.mubr.bf16.mxu0 %v2967
    %3437 = vmatmul.mubr.bf16.gmra.mrb[0].mxu0 %v2966
    %v3438 = vpop.f32.mrb[0].mxu0
    %v3439 = vadd.f32 %v1967, %v3438
    %v3440 = vpop.f32.mrb[0].mxu0
    %v3441 = vadd.f32 %v1967, %v3440
    %v3442 = vpop.f32.mrb[0].mxu0
    %v3443 = vadd.f32 %v1972, %v3442
    %v3444 = vpop.f32.mrb[0].mxu0
    %v3445 = vadd.f32 %v1972, %v3444
    %3446 = vmatprep.mubr.bf16.mxu0 %v2971
    %3447 = vmatmul.mubr.bf16.gmra.mrb[0].mxu0 %v2970
    %v3448 = vpop.f32.mrb[0].mxu0
    %v3449 = vadd.f32 %v1977, %v3448
    %v3450 = vpop.f32.mrb[0].mxu0
    %v3451 = vadd.f32 %v1977, %v3450
    %v3452 = vpop.f32.mrb[0].mxu0
    %v3453 = vadd.f32 %v1982, %v3452
    %v3454 = vpop.f32.mrb[0].mxu0
    %v3455 = vadd.f32 %v1982, %v3454
    %3456 = vmatprep.mubr.bf16.mxu0 %v2975
    %3457 = vmatmul.mubr.bf16.gmra.mrb[0].mxu0 %v2974
    %v3458 = vpop.f32.mrb[0].mxu0
    %v3459 = vadd.f32 %v1987, %v3458
    %v3460 = vpop.f32.mrb[0].mxu0
    %v3461 = vadd.f32 %v1987, %v3460
    %v3462 = vpop.f32.mrb[0].mxu0
    %v3463 = vadd.f32 %v1992, %v3462
    %v3464 = vpop.f32.mrb[0].mxu0
    %v3465 = vadd.f32 %v1992, %v3464
    %3466 = vmatprep.mubr.bf16.mxu0 %v2979
    %3467 = vmatmul.mubr.bf16.gmra.mrb[0].mxu0 %v2978
    %v3468 = vpop.f32.mrb[0].mxu0
    %v3469 = vadd.f32 %v1997, %v3468
    %v3470 = vpop.f32.mrb[0].mxu0
    %v3471 = vadd.f32 %v1997, %v3470
    %v3472 = vpop.f32.mrb[0].mxu0
    %v3473 = vadd.f32 %v2002, %v3472
    %v3474 = vpop.f32.mrb[0].mxu0
    %v3475 = vadd.f32 %v2002, %v3474
    %3476 = vmatprep.mubr.bf16.mxu0 %v2983
    %3477 = vmatmul.mubr.bf16.gmra.mrb[0].mxu0 %v2982
    %v3478 = vpop.f32.mrb[0].mxu0
    %v3479 = vadd.f32 %v2007, %v3478
    %v3480 = vpop.f32.mrb[0].mxu0
    %v3481 = vadd.f32 %v2007, %v3480
    %v3482 = vpop.f32.mrb[0].mxu0
    %v3483 = vadd.f32 %v2012, %v3482
    %v3484 = vpop.f32.mrb[0].mxu0
    %v3485 = vadd.f32 %v2012, %v3484
    %3486 = vmatprep.mubr.bf16.mxu0 %v2987
    %3487 = vmatmul.mubr.bf16.gmra.mrb[0].mxu0 %v2986
    %v3488 = vpop.f32.mrb[0].mxu0
    %v3489 = vadd.f32 %v2017, %v3488
    %v3490 = vpop.f32.mrb[0].mxu0
    %v3491 = vadd.f32 %v2017, %v3490
    %v3492 = vpop.f32.mrb[0].mxu0
    %v3493 = vadd.f32 %v2022, %v3492
    %v3494 = vpop.f32.mrb[0].mxu0
    %v3495 = vadd.f32 %v2022, %v3494
    %3496 = vmatprep.mubr.bf16.mxu0 %v2991
    %3497 = vmatmul.mubr.bf16.gmra.mrb[0].mxu0 %v2990
    %v3498 = vpop.f32.mrb[0].mxu0
    %v3499 = vadd.f32 %v2027, %v3498
    %v3500 = vpop.f32.mrb[0].mxu0
    %v3501 = vadd.f32 %v2027, %v3500
    %v3502 = vpop.f32.mrb[0].mxu0
    %v3503 = vadd.f32 %v2032, %v3502
    %v3504 = vpop.f32.mrb[0].mxu0
    %v3505 = vadd.f32 %v2032, %v3504
    %3506 = vmatprep.mubr.bf16.mxu0 %v2995
    %3507 = vmatmul.mubr.bf16.gmra.mrb[0].mxu0 %v2994
    %v3508 = vpop.f32.mrb[0].mxu0
    %v3509 = vadd.f32 %v2037, %v3508
    %v3510 = vpop.f32.mrb[0].mxu0
    %v3511 = vadd.f32 %v2037, %v3510
    %v3512 = vpop.f32.mrb[0].mxu0
    %v3513 = vadd.f32 %v2042, %v3512
    %v3514 = vpop.f32.mrb[0].mxu0
    %v3515 = vadd.f32 %v2042, %v3514
    %3516 = vmatprep.mubr.bf16.mxu0 %v2999
    %3517 = vmatmul.mubr.bf16.gmra.mrb[0].mxu0 %v2998
    %v3518 = vpop.f32.mrb[0].mxu0
    %v3519 = vadd.f32 %v2047, %v3518
    %v3520 = vpop.f32.mrb[0].mxu0
    %v3521 = vadd.f32 %v2047, %v3520
    %v3522 = vpop.f32.mrb[0].mxu0
    %v3523 = vadd.f32 %v2052, %v3522
    %v3524 = vpop.f32.mrb[0].mxu0
    %v3525 = vadd.f32 %v2052, %v3524
    %3526 = vmatprep.mubr.bf16.mxu0 %v3003
    %3527 = vmatmul.mubr.bf16.gmra.mrb[0].mxu0 %v3002
    %v3528 = vpop.f32.mrb[0].mxu0
    %v3529 = vadd.f32 %v2057, %v3528
    %v3530 = vpop.f32.mrb[0].mxu0
    %v3531 = vadd.f32 %v2057, %v3530
    %v3532 = vpop.f32.mrb[0].mxu0
    %v3533 = vadd.f32 %v2062, %v3532
    %v3534 = vpop.f32.mrb[0].mxu0
    %v3535 = vadd.f32 %v2062, %v3534
    %3536 = vmatprep.mubr.bf16.mxu0 %v3007
    %3537 = vmatmul.mubr.bf16.gmra.mrb[0].mxu0 %v3006
    %v3538 = vpop.f32.mrb[0].mxu0
    %v3539 = vadd.f32 %v2067, %v3538
    %v3540 = vpop.f32.mrb[0].mxu0
    %v3541 = vadd.f32 %v2067, %v3540
    %v3542 = vpop.f32.mrb[0].mxu0
    %v3543 = vadd.f32 %v2072, %v3542
    %v3544 = vpop.f32.mrb[0].mxu0
    %v3545 = vadd.f32 %v2072, %v3544
    %3546 = vmatprep.mubr.bf16.mxu0 %v3011
    %3547 = vmatmul.mubr.bf16.gmra.mrb[0].mxu0 %v3010
    %v3548 = vpop.f32.mrb[0].mxu0
    %v3549 = vadd.f32 %v2077, %v3548
    %v3550 = vpop.f32.mrb[0].mxu0
    %v3551 = vadd.f32 %v2077, %v3550
    %v3552 = vpop.f32.mrb[0].mxu0
    %v3553 = vadd.f32 %v2082, %v3552
    %v3554 = vpop.f32.mrb[0].mxu0
    %v3555 = vadd.f32 %v2082, %v3554
    %3556 = vmatprep.mubr.bf16.mxu0 %v3015
    %3557 = vmatmul.mubr.bf16.gmra.mrb[0].mxu0 %v3014
    %v3558 = vpop.f32.mrb[0].mxu0
    %v3559 = vadd.f32 %v2087, %v3558
    %v3560 = vpop.f32.mrb[0].mxu0
    %v3561 = vadd.f32 %v2087, %v3560
    %v3562 = vpop.f32.mrb[0].mxu0
    %v3563 = vadd.f32 %v2092, %v3562
    %v3564 = vpop.f32.mrb[0].mxu0
    %v3565 = vadd.f32 %v2092, %v3564
    %3566 = vmatprep.mubr.bf16.mxu0 %v3019
    %3567 = vmatmul.mubr.bf16.gmra.mrb[0].mxu0 %v3018
    %v3568 = vpop.f32.mrb[0].mxu0
    %v3569 = vadd.f32 %v2097, %v3568
    %v3570 = vpop.f32.mrb[0].mxu0
    %v3571 = vadd.f32 %v2097, %v3570
    %v3572 = vpop.f32.mrb[0].mxu0
    %v3573 = vadd.f32 %v2102, %v3572
    %v3574 = vpop.f32.mrb[0].mxu0
    %v3575 = vadd.f32 %v2102, %v3574
    %3576 = vmatprep.mubr.bf16.mxu0 %v3023
    %3577 = vmatmul.mubr.bf16.gmra.mrb[0].mxu0 %v3022
    %v3578 = vpop.f32.mrb[0].mxu0
    %v3579 = vadd.f32 %v2107, %v3578
    %v3580 = vpop.f32.mrb[0].mxu0
    %v3581 = vadd.f32 %v2107, %v3580
    %v3582 = vpop.f32.mrb[0].mxu0
    %v3583 = vadd.f32 %v2112, %v3582
    %v3584 = vpop.f32.mrb[0].mxu0
    %v3585 = vadd.f32 %v2112, %v3584
    %3586 = vmatprep.mubr.bf16.mxu0 %v3027
    %3587 = vmatmul.mubr.bf16.gmra.mrb[0].mxu0 %v3026
    %v3588 = vpop.f32.mrb[0].mxu0
    %v3589 = vadd.f32 %v2117, %v3588
    %v3590 = vpop.f32.mrb[0].mxu0
    %v3591 = vadd.f32 %v2117, %v3590
    %v3592 = vpop.f32.mrb[0].mxu0
    %v3593 = vadd.f32 %v2122, %v3592
    %v3594 = vpop.f32.mrb[0].mxu0
    %v3595 = vadd.f32 %v2122, %v3594
    %3596 = vmatprep.mubr.bf16.mxu0 %v3031
    %3597 = vmatmul.mubr.bf16.gmra.mrb[0].mxu0 %v3030
    %v3598 = vpop.f32.mrb[0].mxu0
    %v3599 = vadd.f32 %v2127, %v3598
    %v3600 = vpop.f32.mrb[0].mxu0
    %v3601 = vadd.f32 %v2127, %v3600
    %v3602 = vpop.f32.mrb[0].mxu0
    %v3603 = vadd.f32 %v2132, %v3602
    %v3604 = vpop.f32.mrb[0].mxu0
    %v3605 = vadd.f32 %v2132, %v3604
    %3606 = vmatprep.mubr.bf16.mxu0 %v3035
    %3607 = vmatmul.mubr.bf16.gmra.mrb[0].mxu0 %v3034
    %v3608 = vpop.f32.mrb[0].mxu0
    %v3609 = vadd.f32 %v2137, %v3608
    %v3610 = vpop.f32.mrb[0].mxu0
    %v3611 = vadd.f32 %v2137, %v3610
    %v3612 = vpop.f32.mrb[0].mxu0
    %v3613 = vadd.f32 %v2142, %v3612
    %v3614 = vpop.f32.mrb[0].mxu0
    %v3615 = vadd.f32 %v2142, %v3614
    %3616 = vmatprep.mubr.bf16.mxu0 %v3039
    %3617 = vmatmul.mubr.bf16.gmra.mrb[0].mxu0 %v3038
    %v3618 = vpop.f32.mrb[0].mxu0
    %v3619 = vadd.f32 %v2147, %v3618
    %v3620 = vpop.f32.mrb[0].mxu0
    %v3621 = vadd.f32 %v2147, %v3620
    %v3622 = vpop.f32.mrb[0].mxu0
    %v3623 = vadd.f32 %v2152, %v3622
    %v3624 = vpop.f32.mrb[0].mxu0
    %v3625 = vadd.f32 %v2152, %v3624
    %3626 = vmatprep.mubr.bf16.mxu0 %v3043
    %3627 = vmatmul.mubr.bf16.gmra.mrb[0].mxu0 %v3042
    %v3628 = vpop.f32.mrb[0].mxu0
    %v3629 = vadd.f32 %v2157, %v3628
    %v3630 = vpop.f32.mrb[0].mxu0
    %v3631 = vadd.f32 %v2157, %v3630
    %v3632 = vpop.f32.mrb[0].mxu0
    %v3633 = vadd.f32 %v2162, %v3632
    %v3634 = vpop.f32.mrb[0].mxu0
    %v3635 = vadd.f32 %v2162, %v3634
    %3636 = vmatprep.mubr.bf16.mxu0 %v3047
    %3637 = vmatmul.mubr.bf16.gmra.mrb[0].mxu0 %v3046
    %v3638 = vpop.f32.mrb[0].mxu0
    %v3639 = vadd.f32 %v2167, %v3638
    %v3640 = vpop.f32.mrb[0].mxu0
    %v3641 = vadd.f32 %v2167, %v3640
    %v3642 = vpop.f32.mrb[0].mxu0
    %v3643 = vadd.f32 %v2172, %v3642
    %v3644 = vpop.f32.mrb[0].mxu0
    %v3645 = vadd.f32 %v2172, %v3644
    %3646 = vmatprep.mubr.bf16.mxu0 %v3051
    %3647 = vmatmul.mubr.bf16.gmra.mrb[0].mxu0 %v3050
    %v3648 = vpop.f32.mrb[0].mxu0
    %v3649 = vadd.f32 %v2177, %v3648
    %v3650 = vpop.f32.mrb[0].mxu0
    %v3651 = vadd.f32 %v2177, %v3650
    %v3652 = vpop.f32.mrb[0].mxu0
    %v3653 = vadd.f32 %v2182, %v3652
    %v3654 = vpop.f32.mrb[0].mxu0
    %v3655 = vadd.f32 %v2182, %v3654
    %3656 = vmatprep.mubr.bf16.mxu0 %v3055
    %3657 = vmatmul.mubr.bf16.gmra.mrb[0].mxu0 %v3054
    %v3658 = vpop.f32.mrb[0].mxu0
    %v3659 = vadd.f32 %v2187, %v3658
    %v3660 = vpop.f32.mrb[0].mxu0
    %v3661 = vadd.f32 %v2187, %v3660
    %v3662 = vpop.f32.mrb[0].mxu0
    %v3663 = vadd.f32 %v2192, %v3662
    %v3664 = vpop.f32.mrb[0].mxu0
    %v3665 = vadd.f32 %v2192, %v3664
    %3666 = vmatprep.mubr.bf16.mxu0 %v3059
    %3667 = vmatmul.mubr.bf16.gmra.mrb[0].mxu0 %v3058
    %v3668 = vpop.f32.mrb[0].mxu0
    %v3669 = vadd.f32 %v2197, %v3668
    %v3670 = vpop.f32.mrb[0].mxu0
    %v3671 = vadd.f32 %v2197, %v3670
    %v3672 = vpop.f32.mrb[0].mxu0
    %v3673 = vadd.f32 %v2202, %v3672
    %v3674 = vpop.f32.mrb[0].mxu0
    %v3675 = vadd.f32 %v2202, %v3674
    %3676 = vmatprep.mubr.bf16.mxu0 %v3063
    %3677 = vmatmul.mubr.bf16.gmra.mrb[0].mxu0 %v3062
    %v3678 = vpop.f32.mrb[0].mxu0
    %v3679 = vadd.f32 %v2207, %v3678
    %v3680 = vpop.f32.mrb[0].mxu0
    %v3681 = vadd.f32 %v2207, %v3680
    %v3682 = vpop.f32.mrb[0].mxu0
    %v3683 = vadd.f32 %v2212, %v3682
    %v3684 = vpop.f32.mrb[0].mxu0
    %v3685 = vadd.f32 %v2212, %v3684
    %3686 = vmatprep.mubr.bf16.mxu0 %v3067
    %3687 = vmatmul.mubr.bf16.gmra.mrb[0].mxu0 %v3066
    %v3688 = vpop.f32.mrb[0].mxu0
    %v3689 = vadd.f32 %v2217, %v3688
    %v3690 = vpop.f32.mrb[0].mxu0
    %v3691 = vadd.f32 %v2217, %v3690
    %v3692 = vpop.f32.mrb[0].mxu0
    %v3693 = vadd.f32 %v2222, %v3692
    %v3694 = vpop.f32.mrb[0].mxu0
    %v3695 = vadd.f32 %v2222, %v3694
    %3696 = vmatprep.mubr.bf16.mxu0 %v3071
    %3697 = vmatmul.mubr.bf16.gmra.mrb[0].mxu0 %v3070
    %v3698 = vpop.f32.mrb[0].mxu0
    %v3699 = vadd.f32 %v2227, %v3698
    %v3700 = vpop.f32.mrb[0].mxu0
    %v3701 = vadd.f32 %v2227, %v3700
    %v3702 = vpop.f32.mrb[0].mxu0
    %v3703 = vadd.f32 %v2232, %v3702
    %v3704 = vpop.f32.mrb[0].mxu0
    %v3705 = vadd.f32 %v2232, %v3704
    %3706 = vmatprep.mubr.bf16.mxu0 %v3075
    %3707 = vmatmul.mubr.bf16.gmra.mrb[0].mxu0 %v3074
    %v3708 = vpop.f32.mrb[0].mxu0
    %v3709 = vadd.f32 %v2237, %v3708
    %v3710 = vpop.f32.mrb[0].mxu0
    %v3711 = vadd.f32 %v2237, %v3710
    %v3712 = vpop.f32.mrb[0].mxu0
    %v3713 = vadd.f32 %v2242, %v3712
    %v3714 = vpop.f32.mrb[0].mxu0
    %v3715 = vadd.f32 %v2242, %v3714
    %3716 = vmatprep.mubr.bf16.mxu0 %v3079
    %3717 = vmatmul.mubr.bf16.gmra.mrb[0].mxu0 %v3078
    %v3718 = vpop.f32.mrb[0].mxu0
    %v3719 = vadd.f32 %v2247, %v3718
    %v3720 = vpop.f32.mrb[0].mxu0
    %v3721 = vadd.f32 %v2247, %v3720
    %v3722 = vpop.f32.mrb[0].mxu0
    %v3723 = vadd.f32 %v2252, %v3722
    %v3724 = vpop.f32.mrb[0].mxu0
    %v3725 = vadd.f32 %v2252, %v3724
    %3726 = vmatprep.mubr.bf16.mxu0 %v3083
    %3727 = vmatmul.mubr.bf16.gmra.mrb[0].mxu0 %v3082
    %v3728 = vpop.f32.mrb[0].mxu0
    %v3729 = vadd.f32 %v2257, %v3728
    %v3730 = vpop.f32.mrb[0].mxu0
    %v3731 = vadd.f32 %v2257, %v3730
    %v3732 = vpop.f32.mrb[0].mxu0
    %v3733 = vadd.f32 %v2262, %v3732
    %v3734 = vpop.f32.mrb[0].mxu0
    %v3735 = vadd.f32 %v2262, %v3734
    %3736 = vmatprep.mubr.bf16.mxu0 %v3087
    %3737 = vmatmul.mubr.bf16.gmra.mrb[0].mxu0 %v3086
    %v3738 = vpop.f32.mrb[0].mxu0
    %v3739 = vadd.f32 %v2267, %v3738
    %v3740 = vpop.f32.mrb[0].mxu0
    %v3741 = vadd.f32 %v2267, %v3740
    %v3742 = vpop.f32.mrb[0].mxu0
    %v3743 = vadd.f32 %v2272, %v3742
    %v3744 = vpop.f32.mrb[0].mxu0
    %v3745 = vadd.f32 %v2272, %v3744
    %3746 = vmatprep.mubr.bf16.mxu0 %v3091
    %3747 = vmatmul.mubr.bf16.gmra.mrb[0].mxu0 %v3090
    %v3748 = vpop.f32.mrb[0].mxu0
    %v3749 = vadd.f32 %v2277, %v3748
    %v3750 = vpop.f32.mrb[0].mxu0
    %v3751 = vadd.f32 %v2277, %v3750
    %v3752 = vpop.f32.mrb[0].mxu0
    %v3753 = vadd.f32 %v2282, %v3752
    %v3754 = vpop.f32.mrb[0].mxu0
    %v3755 = vadd.f32 %v2282, %v3754
    %3756 = vmatprep.mubr.bf16.mxu0 %v3095
    %3757 = vmatmul.mubr.bf16.gmra.mrb[0].mxu0 %v3094
    %v3758 = vpop.f32.mrb[0].mxu0
    %v3759 = vadd.f32 %v2287, %v3758
    %v3760 = vpop.f32.mrb[0].mxu0
    %v3761 = vadd.f32 %v2287, %v3760
    %v3762 = vpop.f32.mrb[0].mxu0
    %v3763 = vadd.f32 %v2292, %v3762
    %v3764 = vpop.f32.mrb[0].mxu0
    %v3765 = vadd.f32 %v2292, %v3764
    %3766 = vmatprep.mubr.bf16.mxu0 %v3099
    %3767 = vmatmul.mubr.bf16.gmra.mrb[0].mxu0 %v3098
    %v3768 = vpop.f32.mrb[0].mxu0
    %v3769 = vadd.f32 %v2297, %v3768
    %v3770 = vpop.f32.mrb[0].mxu0
    %v3771 = vadd.f32 %v2297, %v3770
    %v3772 = vpop.f32.mrb[0].mxu0
    %v3773 = vadd.f32 %v2302, %v3772
    %v3774 = vpop.f32.mrb[0].mxu0
    %v3775 = vadd.f32 %v2302, %v3774
    %3776 = vmatprep.mubr.bf16.mxu0 %v3103
    %3777 = vmatmul.mubr.bf16.gmra.mrb[0].mxu0 %v3102
    %v3778 = vpop.f32.mrb[0].mxu0
    %v3779 = vadd.f32 %v2307, %v3778
    %v3780 = vpop.f32.mrb[0].mxu0
    %v3781 = vadd.f32 %v2307, %v3780
    %v3782 = vpop.f32.mrb[0].mxu0
    %v3783 = vadd.f32 %v2312, %v3782
    %v3784 = vpop.f32.mrb[0].mxu0
    %v3785 = vadd.f32 %v2312, %v3784
    %3786 = vmatprep.mubr.bf16.mxu0 %v3107
    %3787 = vmatmul.mubr.bf16.gmra.mrb[0].mxu0 %v3106
    %v3788 = vpop.f32.mrb[0].mxu0
    %v3789 = vadd.f32 %v2317, %v3788
    %v3790 = vpop.f32.mrb[0].mxu0
    %v3791 = vadd.f32 %v2317, %v3790
    %v3792 = vpop.f32.mrb[0].mxu0
    %v3793 = vadd.f32 %v2322, %v3792
    %v3794 = vpop.f32.mrb[0].mxu0
    %v3795 = vadd.f32 %v2322, %v3794
    %3796 = vmatprep.mubr.bf16.mxu0 %v3111
    %3797 = vmatmul.mubr.bf16.gmra.mrb[0].mxu0 %v3110
    %v3798 = vpop.f32.mrb[0].mxu0
    %v3799 = vadd.f32 %v2327, %v3798
    %v3800 = vpop.f32.mrb[0].mxu0
    %v3801 = vadd.f32 %v2327, %v3800
    %v3802 = vpop.f32.mrb[0].mxu0
    %v3803 = vadd.f32 %v2332, %v3802
    %v3804 = vpop.f32.mrb[0].mxu0
    %v3805 = vadd.f32 %v2332, %v3804
    %3806 = vmatprep.mubr.bf16.mxu0 %v3115
    %3807 = vmatmul.mubr.bf16.gmra.mrb[0].mxu0 %v3114
    %v3808 = vpop.f32.mrb[0].mxu0
    %v3809 = vadd.f32 %v2337, %v3808
    %v3810 = vpop.f32.mrb[0].mxu0
    %v3811 = vadd.f32 %v2337, %v3810
    %v3812 = vpop.f32.mrb[0].mxu0
    %v3813 = vadd.f32 %v2342, %v3812
    %v3814 = vpop.f32.mrb[0].mxu0
    %v3815 = vadd.f32 %v2342, %v3814
    %3816 = vmatprep.mubr.bf16.mxu0 %v3119
    %3817 = vmatmul.mubr.bf16.gmra.mrb[0].mxu0 %v3118
    %v3818 = vpop.f32.mrb[0].mxu0
    %v3819 = vadd.f32 %v2347, %v3818
    %v3820 = vpop.f32.mrb[0].mxu0
    %v3821 = vadd.f32 %v2347, %v3820
    %v3822 = vpop.f32.mrb[0].mxu0
    %v3823 = vadd.f32 %v2352, %v3822
    %v3824 = vpop.f32.mrb[0].mxu0
    %v3825 = vadd.f32 %v2352, %v3824
    %3826 = vdwg.mxu0
    %3827 = vmatprep.subr.bf16.mxu0 %v1747
    %3828 = vmatpush1.bf16.msra.mxu0 %v1746
    %3829 = vmatprep.subr.bf16.mxu0 %v1749
    %3830 = vmatpush1.bf16.msra.mxu0 %v1748
    %3831 = vmatprep.subr.bf16.mxu0 %v1751
    %3832 = vmatpush1.bf16.msra.mxu0 %v1750
    %3833 = vmatprep.subr.bf16.mxu0 %v1753
    %3834 = vmatpush1.bf16.msra.mxu0 %v1752
    %3835 = vmatprep.subr.bf16.mxu0 %v1755
    %3836 = vmatpush1.bf16.msra.mxu0 %v1754
    %3837 = vmatprep.subr.bf16.mxu0 %v1757
    %3838 = vmatpush1.bf16.msra.mxu0 %v1756
    %3839 = vmatprep.subr.bf16.mxu0 %v1759
    %3840 = vmatpush1.bf16.msra.mxu0 %v1758
    %3841 = vmatprep.subr.bf16.mxu0 %v1761
    %3842 = vmatpush1.bf16.msra.mxu0 %v1760
    %3843 = vmatprep.subr.bf16.mxu0 %v1763
    %3844 = vmatpush1.bf16.msra.mxu0 %v1762
    %3845 = vmatprep.subr.bf16.mxu0 %v1765
    %3846 = vmatpush1.bf16.msra.mxu0 %v1764
    %3847 = vmatprep.subr.bf16.mxu0 %v1767
    %3848 = vmatpush1.bf16.msra.mxu0 %v1766
    %3849 = vmatprep.subr.bf16.mxu0 %v1769
    %3850 = vmatpush1.bf16.msra.mxu0 %v1768
    %3851 = vmatprep.subr.bf16.mxu0 %v1771
    %3852 = vmatpush1.bf16.msra.mxu0 %v1770
    %3853 = vmatprep.subr.bf16.mxu0 %v1773
    %3854 = vmatpush1.bf16.msra.mxu0 %v1772
    %3855 = vmatprep.subr.bf16.mxu0 %v1775
    %3856 = vmatpush1.bf16.msra.mxu0 %v1774
    %3857 = vmatprep.subr.bf16.mxu0 %v1777
    %3858 = vmatpush1.bf16.msra.mxu0 %v1776
    %3859 = vmatprep.mubr.bf16.mxu0 %v2933
    %3860 = vmatmul.mubr.bf16.gmra.mrb[0].mxu0 %v2932
    %v3861 = vpop.f32.mrb[0].mxu0
    %v3862 = vadd.f32 %v3349, %v3861
    %v3863 = vpop.f32.mrb[0].mxu0
    %v3864 = vadd.f32 %v3351, %v3863
    %v3865 = vpop.f32.mrb[0].mxu0
    %v3866 = vadd.f32 %v3353, %v3865
    %v3867 = vpop.f32.mrb[0].mxu0
    %v3868 = vadd.f32 %v3355, %v3867
    %3869 = vmatprep.mubr.bf16.mxu0 %v2937
    %3870 = vmatmul.mubr.bf16.gmra.mrb[0].mxu0 %v2936
    %v3871 = vpop.f32.mrb[0].mxu0
    %v3872 = vadd.f32 %v3359, %v3871
    %v3873 = vpop.f32.mrb[0].mxu0
    %v3874 = vadd.f32 %v3361, %v3873
    %v3875 = vpop.f32.mrb[0].mxu0
    %v3876 = vadd.f32 %v3363, %v3875
    %v3877 = vpop.f32.mrb[0].mxu0
    %v3878 = vadd.f32 %v3365, %v3877
    %3879 = vmatprep.mubr.bf16.mxu0 %v2941
    %3880 = vmatmul.mubr.bf16.gmra.mrb[0].mxu0 %v2940
    %v3881 = vpop.f32.mrb[0].mxu0
    %v3882 = vadd.f32 %v3369, %v3881
    %v3883 = vpop.f32.mrb[0].mxu0
    %v3884 = vadd.f32 %v3371, %v3883
    %v3885 = vpop.f32.mrb[0].mxu0
    %v3886 = vadd.f32 %v3373, %v3885
    %v3887 = vpop.f32.mrb[0].mxu0
    %v3888 = vadd.f32 %v3375, %v3887
    %3889 = vmatprep.mubr.bf16.mxu0 %v2945
    %3890 = vmatmul.mubr.bf16.gmra.mrb[0].mxu0 %v2944
    %v3891 = vpop.f32.mrb[0].mxu0
    %v3892 = vadd.f32 %v3379, %v3891
    %v3893 = vpop.f32.mrb[0].mxu0
    %v3894 = vadd.f32 %v3381, %v3893
    %v3895 = vpop.f32.mrb[0].mxu0
    %v3896 = vadd.f32 %v3383, %v3895
    %v3897 = vpop.f32.mrb[0].mxu0
    %v3898 = vadd.f32 %v3385, %v3897
    %3899 = vmatprep.mubr.bf16.mxu0 %v2949
    %3900 = vmatmul.mubr.bf16.gmra.mrb[0].mxu0 %v2948
    %v3901 = vpop.f32.mrb[0].mxu0
    %v3902 = vadd.f32 %v3389, %v3901
    %v3903 = vpop.f32.mrb[0].mxu0
    %v3904 = vadd.f32 %v3391, %v3903
    %v3905 = vpop.f32.mrb[0].mxu0
    %v3906 = vadd.f32 %v3393, %v3905
    %v3907 = vpop.f32.mrb[0].mxu0
    %v3908 = vadd.f32 %v3395, %v3907
    %3909 = vmatprep.mubr.bf16.mxu0 %v2953
    %3910 = vmatmul.mubr.bf16.gmra.mrb[0].mxu0 %v2952
    %v3911 = vpop.f32.mrb[0].mxu0
    %v3912 = vadd.f32 %v3399, %v3911
    %v3913 = vpop.f32.mrb[0].mxu0
    %v3914 = vadd.f32 %v3401, %v3913
    %v3915 = vpop.f32.mrb[0].mxu0
    %v3916 = vadd.f32 %v3403, %v3915
    %v3917 = vpop.f32.mrb[0].mxu0
    %v3918 = vadd.f32 %v3405, %v3917
    %3919 = vmatprep.mubr.bf16.mxu0 %v2957
    %3920 = vmatmul.mubr.bf16.gmra.mrb[0].mxu0 %v2956
    %v3921 = vpop.f32.mrb[0].mxu0
    %v3922 = vadd.f32 %v3409, %v3921
    %v3923 = vpop.f32.mrb[0].mxu0
    %v3924 = vadd.f32 %v3411, %v3923
    %v3925 = vpop.f32.mrb[0].mxu0
    %v3926 = vadd.f32 %v3413, %v3925
    %v3927 = vpop.f32.mrb[0].mxu0
    %v3928 = vadd.f32 %v3415, %v3927
    %3929 = vmatprep.mubr.bf16.mxu0 %v2961
    %3930 = vmatmul.mubr.bf16.gmra.mrb[0].mxu0 %v2960
    %v3931 = vpop.f32.mrb[0].mxu0
    %v3932 = vadd.f32 %v3419, %v3931
    %v3933 = vpop.f32.mrb[0].mxu0
    %v3934 = vadd.f32 %v3421, %v3933
    %v3935 = vpop.f32.mrb[0].mxu0
    %v3936 = vadd.f32 %v3423, %v3935
    %v3937 = vpop.f32.mrb[0].mxu0
    %v3938 = vadd.f32 %v3425, %v3937
    %3939 = vmatprep.mubr.bf16.mxu0 %v2965
    %3940 = vmatmul.mubr.bf16.gmra.mrb[0].mxu0 %v2964
    %v3941 = vpop.f32.mrb[0].mxu0
    %v3942 = vadd.f32 %v3429, %v3941
    %v3943 = vpop.f32.mrb[0].mxu0
    %v3944 = vadd.f32 %v3431, %v3943
    %v3945 = vpop.f32.mrb[0].mxu0
    %v3946 = vadd.f32 %v3433, %v3945
    %v3947 = vpop.f32.mrb[0].mxu0
    %v3948 = vadd.f32 %v3435, %v3947
    %3949 = vmatprep.mubr.bf16.mxu0 %v2969
    %3950 = vmatmul.mubr.bf16.gmra.mrb[0].mxu0 %v2968
    %v3951 = vpop.f32.mrb[0].mxu0
    %v3952 = vadd.f32 %v3439, %v3951
    %v3953 = vpop.f32.mrb[0].mxu0
    %v3954 = vadd.f32 %v3441, %v3953
    %v3955 = vpop.f32.mrb[0].mxu0
    %v3956 = vadd.f32 %v3443, %v3955
    %v3957 = vpop.f32.mrb[0].mxu0
    %v3958 = vadd.f32 %v3445, %v3957
    %3959 = vmatprep.mubr.bf16.mxu0 %v2973
    %3960 = vmatmul.mubr.bf16.gmra.mrb[0].mxu0 %v2972
    %v3961 = vpop.f32.mrb[0].mxu0
    %v3962 = vadd.f32 %v3449, %v3961
    %v3963 = vpop.f32.mrb[0].mxu0
    %v3964 = vadd.f32 %v3451, %v3963
    %v3965 = vpop.f32.mrb[0].mxu0
    %v3966 = vadd.f32 %v3453, %v3965
    %v3967 = vpop.f32.mrb[0].mxu0
    %v3968 = vadd.f32 %v3455, %v3967
    %3969 = vmatprep.mubr.bf16.mxu0 %v2977
    %3970 = vmatmul.mubr.bf16.gmra.mrb[0].mxu0 %v2976
    %v3971 = vpop.f32.mrb[0].mxu0
    %v3972 = vadd.f32 %v3459, %v3971
    %v3973 = vpop.f32.mrb[0].mxu0
    %v3974 = vadd.f32 %v3461, %v3973
    %v3975 = vpop.f32.mrb[0].mxu0
    %v3976 = vadd.f32 %v3463, %v3975
    %v3977 = vpop.f32.mrb[0].mxu0
    %v3978 = vadd.f32 %v3465, %v3977
    %3979 = vmatprep.mubr.bf16.mxu0 %v2981
    %3980 = vmatmul.mubr.bf16.gmra.mrb[0].mxu0 %v2980
    %v3981 = vpop.f32.mrb[0].mxu0
    %v3982 = vadd.f32 %v3469, %v3981
    %v3983 = vpop.f32.mrb[0].mxu0
    %v3984 = vadd.f32 %v3471, %v3983
    %v3985 = vpop.f32.mrb[0].mxu0
    %v3986 = vadd.f32 %v3473, %v3985
    %v3987 = vpop.f32.mrb[0].mxu0
    %v3988 = vadd.f32 %v3475, %v3987
    %3989 = vmatprep.mubr.bf16.mxu0 %v2985
    %3990 = vmatmul.mubr.bf16.gmra.mrb[0].mxu0 %v2984
    %v3991 = vpop.f32.mrb[0].mxu0
    %v3992 = vadd.f32 %v3479, %v3991
    %v3993 = vpop.f32.mrb[0].mxu0
    %v3994 = vadd.f32 %v3481, %v3993
    %v3995 = vpop.f32.mrb[0].mxu0
    %v3996 = vadd.f32 %v3483, %v3995
    %v3997 = vpop.f32.mrb[0].mxu0
    %v3998 = vadd.f32 %v3485, %v3997
    %3999 = vmatprep.mubr.bf16.mxu0 %v2989
    %4000 = vmatmul.mubr.bf16.gmra.mrb[0].mxu0 %v2988
    %v4001 = vpop.f32.mrb[0].mxu0
    %v4002 = vadd.f32 %v3489, %v4001
    %v4003 = vpop.f32.mrb[0].mxu0
    %v4004 = vadd.f32 %v3491, %v4003
    %v4005 = vpop.f32.mrb[0].mxu0
    %v4006 = vadd.f32 %v3493, %v4005
    %v4007 = vpop.f32.mrb[0].mxu0
    %v4008 = vadd.f32 %v3495, %v4007
    %4009 = vmatprep.mubr.bf16.mxu0 %v2993
    %4010 = vmatmul.mubr.bf16.gmra.mrb[0].mxu0 %v2992
    %v4011 = vpop.f32.mrb[0].mxu0
    %v4012 = vadd.f32 %v3499, %v4011
    %v4013 = vpop.f32.mrb[0].mxu0
    %v4014 = vadd.f32 %v3501, %v4013
    %v4015 = vpop.f32.mrb[0].mxu0
    %v4016 = vadd.f32 %v3503, %v4015
    %v4017 = vpop.f32.mrb[0].mxu0
    %v4018 = vadd.f32 %v3505, %v4017
    %4019 = vmatprep.mubr.bf16.mxu0 %v2997
    %4020 = vmatmul.mubr.bf16.gmra.mrb[0].mxu0 %v2996
    %v4021 = vpop.f32.mrb[0].mxu0
    %v4022 = vadd.f32 %v3509, %v4021
    %v4023 = vpop.f32.mrb[0].mxu0
    %v4024 = vadd.f32 %v3511, %v4023
    %v4025 = vpop.f32.mrb[0].mxu0
    %v4026 = vadd.f32 %v3513, %v4025
    %v4027 = vpop.f32.mrb[0].mxu0
    %v4028 = vadd.f32 %v3515, %v4027
    %4029 = vmatprep.mubr.bf16.mxu0 %v3001
    %4030 = vmatmul.mubr.bf16.gmra.mrb[0].mxu0 %v3000
    %v4031 = vpop.f32.mrb[0].mxu0
    %v4032 = vadd.f32 %v3519, %v4031
    %v4033 = vpop.f32.mrb[0].mxu0
    %v4034 = vadd.f32 %v3521, %v4033
    %v4035 = vpop.f32.mrb[0].mxu0
    %v4036 = vadd.f32 %v3523, %v4035
    %v4037 = vpop.f32.mrb[0].mxu0
    %v4038 = vadd.f32 %v3525, %v4037
    %4039 = vmatprep.mubr.bf16.mxu0 %v3005
    %4040 = vmatmul.mubr.bf16.gmra.mrb[0].mxu0 %v3004
    %v4041 = vpop.f32.mrb[0].mxu0
    %v4042 = vadd.f32 %v3529, %v4041
    %v4043 = vpop.f32.mrb[0].mxu0
    %v4044 = vadd.f32 %v3531, %v4043
    %v4045 = vpop.f32.mrb[0].mxu0
    %v4046 = vadd.f32 %v3533, %v4045
    %v4047 = vpop.f32.mrb[0].mxu0
    %v4048 = vadd.f32 %v3535, %v4047
    %4049 = vmatprep.mubr.bf16.mxu0 %v3009
    %4050 = vmatmul.mubr.bf16.gmra.mrb[0].mxu0 %v3008
    %v4051 = vpop.f32.mrb[0].mxu0
    %v4052 = vadd.f32 %v3539, %v4051
    %v4053 = vpop.f32.mrb[0].mxu0
    %v4054 = vadd.f32 %v3541, %v4053
    %v4055 = vpop.f32.mrb[0].mxu0
    %v4056 = vadd.f32 %v3543, %v4055
    %v4057 = vpop.f32.mrb[0].mxu0
    %v4058 = vadd.f32 %v3545, %v4057
    %4059 = vmatprep.mubr.bf16.mxu0 %v3013
    %4060 = vmatmul.mubr.bf16.gmra.mrb[0].mxu0 %v3012
    %v4061 = vpop.f32.mrb[0].mxu0
    %v4062 = vadd.f32 %v3549, %v4061
    %v4063 = vpop.f32.mrb[0].mxu0
    %v4064 = vadd.f32 %v3551, %v4063
    %v4065 = vpop.f32.mrb[0].mxu0
    %v4066 = vadd.f32 %v3553, %v4065
    %v4067 = vpop.f32.mrb[0].mxu0
    %v4068 = vadd.f32 %v3555, %v4067
    %4069 = vmatprep.mubr.bf16.mxu0 %v3017
    %4070 = vmatmul.mubr.bf16.gmra.mrb[0].mxu0 %v3016
    %v4071 = vpop.f32.mrb[0].mxu0
    %v4072 = vadd.f32 %v3559, %v4071
    %v4073 = vpop.f32.mrb[0].mxu0
    %v4074 = vadd.f32 %v3561, %v4073
    %v4075 = vpop.f32.mrb[0].mxu0
    %v4076 = vadd.f32 %v3563, %v4075
    %v4077 = vpop.f32.mrb[0].mxu0
    %v4078 = vadd.f32 %v3565, %v4077
    %4079 = vmatprep.mubr.bf16.mxu0 %v3021
    %4080 = vmatmul.mubr.bf16.gmra.mrb[0].mxu0 %v3020
    %v4081 = vpop.f32.mrb[0].mxu0
    %v4082 = vadd.f32 %v3569, %v4081
    %v4083 = vpop.f32.mrb[0].mxu0
    %v4084 = vadd.f32 %v3571, %v4083
    %v4085 = vpop.f32.mrb[0].mxu0
    %v4086 = vadd.f32 %v3573, %v4085
    %v4087 = vpop.f32.mrb[0].mxu0
    %v4088 = vadd.f32 %v3575, %v4087
    %4089 = vmatprep.mubr.bf16.mxu0 %v3025
    %4090 = vmatmul.mubr.bf16.gmra.mrb[0].mxu0 %v3024
    %v4091 = vpop.f32.mrb[0].mxu0
    %v4092 = vadd.f32 %v3579, %v4091
    %v4093 = vpop.f32.mrb[0].mxu0
    %v4094 = vadd.f32 %v3581, %v4093
    %v4095 = vpop.f32.mrb[0].mxu0
    %v4096 = vadd.f32 %v3583, %v4095
    %v4097 = vpop.f32.mrb[0].mxu0
    %v4098 = vadd.f32 %v3585, %v4097
    %4099 = vmatprep.mubr.bf16.mxu0 %v3029
    %4100 = vmatmul.mubr.bf16.gmra.mrb[0].mxu0 %v3028
    %v4101 = vpop.f32.mrb[0].mxu0
    %v4102 = vadd.f32 %v3589, %v4101
    %v4103 = vpop.f32.mrb[0].mxu0
    %v4104 = vadd.f32 %v3591, %v4103
    %v4105 = vpop.f32.mrb[0].mxu0
    %v4106 = vadd.f32 %v3593, %v4105
    %v4107 = vpop.f32.mrb[0].mxu0
    %v4108 = vadd.f32 %v3595, %v4107
    %4109 = vmatprep.mubr.bf16.mxu0 %v3033
    %4110 = vmatmul.mubr.bf16.gmra.mrb[0].mxu0 %v3032
    %v4111 = vpop.f32.mrb[0].mxu0
    %v4112 = vadd.f32 %v3599, %v4111
    %v4113 = vpop.f32.mrb[0].mxu0
    %v4114 = vadd.f32 %v3601, %v4113
    %v4115 = vpop.f32.mrb[0].mxu0
    %v4116 = vadd.f32 %v3603, %v4115
    %v4117 = vpop.f32.mrb[0].mxu0
    %v4118 = vadd.f32 %v3605, %v4117
    %4119 = vmatprep.mubr.bf16.mxu0 %v3037
    %4120 = vmatmul.mubr.bf16.gmra.mrb[0].mxu0 %v3036
    %v4121 = vpop.f32.mrb[0].mxu0
    %v4122 = vadd.f32 %v3609, %v4121
    %v4123 = vpop.f32.mrb[0].mxu0
    %v4124 = vadd.f32 %v3611, %v4123
    %v4125 = vpop.f32.mrb[0].mxu0
    %v4126 = vadd.f32 %v3613, %v4125
    %v4127 = vpop.f32.mrb[0].mxu0
    %v4128 = vadd.f32 %v3615, %v4127
    %4129 = vmatprep.mubr.bf16.mxu0 %v3041
    %4130 = vmatmul.mubr.bf16.gmra.mrb[0].mxu0 %v3040
    %v4131 = vpop.f32.mrb[0].mxu0
    %v4132 = vadd.f32 %v3619, %v4131
    %v4133 = vpop.f32.mrb[0].mxu0
    %v4134 = vadd.f32 %v3621, %v4133
    %v4135 = vpop.f32.mrb[0].mxu0
    %v4136 = vadd.f32 %v3623, %v4135
    %v4137 = vpop.f32.mrb[0].mxu0
    %v4138 = vadd.f32 %v3625, %v4137
    %4139 = vmatprep.mubr.bf16.mxu0 %v3045
    %4140 = vmatmul.mubr.bf16.gmra.mrb[0].mxu0 %v3044
    %v4141 = vpop.f32.mrb[0].mxu0
    %v4142 = vadd.f32 %v3629, %v4141
    %v4143 = vpop.f32.mrb[0].mxu0
    %v4144 = vadd.f32 %v3631, %v4143
    %v4145 = vpop.f32.mrb[0].mxu0
    %v4146 = vadd.f32 %v3633, %v4145
    %v4147 = vpop.f32.mrb[0].mxu0
    %v4148 = vadd.f32 %v3635, %v4147
    %4149 = vmatprep.mubr.bf16.mxu0 %v3049
    %4150 = vmatmul.mubr.bf16.gmra.mrb[0].mxu0 %v3048
    %v4151 = vpop.f32.mrb[0].mxu0
    %v4152 = vadd.f32 %v3639, %v4151
    %v4153 = vpop.f32.mrb[0].mxu0
    %v4154 = vadd.f32 %v3641, %v4153
    %v4155 = vpop.f32.mrb[0].mxu0
    %v4156 = vadd.f32 %v3643, %v4155
    %v4157 = vpop.f32.mrb[0].mxu0
    %v4158 = vadd.f32 %v3645, %v4157
    %4159 = vmatprep.mubr.bf16.mxu0 %v3053
    %4160 = vmatmul.mubr.bf16.gmra.mrb[0].mxu0 %v3052
    %v4161 = vpop.f32.mrb[0].mxu0
    %v4162 = vadd.f32 %v3649, %v4161
    %v4163 = vpop.f32.mrb[0].mxu0
    %v4164 = vadd.f32 %v3651, %v4163
    %v4165 = vpop.f32.mrb[0].mxu0
    %v4166 = vadd.f32 %v3653, %v4165
    %v4167 = vpop.f32.mrb[0].mxu0
    %v4168 = vadd.f32 %v3655, %v4167
    %4169 = vmatprep.mubr.bf16.mxu0 %v3057
    %4170 = vmatmul.mubr.bf16.gmra.mrb[0].mxu0 %v3056
    %v4171 = vpop.f32.mrb[0].mxu0
    %v4172 = vadd.f32 %v3659, %v4171
    %v4173 = vpop.f32.mrb[0].mxu0
    %v4174 = vadd.f32 %v3661, %v4173
    %v4175 = vpop.f32.mrb[0].mxu0
    %v4176 = vadd.f32 %v3663, %v4175
    %v4177 = vpop.f32.mrb[0].mxu0
    %v4178 = vadd.f32 %v3665, %v4177
    %4179 = vmatprep.mubr.bf16.mxu0 %v3061
    %4180 = vmatmul.mubr.bf16.gmra.mrb[0].mxu0 %v3060
    %v4181 = vpop.f32.mrb[0].mxu0
    %v4182 = vadd.f32 %v3669, %v4181
    %v4183 = vpop.f32.mrb[0].mxu0
    %v4184 = vadd.f32 %v3671, %v4183
    %v4185 = vpop.f32.mrb[0].mxu0
    %v4186 = vadd.f32 %v3673, %v4185
    %v4187 = vpop.f32.mrb[0].mxu0
    %v4188 = vadd.f32 %v3675, %v4187
    %4189 = vmatprep.mubr.bf16.mxu0 %v3065
    %4190 = vmatmul.mubr.bf16.gmra.mrb[0].mxu0 %v3064
    %v4191 = vpop.f32.mrb[0].mxu0
    %v4192 = vadd.f32 %v3679, %v4191
    %v4193 = vpop.f32.mrb[0].mxu0
    %v4194 = vadd.f32 %v3681, %v4193
    %v4195 = vpop.f32.mrb[0].mxu0
    %v4196 = vadd.f32 %v3683, %v4195
    %v4197 = vpop.f32.mrb[0].mxu0
    %v4198 = vadd.f32 %v3685, %v4197
    %4199 = vmatprep.mubr.bf16.mxu0 %v3069
    %4200 = vmatmul.mubr.bf16.gmra.mrb[0].mxu0 %v3068
    %v4201 = vpop.f32.mrb[0].mxu0
    %v4202 = vadd.f32 %v3689, %v4201
    %v4203 = vpop.f32.mrb[0].mxu0
    %v4204 = vadd.f32 %v3691, %v4203
    %v4205 = vpop.f32.mrb[0].mxu0
    %v4206 = vadd.f32 %v3693, %v4205
    %v4207 = vpop.f32.mrb[0].mxu0
    %v4208 = vadd.f32 %v3695, %v4207
    %4209 = vmatprep.mubr.bf16.mxu0 %v3073
    %4210 = vmatmul.mubr.bf16.gmra.mrb[0].mxu0 %v3072
    %v4211 = vpop.f32.mrb[0].mxu0
    %v4212 = vadd.f32 %v3699, %v4211
    %v4213 = vpop.f32.mrb[0].mxu0
    %v4214 = vadd.f32 %v3701, %v4213
    %v4215 = vpop.f32.mrb[0].mxu0
    %v4216 = vadd.f32 %v3703, %v4215
    %v4217 = vpop.f32.mrb[0].mxu0
    %v4218 = vadd.f32 %v3705, %v4217
    %4219 = vmatprep.mubr.bf16.mxu0 %v3077
    %4220 = vmatmul.mubr.bf16.gmra.mrb[0].mxu0 %v3076
    %v4221 = vpop.f32.mrb[0].mxu0
    %v4222 = vadd.f32 %v3709, %v4221
    %v4223 = vpop.f32.mrb[0].mxu0
    %v4224 = vadd.f32 %v3711, %v4223
    %v4225 = vpop.f32.mrb[0].mxu0
    %v4226 = vadd.f32 %v3713, %v4225
    %v4227 = vpop.f32.mrb[0].mxu0
    %v4228 = vadd.f32 %v3715, %v4227
    %4229 = vmatprep.mubr.bf16.mxu0 %v3081
    %4230 = vmatmul.mubr.bf16.gmra.mrb[0].mxu0 %v3080
    %v4231 = vpop.f32.mrb[0].mxu0
    %v4232 = vadd.f32 %v3719, %v4231
    %v4233 = vpop.f32.mrb[0].mxu0
    %v4234 = vadd.f32 %v3721, %v4233
    %v4235 = vpop.f32.mrb[0].mxu0
    %v4236 = vadd.f32 %v3723, %v4235
    %v4237 = vpop.f32.mrb[0].mxu0
    %v4238 = vadd.f32 %v3725, %v4237
    %4239 = vmatprep.mubr.bf16.mxu0 %v3085
    %4240 = vmatmul.mubr.bf16.gmra.mrb[0].mxu0 %v3084
    %v4241 = vpop.f32.mrb[0].mxu0
    %v4242 = vadd.f32 %v3729, %v4241
    %v4243 = vpop.f32.mrb[0].mxu0
    %v4244 = vadd.f32 %v3731, %v4243
    %v4245 = vpop.f32.mrb[0].mxu0
    %v4246 = vadd.f32 %v3733, %v4245
    %v4247 = vpop.f32.mrb[0].mxu0
    %v4248 = vadd.f32 %v3735, %v4247
    %4249 = vmatprep.mubr.bf16.mxu0 %v3089
    %4250 = vmatmul.mubr.bf16.gmra.mrb[0].mxu0 %v3088
    %v4251 = vpop.f32.mrb[0].mxu0
    %v4252 = vadd.f32 %v3739, %v4251
    %v4253 = vpop.f32.mrb[0].mxu0
    %v4254 = vadd.f32 %v3741, %v4253
    %v4255 = vpop.f32.mrb[0].mxu0
    %v4256 = vadd.f32 %v3743, %v4255
    %v4257 = vpop.f32.mrb[0].mxu0
    %v4258 = vadd.f32 %v3745, %v4257
    %4259 = vmatprep.mubr.bf16.mxu0 %v3093
    %4260 = vmatmul.mubr.bf16.gmra.mrb[0].mxu0 %v3092
    %v4261 = vpop.f32.mrb[0].mxu0
    %v4262 = vadd.f32 %v3749, %v4261
    %v4263 = vpop.f32.mrb[0].mxu0
    %v4264 = vadd.f32 %v3751, %v4263
    %v4265 = vpop.f32.mrb[0].mxu0
    %v4266 = vadd.f32 %v3753, %v4265
    %v4267 = vpop.f32.mrb[0].mxu0
    %v4268 = vadd.f32 %v3755, %v4267
    %4269 = vmatprep.mubr.bf16.mxu0 %v3097
    %4270 = vmatmul.mubr.bf16.gmra.mrb[0].mxu0 %v3096
    %v4271 = vpop.f32.mrb[0].mxu0
    %v4272 = vadd.f32 %v3759, %v4271
    %v4273 = vpop.f32.mrb[0].mxu0
    %v4274 = vadd.f32 %v3761, %v4273
    %v4275 = vpop.f32.mrb[0].mxu0
    %v4276 = vadd.f32 %v3763, %v4275
    %v4277 = vpop.f32.mrb[0].mxu0
    %v4278 = vadd.f32 %v3765, %v4277
    %4279 = vmatprep.mubr.bf16.mxu0 %v3101
    %4280 = vmatmul.mubr.bf16.gmra.mrb[0].mxu0 %v3100
    %v4281 = vpop.f32.mrb[0].mxu0
    %v4282 = vadd.f32 %v3769, %v4281
    %v4283 = vpop.f32.mrb[0].mxu0
    %v4284 = vadd.f32 %v3771, %v4283
    %v4285 = vpop.f32.mrb[0].mxu0
    %v4286 = vadd.f32 %v3773, %v4285
    %v4287 = vpop.f32.mrb[0].mxu0
    %v4288 = vadd.f32 %v3775, %v4287
    %4289 = vmatprep.mubr.bf16.mxu0 %v3105
    %4290 = vmatmul.mubr.bf16.gmra.mrb[0].mxu0 %v3104
    %v4291 = vpop.f32.mrb[0].mxu0
    %v4292 = vadd.f32 %v3779, %v4291
    %v4293 = vpop.f32.mrb[0].mxu0
    %v4294 = vadd.f32 %v3781, %v4293
    %v4295 = vpop.f32.mrb[0].mxu0
    %v4296 = vadd.f32 %v3783, %v4295
    %v4297 = vpop.f32.mrb[0].mxu0
    %v4298 = vadd.f32 %v3785, %v4297
    %4299 = vmatprep.mubr.bf16.mxu0 %v3109
    %4300 = vmatmul.mubr.bf16.gmra.mrb[0].mxu0 %v3108
    %v4301 = vpop.f32.mrb[0].mxu0
    %v4302 = vadd.f32 %v3789, %v4301
    %v4303 = vpop.f32.mrb[0].mxu0
    %v4304 = vadd.f32 %v3791, %v4303
    %v4305 = vpop.f32.mrb[0].mxu0
    %v4306 = vadd.f32 %v3793, %v4305
    %v4307 = vpop.f32.mrb[0].mxu0
    %v4308 = vadd.f32 %v3795, %v4307
    %4309 = vmatprep.mubr.bf16.mxu0 %v3113
    %4310 = vmatmul.mubr.bf16.gmra.mrb[0].mxu0 %v3112
    %v4311 = vpop.f32.mrb[0].mxu0
    %v4312 = vadd.f32 %v3799, %v4311
    %v4313 = vpop.f32.mrb[0].mxu0
    %v4314 = vadd.f32 %v3801, %v4313
    %v4315 = vpop.f32.mrb[0].mxu0
    %v4316 = vadd.f32 %v3803, %v4315
    %v4317 = vpop.f32.mrb[0].mxu0
    %v4318 = vadd.f32 %v3805, %v4317
    %4319 = vmatprep.mubr.bf16.mxu0 %v3117
    %4320 = vmatmul.mubr.bf16.gmra.mrb[0].mxu0 %v3116
    %v4321 = vpop.f32.mrb[0].mxu0
    %v4322 = vadd.f32 %v3809, %v4321
    %v4323 = vpop.f32.mrb[0].mxu0
    %v4324 = vadd.f32 %v3811, %v4323
    %v4325 = vpop.f32.mrb[0].mxu0
    %v4326 = vadd.f32 %v3813, %v4325
    %v4327 = vpop.f32.mrb[0].mxu0
    %v4328 = vadd.f32 %v3815, %v4327
    %4329 = vmatprep.mubr.bf16.mxu0 %v3121
    %4330 = vmatmul.mubr.bf16.gmra.mrb[0].mxu0 %v3120
    %v4331 = vpop.f32.mrb[0].mxu0
    %v4332 = vadd.f32 %v3819, %v4331
    %v4333 = vpop.f32.mrb[0].mxu0
    %v4334 = vadd.f32 %v3821, %v4333
    %v4335 = vpop.f32.mrb[0].mxu0
    %v4336 = vadd.f32 %v3823, %v4335
    %v4337 = vpop.f32.mrb[0].mxu0
    %v4338 = vadd.f32 %v3825, %v4337
    %4339 = vdwg.mxu0
    %vm4340 = vcmp.ge.f32.partialorder %v3862, 0.0
    %vm4341 = vcmp.ge.f32.partialorder %v3864, 0.0
    %vm4342 = vcmp.ge.f32.partialorder %v3866, 0.0
    %vm4343 = vcmp.ge.f32.partialorder %v3868, 0.0
    %vm4344 = vcmp.ge.f32.partialorder %v3872, 0.0
    %vm4345 = vcmp.ge.f32.partialorder %v3874, 0.0
    %vm4346 = vcmp.ge.f32.partialorder %v3876, 0.0
    %vm4347 = vcmp.ge.f32.partialorder %v3878, 0.0
    %vm4348 = vcmp.ge.f32.partialorder %v3882, 0.0
    %vm4349 = vcmp.ge.f32.partialorder %v3884, 0.0
    %vm4350 = vcmp.ge.f32.partialorder %v3886, 0.0
    %vm4351 = vcmp.ge.f32.partialorder %v3888, 0.0
    %vm4352 = vcmp.ge.f32.partialorder %v3892, 0.0
    %vm4353 = vcmp.ge.f32.partialorder %v3894, 0.0
    %vm4354 = vcmp.ge.f32.partialorder %v3896, 0.0
    %vm4355 = vcmp.ge.f32.partialorder %v3898, 0.0
    %vm4356 = vcmp.ge.f32.partialorder %v3902, 0.0
    %vm4357 = vcmp.ge.f32.partialorder %v3904, 0.0
    %vm4358 = vcmp.ge.f32.partialorder %v3906, 0.0
    %vm4359 = vcmp.ge.f32.partialorder %v3908, 0.0
    %vm4360 = vcmp.ge.f32.partialorder %v3912, 0.0
    %vm4361 = vcmp.ge.f32.partialorder %v3914, 0.0
    %vm4362 = vcmp.ge.f32.partialorder %v3916, 0.0
    %vm4363 = vcmp.ge.f32.partialorder %v3918, 0.0
    %vm4364 = vcmp.ge.f32.partialorder %v3922, 0.0
    %vm4365 = vcmp.ge.f32.partialorder %v3924, 0.0
    %vm4366 = vcmp.ge.f32.partialorder %v3926, 0.0
    %vm4367 = vcmp.ge.f32.partialorder %v3928, 0.0
    %vm4368 = vcmp.ge.f32.partialorder %v3932, 0.0
    %vm4369 = vcmp.ge.f32.partialorder %v3934, 0.0
    %vm4370 = vcmp.ge.f32.partialorder %v3936, 0.0
    %vm4371 = vcmp.ge.f32.partialorder %v3938, 0.0
    %vm4372 = vcmp.ge.f32.partialorder %v3942, 0.0
    %vm4373 = vcmp.ge.f32.partialorder %v3944, 0.0
    %vm4374 = vcmp.ge.f32.partialorder %v3946, 0.0
    %vm4375 = vcmp.ge.f32.partialorder %v3948, 0.0
    %vm4376 = vcmp.ge.f32.partialorder %v3952, 0.0
    %vm4377 = vcmp.ge.f32.partialorder %v3954, 0.0
    %vm4378 = vcmp.ge.f32.partialorder %v3956, 0.0
    %vm4379 = vcmp.ge.f32.partialorder %v3958, 0.0
    %vm4380 = vcmp.ge.f32.partialorder %v3962, 0.0
    %vm4381 = vcmp.ge.f32.partialorder %v3964, 0.0
    %vm4382 = vcmp.ge.f32.partialorder %v3966, 0.0
    %vm4383 = vcmp.ge.f32.partialorder %v3968, 0.0
    %vm4384 = vcmp.ge.f32.partialorder %v3972, 0.0
    %vm4385 = vcmp.ge.f32.partialorder %v3974, 0.0
    %vm4386 = vcmp.ge.f32.partialorder %v3976, 0.0
    %vm4387 = vcmp.ge.f32.partialorder %v3978, 0.0
    %vm4388 = vcmp.ge.f32.partialorder %v3982, 0.0
    %vm4389 = vcmp.ge.f32.partialorder %v3984, 0.0
    %vm4390 = vcmp.ge.f32.partialorder %v3986, 0.0
    %vm4391 = vcmp.ge.f32.partialorder %v3988, 0.0
    %vm4392 = vcmp.ge.f32.partialorder %v3992, 0.0
    %vm4393 = vcmp.ge.f32.partialorder %v3994, 0.0
    %vm4394 = vcmp.ge.f32.partialorder %v3996, 0.0
    %vm4395 = vcmp.ge.f32.partialorder %v3998, 0.0
    %vm4396 = vcmp.ge.f32.partialorder %v4002, 0.0
    %vm4397 = vcmp.ge.f32.partialorder %v4004, 0.0
    %vm4398 = vcmp.ge.f32.partialorder %v4006, 0.0
    %vm4399 = vcmp.ge.f32.partialorder %v4008, 0.0
    %vm4400 = vcmp.ge.f32.partialorder %v4012, 0.0
    %vm4401 = vcmp.ge.f32.partialorder %v4014, 0.0
    %vm4402 = vcmp.ge.f32.partialorder %v4016, 0.0
    %vm4403 = vcmp.ge.f32.partialorder %v4018, 0.0
    %vm4404 = vcmp.ge.f32.partialorder %v4022, 0.0
    %vm4405 = vcmp.ge.f32.partialorder %v4024, 0.0
    %vm4406 = vcmp.ge.f32.partialorder %v4026, 0.0
    %vm4407 = vcmp.ge.f32.partialorder %v4028, 0.0
    %vm4408 = vcmp.ge.f32.partialorder %v4032, 0.0
    %vm4409 = vcmp.ge.f32.partialorder %v4034, 0.0
    %vm4410 = vcmp.ge.f32.partialorder %v4036, 0.0
    %vm4411 = vcmp.ge.f32.partialorder %v4038, 0.0
    %vm4412 = vcmp.ge.f32.partialorder %v4042, 0.0
    %vm4413 = vcmp.ge.f32.partialorder %v4044, 0.0
    %vm4414 = vcmp.ge.f32.partialorder %v4046, 0.0
    %vm4415 = vcmp.ge.f32.partialorder %v4048, 0.0
    %vm4416 = vcmp.ge.f32.partialorder %v4052, 0.0
    %vm4417 = vcmp.ge.f32.partialorder %v4054, 0.0
    %vm4418 = vcmp.ge.f32.partialorder %v4056, 0.0
    %vm4419 = vcmp.ge.f32.partialorder %v4058, 0.0
    %vm4420 = vcmp.ge.f32.partialorder %v4062, 0.0
    %vm4421 = vcmp.ge.f32.partialorder %v4064, 0.0
    %vm4422 = vcmp.ge.f32.partialorder %v4066, 0.0
    %vm4423 = vcmp.ge.f32.partialorder %v4068, 0.0
    %vm4424 = vcmp.ge.f32.partialorder %v4072, 0.0
    %vm4425 = vcmp.ge.f32.partialorder %v4074, 0.0
    %vm4426 = vcmp.ge.f32.partialorder %v4076, 0.0
    %vm4427 = vcmp.ge.f32.partialorder %v4078, 0.0
    %vm4428 = vcmp.ge.f32.partialorder %v4082, 0.0
    %vm4429 = vcmp.ge.f32.partialorder %v4084, 0.0
    %vm4430 = vcmp.ge.f32.partialorder %v4086, 0.0
    %vm4431 = vcmp.ge.f32.partialorder %v4088, 0.0
    %vm4432 = vcmp.ge.f32.partialorder %v4092, 0.0
    %vm4433 = vcmp.ge.f32.partialorder %v4094, 0.0
    %vm4434 = vcmp.ge.f32.partialorder %v4096, 0.0
    %vm4435 = vcmp.ge.f32.partialorder %v4098, 0.0
    %vm4436 = vcmp.ge.f32.partialorder %v4102, 0.0
    %vm4437 = vcmp.ge.f32.partialorder %v4104, 0.0
    %vm4438 = vcmp.ge.f32.partialorder %v4106, 0.0
    %vm4439 = vcmp.ge.f32.partialorder %v4108, 0.0
    %vm4440 = vcmp.ge.f32.partialorder %v4112, 0.0
    %vm4441 = vcmp.ge.f32.partialorder %v4114, 0.0
    %vm4442 = vcmp.ge.f32.partialorder %v4116, 0.0
    %vm4443 = vcmp.ge.f32.partialorder %v4118, 0.0
    %vm4444 = vcmp.ge.f32.partialorder %v4122, 0.0
    %vm4445 = vcmp.ge.f32.partialorder %v4124, 0.0
    %vm4446 = vcmp.ge.f32.partialorder %v4126, 0.0
    %vm4447 = vcmp.ge.f32.partialorder %v4128, 0.0
    %vm4448 = vcmp.ge.f32.partialorder %v4132, 0.0
    %vm4449 = vcmp.ge.f32.partialorder %v4134, 0.0
    %vm4450 = vcmp.ge.f32.partialorder %v4136, 0.0
    %vm4451 = vcmp.ge.f32.partialorder %v4138, 0.0
    %vm4452 = vcmp.ge.f32.partialorder %v4142, 0.0
    %vm4453 = vcmp.ge.f32.partialorder %v4144, 0.0
    %vm4454 = vcmp.ge.f32.partialorder %v4146, 0.0
    %vm4455 = vcmp.ge.f32.partialorder %v4148, 0.0
    %vm4456 = vcmp.ge.f32.partialorder %v4152, 0.0
    %vm4457 = vcmp.ge.f32.partialorder %v4154, 0.0
    %vm4458 = vcmp.ge.f32.partialorder %v4156, 0.0
    %vm4459 = vcmp.ge.f32.partialorder %v4158, 0.0
    %vm4460 = vcmp.ge.f32.partialorder %v4162, 0.0
    %vm4461 = vcmp.ge.f32.partialorder %v4164, 0.0
    %vm4462 = vcmp.ge.f32.partialorder %v4166, 0.0
    %vm4463 = vcmp.ge.f32.partialorder %v4168, 0.0
    %vm4464 = vcmp.ge.f32.partialorder %v4172, 0.0
    %vm4465 = vcmp.ge.f32.partialorder %v4174, 0.0
    %vm4466 = vcmp.ge.f32.partialorder %v4176, 0.0
    %vm4467 = vcmp.ge.f32.partialorder %v4178, 0.0
    %vm4468 = vcmp.ge.f32.partialorder %v4182, 0.0
    %vm4469 = vcmp.ge.f32.partialorder %v4184, 0.0
    %vm4470 = vcmp.ge.f32.partialorder %v4186, 0.0
    %vm4471 = vcmp.ge.f32.partialorder %v4188, 0.0
    %vm4472 = vcmp.ge.f32.partialorder %v4192, 0.0
    %vm4473 = vcmp.ge.f32.partialorder %v4194, 0.0
    %vm4474 = vcmp.ge.f32.partialorder %v4196, 0.0
    %vm4475 = vcmp.ge.f32.partialorder %v4198, 0.0
    %vm4476 = vcmp.ge.f32.partialorder %v4202, 0.0
    %vm4477 = vcmp.ge.f32.partialorder %v4204, 0.0
    %vm4478 = vcmp.ge.f32.partialorder %v4206, 0.0
    %vm4479 = vcmp.ge.f32.partialorder %v4208, 0.0
    %vm4480 = vcmp.ge.f32.partialorder %v4212, 0.0
    %vm4481 = vcmp.ge.f32.partialorder %v4214, 0.0
    %vm4482 = vcmp.ge.f32.partialorder %v4216, 0.0
    %vm4483 = vcmp.ge.f32.partialorder %v4218, 0.0
    %vm4484 = vcmp.ge.f32.partialorder %v4222, 0.0
    %vm4485 = vcmp.ge.f32.partialorder %v4224, 0.0
    %vm4486 = vcmp.ge.f32.partialorder %v4226, 0.0
    %vm4487 = vcmp.ge.f32.partialorder %v4228, 0.0
    %vm4488 = vcmp.ge.f32.partialorder %v4232, 0.0
    %vm4489 = vcmp.ge.f32.partialorder %v4234, 0.0
    %vm4490 = vcmp.ge.f32.partialorder %v4236, 0.0
    %vm4491 = vcmp.ge.f32.partialorder %v4238, 0.0
    %vm4492 = vcmp.ge.f32.partialorder %v4242, 0.0
    %vm4493 = vcmp.ge.f32.partialorder %v4244, 0.0
    %vm4494 = vcmp.ge.f32.partialorder %v4246, 0.0
    %vm4495 = vcmp.ge.f32.partialorder %v4248, 0.0
    %vm4496 = vcmp.ge.f32.partialorder %v4252, 0.0
    %vm4497 = vcmp.ge.f32.partialorder %v4254, 0.0
    %vm4498 = vcmp.ge.f32.partialorder %v4256, 0.0
    %vm4499 = vcmp.ge.f32.partialorder %v4258, 0.0
    %vm4500 = vcmp.ge.f32.partialorder %v4262, 0.0
    %vm4501 = vcmp.ge.f32.partialorder %v4264, 0.0
    %vm4502 = vcmp.ge.f32.partialorder %v4266, 0.0
    %vm4503 = vcmp.ge.f32.partialorder %v4268, 0.0
    %vm4504 = vcmp.ge.f32.partialorder %v4272, 0.0
    %vm4505 = vcmp.ge.f32.partialorder %v4274, 0.0
    %vm4506 = vcmp.ge.f32.partialorder %v4276, 0.0
    %vm4507 = vcmp.ge.f32.partialorder %v4278, 0.0
    %vm4508 = vcmp.ge.f32.partialorder %v4282, 0.0
    %vm4509 = vcmp.ge.f32.partialorder %v4284, 0.0
    %vm4510 = vcmp.ge.f32.partialorder %v4286, 0.0
    %vm4511 = vcmp.ge.f32.partialorder %v4288, 0.0
    %vm4512 = vcmp.ge.f32.partialorder %v4292, 0.0
    %vm4513 = vcmp.ge.f32.partialorder %v4294, 0.0
    %vm4514 = vcmp.ge.f32.partialorder %v4296, 0.0
    %vm4515 = vcmp.ge.f32.partialorder %v4298, 0.0
    %vm4516 = vcmp.ge.f32.partialorder %v4302, 0.0
    %vm4517 = vcmp.ge.f32.partialorder %v4304, 0.0
    %vm4518 = vcmp.ge.f32.partialorder %v4306, 0.0
    %vm4519 = vcmp.ge.f32.partialorder %v4308, 0.0
    %vm4520 = vcmp.ge.f32.partialorder %v4312, 0.0
    %vm4521 = vcmp.ge.f32.partialorder %v4314, 0.0
    %vm4522 = vcmp.ge.f32.partialorder %v4316, 0.0
    %vm4523 = vcmp.ge.f32.partialorder %v4318, 0.0
    %vm4524 = vcmp.ge.f32.partialorder %v4322, 0.0
    %vm4525 = vcmp.ge.f32.partialorder %v4324, 0.0
    %vm4526 = vcmp.ge.f32.partialorder %v4326, 0.0
    %vm4527 = vcmp.ge.f32.partialorder %v4328, 0.0
    %vm4528 = vcmp.ge.f32.partialorder %v4332, 0.0
    %vm4529 = vcmp.ge.f32.partialorder %v4334, 0.0
    %vm4530 = vcmp.ge.f32.partialorder %v4336, 0.0
    %vm4531 = vcmp.ge.f32.partialorder %v4338, 0.0
    %v4532 = vmul.f32 %v3862, 0.2
    %v4533 = vmul.f32 %v3864, 0.2
    %v4534 = vmul.f32 %v3866, 0.2
    %v4535 = vmul.f32 %v3868, 0.2
    %v4536 = vmul.f32 %v3872, 0.2
    %v4537 = vmul.f32 %v3874, 0.2
    %v4538 = vmul.f32 %v3876, 0.2
    %v4539 = vmul.f32 %v3878, 0.2
    %v4540 = vmul.f32 %v3882, 0.2
    %v4541 = vmul.f32 %v3884, 0.2
    %v4542 = vmul.f32 %v3886, 0.2
    %v4543 = vmul.f32 %v3888, 0.2
    %v4544 = vmul.f32 %v3892, 0.2
    %v4545 = vmul.f32 %v3894, 0.2
    %v4546 = vmul.f32 %v3896, 0.2
    %v4547 = vmul.f32 %v3898, 0.2
    %v4548 = vmul.f32 %v3902, 0.2
    %v4549 = vmul.f32 %v3904, 0.2
    %v4550 = vmul.f32 %v3906, 0.2
    %v4551 = vmul.f32 %v3908, 0.2
    %v4552 = vmul.f32 %v3912, 0.2
    %v4553 = vmul.f32 %v3914, 0.2
    %v4554 = vmul.f32 %v3916, 0.2
    %v4555 = vmul.f32 %v3918, 0.2
    %v4556 = vmul.f32 %v3922, 0.2
    %v4557 = vmul.f32 %v3924, 0.2
    %v4558 = vmul.f32 %v3926, 0.2
    %v4559 = vmul.f32 %v3928, 0.2
    %v4560 = vmul.f32 %v3932, 0.2
    %v4561 = vmul.f32 %v3934, 0.2
    %v4562 = vmul.f32 %v3936, 0.2
    %v4563 = vmul.f32 %v3938, 0.2
    %v4564 = vmul.f32 %v3942, 0.2
    %v4565 = vmul.f32 %v3944, 0.2
    %v4566 = vmul.f32 %v3946, 0.2
    %v4567 = vmul.f32 %v3948, 0.2
    %v4568 = vmul.f32 %v3952, 0.2
    %v4569 = vmul.f32 %v3954, 0.2
    %v4570 = vmul.f32 %v3956, 0.2
    %v4571 = vmul.f32 %v3958, 0.2
    %v4572 = vmul.f32 %v3962, 0.2
    %v4573 = vmul.f32 %v3964, 0.2
    %v4574 = vmul.f32 %v3966, 0.2
    %v4575 = vmul.f32 %v3968, 0.2
    %v4576 = vmul.f32 %v3972, 0.2
    %v4577 = vmul.f32 %v3974, 0.2
    %v4578 = vmul.f32 %v3976, 0.2
    %v4579 = vmul.f32 %v3978, 0.2
    %v4580 = vmul.f32 %v3982, 0.2
    %v4581 = vmul.f32 %v3984, 0.2
    %v4582 = vmul.f32 %v3986, 0.2
    %v4583 = vmul.f32 %v3988, 0.2
    %v4584 = vmul.f32 %v3992, 0.2
    %v4585 = vmul.f32 %v3994, 0.2
    %v4586 = vmul.f32 %v3996, 0.2
    %v4587 = vmul.f32 %v3998, 0.2
    %v4588 = vmul.f32 %v4002, 0.2
    %v4589 = vmul.f32 %v4004, 0.2
    %v4590 = vmul.f32 %v4006, 0.2
    %v4591 = vmul.f32 %v4008, 0.2
    %v4592 = vmul.f32 %v4012, 0.2
    %v4593 = vmul.f32 %v4014, 0.2
    %v4594 = vmul.f32 %v4016, 0.2
    %v4595 = vmul.f32 %v4018, 0.2
    %v4596 = vmul.f32 %v4022, 0.2
    %v4597 = vmul.f32 %v4024, 0.2
    %v4598 = vmul.f32 %v4026, 0.2
    %v4599 = vmul.f32 %v4028, 0.2
    %v4600 = vmul.f32 %v4032, 0.2
    %v4601 = vmul.f32 %v4034, 0.2
    %v4602 = vmul.f32 %v4036, 0.2
    %v4603 = vmul.f32 %v4038, 0.2
    %v4604 = vmul.f32 %v4042, 0.2
    %v4605 = vmul.f32 %v4044, 0.2
    %v4606 = vmul.f32 %v4046, 0.2
    %v4607 = vmul.f32 %v4048, 0.2
    %v4608 = vmul.f32 %v4052, 0.2
    %v4609 = vmul.f32 %v4054, 0.2
    %v4610 = vmul.f32 %v4056, 0.2
    %v4611 = vmul.f32 %v4058, 0.2
    %v4612 = vmul.f32 %v4062, 0.2
    %v4613 = vmul.f32 %v4064, 0.2
    %v4614 = vmul.f32 %v4066, 0.2
    %v4615 = vmul.f32 %v4068, 0.2
    %v4616 = vmul.f32 %v4072, 0.2
    %v4617 = vmul.f32 %v4074, 0.2
    %v4618 = vmul.f32 %v4076, 0.2
    %v4619 = vmul.f32 %v4078, 0.2
    %v4620 = vmul.f32 %v4082, 0.2
    %v4621 = vmul.f32 %v4084, 0.2
    %v4622 = vmul.f32 %v4086, 0.2
    %v4623 = vmul.f32 %v4088, 0.2
    %v4624 = vmul.f32 %v4092, 0.2
    %v4625 = vmul.f32 %v4094, 0.2
    %v4626 = vmul.f32 %v4096, 0.2
    %v4627 = vmul.f32 %v4098, 0.2
    %v4628 = vmul.f32 %v4102, 0.2
    %v4629 = vmul.f32 %v4104, 0.2
    %v4630 = vmul.f32 %v4106, 0.2
    %v4631 = vmul.f32 %v4108, 0.2
    %v4632 = vmul.f32 %v4112, 0.2
    %v4633 = vmul.f32 %v4114, 0.2
    %v4634 = vmul.f32 %v4116, 0.2
    %v4635 = vmul.f32 %v4118, 0.2
    %v4636 = vmul.f32 %v4122, 0.2
    %v4637 = vmul.f32 %v4124, 0.2
    %v4638 = vmul.f32 %v4126, 0.2
    %v4639 = vmul.f32 %v4128, 0.2
    %v4640 = vmul.f32 %v4132, 0.2
    %v4641 = vmul.f32 %v4134, 0.2
    %v4642 = vmul.f32 %v4136, 0.2
    %v4643 = vmul.f32 %v4138, 0.2
    %v4644 = vmul.f32 %v4142, 0.2
    %v4645 = vmul.f32 %v4144, 0.2
    %v4646 = vmul.f32 %v4146, 0.2
    %v4647 = vmul.f32 %v4148, 0.2
    %v4648 = vmul.f32 %v4152, 0.2
    %v4649 = vmul.f32 %v4154, 0.2
    %v4650 = vmul.f32 %v4156, 0.2
    %v4651 = vmul.f32 %v4158, 0.2
    %v4652 = vmul.f32 %v4162, 0.2
    %v4653 = vmul.f32 %v4164, 0.2
    %v4654 = vmul.f32 %v4166, 0.2
    %v4655 = vmul.f32 %v4168, 0.2
    %v4656 = vmul.f32 %v4172, 0.2
    %v4657 = vmul.f32 %v4174, 0.2
    %v4658 = vmul.f32 %v4176, 0.2
    %v4659 = vmul.f32 %v4178, 0.2
    %v4660 = vmul.f32 %v4182, 0.2
    %v4661 = vmul.f32 %v4184, 0.2
    %v4662 = vmul.f32 %v4186, 0.2
    %v4663 = vmul.f32 %v4188, 0.2
    %v4664 = vmul.f32 %v4192, 0.2
    %v4665 = vmul.f32 %v4194, 0.2
    %v4666 = vmul.f32 %v4196, 0.2
    %v4667 = vmul.f32 %v4198, 0.2
    %v4668 = vmul.f32 %v4202, 0.2
    %v4669 = vmul.f32 %v4204, 0.2
    %v4670 = vmul.f32 %v4206, 0.2
    %v4671 = vmul.f32 %v4208, 0.2
    %v4672 = vmul.f32 %v4212, 0.2
    %v4673 = vmul.f32 %v4214, 0.2
    %v4674 = vmul.f32 %v4216, 0.2
    %v4675 = vmul.f32 %v4218, 0.2
    %v4676 = vmul.f32 %v4222, 0.2
    %v4677 = vmul.f32 %v4224, 0.2
    %v4678 = vmul.f32 %v4226, 0.2
    %v4679 = vmul.f32 %v4228, 0.2
    %v4680 = vmul.f32 %v4232, 0.2
    %v4681 = vmul.f32 %v4234, 0.2
    %v4682 = vmul.f32 %v4236, 0.2
    %v4683 = vmul.f32 %v4238, 0.2
    %v4684 = vmul.f32 %v4242, 0.2
    %v4685 = vmul.f32 %v4244, 0.2
    %v4686 = vmul.f32 %v4246, 0.2
    %v4687 = vmul.f32 %v4248, 0.2
    %v4688 = vmul.f32 %v4252, 0.2
    %v4689 = vmul.f32 %v4254, 0.2
    %v4690 = vmul.f32 %v4256, 0.2
    %v4691 = vmul.f32 %v4258, 0.2
    %v4692 = vmul.f32 %v4262, 0.2
    %v4693 = vmul.f32 %v4264, 0.2
    %v4694 = vmul.f32 %v4266, 0.2
    %v4695 = vmul.f32 %v4268, 0.2
    %v4696 = vmul.f32 %v4272, 0.2
    %v4697 = vmul.f32 %v4274, 0.2
    %v4698 = vmul.f32 %v4276, 0.2
    %v4699 = vmul.f32 %v4278, 0.2
    %v4700 = vmul.f32 %v4282, 0.2
    %v4701 = vmul.f32 %v4284, 0.2
    %v4702 = vmul.f32 %v4286, 0.2
    %v4703 = vmul.f32 %v4288, 0.2
    %v4704 = vmul.f32 %v4292, 0.2
    %v4705 = vmul.f32 %v4294, 0.2
    %v4706 = vmul.f32 %v4296, 0.2
    %v4707 = vmul.f32 %v4298, 0.2
    %v4708 = vmul.f32 %v4302, 0.2
    %v4709 = vmul.f32 %v4304, 0.2
    %v4710 = vmul.f32 %v4306, 0.2
    %v4711 = vmul.f32 %v4308, 0.2
    %v4712 = vmul.f32 %v4312, 0.2
    %v4713 = vmul.f32 %v4314, 0.2
    %v4714 = vmul.f32 %v4316, 0.2
    %v4715 = vmul.f32 %v4318, 0.2
    %v4716 = vmul.f32 %v4322, 0.2
    %v4717 = vmul.f32 %v4324, 0.2
    %v4718 = vmul.f32 %v4326, 0.2
    %v4719 = vmul.f32 %v4328, 0.2
    %v4720 = vmul.f32 %v4332, 0.2
    %v4721 = vmul.f32 %v4334, 0.2
    %v4722 = vmul.f32 %v4336, 0.2
    %v4723 = vmul.f32 %v4338, 0.2
    %v4724 = vsel %vm4340, %v3862, %v4532
    %v4725 = vsel %vm4341, %v3864, %v4533
    %v4726 = vsel %vm4342, %v3866, %v4534
    %v4727 = vsel %vm4343, %v3868, %v4535
    %v4728 = vsel %vm4344, %v3872, %v4536
    %v4729 = vsel %vm4345, %v3874, %v4537
    %v4730 = vsel %vm4346, %v3876, %v4538
    %v4731 = vsel %vm4347, %v3878, %v4539
    %v4732 = vsel %vm4348, %v3882, %v4540
    %v4733 = vsel %vm4349, %v3884, %v4541
    %v4734 = vsel %vm4350, %v3886, %v4542
    %v4735 = vsel %vm4351, %v3888, %v4543
    %v4736 = vsel %vm4352, %v3892, %v4544
    %v4737 = vsel %vm4353, %v3894, %v4545
    %v4738 = vsel %vm4354, %v3896, %v4546
    %v4739 = vsel %vm4355, %v3898, %v4547
    %v4740 = vsel %vm4356, %v3902, %v4548
    %v4741 = vsel %vm4357, %v3904, %v4549
    %v4742 = vsel %vm4358, %v3906, %v4550
    %v4743 = vsel %vm4359, %v3908, %v4551
    %v4744 = vsel %vm4360, %v3912, %v4552
    %v4745 = vsel %vm4361, %v3914, %v4553
    %v4746 = vsel %vm4362, %v3916, %v4554
    %v4747 = vsel %vm4363, %v3918, %v4555
    %v4748 = vsel %vm4364, %v3922, %v4556
    %v4749 = vsel %vm4365, %v3924, %v4557
    %v4750 = vsel %vm4366, %v3926, %v4558
    %v4751 = vsel %vm4367, %v3928, %v4559
    %v4752 = vsel %vm4368, %v3932, %v4560
    %v4753 = vsel %vm4369, %v3934, %v4561
    %v4754 = vsel %vm4370, %v3936, %v4562
    %v4755 = vsel %vm4371, %v3938, %v4563
    %v4756 = vsel %vm4372, %v3942, %v4564
    %v4757 = vsel %vm4373, %v3944, %v4565
    %v4758 = vsel %vm4374, %v3946, %v4566
    %v4759 = vsel %vm4375, %v3948, %v4567
    %v4760 = vsel %vm4376, %v3952, %v4568
    %v4761 = vsel %vm4377, %v3954, %v4569
    %v4762 = vsel %vm4378, %v3956, %v4570
    %v4763 = vsel %vm4379, %v3958, %v4571
    %v4764 = vsel %vm4380, %v3962, %v4572
    %v4765 = vsel %vm4381, %v3964, %v4573
    %v4766 = vsel %vm4382, %v3966, %v4574
    %v4767 = vsel %vm4383, %v3968, %v4575
    %v4768 = vsel %vm4384, %v3972, %v4576
    %v4769 = vsel %vm4385, %v3974, %v4577
    %v4770 = vsel %vm4386, %v3976, %v4578
    %v4771 = vsel %vm4387, %v3978, %v4579
    %v4772 = vsel %vm4388, %v3982, %v4580
    %v4773 = vsel %vm4389, %v3984, %v4581
    %v4774 = vsel %vm4390, %v3986, %v4582
    %v4775 = vsel %vm4391, %v3988, %v4583
    %v4776 = vsel %vm4392, %v3992, %v4584
    %v4777 = vsel %vm4393, %v3994, %v4585
    %v4778 = vsel %vm4394, %v3996, %v4586
    %v4779 = vsel %vm4395, %v3998, %v4587
    %v4780 = vsel %vm4396, %v4002, %v4588
    %v4781 = vsel %vm4397, %v4004, %v4589
    %v4782 = vsel %vm4398, %v4006, %v4590
    %v4783 = vsel %vm4399, %v4008, %v4591
    %v4784 = vsel %vm4400, %v4012, %v4592
    %v4785 = vsel %vm4401, %v4014, %v4593
    %v4786 = vsel %vm4402, %v4016, %v4594
    %v4787 = vsel %vm4403, %v4018, %v4595
    %v4788 = vsel %vm4404, %v4022, %v4596
    %v4789 = vsel %vm4405, %v4024, %v4597
    %v4790 = vsel %vm4406, %v4026, %v4598
    %v4791 = vsel %vm4407, %v4028, %v4599
    %v4792 = vsel %vm4408, %v4032, %v4600
    %v4793 = vsel %vm4409, %v4034, %v4601
    %v4794 = vsel %vm4410, %v4036, %v4602
    %v4795 = vsel %vm4411, %v4038, %v4603
    %v4796 = vsel %vm4412, %v4042, %v4604
    %v4797 = vsel %vm4413, %v4044, %v4605
    %v4798 = vsel %vm4414, %v4046, %v4606
    %v4799 = vsel %vm4415, %v4048, %v4607
    %v4800 = vsel %vm4416, %v4052, %v4608
    %v4801 = vsel %vm4417, %v4054, %v4609
    %v4802 = vsel %vm4418, %v4056, %v4610
    %v4803 = vsel %vm4419, %v4058, %v4611
    %v4804 = vsel %vm4420, %v4062, %v4612
    %v4805 = vsel %vm4421, %v4064, %v4613
    %v4806 = vsel %vm4422, %v4066, %v4614
    %v4807 = vsel %vm4423, %v4068, %v4615
    %v4808 = vsel %vm4424, %v4072, %v4616
    %v4809 = vsel %vm4425, %v4074, %v4617
    %v4810 = vsel %vm4426, %v4076, %v4618
    %v4811 = vsel %vm4427, %v4078, %v4619
    %v4812 = vsel %vm4428, %v4082, %v4620
    %v4813 = vsel %vm4429, %v4084, %v4621
    %v4814 = vsel %vm4430, %v4086, %v4622
    %v4815 = vsel %vm4431, %v4088, %v4623
    %v4816 = vsel %vm4432, %v4092, %v4624
    %v4817 = vsel %vm4433, %v4094, %v4625
    %v4818 = vsel %vm4434, %v4096, %v4626
    %v4819 = vsel %vm4435, %v4098, %v4627
    %v4820 = vsel %vm4436, %v4102, %v4628
    %v4821 = vsel %vm4437, %v4104, %v4629
    %v4822 = vsel %vm4438, %v4106, %v4630
    %v4823 = vsel %vm4439, %v4108, %v4631
    %v4824 = vsel %vm4440, %v4112, %v4632
    %v4825 = vsel %vm4441, %v4114, %v4633
    %v4826 = vsel %vm4442, %v4116, %v4634
    %v4827 = vsel %vm4443, %v4118, %v4635
    %v4828 = vsel %vm4444, %v4122, %v4636
    %v4829 = vsel %vm4445, %v4124, %v4637
    %v4830 = vsel %vm4446, %v4126, %v4638
    %v4831 = vsel %vm4447, %v4128, %v4639
    %v4832 = vsel %vm4448, %v4132, %v4640
    %v4833 = vsel %vm4449, %v4134, %v4641
    %v4834 = vsel %vm4450, %v4136, %v4642
    %v4835 = vsel %vm4451, %v4138, %v4643
    %v4836 = vsel %vm4452, %v4142, %v4644
    %v4837 = vsel %vm4453, %v4144, %v4645
    %v4838 = vsel %vm4454, %v4146, %v4646
    %v4839 = vsel %vm4455, %v4148, %v4647
    %v4840 = vsel %vm4456, %v4152, %v4648
    %v4841 = vsel %vm4457, %v4154, %v4649
    %v4842 = vsel %vm4458, %v4156, %v4650
    %v4843 = vsel %vm4459, %v4158, %v4651
    %v4844 = vsel %vm4460, %v4162, %v4652
    %v4845 = vsel %vm4461, %v4164, %v4653
    %v4846 = vsel %vm4462, %v4166, %v4654
    %v4847 = vsel %vm4463, %v4168, %v4655
    %v4848 = vsel %vm4464, %v4172, %v4656
    %v4849 = vsel %vm4465, %v4174, %v4657
    %v4850 = vsel %vm4466, %v4176, %v4658
    %v4851 = vsel %vm4467, %v4178, %v4659
    %v4852 = vsel %vm4468, %v4182, %v4660
    %v4853 = vsel %vm4469, %v4184, %v4661
    %v4854 = vsel %vm4470, %v4186, %v4662
    %v4855 = vsel %vm4471, %v4188, %v4663
    %v4856 = vsel %vm4472, %v4192, %v4664
    %v4857 = vsel %vm4473, %v4194, %v4665
    %v4858 = vsel %vm4474, %v4196, %v4666
    %v4859 = vsel %vm4475, %v4198, %v4667
    %v4860 = vsel %vm4476, %v4202, %v4668
    %v4861 = vsel %vm4477, %v4204, %v4669
    %v4862 = vsel %vm4478, %v4206, %v4670
    %v4863 = vsel %vm4479, %v4208, %v4671
    %v4864 = vsel %vm4480, %v4212, %v4672
    %v4865 = vsel %vm4481, %v4214, %v4673
    %v4866 = vsel %vm4482, %v4216, %v4674
    %v4867 = vsel %vm4483, %v4218, %v4675
    %v4868 = vsel %vm4484, %v4222, %v4676
    %v4869 = vsel %vm4485, %v4224, %v4677
    %v4870 = vsel %vm4486, %v4226, %v4678
    %v4871 = vsel %vm4487, %v4228, %v4679
    %v4872 = vsel %vm4488, %v4232, %v4680
    %v4873 = vsel %vm4489, %v4234, %v4681
    %v4874 = vsel %vm4490, %v4236, %v4682
    %v4875 = vsel %vm4491, %v4238, %v4683
    %v4876 = vsel %vm4492, %v4242, %v4684
    %v4877 = vsel %vm4493, %v4244, %v4685
    %v4878 = vsel %vm4494, %v4246, %v4686
    %v4879 = vsel %vm4495, %v4248, %v4687
    %v4880 = vsel %vm4496, %v4252, %v4688
    %v4881 = vsel %vm4497, %v4254, %v4689
    %v4882 = vsel %vm4498, %v4256, %v4690
    %v4883 = vsel %vm4499, %v4258, %v4691
    %v4884 = vsel %vm4500, %v4262, %v4692
    %v4885 = vsel %vm4501, %v4264, %v4693
    %v4886 = vsel %vm4502, %v4266, %v4694
    %v4887 = vsel %vm4503, %v4268, %v4695
    %v4888 = vsel %vm4504, %v4272, %v4696
    %v4889 = vsel %vm4505, %v4274, %v4697
    %v4890 = vsel %vm4506, %v4276, %v4698
    %v4891 = vsel %vm4507, %v4278, %v4699
    %v4892 = vsel %vm4508, %v4282, %v4700
    %v4893 = vsel %vm4509, %v4284, %v4701
    %v4894 = vsel %vm4510, %v4286, %v4702
    %v4895 = vsel %vm4511, %v4288, %v4703
    %v4896 = vsel %vm4512, %v4292, %v4704
    %v4897 = vsel %vm4513, %v4294, %v4705
    %v4898 = vsel %vm4514, %v4296, %v4706
    %v4899 = vsel %vm4515, %v4298, %v4707
    %v4900 = vsel %vm4516, %v4302, %v4708
    %v4901 = vsel %vm4517, %v4304, %v4709
    %v4902 = vsel %vm4518, %v4306, %v4710
    %v4903 = vsel %vm4519, %v4308, %v4711
    %v4904 = vsel %vm4520, %v4312, %v4712
    %v4905 = vsel %vm4521, %v4314, %v4713
    %v4906 = vsel %vm4522, %v4316, %v4714
    %v4907 = vsel %vm4523, %v4318, %v4715
    %v4908 = vsel %vm4524, %v4322, %v4716
    %v4909 = vsel %vm4525, %v4324, %v4717
    %v4910 = vsel %vm4526, %v4326, %v4718
    %v4911 = vsel %vm4527, %v4328, %v4719
    %v4912 = vsel %vm4528, %v4332, %v4720
    %v4913 = vsel %vm4529, %v4334, %v4721
    %v4914 = vsel %vm4530, %v4336, %v4722
    %v4915 = vsel %vm4531, %v4338, %v4723
    %v4916 = vld [vmem:[#allocation3] sm:$0xff]
    %v4917 = vld [vmem:[#allocation3 + $0x8] sm:$0xff]
    %v4918 = vld [vmem:[#allocation3 + $0x10] sm:$0xff]
    %v4919 = vld [vmem:[#allocation3 + $0x18] sm:$0xff]
    %v4920 = vld [vmem:[#allocation3 + $0x20] sm:$0xff]
    %v4921 = vld [vmem:[#allocation3 + $0x28] sm:$0xff]
    %v4922 = vld [vmem:[#allocation3 + $0x30] sm:$0xff]
    %v4923 = vld [vmem:[#allocation3 + $0x38] sm:$0xff]
    %v4924 = vld [vmem:[#allocation3 + $0x40] sm:$0xff]
    %v4925 = vld [vmem:[#allocation3 + $0x48] sm:$0xff]
    %v4926 = vld [vmem:[#allocation3 + $0x50] sm:$0xff]
    %v4927 = vld [vmem:[#allocation3 + $0x58] sm:$0xff]
    %v4928 = vld [vmem:[#allocation3 + $0x60] sm:$0xff]
    %v4929 = vld [vmem:[#allocation3 + $0x68] sm:$0xff]
    %v4930 = vld [vmem:[#allocation3 + $0x70] sm:$0xff]
    %v4931 = vld [vmem:[#allocation3 + $0x78] sm:$0xff]
    %v4932 = vld [vmem:[#allocation3 + $0x80] sm:$0xff]
    %v4933 = vld [vmem:[#allocation3 + $0x88] sm:$0xff]
    %v4934 = vld [vmem:[#allocation3 + $0x90] sm:$0xff]
    %v4935 = vld [vmem:[#allocation3 + $0x98] sm:$0xff]
    %v4936 = vld [vmem:[#allocation3 + $0xa0] sm:$0xff]
    %v4937 = vld [vmem:[#allocation3 + $0xa8] sm:$0xff]
    %v4938 = vld [vmem:[#allocation3 + $0xb0] sm:$0xff]
    %v4939 = vld [vmem:[#allocation3 + $0xb8] sm:$0xff]
    %v4940 = vld [vmem:[#allocation3 + $0xc0] sm:$0xff]
    %v4941 = vld [vmem:[#allocation3 + $0xc8] sm:$0xff]
    %v4942 = vld [vmem:[#allocation3 + $0xd0] sm:$0xff]
    %v4943 = vld [vmem:[#allocation3 + $0xd8] sm:$0xff]
    %v4944 = vld [vmem:[#allocation3 + $0xe0] sm:$0xff]
    %v4945 = vld [vmem:[#allocation3 + $0xe8] sm:$0xff]
    %v4946 = vld [vmem:[#allocation3 + $0xf0] sm:$0xff]
    %v4947 = vld [vmem:[#allocation3 + $0xf8] sm:$0xff]
    %v4948 = vld [vmem:[#allocation3 + $0x100] sm:$0xff]
    %v4949 = vld [vmem:[#allocation3 + $0x108] sm:$0xff]
    %v4950 = vld [vmem:[#allocation3 + $0x110] sm:$0xff]
    %v4951 = vld [vmem:[#allocation3 + $0x118] sm:$0xff]
    %v4952 = vld [vmem:[#allocation3 + $0x120] sm:$0xff]
    %v4953 = vld [vmem:[#allocation3 + $0x128] sm:$0xff]
    %v4954 = vld [vmem:[#allocation3 + $0x130] sm:$0xff]
    %v4955 = vld [vmem:[#allocation3 + $0x138] sm:$0xff]
    %v4956 = vld [vmem:[#allocation3 + $0x140] sm:$0xff]
    %v4957 = vld [vmem:[#allocation3 + $0x148] sm:$0xff]
    %v4958 = vld [vmem:[#allocation3 + $0x150] sm:$0xff]
    %v4959 = vld [vmem:[#allocation3 + $0x158] sm:$0xff]
    %v4960 = vld [vmem:[#allocation3 + $0x160] sm:$0xff]
    %v4961 = vld [vmem:[#allocation3 + $0x168] sm:$0xff]
    %v4962 = vld [vmem:[#allocation3 + $0x170] sm:$0xff]
    %v4963 = vld [vmem:[#allocation3 + $0x178] sm:$0xff]
    %v4964 = vld [vmem:[#allocation3 + $0x180] sm:$0xff]
    %v4965 = vld [vmem:[#allocation3 + $0x188] sm:$0xff]
    %v4966 = vld [vmem:[#allocation3 + $0x190] sm:$0xff]
    %v4967 = vld [vmem:[#allocation3 + $0x198] sm:$0xff]
    %v4968 = vld [vmem:[#allocation3 + $0x1a0] sm:$0xff]
    %v4969 = vld [vmem:[#allocation3 + $0x1a8] sm:$0xff]
    %v4970 = vld [vmem:[#allocation3 + $0x1b0] sm:$0xff]
    %v4971 = vld [vmem:[#allocation3 + $0x1b8] sm:$0xff]
    %v4972 = vld [vmem:[#allocation3 + $0x1c0] sm:$0xff]
    %v4973 = vld [vmem:[#allocation3 + $0x1c8] sm:$0xff]
    %v4974 = vld [vmem:[#allocation3 + $0x1d0] sm:$0xff]
    %v4975 = vld [vmem:[#allocation3 + $0x1d8] sm:$0xff]
    %v4976 = vld [vmem:[#allocation3 + $0x1e0] sm:$0xff]
    %v4977 = vld [vmem:[#allocation3 + $0x1e8] sm:$0xff]
    %v4978 = vld [vmem:[#allocation3 + $0x1f0] sm:$0xff]
    %v4979 = vld [vmem:[#allocation3 + $0x1f8] sm:$0xff]
    %v4980 = vld [vmem:[#allocation3 + $0x200] sm:$0xff]
    %v4981 = vld [vmem:[#allocation3 + $0x208] sm:$0xff]
    %v4982 = vld [vmem:[#allocation3 + $0x210] sm:$0xff]
    %v4983 = vld [vmem:[#allocation3 + $0x218] sm:$0xff]
    %v4984 = vld [vmem:[#allocation3 + $0x220] sm:$0xff]
    %v4985 = vld [vmem:[#allocation3 + $0x228] sm:$0xff]
    %v4986 = vld [vmem:[#allocation3 + $0x230] sm:$0xff]
    %v4987 = vld [vmem:[#allocation3 + $0x238] sm:$0xff]
    %v4988 = vld [vmem:[#allocation3 + $0x240] sm:$0xff]
    %v4989 = vld [vmem:[#allocation3 + $0x248] sm:$0xff]
    %v4990 = vld [vmem:[#allocation3 + $0x250] sm:$0xff]
    %v4991 = vld [vmem:[#allocation3 + $0x258] sm:$0xff]
    %v4992 = vld [vmem:[#allocation3 + $0x260] sm:$0xff]
    %v4993 = vld [vmem:[#allocation3 + $0x268] sm:$0xff]
    %v4994 = vld [vmem:[#allocation3 + $0x270] sm:$0xff]
    %v4995 = vld [vmem:[#allocation3 + $0x278] sm:$0xff]
    %v4996 = vld [vmem:[#allocation3 + $0x280] sm:$0xff]
    %v4997 = vld [vmem:[#allocation3 + $0x288] sm:$0xff]
    %v4998 = vld [vmem:[#allocation3 + $0x290] sm:$0xff]
    %v4999 = vld [vmem:[#allocation3 + $0x298] sm:$0xff]
    %v5000 = vld [vmem:[#allocation3 + $0x2a0] sm:$0xff]
    %v5001 = vld [vmem:[#allocation3 + $0x2a8] sm:$0xff]
    %v5002 = vld [vmem:[#allocation3 + $0x2b0] sm:$0xff]
    %v5003 = vld [vmem:[#allocation3 + $0x2b8] sm:$0xff]
    %v5004 = vld [vmem:[#allocation3 + $0x2c0] sm:$0xff]
    %v5005 = vld [vmem:[#allocation3 + $0x2c8] sm:$0xff]
    %v5006 = vld [vmem:[#allocation3 + $0x2d0] sm:$0xff]
    %v5007 = vld [vmem:[#allocation3 + $0x2d8] sm:$0xff]
    %v5008 = vld [vmem:[#allocation3 + $0x2e0] sm:$0xff]
    %v5009 = vld [vmem:[#allocation3 + $0x2e8] sm:$0xff]
    %v5010 = vld [vmem:[#allocation3 + $0x2f0] sm:$0xff]
    %v5011 = vld [vmem:[#allocation3 + $0x2f8] sm:$0xff]
    %v5012 = vld [vmem:[#allocation3 + $0x300] sm:$0xff]
    %v5013 = vld [vmem:[#allocation3 + $0x308] sm:$0xff]
    %v5014 = vld [vmem:[#allocation3 + $0x310] sm:$0xff]
    %v5015 = vld [vmem:[#allocation3 + $0x318] sm:$0xff]
    %v5016 = vld [vmem:[#allocation3 + $0x320] sm:$0xff]
    %v5017 = vld [vmem:[#allocation3 + $0x328] sm:$0xff]
    %v5018 = vld [vmem:[#allocation3 + $0x330] sm:$0xff]
    %v5019 = vld [vmem:[#allocation3 + $0x338] sm:$0xff]
    %v5020 = vld [vmem:[#allocation3 + $0x340] sm:$0xff]
    %v5021 = vld [vmem:[#allocation3 + $0x348] sm:$0xff]
    %v5022 = vld [vmem:[#allocation3 + $0x350] sm:$0xff]
    %v5023 = vld [vmem:[#allocation3 + $0x358] sm:$0xff]
    %v5024 = vld [vmem:[#allocation3 + $0x360] sm:$0xff]
    %v5025 = vld [vmem:[#allocation3 + $0x368] sm:$0xff]
    %v5026 = vld [vmem:[#allocation3 + $0x370] sm:$0xff]
    %v5027 = vld [vmem:[#allocation3 + $0x378] sm:$0xff]
    %v5028 = vld [vmem:[#allocation3 + $0x380] sm:$0xff]
    %v5029 = vld [vmem:[#allocation3 + $0x388] sm:$0xff]
    %v5030 = vld [vmem:[#allocation3 + $0x390] sm:$0xff]
    %v5031 = vld [vmem:[#allocation3 + $0x398] sm:$0xff]
    %v5032 = vld [vmem:[#allocation3 + $0x3a0] sm:$0xff]
    %v5033 = vld [vmem:[#allocation3 + $0x3a8] sm:$0xff]
    %v5034 = vld [vmem:[#allocation3 + $0x3b0] sm:$0xff]
    %v5035 = vld [vmem:[#allocation3 + $0x3b8] sm:$0xff]
    %v5036 = vld [vmem:[#allocation3 + $0x3c0] sm:$0xff]
    %v5037 = vld [vmem:[#allocation3 + $0x3c8] sm:$0xff]
    %v5038 = vld [vmem:[#allocation3 + $0x3d0] sm:$0xff]
    %v5039 = vld [vmem:[#allocation3 + $0x3d8] sm:$0xff]
    %v5040 = vld [vmem:[#allocation3 + $0x3e0] sm:$0xff]
    %v5041 = vld [vmem:[#allocation3 + $0x3e8] sm:$0xff]
    %v5042 = vld [vmem:[#allocation3 + $0x3f0] sm:$0xff]
    %v5043 = vld [vmem:[#allocation3 + $0x3f8] sm:$0xff]
    %v5044 = vld [vmem:[#allocation3 + $0x400] sm:$0xff]
    %v5045 = vld [vmem:[#allocation3 + $0x408] sm:$0xff]
    %v5046 = vld [vmem:[#allocation3 + $0x410] sm:$0xff]
    %v5047 = vld [vmem:[#allocation3 + $0x418] sm:$0xff]
    %v5048 = vld [vmem:[#allocation3 + $0x420] sm:$0xff]
    %v5049 = vld [vmem:[#allocation3 + $0x428] sm:$0xff]
    %v5050 = vld [vmem:[#allocation3 + $0x430] sm:$0xff]
    %v5051 = vld [vmem:[#allocation3 + $0x438] sm:$0xff]
    %v5052 = vld [vmem:[#allocation3 + $0x440] sm:$0xff]
    %v5053 = vld [vmem:[#allocation3 + $0x448] sm:$0xff]
    %v5054 = vld [vmem:[#allocation3 + $0x450] sm:$0xff]
    %v5055 = vld [vmem:[#allocation3 + $0x458] sm:$0xff]
    %v5056 = vld [vmem:[#allocation3 + $0x460] sm:$0xff]
    %v5057 = vld [vmem:[#allocation3 + $0x468] sm:$0xff]
    %v5058 = vld [vmem:[#allocation3 + $0x470] sm:$0xff]
    %v5059 = vld [vmem:[#allocation3 + $0x478] sm:$0xff]
    %v5060 = vpack.c.bf16 %v4726, %v4724
    %v5061 = vpack.c.bf16 %v4727, %v4725
    %v5062 = vpack.c.bf16 %v4730, %v4728
    %v5063 = vpack.c.bf16 %v4731, %v4729
    %v5064 = vpack.c.bf16 %v4734, %v4732
    %v5065 = vpack.c.bf16 %v4735, %v4733
    %v5066 = vpack.c.bf16 %v4738, %v4736
    %v5067 = vpack.c.bf16 %v4739, %v4737
    %v5068 = vpack.c.bf16 %v4742, %v4740
    %v5069 = vpack.c.bf16 %v4743, %v4741
    %v5070 = vpack.c.bf16 %v4746, %v4744
    %v5071 = vpack.c.bf16 %v4747, %v4745
    %v5072 = vpack.c.bf16 %v4750, %v4748
    %v5073 = vpack.c.bf16 %v4751, %v4749
    %v5074 = vpack.c.bf16 %v4754, %v4752
    %v5075 = vpack.c.bf16 %v4755, %v4753
    %v5076 = vpack.c.bf16 %v4758, %v4756
    %v5077 = vpack.c.bf16 %v4759, %v4757
    %v5078 = vpack.c.bf16 %v4762, %v4760
    %v5079 = vpack.c.bf16 %v4763, %v4761
    %v5080 = vpack.c.bf16 %v4766, %v4764
    %v5081 = vpack.c.bf16 %v4767, %v4765
    %v5082 = vpack.c.bf16 %v4770, %v4768
    %v5083 = vpack.c.bf16 %v4771, %v4769
    %v5084 = vpack.c.bf16 %v4774, %v4772
    %v5085 = vpack.c.bf16 %v4775, %v4773
    %v5086 = vpack.c.bf16 %v4778, %v4776
    %v5087 = vpack.c.bf16 %v4779, %v4777
    %v5088 = vpack.c.bf16 %v4782, %v4780
    %v5089 = vpack.c.bf16 %v4783, %v4781
    %v5090 = vpack.c.bf16 %v4786, %v4784
    %v5091 = vpack.c.bf16 %v4787, %v4785
    %v5092 = vpack.c.bf16 %v4790, %v4788
    %v5093 = vpack.c.bf16 %v4791, %v4789
    %v5094 = vpack.c.bf16 %v4794, %v4792
    %v5095 = vpack.c.bf16 %v4795, %v4793
    %v5096 = vpack.c.bf16 %v4798, %v4796
    %v5097 = vpack.c.bf16 %v4799, %v4797
    %v5098 = vpack.c.bf16 %v4802, %v4800
    %v5099 = vpack.c.bf16 %v4803, %v4801
    %v5100 = vpack.c.bf16 %v4806, %v4804
    %v5101 = vpack.c.bf16 %v4807, %v4805
    %v5102 = vpack.c.bf16 %v4810, %v4808
    %v5103 = vpack.c.bf16 %v4811, %v4809
    %v5104 = vpack.c.bf16 %v4814, %v4812
    %v5105 = vpack.c.bf16 %v4815, %v4813
    %v5106 = vpack.c.bf16 %v4818, %v4816
    %v5107 = vpack.c.bf16 %v4819, %v4817
    %v5108 = vpack.c.bf16 %v4822, %v4820
    %v5109 = vpack.c.bf16 %v4823, %v4821
    %v5110 = vpack.c.bf16 %v4826, %v4824
    %v5111 = vpack.c.bf16 %v4827, %v4825
    %v5112 = vpack.c.bf16 %v4830, %v4828
    %v5113 = vpack.c.bf16 %v4831, %v4829
    %v5114 = vpack.c.bf16 %v4834, %v4832
    %v5115 = vpack.c.bf16 %v4835, %v4833
    %v5116 = vpack.c.bf16 %v4838, %v4836
    %v5117 = vpack.c.bf16 %v4839, %v4837
    %v5118 = vpack.c.bf16 %v4842, %v4840
    %v5119 = vpack.c.bf16 %v4843, %v4841
    %v5120 = vpack.c.bf16 %v4846, %v4844
    %v5121 = vpack.c.bf16 %v4847, %v4845
    %v5122 = vpack.c.bf16 %v4850, %v4848
    %v5123 = vpack.c.bf16 %v4851, %v4849
    %v5124 = vpack.c.bf16 %v4854, %v4852
    %v5125 = vpack.c.bf16 %v4855, %v4853
    %v5126 = vpack.c.bf16 %v4858, %v4856
    %v5127 = vpack.c.bf16 %v4859, %v4857
    %v5128 = vpack.c.bf16 %v4862, %v4860
    %v5129 = vpack.c.bf16 %v4863, %v4861
    %v5130 = vpack.c.bf16 %v4866, %v4864
    %v5131 = vpack.c.bf16 %v4867, %v4865
    %v5132 = vpack.c.bf16 %v4870, %v4868
    %v5133 = vpack.c.bf16 %v4871, %v4869
    %v5134 = vpack.c.bf16 %v4874, %v4872
    %v5135 = vpack.c.bf16 %v4875, %v4873
    %v5136 = vpack.c.bf16 %v4878, %v4876
    %v5137 = vpack.c.bf16 %v4879, %v4877
    %v5138 = vpack.c.bf16 %v4882, %v4880
    %v5139 = vpack.c.bf16 %v4883, %v4881
    %v5140 = vpack.c.bf16 %v4886, %v4884
    %v5141 = vpack.c.bf16 %v4887, %v4885
    %v5142 = vpack.c.bf16 %v4890, %v4888
    %v5143 = vpack.c.bf16 %v4891, %v4889
    %v5144 = vpack.c.bf16 %v4894, %v4892
    %v5145 = vpack.c.bf16 %v4895, %v4893
    %v5146 = vpack.c.bf16 %v4898, %v4896
    %v5147 = vpack.c.bf16 %v4899, %v4897
    %v5148 = vpack.c.bf16 %v4902, %v4900
    %v5149 = vpack.c.bf16 %v4903, %v4901
    %v5150 = vpack.c.bf16 %v4906, %v4904
    %v5151 = vpack.c.bf16 %v4907, %v4905
    %v5152 = vpack.c.bf16 %v4910, %v4908
    %v5153 = vpack.c.bf16 %v4911, %v4909
    %v5154 = vpack.c.bf16 %v4914, %v4912
    %v5155 = vpack.c.bf16 %v4915, %v4913
    %v5156 = vld [vmem:[%s6] sm:$0xff]
    %v5157 = vld [vmem:[%s6 + $0x8] sm:$0xff]
    %v5158 = vld [vmem:[%s6 + $0x10] sm:$0xff]
    %v5159 = vld [vmem:[%s6 + $0x18] sm:$0xff]
    %v5160 = vld [vmem:[%s6 + $0x20] sm:$0xff]
    %v5161 = vld [vmem:[%s6 + $0x28] sm:$0xff]
    %v5162 = vld [vmem:[%s6 + $0x30] sm:$0xff]
    %v5163 = vld [vmem:[%s6 + $0x38] sm:$0xff]
    %v5164 = vld [vmem:[%s6 + $0x40] sm:$0xff]
    %v5165 = vld [vmem:[%s6 + $0x48] sm:$0xff]
    %v5166 = vld [vmem:[%s6 + $0x50] sm:$0xff]
    %v5167 = vld [vmem:[%s6 + $0x58] sm:$0xff]
    %v5168 = vld [vmem:[%s6 + $0x60] sm:$0xff]
    %v5169 = vld [vmem:[%s6 + $0x68] sm:$0xff]
    %v5170 = vld [vmem:[%s6 + $0x70] sm:$0xff]
    %v5171 = vld [vmem:[%s6 + $0x78] sm:$0xff]
    %v5172 = vld [vmem:[%s6 + $0x80] sm:$0xff]
    %v5173 = vld [vmem:[%s6 + $0x88] sm:$0xff]
    %v5174 = vld [vmem:[%s6 + $0x90] sm:$0xff]
    %v5175 = vld [vmem:[%s6 + $0x98] sm:$0xff]
    %v5176 = vld [vmem:[%s6 + $0xa0] sm:$0xff]
    %v5177 = vld [vmem:[%s6 + $0xa8] sm:$0xff]
    %v5178 = vld [vmem:[%s6 + $0xb0] sm:$0xff]
    %v5179 = vld [vmem:[%s6 + $0xb8] sm:$0xff]
    %v5180 = vld [vmem:[%s6 + $0xc0] sm:$0xff]
    %v5181 = vld [vmem:[%s6 + $0xc8] sm:$0xff]
    %v5182 = vld [vmem:[%s6 + $0xd0] sm:$0xff]
    %v5183 = vld [vmem:[%s6 + $0xd8] sm:$0xff]
    %v5184 = vld [vmem:[%s6 + $0xe0] sm:$0xff]
    %v5185 = vld [vmem:[%s6 + $0xe8] sm:$0xff]
    %v5186 = vld [vmem:[%s6 + $0xf0] sm:$0xff]
    %v5187 = vld [vmem:[%s6 + $0xf8] sm:$0xff]
    %v5188 = vld [vmem:[%s6 + $0x100] sm:$0xff]
    %v5189 = vld [vmem:[%s6 + $0x108] sm:$0xff]
    %v5190 = vld [vmem:[%s6 + $0x110] sm:$0xff]
    %v5191 = vld [vmem:[%s6 + $0x118] sm:$0xff]
    %v5192 = vld [vmem:[%s6 + $0x120] sm:$0xff]
    %v5193 = vld [vmem:[%s6 + $0x128] sm:$0xff]
    %v5194 = vld [vmem:[%s6 + $0x130] sm:$0xff]
    %v5195 = vld [vmem:[%s6 + $0x138] sm:$0xff]
    %v5196 = vld [vmem:[%s6 + $0x140] sm:$0xff]
    %v5197 = vld [vmem:[%s6 + $0x148] sm:$0xff]
    %v5198 = vld [vmem:[%s6 + $0x150] sm:$0xff]
    %v5199 = vld [vmem:[%s6 + $0x158] sm:$0xff]
    %v5200 = vld [vmem:[%s6 + $0x160] sm:$0xff]
    %v5201 = vld [vmem:[%s6 + $0x168] sm:$0xff]
    %v5202 = vld [vmem:[%s6 + $0x170] sm:$0xff]
    %v5203 = vld [vmem:[%s6 + $0x178] sm:$0xff]
    %5205 = vset.pattern.permute.xlu0 0
    %5206 = vperm.xlu0 %5205, %v5156
    %v5207 = vpop.permute.xlu0 %5206
    %5210 = vset.pattern.permute.xlu0 0
    %5211 = vperm.xlu0 %5210, %v5157
    %v5212 = vpop.permute.xlu0 %5211
    %5215 = vset.pattern.permute.xlu0 0
    %5216 = vperm.xlu0 %5215, %v5158
    %v5217 = vpop.permute.xlu0 %5216
    %5220 = vset.pattern.permute.xlu0 0
    %5221 = vperm.xlu0 %5220, %v5159
    %v5222 = vpop.permute.xlu0 %5221
    %5225 = vset.pattern.permute.xlu0 0
    %5226 = vperm.xlu0 %5225, %v5160
    %v5227 = vpop.permute.xlu0 %5226
    %5230 = vset.pattern.permute.xlu0 0
    %5231 = vperm.xlu0 %5230, %v5161
    %v5232 = vpop.permute.xlu0 %5231
    %5235 = vset.pattern.permute.xlu0 0
    %5236 = vperm.xlu0 %5235, %v5162
    %v5237 = vpop.permute.xlu0 %5236
    %5240 = vset.pattern.permute.xlu0 0
    %5241 = vperm.xlu0 %5240, %v5163
    %v5242 = vpop.permute.xlu0 %5241
    %5245 = vset.pattern.permute.xlu0 0
    %5246 = vperm.xlu0 %5245, %v5164
    %v5247 = vpop.permute.xlu0 %5246
    %5250 = vset.pattern.permute.xlu0 0
    %5251 = vperm.xlu0 %5250, %v5165
    %v5252 = vpop.permute.xlu0 %5251
    %5255 = vset.pattern.permute.xlu0 0
    %5256 = vperm.xlu0 %5255, %v5166
    %v5257 = vpop.permute.xlu0 %5256
    %5260 = vset.pattern.permute.xlu0 0
    %5261 = vperm.xlu0 %5260, %v5167
    %v5262 = vpop.permute.xlu0 %5261
    %5265 = vset.pattern.permute.xlu0 0
    %5266 = vperm.xlu0 %5265, %v5168
    %v5267 = vpop.permute.xlu0 %5266
    %5270 = vset.pattern.permute.xlu0 0
    %5271 = vperm.xlu0 %5270, %v5169
    %v5272 = vpop.permute.xlu0 %5271
    %5275 = vset.pattern.permute.xlu0 0
    %5276 = vperm.xlu0 %5275, %v5170
    %v5277 = vpop.permute.xlu0 %5276
    %5280 = vset.pattern.permute.xlu0 0
    %5281 = vperm.xlu0 %5280, %v5171
    %v5282 = vpop.permute.xlu0 %5281
    %5285 = vset.pattern.permute.xlu0 0
    %5286 = vperm.xlu0 %5285, %v5172
    %v5287 = vpop.permute.xlu0 %5286
    %5290 = vset.pattern.permute.xlu0 0
    %5291 = vperm.xlu0 %5290, %v5173
    %v5292 = vpop.permute.xlu0 %5291
    %5295 = vset.pattern.permute.xlu0 0
    %5296 = vperm.xlu0 %5295, %v5174
    %v5297 = vpop.permute.xlu0 %5296
    %5300 = vset.pattern.permute.xlu0 0
    %5301 = vperm.xlu0 %5300, %v5175
    %v5302 = vpop.permute.xlu0 %5301
    %5305 = vset.pattern.permute.xlu0 0
    %5306 = vperm.xlu0 %5305, %v5176
    %v5307 = vpop.permute.xlu0 %5306
    %5310 = vset.pattern.permute.xlu0 0
    %5311 = vperm.xlu0 %5310, %v5177
    %v5312 = vpop.permute.xlu0 %5311
    %5315 = vset.pattern.permute.xlu0 0
    %5316 = vperm.xlu0 %5315, %v5178
    %v5317 = vpop.permute.xlu0 %5316
    %5320 = vset.pattern.permute.xlu0 0
    %5321 = vperm.xlu0 %5320, %v5179
    %v5322 = vpop.permute.xlu0 %5321
    %5325 = vset.pattern.permute.xlu0 0
    %5326 = vperm.xlu0 %5325, %v5180
    %v5327 = vpop.permute.xlu0 %5326
    %5330 = vset.pattern.permute.xlu0 0
    %5331 = vperm.xlu0 %5330, %v5181
    %v5332 = vpop.permute.xlu0 %5331
    %5335 = vset.pattern.permute.xlu0 0
    %5336 = vperm.xlu0 %5335, %v5182
    %v5337 = vpop.permute.xlu0 %5336
    %5340 = vset.pattern.permute.xlu0 0
    %5341 = vperm.xlu0 %5340, %v5183
    %v5342 = vpop.permute.xlu0 %5341
    %5345 = vset.pattern.permute.xlu0 0
    %5346 = vperm.xlu0 %5345, %v5184
    %v5347 = vpop.permute.xlu0 %5346
    %5350 = vset.pattern.permute.xlu0 0
    %5351 = vperm.xlu0 %5350, %v5185
    %v5352 = vpop.permute.xlu0 %5351
    %5355 = vset.pattern.permute.xlu0 0
    %5356 = vperm.xlu0 %5355, %v5186
    %v5357 = vpop.permute.xlu0 %5356
    %5360 = vset.pattern.permute.xlu0 0
    %5361 = vperm.xlu0 %5360, %v5187
    %v5362 = vpop.permute.xlu0 %5361
    %5365 = vset.pattern.permute.xlu0 0
    %5366 = vperm.xlu0 %5365, %v5188
    %v5367 = vpop.permute.xlu0 %5366
    %5370 = vset.pattern.permute.xlu0 0
    %5371 = vperm.xlu0 %5370, %v5189
    %v5372 = vpop.permute.xlu0 %5371
    %5375 = vset.pattern.permute.xlu0 0
    %5376 = vperm.xlu0 %5375, %v5190
    %v5377 = vpop.permute.xlu0 %5376
    %5380 = vset.pattern.permute.xlu0 0
    %5381 = vperm.xlu0 %5380, %v5191
    %v5382 = vpop.permute.xlu0 %5381
    %5385 = vset.pattern.permute.xlu0 0
    %5386 = vperm.xlu0 %5385, %v5192
    %v5387 = vpop.permute.xlu0 %5386
    %5390 = vset.pattern.permute.xlu0 0
    %5391 = vperm.xlu0 %5390, %v5193
    %v5392 = vpop.permute.xlu0 %5391
    %5395 = vset.pattern.permute.xlu0 0
    %5396 = vperm.xlu0 %5395, %v5194
    %v5397 = vpop.permute.xlu0 %5396
    %5400 = vset.pattern.permute.xlu0 0
    %5401 = vperm.xlu0 %5400, %v5195
    %v5402 = vpop.permute.xlu0 %5401
    %5405 = vset.pattern.permute.xlu0 0
    %5406 = vperm.xlu0 %5405, %v5196
    %v5407 = vpop.permute.xlu0 %5406
    %5410 = vset.pattern.permute.xlu0 0
    %5411 = vperm.xlu0 %5410, %v5197
    %v5412 = vpop.permute.xlu0 %5411
    %5415 = vset.pattern.permute.xlu0 0
    %5416 = vperm.xlu0 %5415, %v5198
    %v5417 = vpop.permute.xlu0 %5416
    %5420 = vset.pattern.permute.xlu0 0
    %5421 = vperm.xlu0 %5420, %v5199
    %v5422 = vpop.permute.xlu0 %5421
    %5425 = vset.pattern.permute.xlu0 0
    %5426 = vperm.xlu0 %5425, %v5200
    %v5427 = vpop.permute.xlu0 %5426
    %5430 = vset.pattern.permute.xlu0 0
    %5431 = vperm.xlu0 %5430, %v5201
    %v5432 = vpop.permute.xlu0 %5431
    %5435 = vset.pattern.permute.xlu0 0
    %5436 = vperm.xlu0 %5435, %v5202
    %v5437 = vpop.permute.xlu0 %5436
    %5440 = vset.pattern.permute.xlu0 0
    %5441 = vperm.xlu0 %5440, %v5203
    %v5442 = vpop.permute.xlu0 %5441
    %v5588 = vunpack.c.l.b16 %v4916
    %v5589 = vunpack.c.h.b16 %v4916
    %v5590 = vunpack.c.l.b16 %v4917
    %v5591 = vunpack.c.h.b16 %v4917
    %v5592 = vunpack.c.l.b16 %v4918
    %v5593 = vunpack.c.h.b16 %v4918
    %v5594 = vunpack.c.l.b16 %v4919
    %v5595 = vunpack.c.h.b16 %v4919
    %v5596 = vunpack.c.l.b16 %v4920
    %v5597 = vunpack.c.h.b16 %v4920
    %v5598 = vunpack.c.l.b16 %v4921
    %v5599 = vunpack.c.h.b16 %v4921
    %v5600 = vunpack.c.l.b16 %v4922
    %v5601 = vunpack.c.h.b16 %v4922
    %v5602 = vunpack.c.l.b16 %v4923
    %v5603 = vunpack.c.h.b16 %v4923
    %v5604 = vunpack.c.l.b16 %v4924
    %v5605 = vunpack.c.h.b16 %v4924
    %v5606 = vunpack.c.l.b16 %v4925
    %v5607 = vunpack.c.h.b16 %v4925
    %v5608 = vunpack.c.l.b16 %v4926
    %v5609 = vunpack.c.h.b16 %v4926
    %v5610 = vunpack.c.l.b16 %v4927
    %v5611 = vunpack.c.h.b16 %v4927
    %v5612 = vunpack.c.l.b16 %v4928
    %v5613 = vunpack.c.h.b16 %v4928
    %v5614 = vunpack.c.l.b16 %v4929
    %v5615 = vunpack.c.h.b16 %v4929
    %v5616 = vunpack.c.l.b16 %v4930
    %v5617 = vunpack.c.h.b16 %v4930
    %v5618 = vunpack.c.l.b16 %v4931
    %v5619 = vunpack.c.h.b16 %v4931
    %v5620 = vunpack.c.l.b16 %v4932
    %v5621 = vunpack.c.h.b16 %v4932
    %v5622 = vunpack.c.l.b16 %v4933
    %v5623 = vunpack.c.h.b16 %v4933
    %v5624 = vunpack.c.l.b16 %v4934
    %v5625 = vunpack.c.h.b16 %v4934
    %v5626 = vunpack.c.l.b16 %v4935
    %v5627 = vunpack.c.h.b16 %v4935
    %v5628 = vunpack.c.l.b16 %v4936
    %v5629 = vunpack.c.h.b16 %v4936
    %v5630 = vunpack.c.l.b16 %v4937
    %v5631 = vunpack.c.h.b16 %v4937
    %v5632 = vunpack.c.l.b16 %v4938
    %v5633 = vunpack.c.h.b16 %v4938
    %v5634 = vunpack.c.l.b16 %v4939
    %v5635 = vunpack.c.h.b16 %v4939
    %v5636 = vunpack.c.l.b16 %v4940
    %v5637 = vunpack.c.h.b16 %v4940
    %v5638 = vunpack.c.l.b16 %v4941
    %v5639 = vunpack.c.h.b16 %v4941
    %v5640 = vunpack.c.l.b16 %v4942
    %v5641 = vunpack.c.h.b16 %v4942
    %v5642 = vunpack.c.l.b16 %v4943
    %v5643 = vunpack.c.h.b16 %v4943
    %v5644 = vunpack.c.l.b16 %v4944
    %v5645 = vunpack.c.h.b16 %v4944
    %v5646 = vunpack.c.l.b16 %v4945
    %v5647 = vunpack.c.h.b16 %v4945
    %v5648 = vunpack.c.l.b16 %v4946
    %v5649 = vunpack.c.h.b16 %v4946
    %v5650 = vunpack.c.l.b16 %v4947
    %v5651 = vunpack.c.h.b16 %v4947
    %v5652 = vunpack.c.l.b16 %v4948
    %v5653 = vunpack.c.h.b16 %v4948
    %v5654 = vunpack.c.l.b16 %v4949
    %v5655 = vunpack.c.h.b16 %v4949
    %v5656 = vunpack.c.l.b16 %v4950
    %v5657 = vunpack.c.h.b16 %v4950
    %v5658 = vunpack.c.l.b16 %v4951
    %v5659 = vunpack.c.h.b16 %v4951
    %v5660 = vunpack.c.l.b16 %v4952
    %v5661 = vunpack.c.h.b16 %v4952
    %v5662 = vunpack.c.l.b16 %v4953
    %v5663 = vunpack.c.h.b16 %v4953
    %v5664 = vunpack.c.l.b16 %v4954
    %v5665 = vunpack.c.h.b16 %v4954
    %v5666 = vunpack.c.l.b16 %v4955
    %v5667 = vunpack.c.h.b16 %v4955
    %v5668 = vunpack.c.l.b16 %v4956
    %v5669 = vunpack.c.h.b16 %v4956
    %v5670 = vunpack.c.l.b16 %v4957
    %v5671 = vunpack.c.h.b16 %v4957
    %v5672 = vunpack.c.l.b16 %v4958
    %v5673 = vunpack.c.h.b16 %v4958
    %v5674 = vunpack.c.l.b16 %v4959
    %v5675 = vunpack.c.h.b16 %v4959
    %v5676 = vunpack.c.l.b16 %v4960
    %v5677 = vunpack.c.h.b16 %v4960
    %v5678 = vunpack.c.l.b16 %v4961
    %v5679 = vunpack.c.h.b16 %v4961
    %v5680 = vunpack.c.l.b16 %v4962
    %v5681 = vunpack.c.h.b16 %v4962
    %v5682 = vunpack.c.l.b16 %v4963
    %v5683 = vunpack.c.h.b16 %v4963
    %v5684 = vunpack.c.l.b16 %v4964
    %v5685 = vunpack.c.h.b16 %v4964
    %v5686 = vunpack.c.l.b16 %v4965
    %v5687 = vunpack.c.h.b16 %v4965
    %v5688 = vunpack.c.l.b16 %v4966
    %v5689 = vunpack.c.h.b16 %v4966
    %v5690 = vunpack.c.l.b16 %v4967
    %v5691 = vunpack.c.h.b16 %v4967
    %v5692 = vunpack.c.l.b16 %v4968
    %v5693 = vunpack.c.h.b16 %v4968
    %v5694 = vunpack.c.l.b16 %v4969
    %v5695 = vunpack.c.h.b16 %v4969
    %v5696 = vunpack.c.l.b16 %v4970
    %v5697 = vunpack.c.h.b16 %v4970
    %v5698 = vunpack.c.l.b16 %v4971
    %v5699 = vunpack.c.h.b16 %v4971
    %v5700 = vunpack.c.l.b16 %v4972
    %v5701 = vunpack.c.h.b16 %v4972
    %v5702 = vunpack.c.l.b16 %v4973
    %v5703 = vunpack.c.h.b16 %v4973
    %v5704 = vunpack.c.l.b16 %v4974
    %v5705 = vunpack.c.h.b16 %v4974
    %v5706 = vunpack.c.l.b16 %v4975
    %v5707 = vunpack.c.h.b16 %v4975
    %v5708 = vunpack.c.l.b16 %v4976
    %v5709 = vunpack.c.h.b16 %v4976
    %v5710 = vunpack.c.l.b16 %v4977
    %v5711 = vunpack.c.h.b16 %v4977
    %v5712 = vunpack.c.l.b16 %v4978
    %v5713 = vunpack.c.h.b16 %v4978
    %v5714 = vunpack.c.l.b16 %v4979
    %v5715 = vunpack.c.h.b16 %v4979
    %v5716 = vunpack.c.l.b16 %v4980
    %v5717 = vunpack.c.h.b16 %v4980
    %v5718 = vunpack.c.l.b16 %v4981
    %v5719 = vunpack.c.h.b16 %v4981
    %v5720 = vunpack.c.l.b16 %v4982
    %v5721 = vunpack.c.h.b16 %v4982
    %v5722 = vunpack.c.l.b16 %v4983
    %v5723 = vunpack.c.h.b16 %v4983
    %v5724 = vunpack.c.l.b16 %v4984
    %v5725 = vunpack.c.h.b16 %v4984
    %v5726 = vunpack.c.l.b16 %v4985
    %v5727 = vunpack.c.h.b16 %v4985
    %v5728 = vunpack.c.l.b16 %v4986
    %v5729 = vunpack.c.h.b16 %v4986
    %v5730 = vunpack.c.l.b16 %v4987
    %v5731 = vunpack.c.h.b16 %v4987
    %v5732 = vunpack.c.l.b16 %v4988
    %v5733 = vunpack.c.h.b16 %v4988
    %v5734 = vunpack.c.l.b16 %v4989
    %v5735 = vunpack.c.h.b16 %v4989
    %v5736 = vunpack.c.l.b16 %v4990
    %v5737 = vunpack.c.h.b16 %v4990
    %v5738 = vunpack.c.l.b16 %v4991
    %v5739 = vunpack.c.h.b16 %v4991
    %v5740 = vunpack.c.l.b16 %v4992
    %v5741 = vunpack.c.h.b16 %v4992
    %v5742 = vunpack.c.l.b16 %v4993
    %v5743 = vunpack.c.h.b16 %v4993
    %v5744 = vunpack.c.l.b16 %v4994
    %v5745 = vunpack.c.h.b16 %v4994
    %v5746 = vunpack.c.l.b16 %v4995
    %v5747 = vunpack.c.h.b16 %v4995
    %v5748 = vunpack.c.l.b16 %v4996
    %v5749 = vunpack.c.h.b16 %v4996
    %v5750 = vunpack.c.l.b16 %v4997
    %v5751 = vunpack.c.h.b16 %v4997
    %v5752 = vunpack.c.l.b16 %v4998
    %v5753 = vunpack.c.h.b16 %v4998
    %v5754 = vunpack.c.l.b16 %v4999
    %v5755 = vunpack.c.h.b16 %v4999
    %v5756 = vunpack.c.l.b16 %v5000
    %v5757 = vunpack.c.h.b16 %v5000
    %v5758 = vunpack.c.l.b16 %v5001
    %v5759 = vunpack.c.h.b16 %v5001
    %v5760 = vunpack.c.l.b16 %v5002
    %v5761 = vunpack.c.h.b16 %v5002
    %v5762 = vunpack.c.l.b16 %v5003
    %v5763 = vunpack.c.h.b16 %v5003
    %v5764 = vunpack.c.l.b16 %v5004
    %v5765 = vunpack.c.h.b16 %v5004
    %v5766 = vunpack.c.l.b16 %v5005
    %v5767 = vunpack.c.h.b16 %v5005
    %v5768 = vunpack.c.l.b16 %v5006
    %v5769 = vunpack.c.h.b16 %v5006
    %v5770 = vunpack.c.l.b16 %v5007
    %v5771 = vunpack.c.h.b16 %v5007
    %v5772 = vunpack.c.l.b16 %v5008
    %v5773 = vunpack.c.h.b16 %v5008
    %v5774 = vunpack.c.l.b16 %v5009
    %v5775 = vunpack.c.h.b16 %v5009
    %v5776 = vunpack.c.l.b16 %v5010
    %v5777 = vunpack.c.h.b16 %v5010
    %v5778 = vunpack.c.l.b16 %v5011
    %v5779 = vunpack.c.h.b16 %v5011
    %v5780 = vunpack.c.l.b16 %v5012
    %v5781 = vunpack.c.h.b16 %v5012
    %v5782 = vunpack.c.l.b16 %v5013
    %v5783 = vunpack.c.h.b16 %v5013
    %v5784 = vunpack.c.l.b16 %v5014
    %v5785 = vunpack.c.h.b16 %v5014
    %v5786 = vunpack.c.l.b16 %v5015
    %v5787 = vunpack.c.h.b16 %v5015
    %v5788 = vunpack.c.l.b16 %v5016
    %v5789 = vunpack.c.h.b16 %v5016
    %v5790 = vunpack.c.l.b16 %v5017
    %v5791 = vunpack.c.h.b16 %v5017
    %v5792 = vunpack.c.l.b16 %v5018
    %v5793 = vunpack.c.h.b16 %v5018
    %v5794 = vunpack.c.l.b16 %v5019
    %v5795 = vunpack.c.h.b16 %v5019
    %v5796 = vunpack.c.l.b16 %v5020
    %v5797 = vunpack.c.h.b16 %v5020
    %v5798 = vunpack.c.l.b16 %v5021
    %v5799 = vunpack.c.h.b16 %v5021
    %v5800 = vunpack.c.l.b16 %v5022
    %v5801 = vunpack.c.h.b16 %v5022
    %v5802 = vunpack.c.l.b16 %v5023
    %v5803 = vunpack.c.h.b16 %v5023
    %v5804 = vunpack.c.l.b16 %v5024
    %v5805 = vunpack.c.h.b16 %v5024
    %v5806 = vunpack.c.l.b16 %v5025
    %v5807 = vunpack.c.h.b16 %v5025
    %v5808 = vunpack.c.l.b16 %v5026
    %v5809 = vunpack.c.h.b16 %v5026
    %v5810 = vunpack.c.l.b16 %v5027
    %v5811 = vunpack.c.h.b16 %v5027
    %v5812 = vunpack.c.l.b16 %v5028
    %v5813 = vunpack.c.h.b16 %v5028
    %v5814 = vunpack.c.l.b16 %v5029
    %v5815 = vunpack.c.h.b16 %v5029
    %v5816 = vunpack.c.l.b16 %v5030
    %v5817 = vunpack.c.h.b16 %v5030
    %v5818 = vunpack.c.l.b16 %v5031
    %v5819 = vunpack.c.h.b16 %v5031
    %v5820 = vunpack.c.l.b16 %v5032
    %v5821 = vunpack.c.h.b16 %v5032
    %v5822 = vunpack.c.l.b16 %v5033
    %v5823 = vunpack.c.h.b16 %v5033
    %v5824 = vunpack.c.l.b16 %v5034
    %v5825 = vunpack.c.h.b16 %v5034
    %v5826 = vunpack.c.l.b16 %v5035
    %v5827 = vunpack.c.h.b16 %v5035
    %v5828 = vunpack.c.l.b16 %v5036
    %v5829 = vunpack.c.h.b16 %v5036
    %v5830 = vunpack.c.l.b16 %v5037
    %v5831 = vunpack.c.h.b16 %v5037
    %v5832 = vunpack.c.l.b16 %v5038
    %v5833 = vunpack.c.h.b16 %v5038
    %v5834 = vunpack.c.l.b16 %v5039
    %v5835 = vunpack.c.h.b16 %v5039
    %v5836 = vunpack.c.l.b16 %v5040
    %v5837 = vunpack.c.h.b16 %v5040
    %v5838 = vunpack.c.l.b16 %v5041
    %v5839 = vunpack.c.h.b16 %v5041
    %v5840 = vunpack.c.l.b16 %v5042
    %v5841 = vunpack.c.h.b16 %v5042
    %v5842 = vunpack.c.l.b16 %v5043
    %v5843 = vunpack.c.h.b16 %v5043
    %v5844 = vunpack.c.l.b16 %v5044
    %v5845 = vunpack.c.h.b16 %v5044
    %v5846 = vunpack.c.l.b16 %v5045
    %v5847 = vunpack.c.h.b16 %v5045
    %v5848 = vunpack.c.l.b16 %v5046
    %v5849 = vunpack.c.h.b16 %v5046
    %v5850 = vunpack.c.l.b16 %v5047
    %v5851 = vunpack.c.h.b16 %v5047
    %v5852 = vunpack.c.l.b16 %v5048
    %v5853 = vunpack.c.h.b16 %v5048
    %v5854 = vunpack.c.l.b16 %v5049
    %v5855 = vunpack.c.h.b16 %v5049
    %v5856 = vunpack.c.l.b16 %v5050
    %v5857 = vunpack.c.h.b16 %v5050
    %v5858 = vunpack.c.l.b16 %v5051
    %v5859 = vunpack.c.h.b16 %v5051
    %v5860 = vunpack.c.l.b16 %v5052
    %v5861 = vunpack.c.h.b16 %v5052
    %v5862 = vunpack.c.l.b16 %v5053
    %v5863 = vunpack.c.h.b16 %v5053
    %v5864 = vunpack.c.l.b16 %v5054
    %v5865 = vunpack.c.h.b16 %v5054
    %v5866 = vunpack.c.l.b16 %v5055
    %v5867 = vunpack.c.h.b16 %v5055
    %v5868 = vunpack.c.l.b16 %v5056
    %v5869 = vunpack.c.h.b16 %v5056
    %v5870 = vunpack.c.l.b16 %v5057
    %v5871 = vunpack.c.h.b16 %v5057
    %v5872 = vunpack.c.l.b16 %v5058
    %v5873 = vunpack.c.h.b16 %v5058
    %v5874 = vunpack.c.l.b16 %v5059
    %v5875 = vunpack.c.h.b16 %v5059
    %v5876 = vpack.c.b16 %v5594, %v5588
    %v5877 = vpack.c.b16 %v5595, %v5589
    %v5878 = vpack.c.b16 %v5596, %v5590
    %v5879 = vpack.c.b16 %v5597, %v5591
    %v5880 = vpack.c.b16 %v5598, %v5592
    %v5881 = vpack.c.b16 %v5599, %v5593
    %v5882 = vpack.c.b16 %v5606, %v5600
    %v5883 = vpack.c.b16 %v5607, %v5601
    %v5884 = vpack.c.b16 %v5608, %v5602
    %v5885 = vpack.c.b16 %v5609, %v5603
    %v5886 = vpack.c.b16 %v5610, %v5604
    %v5887 = vpack.c.b16 %v5611, %v5605
    %v5888 = vpack.c.b16 %v5618, %v5612
    %v5889 = vpack.c.b16 %v5619, %v5613
    %v5890 = vpack.c.b16 %v5620, %v5614
    %v5891 = vpack.c.b16 %v5621, %v5615
    %v5892 = vpack.c.b16 %v5622, %v5616
    %v5893 = vpack.c.b16 %v5623, %v5617
    %v5894 = vpack.c.b16 %v5630, %v5624
    %v5895 = vpack.c.b16 %v5631, %v5625
    %v5896 = vpack.c.b16 %v5632, %v5626
    %v5897 = vpack.c.b16 %v5633, %v5627
    %v5898 = vpack.c.b16 %v5634, %v5628
    %v5899 = vpack.c.b16 %v5635, %v5629
    %v5900 = vpack.c.b16 %v5642, %v5636
    %v5901 = vpack.c.b16 %v5643, %v5637
    %v5902 = vpack.c.b16 %v5644, %v5638
    %v5903 = vpack.c.b16 %v5645, %v5639
    %v5904 = vpack.c.b16 %v5646, %v5640
    %v5905 = vpack.c.b16 %v5647, %v5641
    %v5906 = vpack.c.b16 %v5654, %v5648
    %v5907 = vpack.c.b16 %v5655, %v5649
    %v5908 = vpack.c.b16 %v5656, %v5650
    %v5909 = vpack.c.b16 %v5657, %v5651
    %v5910 = vpack.c.b16 %v5658, %v5652
    %v5911 = vpack.c.b16 %v5659, %v5653
    %v5912 = vpack.c.b16 %v5666, %v5660
    %v5913 = vpack.c.b16 %v5667, %v5661
    %v5914 = vpack.c.b16 %v5668, %v5662
    %v5915 = vpack.c.b16 %v5669, %v5663
    %v5916 = vpack.c.b16 %v5670, %v5664
    %v5917 = vpack.c.b16 %v5671, %v5665
    %v5918 = vpack.c.b16 %v5678, %v5672
    %v5919 = vpack.c.b16 %v5679, %v5673
    %v5920 = vpack.c.b16 %v5680, %v5674
    %v5921 = vpack.c.b16 %v5681, %v5675
    %v5922 = vpack.c.b16 %v5682, %v5676
    %v5923 = vpack.c.b16 %v5683, %v5677
    %v5924 = vpack.c.b16 %v5690, %v5684
    %v5925 = vpack.c.b16 %v5691, %v5685
    %v5926 = vpack.c.b16 %v5692, %v5686
    %v5927 = vpack.c.b16 %v5693, %v5687
    %v5928 = vpack.c.b16 %v5694, %v5688
    %v5929 = vpack.c.b16 %v5695, %v5689
    %v5930 = vpack.c.b16 %v5702, %v5696
    %v5931 = vpack.c.b16 %v5703, %v5697
    %v5932 = vpack.c.b16 %v5704, %v5698
    %v5933 = vpack.c.b16 %v5705, %v5699
    %v5934 = vpack.c.b16 %v5706, %v5700
    %v5935 = vpack.c.b16 %v5707, %v5701
    %v5936 = vpack.c.b16 %v5714, %v5708
    %v5937 = vpack.c.b16 %v5715, %v5709
    %v5938 = vpack.c.b16 %v5716, %v5710
    %v5939 = vpack.c.b16 %v5717, %v5711
    %v5940 = vpack.c.b16 %v5718, %v5712
    %v5941 = vpack.c.b16 %v5719, %v5713
    %v5942 = vpack.c.b16 %v5726, %v5720
    %v5943 = vpack.c.b16 %v5727, %v5721
    %v5944 = vpack.c.b16 %v5728, %v5722
    %v5945 = vpack.c.b16 %v5729, %v5723
    %v5946 = vpack.c.b16 %v5730, %v5724
    %v5947 = vpack.c.b16 %v5731, %v5725
    %v5948 = vpack.c.b16 %v5738, %v5732
    %v5949 = vpack.c.b16 %v5739, %v5733
    %v5950 = vpack.c.b16 %v5740, %v5734
    %v5951 = vpack.c.b16 %v5741, %v5735
    %v5952 = vpack.c.b16 %v5742, %v5736
    %v5953 = vpack.c.b16 %v5743, %v5737
    %v5954 = vpack.c.b16 %v5750, %v5744
    %v5955 = vpack.c.b16 %v5751, %v5745
    %v5956 = vpack.c.b16 %v5752, %v5746
    %v5957 = vpack.c.b16 %v5753, %v5747
    %v5958 = vpack.c.b16 %v5754, %v5748
    %v5959 = vpack.c.b16 %v5755, %v5749
    %v5960 = vpack.c.b16 %v5762, %v5756
    %v5961 = vpack.c.b16 %v5763, %v5757
    %v5962 = vpack.c.b16 %v5764, %v5758
    %v5963 = vpack.c.b16 %v5765, %v5759
    %v5964 = vpack.c.b16 %v5766, %v5760
    %v5965 = vpack.c.b16 %v5767, %v5761
    %v5966 = vpack.c.b16 %v5774, %v5768
    %v5967 = vpack.c.b16 %v5775, %v5769
    %v5968 = vpack.c.b16 %v5776, %v5770
    %v5969 = vpack.c.b16 %v5777, %v5771
    %v5970 = vpack.c.b16 %v5778, %v5772
    %v5971 = vpack.c.b16 %v5779, %v5773
    %v5972 = vpack.c.b16 %v5786, %v5780
    %v5973 = vpack.c.b16 %v5787, %v5781
    %v5974 = vpack.c.b16 %v5788, %v5782
    %v5975 = vpack.c.b16 %v5789, %v5783
    %v5976 = vpack.c.b16 %v5790, %v5784
    %v5977 = vpack.c.b16 %v5791, %v5785
    %v5978 = vpack.c.b16 %v5798, %v5792
    %v5979 = vpack.c.b16 %v5799, %v5793
    %v5980 = vpack.c.b16 %v5800, %v5794
    %v5981 = vpack.c.b16 %v5801, %v5795
    %v5982 = vpack.c.b16 %v5802, %v5796
    %v5983 = vpack.c.b16 %v5803, %v5797
    %v5984 = vpack.c.b16 %v5810, %v5804
    %v5985 = vpack.c.b16 %v5811, %v5805
    %v5986 = vpack.c.b16 %v5812, %v5806
    %v5987 = vpack.c.b16 %v5813, %v5807
    %v5988 = vpack.c.b16 %v5814, %v5808
    %v5989 = vpack.c.b16 %v5815, %v5809
    %v5990 = vpack.c.b16 %v5822, %v5816
    %v5991 = vpack.c.b16 %v5823, %v5817
    %v5992 = vpack.c.b16 %v5824, %v5818
    %v5993 = vpack.c.b16 %v5825, %v5819
    %v5994 = vpack.c.b16 %v5826, %v5820
    %v5995 = vpack.c.b16 %v5827, %v5821
    %v5996 = vpack.c.b16 %v5834, %v5828
    %v5997 = vpack.c.b16 %v5835, %v5829
    %v5998 = vpack.c.b16 %v5836, %v5830
    %v5999 = vpack.c.b16 %v5837, %v5831
    %v6000 = vpack.c.b16 %v5838, %v5832
    %v6001 = vpack.c.b16 %v5839, %v5833
    %v6002 = vpack.c.b16 %v5846, %v5840
    %v6003 = vpack.c.b16 %v5847, %v5841
    %v6004 = vpack.c.b16 %v5848, %v5842
    %v6005 = vpack.c.b16 %v5849, %v5843
    %v6006 = vpack.c.b16 %v5850, %v5844
    %v6007 = vpack.c.b16 %v5851, %v5845
    %v6008 = vpack.c.b16 %v5858, %v5852
    %v6009 = vpack.c.b16 %v5859, %v5853
    %v6010 = vpack.c.b16 %v5860, %v5854
    %v6011 = vpack.c.b16 %v5861, %v5855
    %v6012 = vpack.c.b16 %v5862, %v5856
    %v6013 = vpack.c.b16 %v5863, %v5857
    %v6014 = vpack.c.b16 %v5870, %v5864
    %v6015 = vpack.c.b16 %v5871, %v5865
    %v6016 = vpack.c.b16 %v5872, %v5866
    %v6017 = vpack.c.b16 %v5873, %v5867
    %v6018 = vpack.c.b16 %v5874, %v5868
    %v6019 = vpack.c.b16 %v5875, %v5869
    %6164 = vmatprep.subr.bf16.mxu0 %v5061
    %6165 = vmatpush1.bf16.msra.mxu0 %v5060
    %6166 = vmatprep.subr.bf16.mxu0 %v5063
    %6167 = vmatpush1.bf16.msra.mxu0 %v5062
    %6168 = vmatprep.subr.bf16.mxu0 %v5065
    %6169 = vmatpush1.bf16.msra.mxu0 %v5064
    %6170 = vmatprep.subr.bf16.mxu0 %v5067
    %6171 = vmatpush1.bf16.msra.mxu0 %v5066
    %6172 = vmatprep.subr.bf16.mxu0 %v5069
    %6173 = vmatpush1.bf16.msra.mxu0 %v5068
    %6174 = vmatprep.subr.bf16.mxu0 %v5071
    %6175 = vmatpush1.bf16.msra.mxu0 %v5070
    %6176 = vmatprep.subr.bf16.mxu0 %v5073
    %6177 = vmatpush1.bf16.msra.mxu0 %v5072
    %6178 = vmatprep.subr.bf16.mxu0 %v5075
    %6179 = vmatpush1.bf16.msra.mxu0 %v5074
    %6180 = vmatprep.subr.bf16.mxu0 %v5077
    %6181 = vmatpush1.bf16.msra.mxu0 %v5076
    %6182 = vmatprep.subr.bf16.mxu0 %v5079
    %6183 = vmatpush1.bf16.msra.mxu0 %v5078
    %6184 = vmatprep.subr.bf16.mxu0 %v5081
    %6185 = vmatpush1.bf16.msra.mxu0 %v5080
    %6186 = vmatprep.subr.bf16.mxu0 %v5083
    %6187 = vmatpush1.bf16.msra.mxu0 %v5082
    %6188 = vmatprep.subr.bf16.mxu0 %v5085
    %6189 = vmatpush1.bf16.msra.mxu0 %v5084
    %6190 = vmatprep.subr.bf16.mxu0 %v5087
    %6191 = vmatpush1.bf16.msra.mxu0 %v5086
    %6192 = vmatprep.subr.bf16.mxu0 %v5089
    %6193 = vmatpush1.bf16.msra.mxu0 %v5088
    %6194 = vmatprep.subr.bf16.mxu0 %v5091
    %6195 = vmatpush1.bf16.msra.mxu0 %v5090
    %6196 = vmatprep.mubr.bf16.mxu0 %v5877
    %6197 = vmatmul.mubr.bf16.gmra.mrb[0].mxu0 %v5876
    %v6198 = vpop.f32.mrb[0].mxu0
    %v6199 = vadd.f32 %v5207, %v6198
    %v6200 = vpop.f32.mrb[0].mxu0
    %v6201 = vadd.f32 %v5207, %v6200
    %v6202 = vpop.f32.mrb[0].mxu0
    %v6203 = vadd.f32 %v5212, %v6202
    %v6204 = vpop.f32.mrb[0].mxu0
    %v6205 = vadd.f32 %v5212, %v6204
    %6206 = vmatprep.mubr.bf16.mxu0 %v5883
    %6207 = vmatmul.mubr.bf16.gmra.mrb[0].mxu0 %v5882
    %v6208 = vpop.f32.mrb[0].mxu0
    %v6209 = vadd.f32 %v5217, %v6208
    %v6210 = vpop.f32.mrb[0].mxu0
    %v6211 = vadd.f32 %v5217, %v6210
    %v6212 = vpop.f32.mrb[0].mxu0
    %v6213 = vadd.f32 %v5222, %v6212
    %v6214 = vpop.f32.mrb[0].mxu0
    %v6215 = vadd.f32 %v5222, %v6214
    %6216 = vmatprep.mubr.bf16.mxu0 %v5889
    %6217 = vmatmul.mubr.bf16.gmra.mrb[0].mxu0 %v5888
    %v6218 = vpop.f32.mrb[0].mxu0
    %v6219 = vadd.f32 %v5227, %v6218
    %v6220 = vpop.f32.mrb[0].mxu0
    %v6221 = vadd.f32 %v5227, %v6220
    %v6222 = vpop.f32.mrb[0].mxu0
    %v6223 = vadd.f32 %v5232, %v6222
    %v6224 = vpop.f32.mrb[0].mxu0
    %v6225 = vadd.f32 %v5232, %v6224
    %6226 = vmatprep.mubr.bf16.mxu0 %v5895
    %6227 = vmatmul.mubr.bf16.gmra.mrb[0].mxu0 %v5894
    %v6228 = vpop.f32.mrb[0].mxu0
    %v6229 = vadd.f32 %v5237, %v6228
    %v6230 = vpop.f32.mrb[0].mxu0
    %v6231 = vadd.f32 %v5237, %v6230
    %v6232 = vpop.f32.mrb[0].mxu0
    %v6233 = vadd.f32 %v5242, %v6232
    %v6234 = vpop.f32.mrb[0].mxu0
    %v6235 = vadd.f32 %v5242, %v6234
    %6236 = vmatprep.mubr.bf16.mxu0 %v5901
    %6237 = vmatmul.mubr.bf16.gmra.mrb[0].mxu0 %v5900
    %v6238 = vpop.f32.mrb[0].mxu0
    %v6239 = vadd.f32 %v5247, %v6238
    %v6240 = vpop.f32.mrb[0].mxu0
    %v6241 = vadd.f32 %v5247, %v6240
    %v6242 = vpop.f32.mrb[0].mxu0
    %v6243 = vadd.f32 %v5252, %v6242
    %v6244 = vpop.f32.mrb[0].mxu0
    %v6245 = vadd.f32 %v5252, %v6244
    %6246 = vmatprep.mubr.bf16.mxu0 %v5907
    %6247 = vmatmul.mubr.bf16.gmra.mrb[0].mxu0 %v5906
    %v6248 = vpop.f32.mrb[0].mxu0
    %v6249 = vadd.f32 %v5257, %v6248
    %v6250 = vpop.f32.mrb[0].mxu0
    %v6251 = vadd.f32 %v5257, %v6250
    %v6252 = vpop.f32.mrb[0].mxu0
    %v6253 = vadd.f32 %v5262, %v6252
    %v6254 = vpop.f32.mrb[0].mxu0
    %v6255 = vadd.f32 %v5262, %v6254
    %6256 = vmatprep.mubr.bf16.mxu0 %v5913
    %6257 = vmatmul.mubr.bf16.gmra.mrb[0].mxu0 %v5912
    %v6258 = vpop.f32.mrb[0].mxu0
    %v6259 = vadd.f32 %v5267, %v6258
    %v6260 = vpop.f32.mrb[0].mxu0
    %v6261 = vadd.f32 %v5267, %v6260
    %v6262 = vpop.f32.mrb[0].mxu0
    %v6263 = vadd.f32 %v5272, %v6262
    %v6264 = vpop.f32.mrb[0].mxu0
    %v6265 = vadd.f32 %v5272, %v6264
    %6266 = vmatprep.mubr.bf16.mxu0 %v5919
    %6267 = vmatmul.mubr.bf16.gmra.mrb[0].mxu0 %v5918
    %v6268 = vpop.f32.mrb[0].mxu0
    %v6269 = vadd.f32 %v5277, %v6268
    %v6270 = vpop.f32.mrb[0].mxu0
    %v6271 = vadd.f32 %v5277, %v6270
    %v6272 = vpop.f32.mrb[0].mxu0
    %v6273 = vadd.f32 %v5282, %v6272
    %v6274 = vpop.f32.mrb[0].mxu0
    %v6275 = vadd.f32 %v5282, %v6274
    %6276 = vmatprep.mubr.bf16.mxu0 %v5925
    %6277 = vmatmul.mubr.bf16.gmra.mrb[0].mxu0 %v5924
    %v6278 = vpop.f32.mrb[0].mxu0
    %v6279 = vadd.f32 %v5287, %v6278
    %v6280 = vpop.f32.mrb[0].mxu0
    %v6281 = vadd.f32 %v5287, %v6280
    %v6282 = vpop.f32.mrb[0].mxu0
    %v6283 = vadd.f32 %v5292, %v6282
    %v6284 = vpop.f32.mrb[0].mxu0
    %v6285 = vadd.f32 %v5292, %v6284
    %6286 = vmatprep.mubr.bf16.mxu0 %v5931
    %6287 = vmatmul.mubr.bf16.gmra.mrb[0].mxu0 %v5930
    %v6288 = vpop.f32.mrb[0].mxu0
    %v6289 = vadd.f32 %v5297, %v6288
    %v6290 = vpop.f32.mrb[0].mxu0
    %v6291 = vadd.f32 %v5297, %v6290
    %v6292 = vpop.f32.mrb[0].mxu0
    %v6293 = vadd.f32 %v5302, %v6292
    %v6294 = vpop.f32.mrb[0].mxu0
    %v6295 = vadd.f32 %v5302, %v6294
    %6296 = vmatprep.mubr.bf16.mxu0 %v5937
    %6297 = vmatmul.mubr.bf16.gmra.mrb[0].mxu0 %v5936
    %v6298 = vpop.f32.mrb[0].mxu0
    %v6299 = vadd.f32 %v5307, %v6298
    %v6300 = vpop.f32.mrb[0].mxu0
    %v6301 = vadd.f32 %v5307, %v6300
    %v6302 = vpop.f32.mrb[0].mxu0
    %v6303 = vadd.f32 %v5312, %v6302
    %v6304 = vpop.f32.mrb[0].mxu0
    %v6305 = vadd.f32 %v5312, %v6304
    %6306 = vmatprep.mubr.bf16.mxu0 %v5943
    %6307 = vmatmul.mubr.bf16.gmra.mrb[0].mxu0 %v5942
    %v6308 = vpop.f32.mrb[0].mxu0
    %v6309 = vadd.f32 %v5317, %v6308
    %v6310 = vpop.f32.mrb[0].mxu0
    %v6311 = vadd.f32 %v5317, %v6310
    %v6312 = vpop.f32.mrb[0].mxu0
    %v6313 = vadd.f32 %v5322, %v6312
    %v6314 = vpop.f32.mrb[0].mxu0
    %v6315 = vadd.f32 %v5322, %v6314
    %6316 = vmatprep.mubr.bf16.mxu0 %v5949
    %6317 = vmatmul.mubr.bf16.gmra.mrb[0].mxu0 %v5948
    %v6318 = vpop.f32.mrb[0].mxu0
    %v6319 = vadd.f32 %v5327, %v6318
    %v6320 = vpop.f32.mrb[0].mxu0
    %v6321 = vadd.f32 %v5327, %v6320
    %v6322 = vpop.f32.mrb[0].mxu0
    %v6323 = vadd.f32 %v5332, %v6322
    %v6324 = vpop.f32.mrb[0].mxu0
    %v6325 = vadd.f32 %v5332, %v6324
    %6326 = vmatprep.mubr.bf16.mxu0 %v5955
    %6327 = vmatmul.mubr.bf16.gmra.mrb[0].mxu0 %v5954
    %v6328 = vpop.f32.mrb[0].mxu0
    %v6329 = vadd.f32 %v5337, %v6328
    %v6330 = vpop.f32.mrb[0].mxu0
    %v6331 = vadd.f32 %v5337, %v6330
    %v6332 = vpop.f32.mrb[0].mxu0
    %v6333 = vadd.f32 %v5342, %v6332
    %v6334 = vpop.f32.mrb[0].mxu0
    %v6335 = vadd.f32 %v5342, %v6334
    %6336 = vmatprep.mubr.bf16.mxu0 %v5961
    %6337 = vmatmul.mubr.bf16.gmra.mrb[0].mxu0 %v5960
    %v6338 = vpop.f32.mrb[0].mxu0
    %v6339 = vadd.f32 %v5347, %v6338
    %v6340 = vpop.f32.mrb[0].mxu0
    %v6341 = vadd.f32 %v5347, %v6340
    %v6342 = vpop.f32.mrb[0].mxu0
    %v6343 = vadd.f32 %v5352, %v6342
    %v6344 = vpop.f32.mrb[0].mxu0
    %v6345 = vadd.f32 %v5352, %v6344
    %6346 = vmatprep.mubr.bf16.mxu0 %v5967
    %6347 = vmatmul.mubr.bf16.gmra.mrb[0].mxu0 %v5966
    %v6348 = vpop.f32.mrb[0].mxu0
    %v6349 = vadd.f32 %v5357, %v6348
    %v6350 = vpop.f32.mrb[0].mxu0
    %v6351 = vadd.f32 %v5357, %v6350
    %v6352 = vpop.f32.mrb[0].mxu0
    %v6353 = vadd.f32 %v5362, %v6352
    %v6354 = vpop.f32.mrb[0].mxu0
    %v6355 = vadd.f32 %v5362, %v6354
    %6356 = vmatprep.mubr.bf16.mxu0 %v5973
    %6357 = vmatmul.mubr.bf16.gmra.mrb[0].mxu0 %v5972
    %v6358 = vpop.f32.mrb[0].mxu0
    %v6359 = vadd.f32 %v5367, %v6358
    %v6360 = vpop.f32.mrb[0].mxu0
    %v6361 = vadd.f32 %v5367, %v6360
    %v6362 = vpop.f32.mrb[0].mxu0
    %v6363 = vadd.f32 %v5372, %v6362
    %v6364 = vpop.f32.mrb[0].mxu0
    %v6365 = vadd.f32 %v5372, %v6364
    %6366 = vmatprep.mubr.bf16.mxu0 %v5979
    %6367 = vmatmul.mubr.bf16.gmra.mrb[0].mxu0 %v5978
    %v6368 = vpop.f32.mrb[0].mxu0
    %v6369 = vadd.f32 %v5377, %v6368
    %v6370 = vpop.f32.mrb[0].mxu0
    %v6371 = vadd.f32 %v5377, %v6370
    %v6372 = vpop.f32.mrb[0].mxu0
    %v6373 = vadd.f32 %v5382, %v6372
    %v6374 = vpop.f32.mrb[0].mxu0
    %v6375 = vadd.f32 %v5382, %v6374
    %6376 = vmatprep.mubr.bf16.mxu0 %v5985
    %6377 = vmatmul.mubr.bf16.gmra.mrb[0].mxu0 %v5984
    %v6378 = vpop.f32.mrb[0].mxu0
    %v6379 = vadd.f32 %v5387, %v6378
    %v6380 = vpop.f32.mrb[0].mxu0
    %v6381 = vadd.f32 %v5387, %v6380
    %v6382 = vpop.f32.mrb[0].mxu0
    %v6383 = vadd.f32 %v5392, %v6382
    %v6384 = vpop.f32.mrb[0].mxu0
    %v6385 = vadd.f32 %v5392, %v6384
    %6386 = vmatprep.mubr.bf16.mxu0 %v5991
    %6387 = vmatmul.mubr.bf16.gmra.mrb[0].mxu0 %v5990
    %v6388 = vpop.f32.mrb[0].mxu0
    %v6389 = vadd.f32 %v5397, %v6388
    %v6390 = vpop.f32.mrb[0].mxu0
    %v6391 = vadd.f32 %v5397, %v6390
    %v6392 = vpop.f32.mrb[0].mxu0
    %v6393 = vadd.f32 %v5402, %v6392
    %v6394 = vpop.f32.mrb[0].mxu0
    %v6395 = vadd.f32 %v5402, %v6394
    %6396 = vmatprep.mubr.bf16.mxu0 %v5997
    %6397 = vmatmul.mubr.bf16.gmra.mrb[0].mxu0 %v5996
    %v6398 = vpop.f32.mrb[0].mxu0
    %v6399 = vadd.f32 %v5407, %v6398
    %v6400 = vpop.f32.mrb[0].mxu0
    %v6401 = vadd.f32 %v5407, %v6400
    %v6402 = vpop.f32.mrb[0].mxu0
    %v6403 = vadd.f32 %v5412, %v6402
    %v6404 = vpop.f32.mrb[0].mxu0
    %v6405 = vadd.f32 %v5412, %v6404
    %6406 = vmatprep.mubr.bf16.mxu0 %v6003
    %6407 = vmatmul.mubr.bf16.gmra.mrb[0].mxu0 %v6002
    %v6408 = vpop.f32.mrb[0].mxu0
    %v6409 = vadd.f32 %v5417, %v6408
    %v6410 = vpop.f32.mrb[0].mxu0
    %v6411 = vadd.f32 %v5417, %v6410
    %v6412 = vpop.f32.mrb[0].mxu0
    %v6413 = vadd.f32 %v5422, %v6412
    %v6414 = vpop.f32.mrb[0].mxu0
    %v6415 = vadd.f32 %v5422, %v6414
    %6416 = vmatprep.mubr.bf16.mxu0 %v6009
    %6417 = vmatmul.mubr.bf16.gmra.mrb[0].mxu0 %v6008
    %v6418 = vpop.f32.mrb[0].mxu0
    %v6419 = vadd.f32 %v5427, %v6418
    %v6420 = vpop.f32.mrb[0].mxu0
    %v6421 = vadd.f32 %v5427, %v6420
    %v6422 = vpop.f32.mrb[0].mxu0
    %v6423 = vadd.f32 %v5432, %v6422
    %v6424 = vpop.f32.mrb[0].mxu0
    %v6425 = vadd.f32 %v5432, %v6424
    %6426 = vmatprep.mubr.bf16.mxu0 %v6015
    %6427 = vmatmul.mubr.bf16.gmra.mrb[0].mxu0 %v6014
    %v6428 = vpop.f32.mrb[0].mxu0
    %v6429 = vadd.f32 %v5437, %v6428
    %v6430 = vpop.f32.mrb[0].mxu0
    %v6431 = vadd.f32 %v5437, %v6430
    %v6432 = vpop.f32.mrb[0].mxu0
    %v6433 = vadd.f32 %v5442, %v6432
    %v6434 = vpop.f32.mrb[0].mxu0
    %v6435 = vadd.f32 %v5442, %v6434
    %6436 = vdwg.mxu0
    %6437 = vmatprep.subr.bf16.mxu0 %v5093
    %6438 = vmatpush1.bf16.msra.mxu0 %v5092
    %6439 = vmatprep.subr.bf16.mxu0 %v5095
    %6440 = vmatpush1.bf16.msra.mxu0 %v5094
    %6441 = vmatprep.subr.bf16.mxu0 %v5097
    %6442 = vmatpush1.bf16.msra.mxu0 %v5096
    %6443 = vmatprep.subr.bf16.mxu0 %v5099
    %6444 = vmatpush1.bf16.msra.mxu0 %v5098
    %6445 = vmatprep.subr.bf16.mxu0 %v5101
    %6446 = vmatpush1.bf16.msra.mxu0 %v5100
    %6447 = vmatprep.subr.bf16.mxu0 %v5103
    %6448 = vmatpush1.bf16.msra.mxu0 %v5102
    %6449 = vmatprep.subr.bf16.mxu0 %v5105
    %6450 = vmatpush1.bf16.msra.mxu0 %v5104
    %6451 = vmatprep.subr.bf16.mxu0 %v5107
    %6452 = vmatpush1.bf16.msra.mxu0 %v5106
    %6453 = vmatprep.subr.bf16.mxu0 %v5109
    %6454 = vmatpush1.bf16.msra.mxu0 %v5108
    %6455 = vmatprep.subr.bf16.mxu0 %v5111
    %6456 = vmatpush1.bf16.msra.mxu0 %v5110
    %6457 = vmatprep.subr.bf16.mxu0 %v5113
    %6458 = vmatpush1.bf16.msra.mxu0 %v5112
    %6459 = vmatprep.subr.bf16.mxu0 %v5115
    %6460 = vmatpush1.bf16.msra.mxu0 %v5114
    %6461 = vmatprep.subr.bf16.mxu0 %v5117
    %6462 = vmatpush1.bf16.msra.mxu0 %v5116
    %6463 = vmatprep.subr.bf16.mxu0 %v5119
    %6464 = vmatpush1.bf16.msra.mxu0 %v5118
    %6465 = vmatprep.subr.bf16.mxu0 %v5121
    %6466 = vmatpush1.bf16.msra.mxu0 %v5120
    %6467 = vmatprep.subr.bf16.mxu0 %v5123
    %6468 = vmatpush1.bf16.msra.mxu0 %v5122
    %6469 = vmatprep.mubr.bf16.mxu0 %v5879
    %6470 = vmatmul.mubr.bf16.gmra.mrb[0].mxu0 %v5878
    %v6471 = vpop.f32.mrb[0].mxu0
    %v6472 = vadd.f32 %v6199, %v6471
    %v6473 = vpop.f32.mrb[0].mxu0
    %v6474 = vadd.f32 %v6201, %v6473
    %v6475 = vpop.f32.mrb[0].mxu0
    %v6476 = vadd.f32 %v6203, %v6475
    %v6477 = vpop.f32.mrb[0].mxu0
    %v6478 = vadd.f32 %v6205, %v6477
    %6479 = vmatprep.mubr.bf16.mxu0 %v5885
    %6480 = vmatmul.mubr.bf16.gmra.mrb[0].mxu0 %v5884
    %v6481 = vpop.f32.mrb[0].mxu0
    %v6482 = vadd.f32 %v6209, %v6481
    %v6483 = vpop.f32.mrb[0].mxu0
    %v6484 = vadd.f32 %v6211, %v6483
    %v6485 = vpop.f32.mrb[0].mxu0
    %v6486 = vadd.f32 %v6213, %v6485
    %v6487 = vpop.f32.mrb[0].mxu0
    %v6488 = vadd.f32 %v6215, %v6487
    %6489 = vmatprep.mubr.bf16.mxu0 %v5891
    %6490 = vmatmul.mubr.bf16.gmra.mrb[0].mxu0 %v5890
    %v6491 = vpop.f32.mrb[0].mxu0
    %v6492 = vadd.f32 %v6219, %v6491
    %v6493 = vpop.f32.mrb[0].mxu0
    %v6494 = vadd.f32 %v6221, %v6493
    %v6495 = vpop.f32.mrb[0].mxu0
    %v6496 = vadd.f32 %v6223, %v6495
    %v6497 = vpop.f32.mrb[0].mxu0
    %v6498 = vadd.f32 %v6225, %v6497
    %6499 = vmatprep.mubr.bf16.mxu0 %v5897
    %6500 = vmatmul.mubr.bf16.gmra.mrb[0].mxu0 %v5896
    %v6501 = vpop.f32.mrb[0].mxu0
    %v6502 = vadd.f32 %v6229, %v6501
    %v6503 = vpop.f32.mrb[0].mxu0
    %v6504 = vadd.f32 %v6231, %v6503
    %v6505 = vpop.f32.mrb[0].mxu0
    %v6506 = vadd.f32 %v6233, %v6505
    %v6507 = vpop.f32.mrb[0].mxu0
    %v6508 = vadd.f32 %v6235, %v6507
    %6509 = vmatprep.mubr.bf16.mxu0 %v5903
    %6510 = vmatmul.mubr.bf16.gmra.mrb[0].mxu0 %v5902
    %v6511 = vpop.f32.mrb[0].mxu0
    %v6512 = vadd.f32 %v6239, %v6511
    %v6513 = vpop.f32.mrb[0].mxu0
    %v6514 = vadd.f32 %v6241, %v6513
    %v6515 = vpop.f32.mrb[0].mxu0
    %v6516 = vadd.f32 %v6243, %v6515
    %v6517 = vpop.f32.mrb[0].mxu0
    %v6518 = vadd.f32 %v6245, %v6517
    %6519 = vmatprep.mubr.bf16.mxu0 %v5909
    %6520 = vmatmul.mubr.bf16.gmra.mrb[0].mxu0 %v5908
    %v6521 = vpop.f32.mrb[0].mxu0
    %v6522 = vadd.f32 %v6249, %v6521
    %v6523 = vpop.f32.mrb[0].mxu0
    %v6524 = vadd.f32 %v6251, %v6523
    %v6525 = vpop.f32.mrb[0].mxu0
    %v6526 = vadd.f32 %v6253, %v6525
    %v6527 = vpop.f32.mrb[0].mxu0
    %v6528 = vadd.f32 %v6255, %v6527
    %6529 = vmatprep.mubr.bf16.mxu0 %v5915
    %6530 = vmatmul.mubr.bf16.gmra.mrb[0].mxu0 %v5914
    %v6531 = vpop.f32.mrb[0].mxu0
    %v6532 = vadd.f32 %v6259, %v6531
    %v6533 = vpop.f32.mrb[0].mxu0
    %v6534 = vadd.f32 %v6261, %v6533
    %v6535 = vpop.f32.mrb[0].mxu0
    %v6536 = vadd.f32 %v6263, %v6535
    %v6537 = vpop.f32.mrb[0].mxu0
    %v6538 = vadd.f32 %v6265, %v6537
    %6539 = vmatprep.mubr.bf16.mxu0 %v5921
    %6540 = vmatmul.mubr.bf16.gmra.mrb[0].mxu0 %v5920
    %v6541 = vpop.f32.mrb[0].mxu0
    %v6542 = vadd.f32 %v6269, %v6541
    %v6543 = vpop.f32.mrb[0].mxu0
    %v6544 = vadd.f32 %v6271, %v6543
    %v6545 = vpop.f32.mrb[0].mxu0
    %v6546 = vadd.f32 %v6273, %v6545
    %v6547 = vpop.f32.mrb[0].mxu0
    %v6548 = vadd.f32 %v6275, %v6547
    %6549 = vmatprep.mubr.bf16.mxu0 %v5927
    %6550 = vmatmul.mubr.bf16.gmra.mrb[0].mxu0 %v5926
    %v6551 = vpop.f32.mrb[0].mxu0
    %v6552 = vadd.f32 %v6279, %v6551
    %v6553 = vpop.f32.mrb[0].mxu0
    %v6554 = vadd.f32 %v6281, %v6553
    %v6555 = vpop.f32.mrb[0].mxu0
    %v6556 = vadd.f32 %v6283, %v6555
    %v6557 = vpop.f32.mrb[0].mxu0
    %v6558 = vadd.f32 %v6285, %v6557
    %6559 = vmatprep.mubr.bf16.mxu0 %v5933
    %6560 = vmatmul.mubr.bf16.gmra.mrb[0].mxu0 %v5932
    %v6561 = vpop.f32.mrb[0].mxu0
    %v6562 = vadd.f32 %v6289, %v6561
    %v6563 = vpop.f32.mrb[0].mxu0
    %v6564 = vadd.f32 %v6291, %v6563
    %v6565 = vpop.f32.mrb[0].mxu0
    %v6566 = vadd.f32 %v6293, %v6565
    %v6567 = vpop.f32.mrb[0].mxu0
    %v6568 = vadd.f32 %v6295, %v6567
    %6569 = vmatprep.mubr.bf16.mxu0 %v5939
    %6570 = vmatmul.mubr.bf16.gmra.mrb[0].mxu0 %v5938
    %v6571 = vpop.f32.mrb[0].mxu0
    %v6572 = vadd.f32 %v6299, %v6571
    %v6573 = vpop.f32.mrb[0].mxu0
    %v6574 = vadd.f32 %v6301, %v6573
    %v6575 = vpop.f32.mrb[0].mxu0
    %v6576 = vadd.f32 %v6303, %v6575
    %v6577 = vpop.f32.mrb[0].mxu0
    %v6578 = vadd.f32 %v6305, %v6577
    %6579 = vmatprep.mubr.bf16.mxu0 %v5945
    %6580 = vmatmul.mubr.bf16.gmra.mrb[0].mxu0 %v5944
    %v6581 = vpop.f32.mrb[0].mxu0
    %v6582 = vadd.f32 %v6309, %v6581
    %v6583 = vpop.f32.mrb[0].mxu0
    %v6584 = vadd.f32 %v6311, %v6583
    %v6585 = vpop.f32.mrb[0].mxu0
    %v6586 = vadd.f32 %v6313, %v6585
    %v6587 = vpop.f32.mrb[0].mxu0
    %v6588 = vadd.f32 %v6315, %v6587
    %6589 = vmatprep.mubr.bf16.mxu0 %v5951
    %6590 = vmatmul.mubr.bf16.gmra.mrb[0].mxu0 %v5950
    %v6591 = vpop.f32.mrb[0].mxu0
    %v6592 = vadd.f32 %v6319, %v6591
    %v6593 = vpop.f32.mrb[0].mxu0
    %v6594 = vadd.f32 %v6321, %v6593
    %v6595 = vpop.f32.mrb[0].mxu0
    %v6596 = vadd.f32 %v6323, %v6595
    %v6597 = vpop.f32.mrb[0].mxu0
    %v6598 = vadd.f32 %v6325, %v6597
    %6599 = vmatprep.mubr.bf16.mxu0 %v5957
    %6600 = vmatmul.mubr.bf16.gmra.mrb[0].mxu0 %v5956
    %v6601 = vpop.f32.mrb[0].mxu0
    %v6602 = vadd.f32 %v6329, %v6601
    %v6603 = vpop.f32.mrb[0].mxu0
    %v6604 = vadd.f32 %v6331, %v6603
    %v6605 = vpop.f32.mrb[0].mxu0
    %v6606 = vadd.f32 %v6333, %v6605
    %v6607 = vpop.f32.mrb[0].mxu0
    %v6608 = vadd.f32 %v6335, %v6607
    %6609 = vmatprep.mubr.bf16.mxu0 %v5963
    %6610 = vmatmul.mubr.bf16.gmra.mrb[0].mxu0 %v5962
    %v6611 = vpop.f32.mrb[0].mxu0
    %v6612 = vadd.f32 %v6339, %v6611
    %v6613 = vpop.f32.mrb[0].mxu0
    %v6614 = vadd.f32 %v6341, %v6613
    %v6615 = vpop.f32.mrb[0].mxu0
    %v6616 = vadd.f32 %v6343, %v6615
    %v6617 = vpop.f32.mrb[0].mxu0
    %v6618 = vadd.f32 %v6345, %v6617
    %6619 = vmatprep.mubr.bf16.mxu0 %v5969
    %6620 = vmatmul.mubr.bf16.gmra.mrb[0].mxu0 %v5968
    %v6621 = vpop.f32.mrb[0].mxu0
    %v6622 = vadd.f32 %v6349, %v6621
    %v6623 = vpop.f32.mrb[0].mxu0
    %v6624 = vadd.f32 %v6351, %v6623
    %v6625 = vpop.f32.mrb[0].mxu0
    %v6626 = vadd.f32 %v6353, %v6625
    %v6627 = vpop.f32.mrb[0].mxu0
    %v6628 = vadd.f32 %v6355, %v6627
    %6629 = vmatprep.mubr.bf16.mxu0 %v5975
    %6630 = vmatmul.mubr.bf16.gmra.mrb[0].mxu0 %v5974
    %v6631 = vpop.f32.mrb[0].mxu0
    %v6632 = vadd.f32 %v6359, %v6631
    %v6633 = vpop.f32.mrb[0].mxu0
    %v6634 = vadd.f32 %v6361, %v6633
    %v6635 = vpop.f32.mrb[0].mxu0
    %v6636 = vadd.f32 %v6363, %v6635
    %v6637 = vpop.f32.mrb[0].mxu0
    %v6638 = vadd.f32 %v6365, %v6637
    %6639 = vmatprep.mubr.bf16.mxu0 %v5981
    %6640 = vmatmul.mubr.bf16.gmra.mrb[0].mxu0 %v5980
    %v6641 = vpop.f32.mrb[0].mxu0
    %v6642 = vadd.f32 %v6369, %v6641
    %v6643 = vpop.f32.mrb[0].mxu0
    %v6644 = vadd.f32 %v6371, %v6643
    %v6645 = vpop.f32.mrb[0].mxu0
    %v6646 = vadd.f32 %v6373, %v6645
    %v6647 = vpop.f32.mrb[0].mxu0
    %v6648 = vadd.f32 %v6375, %v6647
    %6649 = vmatprep.mubr.bf16.mxu0 %v5987
    %6650 = vmatmul.mubr.bf16.gmra.mrb[0].mxu0 %v5986
    %v6651 = vpop.f32.mrb[0].mxu0
    %v6652 = vadd.f32 %v6379, %v6651
    %v6653 = vpop.f32.mrb[0].mxu0
    %v6654 = vadd.f32 %v6381, %v6653
    %v6655 = vpop.f32.mrb[0].mxu0
    %v6656 = vadd.f32 %v6383, %v6655
    %v6657 = vpop.f32.mrb[0].mxu0
    %v6658 = vadd.f32 %v6385, %v6657
    %6659 = vmatprep.mubr.bf16.mxu0 %v5993
    %6660 = vmatmul.mubr.bf16.gmra.mrb[0].mxu0 %v5992
    %v6661 = vpop.f32.mrb[0].mxu0
    %v6662 = vadd.f32 %v6389, %v6661
    %v6663 = vpop.f32.mrb[0].mxu0
    %v6664 = vadd.f32 %v6391, %v6663
    %v6665 = vpop.f32.mrb[0].mxu0
    %v6666 = vadd.f32 %v6393, %v6665
    %v6667 = vpop.f32.mrb[0].mxu0
    %v6668 = vadd.f32 %v6395, %v6667
    %6669 = vmatprep.mubr.bf16.mxu0 %v5999
    %6670 = vmatmul.mubr.bf16.gmra.mrb[0].mxu0 %v5998
    %v6671 = vpop.f32.mrb[0].mxu0
    %v6672 = vadd.f32 %v6399, %v6671
    %v6673 = vpop.f32.mrb[0].mxu0
    %v6674 = vadd.f32 %v6401, %v6673
    %v6675 = vpop.f32.mrb[0].mxu0
    %v6676 = vadd.f32 %v6403, %v6675
    %v6677 = vpop.f32.mrb[0].mxu0
    %v6678 = vadd.f32 %v6405, %v6677
    %6679 = vmatprep.mubr.bf16.mxu0 %v6005
    %6680 = vmatmul.mubr.bf16.gmra.mrb[0].mxu0 %v6004
    %v6681 = vpop.f32.mrb[0].mxu0
    %v6682 = vadd.f32 %v6409, %v6681
    %v6683 = vpop.f32.mrb[0].mxu0
    %v6684 = vadd.f32 %v6411, %v6683
    %v6685 = vpop.f32.mrb[0].mxu0
    %v6686 = vadd.f32 %v6413, %v6685
    %v6687 = vpop.f32.mrb[0].mxu0
    %v6688 = vadd.f32 %v6415, %v6687
    %6689 = vmatprep.mubr.bf16.mxu0 %v6011
    %6690 = vmatmul.mubr.bf16.gmra.mrb[0].mxu0 %v6010
    %v6691 = vpop.f32.mrb[0].mxu0
    %v6692 = vadd.f32 %v6419, %v6691
    %v6693 = vpop.f32.mrb[0].mxu0
    %v6694 = vadd.f32 %v6421, %v6693
    %v6695 = vpop.f32.mrb[0].mxu0
    %v6696 = vadd.f32 %v6423, %v6695
    %v6697 = vpop.f32.mrb[0].mxu0
    %v6698 = vadd.f32 %v6425, %v6697
    %6699 = vmatprep.mubr.bf16.mxu0 %v6017
    %6700 = vmatmul.mubr.bf16.gmra.mrb[0].mxu0 %v6016
    %v6701 = vpop.f32.mrb[0].mxu0
    %v6702 = vadd.f32 %v6429, %v6701
    %v6703 = vpop.f32.mrb[0].mxu0
    %v6704 = vadd.f32 %v6431, %v6703
    %v6705 = vpop.f32.mrb[0].mxu0
    %v6706 = vadd.f32 %v6433, %v6705
    %v6707 = vpop.f32.mrb[0].mxu0
    %v6708 = vadd.f32 %v6435, %v6707
    %6709 = vdwg.mxu0
    %6710 = vmatprep.subr.bf16.mxu0 %v5125
    %6711 = vmatpush1.bf16.msra.mxu0 %v5124
    %6712 = vmatprep.subr.bf16.mxu0 %v5127
    %6713 = vmatpush1.bf16.msra.mxu0 %v5126
    %6714 = vmatprep.subr.bf16.mxu0 %v5129
    %6715 = vmatpush1.bf16.msra.mxu0 %v5128
    %6716 = vmatprep.subr.bf16.mxu0 %v5131
    %6717 = vmatpush1.bf16.msra.mxu0 %v5130
    %6718 = vmatprep.subr.bf16.mxu0 %v5133
    %6719 = vmatpush1.bf16.msra.mxu0 %v5132
    %6720 = vmatprep.subr.bf16.mxu0 %v5135
    %6721 = vmatpush1.bf16.msra.mxu0 %v5134
    %6722 = vmatprep.subr.bf16.mxu0 %v5137
    %6723 = vmatpush1.bf16.msra.mxu0 %v5136
    %6724 = vmatprep.subr.bf16.mxu0 %v5139
    %6725 = vmatpush1.bf16.msra.mxu0 %v5138
    %6726 = vmatprep.subr.bf16.mxu0 %v5141
    %6727 = vmatpush1.bf16.msra.mxu0 %v5140
    %6728 = vmatprep.subr.bf16.mxu0 %v5143
    %6729 = vmatpush1.bf16.msra.mxu0 %v5142
    %6730 = vmatprep.subr.bf16.mxu0 %v5145
    %6731 = vmatpush1.bf16.msra.mxu0 %v5144
    %6732 = vmatprep.subr.bf16.mxu0 %v5147
    %6733 = vmatpush1.bf16.msra.mxu0 %v5146
    %6734 = vmatprep.subr.bf16.mxu0 %v5149
    %6735 = vmatpush1.bf16.msra.mxu0 %v5148
    %6736 = vmatprep.subr.bf16.mxu0 %v5151
    %6737 = vmatpush1.bf16.msra.mxu0 %v5150
    %6738 = vmatprep.subr.bf16.mxu0 %v5153
    %6739 = vmatpush1.bf16.msra.mxu0 %v5152
    %6740 = vmatprep.subr.bf16.mxu0 %v5155
    %6741 = vmatpush1.bf16.msra.mxu0 %v5154
    %6742 = vmatprep.mubr.bf16.mxu0 %v5881
    %6743 = vmatmul.mubr.bf16.gmra.mrb[0].mxu0 %v5880
    %v6744 = vpop.f32.mrb[0].mxu0
    %v6745 = vadd.f32 %v6472, %v6744
    %v6746 = vpop.f32.mrb[0].mxu0
    %v6747 = vadd.f32 %v6474, %v6746
    %v6748 = vpop.f32.mrb[0].mxu0
    %v6749 = vadd.f32 %v6476, %v6748
    %v6750 = vpop.f32.mrb[0].mxu0
    %v6751 = vadd.f32 %v6478, %v6750
    %6752 = vmatprep.mubr.bf16.mxu0 %v5887
    %6753 = vmatmul.mubr.bf16.gmra.mrb[0].mxu0 %v5886
    %v6754 = vpop.f32.mrb[0].mxu0
    %v6755 = vadd.f32 %v6482, %v6754
    %v6756 = vpop.f32.mrb[0].mxu0
    %v6757 = vadd.f32 %v6484, %v6756
    %v6758 = vpop.f32.mrb[0].mxu0
    %v6759 = vadd.f32 %v6486, %v6758
    %v6760 = vpop.f32.mrb[0].mxu0
    %v6761 = vadd.f32 %v6488, %v6760
    %6762 = vmatprep.mubr.bf16.mxu0 %v5893
    %6763 = vmatmul.mubr.bf16.gmra.mrb[0].mxu0 %v5892
    %v6764 = vpop.f32.mrb[0].mxu0
    %v6765 = vadd.f32 %v6492, %v6764
    %v6766 = vpop.f32.mrb[0].mxu0
    %v6767 = vadd.f32 %v6494, %v6766
    %v6768 = vpop.f32.mrb[0].mxu0
    %v6769 = vadd.f32 %v6496, %v6768
    %v6770 = vpop.f32.mrb[0].mxu0
    %v6771 = vadd.f32 %v6498, %v6770
    %6772 = vmatprep.mubr.bf16.mxu0 %v5899
    %6773 = vmatmul.mubr.bf16.gmra.mrb[0].mxu0 %v5898
    %v6774 = vpop.f32.mrb[0].mxu0
    %v6775 = vadd.f32 %v6502, %v6774
    %v6776 = vpop.f32.mrb[0].mxu0
    %v6777 = vadd.f32 %v6504, %v6776
    %v6778 = vpop.f32.mrb[0].mxu0
    %v6779 = vadd.f32 %v6506, %v6778
    %v6780 = vpop.f32.mrb[0].mxu0
    %v6781 = vadd.f32 %v6508, %v6780
    %6782 = vmatprep.mubr.bf16.mxu0 %v5905
    %6783 = vmatmul.mubr.bf16.gmra.mrb[0].mxu0 %v5904
    %v6784 = vpop.f32.mrb[0].mxu0
    %v6785 = vadd.f32 %v6512, %v6784
    %v6786 = vpop.f32.mrb[0].mxu0
    %v6787 = vadd.f32 %v6514, %v6786
    %v6788 = vpop.f32.mrb[0].mxu0
    %v6789 = vadd.f32 %v6516, %v6788
    %v6790 = vpop.f32.mrb[0].mxu0
    %v6791 = vadd.f32 %v6518, %v6790
    %6792 = vmatprep.mubr.bf16.mxu0 %v5911
    %6793 = vmatmul.mubr.bf16.gmra.mrb[0].mxu0 %v5910
    %v6794 = vpop.f32.mrb[0].mxu0
    %v6795 = vadd.f32 %v6522, %v6794
    %v6796 = vpop.f32.mrb[0].mxu0
    %v6797 = vadd.f32 %v6524, %v6796
    %v6798 = vpop.f32.mrb[0].mxu0
    %v6799 = vadd.f32 %v6526, %v6798
    %v6800 = vpop.f32.mrb[0].mxu0
    %v6801 = vadd.f32 %v6528, %v6800
    %6802 = vmatprep.mubr.bf16.mxu0 %v5917
    %6803 = vmatmul.mubr.bf16.gmra.mrb[0].mxu0 %v5916
    %v6804 = vpop.f32.mrb[0].mxu0
    %v6805 = vadd.f32 %v6532, %v6804
    %v6806 = vpop.f32.mrb[0].mxu0
    %v6807 = vadd.f32 %v6534, %v6806
    %v6808 = vpop.f32.mrb[0].mxu0
    %v6809 = vadd.f32 %v6536, %v6808
    %v6810 = vpop.f32.mrb[0].mxu0
    %v6811 = vadd.f32 %v6538, %v6810
    %6812 = vmatprep.mubr.bf16.mxu0 %v5923
    %6813 = vmatmul.mubr.bf16.gmra.mrb[0].mxu0 %v5922
    %v6814 = vpop.f32.mrb[0].mxu0
    %v6815 = vadd.f32 %v6542, %v6814
    %v6816 = vpop.f32.mrb[0].mxu0
    %v6817 = vadd.f32 %v6544, %v6816
    %v6818 = vpop.f32.mrb[0].mxu0
    %v6819 = vadd.f32 %v6546, %v6818
    %v6820 = vpop.f32.mrb[0].mxu0
    %v6821 = vadd.f32 %v6548, %v6820
    %6822 = vmatprep.mubr.bf16.mxu0 %v5929
    %6823 = vmatmul.mubr.bf16.gmra.mrb[0].mxu0 %v5928
    %v6824 = vpop.f32.mrb[0].mxu0
    %v6825 = vadd.f32 %v6552, %v6824
    %v6826 = vpop.f32.mrb[0].mxu0
    %v6827 = vadd.f32 %v6554, %v6826
    %v6828 = vpop.f32.mrb[0].mxu0
    %v6829 = vadd.f32 %v6556, %v6828
    %v6830 = vpop.f32.mrb[0].mxu0
    %v6831 = vadd.f32 %v6558, %v6830
    %6832 = vmatprep.mubr.bf16.mxu0 %v5935
    %6833 = vmatmul.mubr.bf16.gmra.mrb[0].mxu0 %v5934
    %v6834 = vpop.f32.mrb[0].mxu0
    %v6835 = vadd.f32 %v6562, %v6834
    %v6836 = vpop.f32.mrb[0].mxu0
    %v6837 = vadd.f32 %v6564, %v6836
    %v6838 = vpop.f32.mrb[0].mxu0
    %v6839 = vadd.f32 %v6566, %v6838
    %v6840 = vpop.f32.mrb[0].mxu0
    %v6841 = vadd.f32 %v6568, %v6840
    %6842 = vmatprep.mubr.bf16.mxu0 %v5941
    %6843 = vmatmul.mubr.bf16.gmra.mrb[0].mxu0 %v5940
    %v6844 = vpop.f32.mrb[0].mxu0
    %v6845 = vadd.f32 %v6572, %v6844
    %v6846 = vpop.f32.mrb[0].mxu0
    %v6847 = vadd.f32 %v6574, %v6846
    %v6848 = vpop.f32.mrb[0].mxu0
    %v6849 = vadd.f32 %v6576, %v6848
    %v6850 = vpop.f32.mrb[0].mxu0
    %v6851 = vadd.f32 %v6578, %v6850
    %6852 = vmatprep.mubr.bf16.mxu0 %v5947
    %6853 = vmatmul.mubr.bf16.gmra.mrb[0].mxu0 %v5946
    %v6854 = vpop.f32.mrb[0].mxu0
    %v6855 = vadd.f32 %v6582, %v6854
    %v6856 = vpop.f32.mrb[0].mxu0
    %v6857 = vadd.f32 %v6584, %v6856
    %v6858 = vpop.f32.mrb[0].mxu0
    %v6859 = vadd.f32 %v6586, %v6858
    %v6860 = vpop.f32.mrb[0].mxu0
    %v6861 = vadd.f32 %v6588, %v6860
    %6862 = vmatprep.mubr.bf16.mxu0 %v5953
    %6863 = vmatmul.mubr.bf16.gmra.mrb[0].mxu0 %v5952
    %v6864 = vpop.f32.mrb[0].mxu0
    %v6865 = vadd.f32 %v6592, %v6864
    %v6866 = vpop.f32.mrb[0].mxu0
    %v6867 = vadd.f32 %v6594, %v6866
    %v6868 = vpop.f32.mrb[0].mxu0
    %v6869 = vadd.f32 %v6596, %v6868
    %v6870 = vpop.f32.mrb[0].mxu0
    %v6871 = vadd.f32 %v6598, %v6870
    %6872 = vmatprep.mubr.bf16.mxu0 %v5959
    %6873 = vmatmul.mubr.bf16.gmra.mrb[0].mxu0 %v5958
    %v6874 = vpop.f32.mrb[0].mxu0
    %v6875 = vadd.f32 %v6602, %v6874
    %v6876 = vpop.f32.mrb[0].mxu0
    %v6877 = vadd.f32 %v6604, %v6876
    %v6878 = vpop.f32.mrb[0].mxu0
    %v6879 = vadd.f32 %v6606, %v6878
    %v6880 = vpop.f32.mrb[0].mxu0
    %v6881 = vadd.f32 %v6608, %v6880
    %6882 = vmatprep.mubr.bf16.mxu0 %v5965
    %6883 = vmatmul.mubr.bf16.gmra.mrb[0].mxu0 %v5964
    %v6884 = vpop.f32.mrb[0].mxu0
    %v6885 = vadd.f32 %v6612, %v6884
    %v6886 = vpop.f32.mrb[0].mxu0
    %v6887 = vadd.f32 %v6614, %v6886
    %v6888 = vpop.f32.mrb[0].mxu0
    %v6889 = vadd.f32 %v6616, %v6888
    %v6890 = vpop.f32.mrb[0].mxu0
    %v6891 = vadd.f32 %v6618, %v6890
    %6892 = vmatprep.mubr.bf16.mxu0 %v5971
    %6893 = vmatmul.mubr.bf16.gmra.mrb[0].mxu0 %v5970
    %v6894 = vpop.f32.mrb[0].mxu0
    %v6895 = vadd.f32 %v6622, %v6894
    %v6896 = vpop.f32.mrb[0].mxu0
    %v6897 = vadd.f32 %v6624, %v6896
    %v6898 = vpop.f32.mrb[0].mxu0
    %v6899 = vadd.f32 %v6626, %v6898
    %v6900 = vpop.f32.mrb[0].mxu0
    %v6901 = vadd.f32 %v6628, %v6900
    %6902 = vmatprep.mubr.bf16.mxu0 %v5977
    %6903 = vmatmul.mubr.bf16.gmra.mrb[0].mxu0 %v5976
    %v6904 = vpop.f32.mrb[0].mxu0
    %v6905 = vadd.f32 %v6632, %v6904
    %v6906 = vpop.f32.mrb[0].mxu0
    %v6907 = vadd.f32 %v6634, %v6906
    %v6908 = vpop.f32.mrb[0].mxu0
    %v6909 = vadd.f32 %v6636, %v6908
    %v6910 = vpop.f32.mrb[0].mxu0
    %v6911 = vadd.f32 %v6638, %v6910
    %6912 = vmatprep.mubr.bf16.mxu0 %v5983
    %6913 = vmatmul.mubr.bf16.gmra.mrb[0].mxu0 %v5982
    %v6914 = vpop.f32.mrb[0].mxu0
    %v6915 = vadd.f32 %v6642, %v6914
    %v6916 = vpop.f32.mrb[0].mxu0
    %v6917 = vadd.f32 %v6644, %v6916
    %v6918 = vpop.f32.mrb[0].mxu0
    %v6919 = vadd.f32 %v6646, %v6918
    %v6920 = vpop.f32.mrb[0].mxu0
    %v6921 = vadd.f32 %v6648, %v6920
    %6922 = vmatprep.mubr.bf16.mxu0 %v5989
    %6923 = vmatmul.mubr.bf16.gmra.mrb[0].mxu0 %v5988
    %v6924 = vpop.f32.mrb[0].mxu0
    %v6925 = vadd.f32 %v6652, %v6924
    %v6926 = vpop.f32.mrb[0].mxu0
    %v6927 = vadd.f32 %v6654, %v6926
    %v6928 = vpop.f32.mrb[0].mxu0
    %v6929 = vadd.f32 %v6656, %v6928
    %v6930 = vpop.f32.mrb[0].mxu0
    %v6931 = vadd.f32 %v6658, %v6930
    %6932 = vmatprep.mubr.bf16.mxu0 %v5995
    %6933 = vmatmul.mubr.bf16.gmra.mrb[0].mxu0 %v5994
    %v6934 = vpop.f32.mrb[0].mxu0
    %v6935 = vadd.f32 %v6662, %v6934
    %v6936 = vpop.f32.mrb[0].mxu0
    %v6937 = vadd.f32 %v6664, %v6936
    %v6938 = vpop.f32.mrb[0].mxu0
    %v6939 = vadd.f32 %v6666, %v6938
    %v6940 = vpop.f32.mrb[0].mxu0
    %v6941 = vadd.f32 %v6668, %v6940
    %6942 = vmatprep.mubr.bf16.mxu0 %v6001
    %6943 = vmatmul.mubr.bf16.gmra.mrb[0].mxu0 %v6000
    %v6944 = vpop.f32.mrb[0].mxu0
    %v6945 = vadd.f32 %v6672, %v6944
    %v6946 = vpop.f32.mrb[0].mxu0
    %v6947 = vadd.f32 %v6674, %v6946
    %v6948 = vpop.f32.mrb[0].mxu0
    %v6949 = vadd.f32 %v6676, %v6948
    %v6950 = vpop.f32.mrb[0].mxu0
    %v6951 = vadd.f32 %v6678, %v6950
    %6952 = vmatprep.mubr.bf16.mxu0 %v6007
    %6953 = vmatmul.mubr.bf16.gmra.mrb[0].mxu0 %v6006
    %v6954 = vpop.f32.mrb[0].mxu0
    %v6955 = vadd.f32 %v6682, %v6954
    %v6956 = vpop.f32.mrb[0].mxu0
    %v6957 = vadd.f32 %v6684, %v6956
    %v6958 = vpop.f32.mrb[0].mxu0
    %v6959 = vadd.f32 %v6686, %v6958
    %v6960 = vpop.f32.mrb[0].mxu0
    %v6961 = vadd.f32 %v6688, %v6960
    %6962 = vmatprep.mubr.bf16.mxu0 %v6013
    %6963 = vmatmul.mubr.bf16.gmra.mrb[0].mxu0 %v6012
    %v6964 = vpop.f32.mrb[0].mxu0
    %v6965 = vadd.f32 %v6692, %v6964
    %v6966 = vpop.f32.mrb[0].mxu0
    %v6967 = vadd.f32 %v6694, %v6966
    %v6968 = vpop.f32.mrb[0].mxu0
    %v6969 = vadd.f32 %v6696, %v6968
    %v6970 = vpop.f32.mrb[0].mxu0
    %v6971 = vadd.f32 %v6698, %v6970
    %6972 = vmatprep.mubr.bf16.mxu0 %v6019
    %6973 = vmatmul.mubr.bf16.gmra.mrb[0].mxu0 %v6018
    %v6974 = vpop.f32.mrb[0].mxu0
    %v6975 = vadd.f32 %v6702, %v6974
    %v6976 = vpop.f32.mrb[0].mxu0
    %v6977 = vadd.f32 %v6704, %v6976
    %v6978 = vpop.f32.mrb[0].mxu0
    %v6979 = vadd.f32 %v6706, %v6978
    %v6980 = vpop.f32.mrb[0].mxu0
    %v6981 = vadd.f32 %v6708, %v6980
    %6982 = vdwg.mxu0
    %vm6983 = vcmp.ge.f32.partialorder %v6745, 0.0
    %vm6984 = vcmp.ge.f32.partialorder %v6747, 0.0
    %vm6985 = vcmp.ge.f32.partialorder %v6749, 0.0
    %vm6986 = vcmp.ge.f32.partialorder %v6751, 0.0
    %vm6987 = vcmp.ge.f32.partialorder %v6755, 0.0
    %vm6988 = vcmp.ge.f32.partialorder %v6757, 0.0
    %vm6989 = vcmp.ge.f32.partialorder %v6759, 0.0
    %vm6990 = vcmp.ge.f32.partialorder %v6761, 0.0
    %vm6991 = vcmp.ge.f32.partialorder %v6765, 0.0
    %vm6992 = vcmp.ge.f32.partialorder %v6767, 0.0
    %vm6993 = vcmp.ge.f32.partialorder %v6769, 0.0
    %vm6994 = vcmp.ge.f32.partialorder %v6771, 0.0
    %vm6995 = vcmp.ge.f32.partialorder %v6775, 0.0
    %vm6996 = vcmp.ge.f32.partialorder %v6777, 0.0
    %vm6997 = vcmp.ge.f32.partialorder %v6779, 0.0
    %vm6998 = vcmp.ge.f32.partialorder %v6781, 0.0
    %vm6999 = vcmp.ge.f32.partialorder %v6785, 0.0
    %vm7000 = vcmp.ge.f32.partialorder %v6787, 0.0
    %vm7001 = vcmp.ge.f32.partialorder %v6789, 0.0
    %vm7002 = vcmp.ge.f32.partialorder %v6791, 0.0
    %vm7003 = vcmp.ge.f32.partialorder %v6795, 0.0
    %vm7004 = vcmp.ge.f32.partialorder %v6797, 0.0
    %vm7005 = vcmp.ge.f32.partialorder %v6799, 0.0
    %vm7006 = vcmp.ge.f32.partialorder %v6801, 0.0
    %vm7007 = vcmp.ge.f32.partialorder %v6805, 0.0
    %vm7008 = vcmp.ge.f32.partialorder %v6807, 0.0
    %vm7009 = vcmp.ge.f32.partialorder %v6809, 0.0
    %vm7010 = vcmp.ge.f32.partialorder %v6811, 0.0
    %vm7011 = vcmp.ge.f32.partialorder %v6815, 0.0
    %vm7012 = vcmp.ge.f32.partialorder %v6817, 0.0
    %vm7013 = vcmp.ge.f32.partialorder %v6819, 0.0
    %vm7014 = vcmp.ge.f32.partialorder %v6821, 0.0
    %vm7015 = vcmp.ge.f32.partialorder %v6825, 0.0
    %vm7016 = vcmp.ge.f32.partialorder %v6827, 0.0
    %vm7017 = vcmp.ge.f32.partialorder %v6829, 0.0
    %vm7018 = vcmp.ge.f32.partialorder %v6831, 0.0
    %vm7019 = vcmp.ge.f32.partialorder %v6835, 0.0
    %vm7020 = vcmp.ge.f32.partialorder %v6837, 0.0
    %vm7021 = vcmp.ge.f32.partialorder %v6839, 0.0
    %vm7022 = vcmp.ge.f32.partialorder %v6841, 0.0
    %vm7023 = vcmp.ge.f32.partialorder %v6845, 0.0
    %vm7024 = vcmp.ge.f32.partialorder %v6847, 0.0
    %vm7025 = vcmp.ge.f32.partialorder %v6849, 0.0
    %vm7026 = vcmp.ge.f32.partialorder %v6851, 0.0
    %vm7027 = vcmp.ge.f32.partialorder %v6855, 0.0
    %vm7028 = vcmp.ge.f32.partialorder %v6857, 0.0
    %vm7029 = vcmp.ge.f32.partialorder %v6859, 0.0
    %vm7030 = vcmp.ge.f32.partialorder %v6861, 0.0
    %vm7031 = vcmp.ge.f32.partialorder %v6865, 0.0
    %vm7032 = vcmp.ge.f32.partialorder %v6867, 0.0
    %vm7033 = vcmp.ge.f32.partialorder %v6869, 0.0
    %vm7034 = vcmp.ge.f32.partialorder %v6871, 0.0
    %vm7035 = vcmp.ge.f32.partialorder %v6875, 0.0
    %vm7036 = vcmp.ge.f32.partialorder %v6877, 0.0
    %vm7037 = vcmp.ge.f32.partialorder %v6879, 0.0
    %vm7038 = vcmp.ge.f32.partialorder %v6881, 0.0
    %vm7039 = vcmp.ge.f32.partialorder %v6885, 0.0
    %vm7040 = vcmp.ge.f32.partialorder %v6887, 0.0
    %vm7041 = vcmp.ge.f32.partialorder %v6889, 0.0
    %vm7042 = vcmp.ge.f32.partialorder %v6891, 0.0
    %vm7043 = vcmp.ge.f32.partialorder %v6895, 0.0
    %vm7044 = vcmp.ge.f32.partialorder %v6897, 0.0
    %vm7045 = vcmp.ge.f32.partialorder %v6899, 0.0
    %vm7046 = vcmp.ge.f32.partialorder %v6901, 0.0
    %vm7047 = vcmp.ge.f32.partialorder %v6905, 0.0
    %vm7048 = vcmp.ge.f32.partialorder %v6907, 0.0
    %vm7049 = vcmp.ge.f32.partialorder %v6909, 0.0
    %vm7050 = vcmp.ge.f32.partialorder %v6911, 0.0
    %vm7051 = vcmp.ge.f32.partialorder %v6915, 0.0
    %vm7052 = vcmp.ge.f32.partialorder %v6917, 0.0
    %vm7053 = vcmp.ge.f32.partialorder %v6919, 0.0
    %vm7054 = vcmp.ge.f32.partialorder %v6921, 0.0
    %vm7055 = vcmp.ge.f32.partialorder %v6925, 0.0
    %vm7056 = vcmp.ge.f32.partialorder %v6927, 0.0
    %vm7057 = vcmp.ge.f32.partialorder %v6929, 0.0
    %vm7058 = vcmp.ge.f32.partialorder %v6931, 0.0
    %vm7059 = vcmp.ge.f32.partialorder %v6935, 0.0
    %vm7060 = vcmp.ge.f32.partialorder %v6937, 0.0
    %vm7061 = vcmp.ge.f32.partialorder %v6939, 0.0
    %vm7062 = vcmp.ge.f32.partialorder %v6941, 0.0
    %vm7063 = vcmp.ge.f32.partialorder %v6945, 0.0
    %vm7064 = vcmp.ge.f32.partialorder %v6947, 0.0
    %vm7065 = vcmp.ge.f32.partialorder %v6949, 0.0
    %vm7066 = vcmp.ge.f32.partialorder %v6951, 0.0
    %vm7067 = vcmp.ge.f32.partialorder %v6955, 0.0
    %vm7068 = vcmp.ge.f32.partialorder %v6957, 0.0
    %vm7069 = vcmp.ge.f32.partialorder %v6959, 0.0
    %vm7070 = vcmp.ge.f32.partialorder %v6961, 0.0
    %vm7071 = vcmp.ge.f32.partialorder %v6965, 0.0
    %vm7072 = vcmp.ge.f32.partialorder %v6967, 0.0
    %vm7073 = vcmp.ge.f32.partialorder %v6969, 0.0
    %vm7074 = vcmp.ge.f32.partialorder %v6971, 0.0
    %vm7075 = vcmp.ge.f32.partialorder %v6975, 0.0
    %vm7076 = vcmp.ge.f32.partialorder %v6977, 0.0
    %vm7077 = vcmp.ge.f32.partialorder %v6979, 0.0
    %vm7078 = vcmp.ge.f32.partialorder %v6981, 0.0
    %v7079 = vmul.f32 %v6745, 0.2
    %v7080 = vmul.f32 %v6747, 0.2
    %v7081 = vmul.f32 %v6749, 0.2
    %v7082 = vmul.f32 %v6751, 0.2
    %v7083 = vmul.f32 %v6755, 0.2
    %v7084 = vmul.f32 %v6757, 0.2
    %v7085 = vmul.f32 %v6759, 0.2
    %v7086 = vmul.f32 %v6761, 0.2
    %v7087 = vmul.f32 %v6765, 0.2
    %v7088 = vmul.f32 %v6767, 0.2
    %v7089 = vmul.f32 %v6769, 0.2
    %v7090 = vmul.f32 %v6771, 0.2
    %v7091 = vmul.f32 %v6775, 0.2
    %v7092 = vmul.f32 %v6777, 0.2
    %v7093 = vmul.f32 %v6779, 0.2
    %v7094 = vmul.f32 %v6781, 0.2
    %v7095 = vmul.f32 %v6785, 0.2
    %v7096 = vmul.f32 %v6787, 0.2
    %v7097 = vmul.f32 %v6789, 0.2
    %v7098 = vmul.f32 %v6791, 0.2
    %v7099 = vmul.f32 %v6795, 0.2
    %v7100 = vmul.f32 %v6797, 0.2
    %v7101 = vmul.f32 %v6799, 0.2
    %v7102 = vmul.f32 %v6801, 0.2
    %v7103 = vmul.f32 %v6805, 0.2
    %v7104 = vmul.f32 %v6807, 0.2
    %v7105 = vmul.f32 %v6809, 0.2
    %v7106 = vmul.f32 %v6811, 0.2
    %v7107 = vmul.f32 %v6815, 0.2
    %v7108 = vmul.f32 %v6817, 0.2
    %v7109 = vmul.f32 %v6819, 0.2
    %v7110 = vmul.f32 %v6821, 0.2
    %v7111 = vmul.f32 %v6825, 0.2
    %v7112 = vmul.f32 %v6827, 0.2
    %v7113 = vmul.f32 %v6829, 0.2
    %v7114 = vmul.f32 %v6831, 0.2
    %v7115 = vmul.f32 %v6835, 0.2
    %v7116 = vmul.f32 %v6837, 0.2
    %v7117 = vmul.f32 %v6839, 0.2
    %v7118 = vmul.f32 %v6841, 0.2
    %v7119 = vmul.f32 %v6845, 0.2
    %v7120 = vmul.f32 %v6847, 0.2
    %v7121 = vmul.f32 %v6849, 0.2
    %v7122 = vmul.f32 %v6851, 0.2
    %v7123 = vmul.f32 %v6855, 0.2
    %v7124 = vmul.f32 %v6857, 0.2
    %v7125 = vmul.f32 %v6859, 0.2
    %v7126 = vmul.f32 %v6861, 0.2
    %v7127 = vmul.f32 %v6865, 0.2
    %v7128 = vmul.f32 %v6867, 0.2
    %v7129 = vmul.f32 %v6869, 0.2
    %v7130 = vmul.f32 %v6871, 0.2
    %v7131 = vmul.f32 %v6875, 0.2
    %v7132 = vmul.f32 %v6877, 0.2
    %v7133 = vmul.f32 %v6879, 0.2
    %v7134 = vmul.f32 %v6881, 0.2
    %v7135 = vmul.f32 %v6885, 0.2
    %v7136 = vmul.f32 %v6887, 0.2
    %v7137 = vmul.f32 %v6889, 0.2
    %v7138 = vmul.f32 %v6891, 0.2
    %v7139 = vmul.f32 %v6895, 0.2
    %v7140 = vmul.f32 %v6897, 0.2
    %v7141 = vmul.f32 %v6899, 0.2
    %v7142 = vmul.f32 %v6901, 0.2
    %v7143 = vmul.f32 %v6905, 0.2
    %v7144 = vmul.f32 %v6907, 0.2
    %v7145 = vmul.f32 %v6909, 0.2
    %v7146 = vmul.f32 %v6911, 0.2
    %v7147 = vmul.f32 %v6915, 0.2
    %v7148 = vmul.f32 %v6917, 0.2
    %v7149 = vmul.f32 %v6919, 0.2
    %v7150 = vmul.f32 %v6921, 0.2
    %v7151 = vmul.f32 %v6925, 0.2
    %v7152 = vmul.f32 %v6927, 0.2
    %v7153 = vmul.f32 %v6929, 0.2
    %v7154 = vmul.f32 %v6931, 0.2
    %v7155 = vmul.f32 %v6935, 0.2
    %v7156 = vmul.f32 %v6937, 0.2
    %v7157 = vmul.f32 %v6939, 0.2
    %v7158 = vmul.f32 %v6941, 0.2
    %v7159 = vmul.f32 %v6945, 0.2
    %v7160 = vmul.f32 %v6947, 0.2
    %v7161 = vmul.f32 %v6949, 0.2
    %v7162 = vmul.f32 %v6951, 0.2
    %v7163 = vmul.f32 %v6955, 0.2
    %v7164 = vmul.f32 %v6957, 0.2
    %v7165 = vmul.f32 %v6959, 0.2
    %v7166 = vmul.f32 %v6961, 0.2
    %v7167 = vmul.f32 %v6965, 0.2
    %v7168 = vmul.f32 %v6967, 0.2
    %v7169 = vmul.f32 %v6969, 0.2
    %v7170 = vmul.f32 %v6971, 0.2
    %v7171 = vmul.f32 %v6975, 0.2
    %v7172 = vmul.f32 %v6977, 0.2
    %v7173 = vmul.f32 %v6979, 0.2
    %v7174 = vmul.f32 %v6981, 0.2
    %v7175 = vsel %vm6983, %v6745, %v7079
    %v7176 = vsel %vm6984, %v6747, %v7080
    %v7177 = vsel %vm6985, %v6749, %v7081
    %v7178 = vsel %vm6986, %v6751, %v7082
    %v7179 = vsel %vm6987, %v6755, %v7083
    %v7180 = vsel %vm6988, %v6757, %v7084
    %v7181 = vsel %vm6989, %v6759, %v7085
    %v7182 = vsel %vm6990, %v6761, %v7086
    %v7183 = vsel %vm6991, %v6765, %v7087
    %v7184 = vsel %vm6992, %v6767, %v7088
    %v7185 = vsel %vm6993, %v6769, %v7089
    %v7186 = vsel %vm6994, %v6771, %v7090
    %v7187 = vsel %vm6995, %v6775, %v7091
    %v7188 = vsel %vm6996, %v6777, %v7092
    %v7189 = vsel %vm6997, %v6779, %v7093
    %v7190 = vsel %vm6998, %v6781, %v7094
    %v7191 = vsel %vm6999, %v6785, %v7095
    %v7192 = vsel %vm7000, %v6787, %v7096
    %v7193 = vsel %vm7001, %v6789, %v7097
    %v7194 = vsel %vm7002, %v6791, %v7098
    %v7195 = vsel %vm7003, %v6795, %v7099
    %v7196 = vsel %vm7004, %v6797, %v7100
    %v7197 = vsel %vm7005, %v6799, %v7101
    %v7198 = vsel %vm7006, %v6801, %v7102
    %v7199 = vsel %vm7007, %v6805, %v7103
    %v7200 = vsel %vm7008, %v6807, %v7104
    %v7201 = vsel %vm7009, %v6809, %v7105
    %v7202 = vsel %vm7010, %v6811, %v7106
    %v7203 = vsel %vm7011, %v6815, %v7107
    %v7204 = vsel %vm7012, %v6817, %v7108
    %v7205 = vsel %vm7013, %v6819, %v7109
    %v7206 = vsel %vm7014, %v6821, %v7110
    %v7207 = vsel %vm7015, %v6825, %v7111
    %v7208 = vsel %vm7016, %v6827, %v7112
    %v7209 = vsel %vm7017, %v6829, %v7113
    %v7210 = vsel %vm7018, %v6831, %v7114
    %v7211 = vsel %vm7019, %v6835, %v7115
    %v7212 = vsel %vm7020, %v6837, %v7116
    %v7213 = vsel %vm7021, %v6839, %v7117
    %v7214 = vsel %vm7022, %v6841, %v7118
    %v7215 = vsel %vm7023, %v6845, %v7119
    %v7216 = vsel %vm7024, %v6847, %v7120
    %v7217 = vsel %vm7025, %v6849, %v7121
    %v7218 = vsel %vm7026, %v6851, %v7122
    %v7219 = vsel %vm7027, %v6855, %v7123
    %v7220 = vsel %vm7028, %v6857, %v7124
    %v7221 = vsel %vm7029, %v6859, %v7125
    %v7222 = vsel %vm7030, %v6861, %v7126
    %v7223 = vsel %vm7031, %v6865, %v7127
    %v7224 = vsel %vm7032, %v6867, %v7128
    %v7225 = vsel %vm7033, %v6869, %v7129
    %v7226 = vsel %vm7034, %v6871, %v7130
    %v7227 = vsel %vm7035, %v6875, %v7131
    %v7228 = vsel %vm7036, %v6877, %v7132
    %v7229 = vsel %vm7037, %v6879, %v7133
    %v7230 = vsel %vm7038, %v6881, %v7134
    %v7231 = vsel %vm7039, %v6885, %v7135
    %v7232 = vsel %vm7040, %v6887, %v7136
    %v7233 = vsel %vm7041, %v6889, %v7137
    %v7234 = vsel %vm7042, %v6891, %v7138
    %v7235 = vsel %vm7043, %v6895, %v7139
    %v7236 = vsel %vm7044, %v6897, %v7140
    %v7237 = vsel %vm7045, %v6899, %v7141
    %v7238 = vsel %vm7046, %v6901, %v7142
    %v7239 = vsel %vm7047, %v6905, %v7143
    %v7240 = vsel %vm7048, %v6907, %v7144
    %v7241 = vsel %vm7049, %v6909, %v7145
    %v7242 = vsel %vm7050, %v6911, %v7146
    %v7243 = vsel %vm7051, %v6915, %v7147
    %v7244 = vsel %vm7052, %v6917, %v7148
    %v7245 = vsel %vm7053, %v6919, %v7149
    %v7246 = vsel %vm7054, %v6921, %v7150
    %v7247 = vsel %vm7055, %v6925, %v7151
    %v7248 = vsel %vm7056, %v6927, %v7152
    %v7249 = vsel %vm7057, %v6929, %v7153
    %v7250 = vsel %vm7058, %v6931, %v7154
    %v7251 = vsel %vm7059, %v6935, %v7155
    %v7252 = vsel %vm7060, %v6937, %v7156
    %v7253 = vsel %vm7061, %v6939, %v7157
    %v7254 = vsel %vm7062, %v6941, %v7158
    %v7255 = vsel %vm7063, %v6945, %v7159
    %v7256 = vsel %vm7064, %v6947, %v7160
    %v7257 = vsel %vm7065, %v6949, %v7161
    %v7258 = vsel %vm7066, %v6951, %v7162
    %v7259 = vsel %vm7067, %v6955, %v7163
    %v7260 = vsel %vm7068, %v6957, %v7164
    %v7261 = vsel %vm7069, %v6959, %v7165
    %v7262 = vsel %vm7070, %v6961, %v7166
    %v7263 = vsel %vm7071, %v6965, %v7167
    %v7264 = vsel %vm7072, %v6967, %v7168
    %v7265 = vsel %vm7073, %v6969, %v7169
    %v7266 = vsel %vm7074, %v6971, %v7170
    %v7267 = vsel %vm7075, %v6975, %v7171
    %v7268 = vsel %vm7076, %v6977, %v7172
    %v7269 = vsel %vm7077, %v6979, %v7173
    %v7270 = vsel %vm7078, %v6981, %v7174
    %v7271 = vld [vmem:[%s7] sm:$0xff]
    %v7272 = vld [vmem:[%s7 + $0x8] sm:$0xf]
    %v7273 = vld [vmem:[%s7 + $0xc] sm:$0xff]
    %v7274 = vld [vmem:[%s7 + $0x14] sm:$0xf]
    %v7275 = vld [vmem:[%s7 + $0x18] sm:$0xff]
    %v7276 = vld [vmem:[%s7 + $0x20] sm:$0xf]
    %v7277 = vld [vmem:[%s7 + $0x24] sm:$0xff]
    %v7278 = vld [vmem:[%s7 + $0x2c] sm:$0xf]
    %v7279 = vld [vmem:[%s7 + $0x30] sm:$0xff]
    %v7280 = vld [vmem:[%s7 + $0x38] sm:$0xf]
    %v7281 = vld [vmem:[%s7 + $0x3c] sm:$0xff]
    %v7282 = vld [vmem:[%s7 + $0x44] sm:$0xf]
    %v7283 = vld [vmem:[%s7 + $0x48] sm:$0xff]
    %v7284 = vld [vmem:[%s7 + $0x50] sm:$0xf]
    %v7285 = vld [vmem:[%s7 + $0x54] sm:$0xff]
    %v7286 = vld [vmem:[%s7 + $0x5c] sm:$0xf]
    %v7287 = vld [vmem:[%s7 + $0x60] sm:$0xff]
    %v7288 = vld [vmem:[%s7 + $0x68] sm:$0xf]
    %v7289 = vld [vmem:[%s7 + $0x6c] sm:$0xff]
    %v7290 = vld [vmem:[%s7 + $0x74] sm:$0xf]
    %v7291 = vld [vmem:[%s7 + $0x78] sm:$0xff]
    %v7292 = vld [vmem:[%s7 + $0x80] sm:$0xf]
    %v7293 = vld [vmem:[%s7 + $0x84] sm:$0xff]
    %v7294 = vld [vmem:[%s7 + $0x8c] sm:$0xf]
    %v7295 = vld [vmem:[%s7 + $0x90] sm:$0xff]
    %v7296 = vld [vmem:[%s7 + $0x98] sm:$0xf]
    %v7297 = vld [vmem:[%s7 + $0x9c] sm:$0xff]
    %v7298 = vld [vmem:[%s7 + $0xa4] sm:$0xf]
    %v7299 = vld [vmem:[%s7 + $0xa8] sm:$0xff]
    %v7300 = vld [vmem:[%s7 + $0xb0] sm:$0xf]
    %v7301 = vld [vmem:[%s7 + $0xb4] sm:$0xff]
    %v7302 = vld [vmem:[%s7 + $0xbc] sm:$0xf]
    %v7303 = vpack.c.bf16 %v7177, %v7175
    %v7304 = vpack.c.bf16 %v7178, %v7176
    %v7305 = vpack.c.bf16 %v7181, %v7179
    %v7306 = vpack.c.bf16 %v7182, %v7180
    %v7307 = vpack.c.bf16 %v7185, %v7183
    %v7308 = vpack.c.bf16 %v7186, %v7184
    %v7309 = vpack.c.bf16 %v7189, %v7187
    %v7310 = vpack.c.bf16 %v7190, %v7188
    %v7311 = vpack.c.bf16 %v7193, %v7191
    %v7312 = vpack.c.bf16 %v7194, %v7192
    %v7313 = vpack.c.bf16 %v7197, %v7195
    %v7314 = vpack.c.bf16 %v7198, %v7196
    %v7315 = vpack.c.bf16 %v7201, %v7199
    %v7316 = vpack.c.bf16 %v7202, %v7200
    %v7317 = vpack.c.bf16 %v7205, %v7203
    %v7318 = vpack.c.bf16 %v7206, %v7204
    %v7319 = vpack.c.bf16 %v7209, %v7207
    %v7320 = vpack.c.bf16 %v7210, %v7208
    %v7321 = vpack.c.bf16 %v7213, %v7211
    %v7322 = vpack.c.bf16 %v7214, %v7212
    %v7323 = vpack.c.bf16 %v7217, %v7215
    %v7324 = vpack.c.bf16 %v7218, %v7216
    %v7325 = vpack.c.bf16 %v7221, %v7219
    %v7326 = vpack.c.bf16 %v7222, %v7220
    %v7327 = vpack.c.bf16 %v7225, %v7223
    %v7328 = vpack.c.bf16 %v7226, %v7224
    %v7329 = vpack.c.bf16 %v7229, %v7227
    %v7330 = vpack.c.bf16 %v7230, %v7228
    %v7331 = vpack.c.bf16 %v7233, %v7231
    %v7332 = vpack.c.bf16 %v7234, %v7232
    %v7333 = vpack.c.bf16 %v7237, %v7235
    %v7334 = vpack.c.bf16 %v7238, %v7236
    %v7335 = vpack.c.bf16 %v7241, %v7239
    %v7336 = vpack.c.bf16 %v7242, %v7240
    %v7337 = vpack.c.bf16 %v7245, %v7243
    %v7338 = vpack.c.bf16 %v7246, %v7244
    %v7339 = vpack.c.bf16 %v7249, %v7247
    %v7340 = vpack.c.bf16 %v7250, %v7248
    %v7341 = vpack.c.bf16 %v7253, %v7251
    %v7342 = vpack.c.bf16 %v7254, %v7252
    %v7343 = vpack.c.bf16 %v7257, %v7255
    %v7344 = vpack.c.bf16 %v7258, %v7256
    %v7345 = vpack.c.bf16 %v7261, %v7259
    %v7346 = vpack.c.bf16 %v7262, %v7260
    %v7347 = vpack.c.bf16 %v7265, %v7263
    %v7348 = vpack.c.bf16 %v7266, %v7264
    %v7349 = vpack.c.bf16 %v7269, %v7267
    %v7350 = vpack.c.bf16 %v7270, %v7268
    %v7351 = vld [vmem:[%s8] sm:$0xff]
    %v7352 = vld [vmem:[%s8 + $0x8] sm:$0xff]
    %v7353 = vld [vmem:[%s8 + $0x10] sm:$0xff]
    %v7354 = vld [vmem:[%s8 + $0x18] sm:$0xff]
    %v7355 = vld [vmem:[%s8 + $0x20] sm:$0xff]
    %v7356 = vld [vmem:[%s8 + $0x28] sm:$0xff]
    %v7357 = vld [vmem:[%s8 + $0x30] sm:$0xff]
    %v7358 = vld [vmem:[%s8 + $0x38] sm:$0xff]
    %v7359 = vld [vmem:[%s8 + $0x40] sm:$0xff]
    %v7360 = vld [vmem:[%s8 + $0x48] sm:$0xff]
    %v7361 = vld [vmem:[%s8 + $0x50] sm:$0xff]
    %v7362 = vld [vmem:[%s8 + $0x58] sm:$0xff]
    %v7363 = vld [vmem:[%s8 + $0x60] sm:$0xff]
    %v7364 = vld [vmem:[%s8 + $0x68] sm:$0xff]
    %v7365 = vld [vmem:[%s8 + $0x70] sm:$0xff]
    %v7366 = vld [vmem:[%s8 + $0x78] sm:$0xff]
    %7368 = vset.pattern.permute.xlu0 0
    %7369 = vperm.xlu0 %7368, %v7351
    %v7370 = vpop.permute.xlu0 %7369
    %7373 = vset.pattern.permute.xlu0 0
    %7374 = vperm.xlu0 %7373, %v7352
    %v7375 = vpop.permute.xlu0 %7374
    %7378 = vset.pattern.permute.xlu0 0
    %7379 = vperm.xlu0 %7378, %v7353
    %v7380 = vpop.permute.xlu0 %7379
    %7383 = vset.pattern.permute.xlu0 0
    %7384 = vperm.xlu0 %7383, %v7354
    %v7385 = vpop.permute.xlu0 %7384
    %7388 = vset.pattern.permute.xlu0 0
    %7389 = vperm.xlu0 %7388, %v7355
    %v7390 = vpop.permute.xlu0 %7389
    %7393 = vset.pattern.permute.xlu0 0
    %7394 = vperm.xlu0 %7393, %v7356
    %v7395 = vpop.permute.xlu0 %7394
    %7398 = vset.pattern.permute.xlu0 0
    %7399 = vperm.xlu0 %7398, %v7357
    %v7400 = vpop.permute.xlu0 %7399
    %7403 = vset.pattern.permute.xlu0 0
    %7404 = vperm.xlu0 %7403, %v7358
    %v7405 = vpop.permute.xlu0 %7404
    %7408 = vset.pattern.permute.xlu0 0
    %7409 = vperm.xlu0 %7408, %v7359
    %v7410 = vpop.permute.xlu0 %7409
    %7413 = vset.pattern.permute.xlu0 0
    %7414 = vperm.xlu0 %7413, %v7360
    %v7415 = vpop.permute.xlu0 %7414
    %7418 = vset.pattern.permute.xlu0 0
    %7419 = vperm.xlu0 %7418, %v7361
    %v7420 = vpop.permute.xlu0 %7419
    %7423 = vset.pattern.permute.xlu0 0
    %7424 = vperm.xlu0 %7423, %v7362
    %v7425 = vpop.permute.xlu0 %7424
    %7428 = vset.pattern.permute.xlu0 0
    %7429 = vperm.xlu0 %7428, %v7363
    %v7430 = vpop.permute.xlu0 %7429
    %7433 = vset.pattern.permute.xlu0 0
    %7434 = vperm.xlu0 %7433, %v7364
    %v7435 = vpop.permute.xlu0 %7434
    %7438 = vset.pattern.permute.xlu0 0
    %7439 = vperm.xlu0 %7438, %v7365
    %v7440 = vpop.permute.xlu0 %7439
    %7443 = vset.pattern.permute.xlu0 0
    %7444 = vperm.xlu0 %7443, %v7366
    %v7445 = vpop.permute.xlu0 %7444
    %v7479 = vunpack.c.l.b16 %v7271
    %v7480 = vunpack.c.h.b16 %v7271
    %v7481 = vunpack.c.l.b16 %v7272
    %v7482 = vunpack.c.l.b16 %v7273
    %v7483 = vunpack.c.h.b16 %v7273
    %v7484 = vunpack.c.l.b16 %v7274
    %v7485 = vunpack.c.l.b16 %v7275
    %v7486 = vunpack.c.h.b16 %v7275
    %v7487 = vunpack.c.l.b16 %v7276
    %v7488 = vunpack.c.l.b16 %v7277
    %v7489 = vunpack.c.h.b16 %v7277
    %v7490 = vunpack.c.l.b16 %v7278
    %v7491 = vunpack.c.l.b16 %v7279
    %v7492 = vunpack.c.h.b16 %v7279
    %v7493 = vunpack.c.l.b16 %v7280
    %v7494 = vunpack.c.l.b16 %v7281
    %v7495 = vunpack.c.h.b16 %v7281
    %v7496 = vunpack.c.l.b16 %v7282
    %v7497 = vunpack.c.l.b16 %v7283
    %v7498 = vunpack.c.h.b16 %v7283
    %v7499 = vunpack.c.l.b16 %v7284
    %v7500 = vunpack.c.l.b16 %v7285
    %v7501 = vunpack.c.h.b16 %v7285
    %v7502 = vunpack.c.l.b16 %v7286
    %v7503 = vunpack.c.l.b16 %v7287
    %v7504 = vunpack.c.h.b16 %v7287
    %v7505 = vunpack.c.l.b16 %v7288
    %v7506 = vunpack.c.l.b16 %v7289
    %v7507 = vunpack.c.h.b16 %v7289
    %v7508 = vunpack.c.l.b16 %v7290
    %v7509 = vunpack.c.l.b16 %v7291
    %v7510 = vunpack.c.h.b16 %v7291
    %v7511 = vunpack.c.l.b16 %v7292
    %v7512 = vunpack.c.l.b16 %v7293
    %v7513 = vunpack.c.h.b16 %v7293
    %v7514 = vunpack.c.l.b16 %v7294
    %v7515 = vunpack.c.l.b16 %v7295
    %v7516 = vunpack.c.h.b16 %v7295
    %v7517 = vunpack.c.l.b16 %v7296
    %v7518 = vunpack.c.l.b16 %v7297
    %v7519 = vunpack.c.h.b16 %v7297
    %v7520 = vunpack.c.l.b16 %v7298
    %v7521 = vunpack.c.l.b16 %v7299
    %v7522 = vunpack.c.h.b16 %v7299
    %v7523 = vunpack.c.l.b16 %v7300
    %v7524 = vunpack.c.l.b16 %v7301
    %v7525 = vunpack.c.h.b16 %v7301
    %v7526 = vunpack.c.l.b16 %v7302
    %v7527 = vpack.c.b16 %v7482, %v7479
    %v7528 = vpack.c.b16 %v7483, %v7480
    %v7529 = vpack.c.b16 %v7484, %v7481
    %v7530 = vpack.c.b16 %v7488, %v7485
    %v7531 = vpack.c.b16 %v7489, %v7486
    %v7532 = vpack.c.b16 %v7490, %v7487
    %v7533 = vpack.c.b16 %v7494, %v7491
    %v7534 = vpack.c.b16 %v7495, %v7492
    %v7535 = vpack.c.b16 %v7496, %v7493
    %v7536 = vpack.c.b16 %v7500, %v7497
    %v7537 = vpack.c.b16 %v7501, %v7498
    %v7538 = vpack.c.b16 %v7502, %v7499
    %v7539 = vpack.c.b16 %v7506, %v7503
    %v7540 = vpack.c.b16 %v7507, %v7504
    %v7541 = vpack.c.b16 %v7508, %v7505
    %v7542 = vpack.c.b16 %v7512, %v7509
    %v7543 = vpack.c.b16 %v7513, %v7510
    %v7544 = vpack.c.b16 %v7514, %v7511
    %v7545 = vpack.c.b16 %v7518, %v7515
    %v7546 = vpack.c.b16 %v7519, %v7516
    %v7547 = vpack.c.b16 %v7520, %v7517
    %v7548 = vpack.c.b16 %v7524, %v7521
    %v7549 = vpack.c.b16 %v7525, %v7522
    %v7550 = vpack.c.b16 %v7526, %v7523
    %7575 = vmatprep.subr.bf16.mxu0 %v7304
    %7576 = vmatpush1.bf16.msra.mxu0 %v7303
    %7577 = vmatprep.subr.bf16.mxu0 %v7306
    %7578 = vmatpush1.bf16.msra.mxu0 %v7305
    %7579 = vmatprep.subr.bf16.mxu0 %v7308
    %7580 = vmatpush1.bf16.msra.mxu0 %v7307
    %7581 = vmatprep.subr.bf16.mxu0 %v7310
    %7582 = vmatpush1.bf16.msra.mxu0 %v7309
    %7583 = vmatprep.subr.bf16.mxu0 %v7312
    %7584 = vmatpush1.bf16.msra.mxu0 %v7311
    %7585 = vmatprep.subr.bf16.mxu0 %v7314
    %7586 = vmatpush1.bf16.msra.mxu0 %v7313
    %7587 = vmatprep.subr.bf16.mxu0 %v7316
    %7588 = vmatpush1.bf16.msra.mxu0 %v7315
    %7589 = vmatprep.subr.bf16.mxu0 %v7318
    %7590 = vmatpush1.bf16.msra.mxu0 %v7317
    %7591 = vmatprep.subr.bf16.mxu0 %v7320
    %7592 = vmatpush1.bf16.msra.mxu0 %v7319
    %7593 = vmatprep.subr.bf16.mxu0 %v7322
    %7594 = vmatpush1.bf16.msra.mxu0 %v7321
    %7595 = vmatprep.subr.bf16.mxu0 %v7324
    %7596 = vmatpush1.bf16.msra.mxu0 %v7323
    %7597 = vmatprep.subr.bf16.mxu0 %v7326
    %7598 = vmatpush1.bf16.msra.mxu0 %v7325
    %7599 = vmatprep.subr.bf16.mxu0 %v7328
    %7600 = vmatpush1.bf16.msra.mxu0 %v7327
    %7601 = vmatprep.subr.bf16.mxu0 %v7330
    %7602 = vmatpush1.bf16.msra.mxu0 %v7329
    %7603 = vmatprep.subr.bf16.mxu0 %v7332
    %7604 = vmatpush1.bf16.msra.mxu0 %v7331
    %7605 = vmatprep.subr.bf16.mxu0 %v7334
    %7606 = vmatpush1.bf16.msra.mxu0 %v7333
    %7607 = vmatprep.mubr.bf16.mxu0 %v7528
    %7608 = vmatmul.mubr.bf16.gmra.mrb[0].mxu0 %v7527
    %v7609 = vpop.f32.mrb[0].mxu0
    %v7610 = vadd.f32 %v7370, %v7609
    %v7611 = vpop.f32.mrb[0].mxu0
    %v7612 = vadd.f32 %v7370, %v7611
    %v7613 = vpop.f32.mrb[0].mxu0
    %v7614 = vadd.f32 %v7375, %v7613
    %v7615 = vpop.f32.mrb[0].mxu0
    %v7616 = vadd.f32 %v7375, %v7615
    %7617 = vmatprep.mubr.bf16.mxu0 %v7531
    %7618 = vmatmul.mubr.bf16.gmra.mrb[0].mxu0 %v7530
    %v7619 = vpop.f32.mrb[0].mxu0
    %v7620 = vadd.f32 %v7380, %v7619
    %v7621 = vpop.f32.mrb[0].mxu0
    %v7622 = vadd.f32 %v7380, %v7621
    %v7623 = vpop.f32.mrb[0].mxu0
    %v7624 = vadd.f32 %v7385, %v7623
    %v7625 = vpop.f32.mrb[0].mxu0
    %v7626 = vadd.f32 %v7385, %v7625
    %7627 = vmatprep.mubr.bf16.mxu0 %v7534
    %7628 = vmatmul.mubr.bf16.gmra.mrb[0].mxu0 %v7533
    %v7629 = vpop.f32.mrb[0].mxu0
    %v7630 = vadd.f32 %v7390, %v7629
    %v7631 = vpop.f32.mrb[0].mxu0
    %v7632 = vadd.f32 %v7390, %v7631
    %v7633 = vpop.f32.mrb[0].mxu0
    %v7634 = vadd.f32 %v7395, %v7633
    %v7635 = vpop.f32.mrb[0].mxu0
    %v7636 = vadd.f32 %v7395, %v7635
    %7637 = vmatprep.mubr.bf16.mxu0 %v7537
    %7638 = vmatmul.mubr.bf16.gmra.mrb[0].mxu0 %v7536
    %v7639 = vpop.f32.mrb[0].mxu0
    %v7640 = vadd.f32 %v7400, %v7639
    %v7641 = vpop.f32.mrb[0].mxu0
    %v7642 = vadd.f32 %v7400, %v7641
    %v7643 = vpop.f32.mrb[0].mxu0
    %v7644 = vadd.f32 %v7405, %v7643
    %v7645 = vpop.f32.mrb[0].mxu0
    %v7646 = vadd.f32 %v7405, %v7645
    %7647 = vmatprep.mubr.bf16.mxu0 %v7540
    %7648 = vmatmul.mubr.bf16.gmra.mrb[0].mxu0 %v7539
    %v7649 = vpop.f32.mrb[0].mxu0
    %v7650 = vadd.f32 %v7410, %v7649
    %v7651 = vpop.f32.mrb[0].mxu0
    %v7652 = vadd.f32 %v7410, %v7651
    %v7653 = vpop.f32.mrb[0].mxu0
    %v7654 = vadd.f32 %v7415, %v7653
    %v7655 = vpop.f32.mrb[0].mxu0
    %v7656 = vadd.f32 %v7415, %v7655
    %7657 = vmatprep.mubr.bf16.mxu0 %v7543
    %7658 = vmatmul.mubr.bf16.gmra.mrb[0].mxu0 %v7542
    %v7659 = vpop.f32.mrb[0].mxu0
    %v7660 = vadd.f32 %v7420, %v7659
    %v7661 = vpop.f32.mrb[0].mxu0
    %v7662 = vadd.f32 %v7420, %v7661
    %v7663 = vpop.f32.mrb[0].mxu0
    %v7664 = vadd.f32 %v7425, %v7663
    %v7665 = vpop.f32.mrb[0].mxu0
    %v7666 = vadd.f32 %v7425, %v7665
    %7667 = vmatprep.mubr.bf16.mxu0 %v7546
    %7668 = vmatmul.mubr.bf16.gmra.mrb[0].mxu0 %v7545
    %v7669 = vpop.f32.mrb[0].mxu0
    %v7670 = vadd.f32 %v7430, %v7669
    %v7671 = vpop.f32.mrb[0].mxu0
    %v7672 = vadd.f32 %v7430, %v7671
    %v7673 = vpop.f32.mrb[0].mxu0
    %v7674 = vadd.f32 %v7435, %v7673
    %v7675 = vpop.f32.mrb[0].mxu0
    %v7676 = vadd.f32 %v7435, %v7675
    %7677 = vmatprep.mubr.bf16.mxu0 %v7549
    %7678 = vmatmul.mubr.bf16.gmra.mrb[0].mxu0 %v7548
    %v7679 = vpop.f32.mrb[0].mxu0
    %v7680 = vadd.f32 %v7440, %v7679
    %v7681 = vpop.f32.mrb[0].mxu0
    %v7682 = vadd.f32 %v7440, %v7681
    %v7683 = vpop.f32.mrb[0].mxu0
    %v7684 = vadd.f32 %v7445, %v7683
    %v7685 = vpop.f32.mrb[0].mxu0
    %v7686 = vadd.f32 %v7445, %v7685
    %7687 = vdwg.mxu0
    %7688 = vmatprep.subr.bf16.mxu0 %v7336
    %7689 = vmatpush1.bf16.msra.mxu0 %v7335
    %7690 = vmatprep.subr.bf16.mxu0 %v7338
    %7691 = vmatpush1.bf16.msra.mxu0 %v7337
    %7692 = vmatprep.subr.bf16.mxu0 %v7340
    %7693 = vmatpush1.bf16.msra.mxu0 %v7339
    %7694 = vmatprep.subr.bf16.mxu0 %v7342
    %7695 = vmatpush1.bf16.msra.mxu0 %v7341
    %7696 = vmatprep.subr.bf16.mxu0 %v7344
    %7697 = vmatpush1.bf16.msra.mxu0 %v7343
    %7698 = vmatprep.subr.bf16.mxu0 %v7346
    %7699 = vmatpush1.bf16.msra.mxu0 %v7345
    %7700 = vmatprep.subr.bf16.mxu0 %v7348
    %7701 = vmatpush1.bf16.msra.mxu0 %v7347
    %7702 = vmatprep.subr.bf16.mxu0 %v7350
    %7703 = vmatpush1.bf16.msra.mxu0 %v7349
    %7704 = vmatprep.subr.bf16.mxu0 0
    %7705 = vmatpush1.bf16.msra.mxu0 0
    %7706 = vmatprep.subr.bf16.mxu0 0
    %7707 = vmatpush1.bf16.msra.mxu0 0
    %7708 = vmatprep.subr.bf16.mxu0 0
    %7709 = vmatpush1.bf16.msra.mxu0 0
    %7710 = vmatprep.subr.bf16.mxu0 0
    %7711 = vmatpush1.bf16.msra.mxu0 0
    %7712 = vmatprep.subr.bf16.mxu0 0
    %7713 = vmatpush1.bf16.msra.mxu0 0
    %7714 = vmatprep.subr.bf16.mxu0 0
    %7715 = vmatpush1.bf16.msra.mxu0 0
    %7716 = vmatprep.subr.bf16.mxu0 0
    %7717 = vmatpush1.bf16.msra.mxu0 0
    %7718 = vmatprep.subr.bf16.mxu0 0
    %7719 = vmatpush1.bf16.msra.mxu0 0
    %7720 = vmatprep.mubr.bf16.mxu0 0
    %7721 = vmatmul.mubr.bf16.gmra.mrb[0].mxu0 %v7529
    %v7722 = vpop.f32.mrb[0].mxu0
    %v7723 = vadd.f32 %v7610, %v7722
    %v7724 = vpop.f32.mrb[0].mxu0
    %v7725 = vadd.f32 %v7612, %v7724
    %v7726 = vpop.f32.mrb[0].mxu0
    %v7727 = vadd.f32 %v7614, %v7726
    %v7728 = vpop.f32.mrb[0].mxu0
    %v7729 = vadd.f32 %v7616, %v7728
    %7730 = vmatprep.mubr.bf16.mxu0 0
    %7731 = vmatmul.mubr.bf16.gmra.mrb[0].mxu0 %v7532
    %v7732 = vpop.f32.mrb[0].mxu0
    %v7733 = vadd.f32 %v7620, %v7732
    %v7734 = vpop.f32.mrb[0].mxu0
    %v7735 = vadd.f32 %v7622, %v7734
    %v7736 = vpop.f32.mrb[0].mxu0
    %v7737 = vadd.f32 %v7624, %v7736
    %v7738 = vpop.f32.mrb[0].mxu0
    %v7739 = vadd.f32 %v7626, %v7738
    %7740 = vmatprep.mubr.bf16.mxu0 0
    %7741 = vmatmul.mubr.bf16.gmra.mrb[0].mxu0 %v7535
    %v7742 = vpop.f32.mrb[0].mxu0
    %v7743 = vadd.f32 %v7630, %v7742
    %v7744 = vpop.f32.mrb[0].mxu0
    %v7745 = vadd.f32 %v7632, %v7744
    %v7746 = vpop.f32.mrb[0].mxu0
    %v7747 = vadd.f32 %v7634, %v7746
    %v7748 = vpop.f32.mrb[0].mxu0
    %v7749 = vadd.f32 %v7636, %v7748
    %7750 = vmatprep.mubr.bf16.mxu0 0
    %7751 = vmatmul.mubr.bf16.gmra.mrb[0].mxu0 %v7538
    %v7752 = vpop.f32.mrb[0].mxu0
    %v7753 = vadd.f32 %v7640, %v7752
    %v7754 = vpop.f32.mrb[0].mxu0
    %v7755 = vadd.f32 %v7642, %v7754
    %v7756 = vpop.f32.mrb[0].mxu0
    %v7757 = vadd.f32 %v7644, %v7756
    %v7758 = vpop.f32.mrb[0].mxu0
    %v7759 = vadd.f32 %v7646, %v7758
    %7760 = vmatprep.mubr.bf16.mxu0 0
    %7761 = vmatmul.mubr.bf16.gmra.mrb[0].mxu0 %v7541
    %v7762 = vpop.f32.mrb[0].mxu0
    %v7763 = vadd.f32 %v7650, %v7762
    %v7764 = vpop.f32.mrb[0].mxu0
    %v7765 = vadd.f32 %v7652, %v7764
    %v7766 = vpop.f32.mrb[0].mxu0
    %v7767 = vadd.f32 %v7654, %v7766
    %v7768 = vpop.f32.mrb[0].mxu0
    %v7769 = vadd.f32 %v7656, %v7768
    %7770 = vmatprep.mubr.bf16.mxu0 0
    %7771 = vmatmul.mubr.bf16.gmra.mrb[0].mxu0 %v7544
    %v7772 = vpop.f32.mrb[0].mxu0
    %v7773 = vadd.f32 %v7660, %v7772
    %v7774 = vpop.f32.mrb[0].mxu0
    %v7775 = vadd.f32 %v7662, %v7774
    %v7776 = vpop.f32.mrb[0].mxu0
    %v7777 = vadd.f32 %v7664, %v7776
    %v7778 = vpop.f32.mrb[0].mxu0
    %v7779 = vadd.f32 %v7666, %v7778
    %7780 = vmatprep.mubr.bf16.mxu0 0
    %7781 = vmatmul.mubr.bf16.gmra.mrb[0].mxu0 %v7547
    %v7782 = vpop.f32.mrb[0].mxu0
    %v7783 = vadd.f32 %v7670, %v7782
    %v7784 = vpop.f32.mrb[0].mxu0
    %v7785 = vadd.f32 %v7672, %v7784
    %v7786 = vpop.f32.mrb[0].mxu0
    %v7787 = vadd.f32 %v7674, %v7786
    %v7788 = vpop.f32.mrb[0].mxu0
    %v7789 = vadd.f32 %v7676, %v7788
    %7790 = vmatprep.mubr.bf16.mxu0 0
    %7791 = vmatmul.mubr.bf16.gmra.mrb[0].mxu0 %v7550
    %v7792 = vpop.f32.mrb[0].mxu0
    %v7793 = vadd.f32 %v7680, %v7792
    %v7794 = vpop.f32.mrb[0].mxu0
    %v7795 = vadd.f32 %v7682, %v7794
    %v7796 = vpop.f32.mrb[0].mxu0
    %v7797 = vadd.f32 %v7684, %v7796
    %v7798 = vpop.f32.mrb[0].mxu0
    %v7799 = vadd.f32 %v7686, %v7798
    %7800 = vdwg.mxu0
    %vm7801 = vcmp.ge.f32.partialorder %v7723, 0.0
    %vm7802 = vcmp.ge.f32.partialorder %v7725, 0.0
    %vm7803 = vcmp.ge.f32.partialorder %v7727, 0.0
    %vm7804 = vcmp.ge.f32.partialorder %v7729, 0.0
    %vm7805 = vcmp.ge.f32.partialorder %v7733, 0.0
    %vm7806 = vcmp.ge.f32.partialorder %v7735, 0.0
    %vm7807 = vcmp.ge.f32.partialorder %v7737, 0.0
    %vm7808 = vcmp.ge.f32.partialorder %v7739, 0.0
    %vm7809 = vcmp.ge.f32.partialorder %v7743, 0.0
    %vm7810 = vcmp.ge.f32.partialorder %v7745, 0.0
    %vm7811 = vcmp.ge.f32.partialorder %v7747, 0.0
    %vm7812 = vcmp.ge.f32.partialorder %v7749, 0.0
    %vm7813 = vcmp.ge.f32.partialorder %v7753, 0.0
    %vm7814 = vcmp.ge.f32.partialorder %v7755, 0.0
    %vm7815 = vcmp.ge.f32.partialorder %v7757, 0.0
    %vm7816 = vcmp.ge.f32.partialorder %v7759, 0.0
    %vm7817 = vcmp.ge.f32.partialorder %v7763, 0.0
    %vm7818 = vcmp.ge.f32.partialorder %v7765, 0.0
    %vm7819 = vcmp.ge.f32.partialorder %v7767, 0.0
    %vm7820 = vcmp.ge.f32.partialorder %v7769, 0.0
    %vm7821 = vcmp.ge.f32.partialorder %v7773, 0.0
    %vm7822 = vcmp.ge.f32.partialorder %v7775, 0.0
    %vm7823 = vcmp.ge.f32.partialorder %v7777, 0.0
    %vm7824 = vcmp.ge.f32.partialorder %v7779, 0.0
    %vm7825 = vcmp.ge.f32.partialorder %v7783, 0.0
    %vm7826 = vcmp.ge.f32.partialorder %v7785, 0.0
    %vm7827 = vcmp.ge.f32.partialorder %v7787, 0.0
    %vm7828 = vcmp.ge.f32.partialorder %v7789, 0.0
    %vm7829 = vcmp.ge.f32.partialorder %v7793, 0.0
    %vm7830 = vcmp.ge.f32.partialorder %v7795, 0.0
    %vm7831 = vcmp.ge.f32.partialorder %v7797, 0.0
    %vm7832 = vcmp.ge.f32.partialorder %v7799, 0.0
    %v7833 = vmul.f32 %v7723, 0.2
    %v7834 = vmul.f32 %v7725, 0.2
    %v7835 = vmul.f32 %v7727, 0.2
    %v7836 = vmul.f32 %v7729, 0.2
    %v7837 = vmul.f32 %v7733, 0.2
    %v7838 = vmul.f32 %v7735, 0.2
    %v7839 = vmul.f32 %v7737, 0.2
    %v7840 = vmul.f32 %v7739, 0.2
    %v7841 = vmul.f32 %v7743, 0.2
    %v7842 = vmul.f32 %v7745, 0.2
    %v7843 = vmul.f32 %v7747, 0.2
    %v7844 = vmul.f32 %v7749, 0.2
    %v7845 = vmul.f32 %v7753, 0.2
    %v7846 = vmul.f32 %v7755, 0.2
    %v7847 = vmul.f32 %v7757, 0.2
    %v7848 = vmul.f32 %v7759, 0.2
    %v7849 = vmul.f32 %v7763, 0.2
    %v7850 = vmul.f32 %v7765, 0.2
    %v7851 = vmul.f32 %v7767, 0.2
    %v7852 = vmul.f32 %v7769, 0.2
    %v7853 = vmul.f32 %v7773, 0.2
    %v7854 = vmul.f32 %v7775, 0.2
    %v7855 = vmul.f32 %v7777, 0.2
    %v7856 = vmul.f32 %v7779, 0.2
    %v7857 = vmul.f32 %v7783, 0.2
    %v7858 = vmul.f32 %v7785, 0.2
    %v7859 = vmul.f32 %v7787, 0.2
    %v7860 = vmul.f32 %v7789, 0.2
    %v7861 = vmul.f32 %v7793, 0.2
    %v7862 = vmul.f32 %v7795, 0.2
    %v7863 = vmul.f32 %v7797, 0.2
    %v7864 = vmul.f32 %v7799, 0.2
    %v7865 = vsel %vm7801, %v7723, %v7833
    %v7866 = vsel %vm7802, %v7725, %v7834
    %v7867 = vsel %vm7803, %v7727, %v7835
    %v7868 = vsel %vm7804, %v7729, %v7836
    %v7869 = vsel %vm7805, %v7733, %v7837
    %v7870 = vsel %vm7806, %v7735, %v7838
    %v7871 = vsel %vm7807, %v7737, %v7839
    %v7872 = vsel %vm7808, %v7739, %v7840
    %v7873 = vsel %vm7809, %v7743, %v7841
    %v7874 = vsel %vm7810, %v7745, %v7842
    %v7875 = vsel %vm7811, %v7747, %v7843
    %v7876 = vsel %vm7812, %v7749, %v7844
    %v7877 = vsel %vm7813, %v7753, %v7845
    %v7878 = vsel %vm7814, %v7755, %v7846
    %v7879 = vsel %vm7815, %v7757, %v7847
    %v7880 = vsel %vm7816, %v7759, %v7848
    %v7881 = vsel %vm7817, %v7763, %v7849
    %v7882 = vsel %vm7818, %v7765, %v7850
    %v7883 = vsel %vm7819, %v7767, %v7851
    %v7884 = vsel %vm7820, %v7769, %v7852
    %v7885 = vsel %vm7821, %v7773, %v7853
    %v7886 = vsel %vm7822, %v7775, %v7854
    %v7887 = vsel %vm7823, %v7777, %v7855
    %v7888 = vsel %vm7824, %v7779, %v7856
    %v7889 = vsel %vm7825, %v7783, %v7857
    %v7890 = vsel %vm7826, %v7785, %v7858
    %v7891 = vsel %vm7827, %v7787, %v7859
    %v7892 = vsel %vm7828, %v7789, %v7860
    %v7893 = vsel %vm7829, %v7793, %v7861
    %v7894 = vsel %vm7830, %v7795, %v7862
    %v7895 = vsel %vm7831, %v7797, %v7863
    %v7896 = vsel %vm7832, %v7799, %v7864
    %v7897 = vld [vmem:[%s9] sm:$0xf]
    %v7898 = vld [vmem:[%s9 + $0x4] sm:$0xf]
    %v7899 = vld [vmem:[%s9 + $0x8] sm:$0xf]
    %v7900 = vld [vmem:[%s9 + $0xc] sm:$0xf]
    %v7901 = vld [vmem:[%s9 + $0x10] sm:$0xf]
    %v7902 = vld [vmem:[%s9 + $0x14] sm:$0xf]
    %v7903 = vld [vmem:[%s9 + $0x18] sm:$0xf]
    %v7904 = vld [vmem:[%s9 + $0x1c] sm:$0xf]
    %v7905 = vpack.c.bf16 %v7867, %v7865
    %v7906 = vpack.c.bf16 %v7868, %v7866
    %v7907 = vpack.c.bf16 %v7871, %v7869
    %v7908 = vpack.c.bf16 %v7872, %v7870
    %v7909 = vpack.c.bf16 %v7875, %v7873
    %v7910 = vpack.c.bf16 %v7876, %v7874
    %v7911 = vpack.c.bf16 %v7879, %v7877
    %v7912 = vpack.c.bf16 %v7880, %v7878
    %v7913 = vpack.c.bf16 %v7883, %v7881
    %v7914 = vpack.c.bf16 %v7884, %v7882
    %v7915 = vpack.c.bf16 %v7887, %v7885
    %v7916 = vpack.c.bf16 %v7888, %v7886
    %v7917 = vpack.c.bf16 %v7891, %v7889
    %v7918 = vpack.c.bf16 %v7892, %v7890
    %v7919 = vpack.c.bf16 %v7895, %v7893
    %v7920 = vpack.c.bf16 %v7896, %v7894
    %v7921 = vld [vmem:[%s10] sm:$0xff]
    %v7922 = vld [vmem:[%s10 + $0x8] sm:$0xff]
    %v7923 = vld [vmem:[%s10 + $0x10] sm:$0xff]
    %v7924 = vld [vmem:[%s10 + $0x18] sm:$0xff]
    %v7925 = vld [vmem:[%s10 + $0x20] sm:$0xff]
    %v7926 = vld [vmem:[%s10 + $0x28] sm:$0xff]
    %v7927 = vld [vmem:[%s10 + $0x30] sm:$0xff]
    %v7928 = vld [vmem:[%s10 + $0x38] sm:$0xff]
    %7930 = vset.pattern.permute.xlu0 0
    %7931 = vperm.xlu0 %7930, %v7921
    %v7932 = vpop.permute.xlu0 %7931
    %7935 = vset.pattern.permute.xlu0 0
    %7936 = vperm.xlu0 %7935, %v7922
    %v7937 = vpop.permute.xlu0 %7936
    %7940 = vset.pattern.permute.xlu0 0
    %7941 = vperm.xlu0 %7940, %v7923
    %v7942 = vpop.permute.xlu0 %7941
    %7945 = vset.pattern.permute.xlu0 0
    %7946 = vperm.xlu0 %7945, %v7924
    %v7947 = vpop.permute.xlu0 %7946
    %7950 = vset.pattern.permute.xlu0 0
    %7951 = vperm.xlu0 %7950, %v7925
    %v7952 = vpop.permute.xlu0 %7951
    %7955 = vset.pattern.permute.xlu0 0
    %7956 = vperm.xlu0 %7955, %v7926
    %v7957 = vpop.permute.xlu0 %7956
    %7960 = vset.pattern.permute.xlu0 0
    %7961 = vperm.xlu0 %7960, %v7927
    %v7962 = vpop.permute.xlu0 %7961
    %7965 = vset.pattern.permute.xlu0 0
    %7966 = vperm.xlu0 %7965, %v7928
    %v7967 = vpop.permute.xlu0 %7966
    %v7977 = vunpack.c.l.b16 %v7897
    %v7978 = vunpack.c.l.b16 %v7898
    %v7979 = vunpack.c.l.b16 %v7899
    %v7980 = vunpack.c.l.b16 %v7900
    %v7981 = vunpack.c.l.b16 %v7901
    %v7982 = vunpack.c.l.b16 %v7902
    %v7983 = vunpack.c.l.b16 %v7903
    %v7984 = vunpack.c.l.b16 %v7904
    %v7985 = vpack.c.b16 %v7978, %v7977
    %v7986 = vpack.c.b16 %v7980, %v7979
    %v7987 = vpack.c.b16 %v7982, %v7981
    %v7988 = vpack.c.b16 %v7984, %v7983
    %7993 = vmatprep.subr.bf16.mxu0 %v7906
    %7994 = vmatpush1.bf16.msra.mxu0 %v7905
    %7995 = vmatprep.subr.bf16.mxu0 %v7908
    %7996 = vmatpush1.bf16.msra.mxu0 %v7907
    %7997 = vmatprep.subr.bf16.mxu0 %v7910
    %7998 = vmatpush1.bf16.msra.mxu0 %v7909
    %7999 = vmatprep.subr.bf16.mxu0 %v7912
    %8000 = vmatpush1.bf16.msra.mxu0 %v7911
    %8001 = vmatprep.subr.bf16.mxu0 %v7914
    %8002 = vmatpush1.bf16.msra.mxu0 %v7913
    %8003 = vmatprep.subr.bf16.mxu0 %v7916
    %8004 = vmatpush1.bf16.msra.mxu0 %v7915
    %8005 = vmatprep.subr.bf16.mxu0 %v7918
    %8006 = vmatpush1.bf16.msra.mxu0 %v7917
    %8007 = vmatprep.subr.bf16.mxu0 %v7920
    %8008 = vmatpush1.bf16.msra.mxu0 %v7919
    %8009 = vmatprep.subr.bf16.mxu0 0
    %8010 = vmatpush1.bf16.msra.mxu0 0
    %8011 = vmatprep.subr.bf16.mxu0 0
    %8012 = vmatpush1.bf16.msra.mxu0 0
    %8013 = vmatprep.subr.bf16.mxu0 0
    %8014 = vmatpush1.bf16.msra.mxu0 0
    %8015 = vmatprep.subr.bf16.mxu0 0
    %8016 = vmatpush1.bf16.msra.mxu0 0
    %8017 = vmatprep.subr.bf16.mxu0 0
    %8018 = vmatpush1.bf16.msra.mxu0 0
    %8019 = vmatprep.subr.bf16.mxu0 0
    %8020 = vmatpush1.bf16.msra.mxu0 0
    %8021 = vmatprep.subr.bf16.mxu0 0
    %8022 = vmatpush1.bf16.msra.mxu0 0
    %8023 = vmatprep.subr.bf16.mxu0 0
    %8024 = vmatpush1.bf16.msra.mxu0 0
    %8025 = vmatprep.mubr.bf16.mxu0 0
    %8026 = vmatmul.mubr.bf16.gmra.mrb[0].mxu0 %v7985
    %v8027 = vpop.f32.mrb[0].mxu0
    %v8028 = vadd.f32 %v7932, %v8027
    %v8029 = vpop.f32.mrb[0].mxu0
    %v8030 = vadd.f32 %v7932, %v8029
    %v8031 = vpop.f32.mrb[0].mxu0
    %v8032 = vadd.f32 %v7937, %v8031
    %v8033 = vpop.f32.mrb[0].mxu0
    %v8034 = vadd.f32 %v7937, %v8033
    %8035 = vmatprep.mubr.bf16.mxu0 0
    %8036 = vmatmul.mubr.bf16.gmra.mrb[0].mxu0 %v7986
    %v8037 = vpop.f32.mrb[0].mxu0
    %v8038 = vadd.f32 %v7942, %v8037
    %v8039 = vpop.f32.mrb[0].mxu0
    %v8040 = vadd.f32 %v7942, %v8039
    %v8041 = vpop.f32.mrb[0].mxu0
    %v8042 = vadd.f32 %v7947, %v8041
    %v8043 = vpop.f32.mrb[0].mxu0
    %v8044 = vadd.f32 %v7947, %v8043
    %8045 = vmatprep.mubr.bf16.mxu0 0
    %8046 = vmatmul.mubr.bf16.gmra.mrb[0].mxu0 %v7987
    %v8047 = vpop.f32.mrb[0].mxu0
    %v8048 = vadd.f32 %v7952, %v8047
    %v8049 = vpop.f32.mrb[0].mxu0
    %v8050 = vadd.f32 %v7952, %v8049
    %v8051 = vpop.f32.mrb[0].mxu0
    %v8052 = vadd.f32 %v7957, %v8051
    %v8053 = vpop.f32.mrb[0].mxu0
    %v8054 = vadd.f32 %v7957, %v8053
    %8055 = vmatprep.mubr.bf16.mxu0 0
    %8056 = vmatmul.mubr.bf16.gmra.mrb[0].mxu0 %v7988
    %v8057 = vpop.f32.mrb[0].mxu0
    %v8058 = vadd.f32 %v7962, %v8057
    %v8059 = vpop.f32.mrb[0].mxu0
    %v8060 = vadd.f32 %v7962, %v8059
    %v8061 = vpop.f32.mrb[0].mxu0
    %v8062 = vadd.f32 %v7967, %v8061
    %v8063 = vpop.f32.mrb[0].mxu0
    %v8064 = vadd.f32 %v7967, %v8063
    %8065 = vdwg.mxu0
    %vm8066 = vcmp.ge.f32.partialorder %v8028, 0.0
    %vm8067 = vcmp.ge.f32.partialorder %v8030, 0.0
    %vm8068 = vcmp.ge.f32.partialorder %v8032, 0.0
    %vm8069 = vcmp.ge.f32.partialorder %v8034, 0.0
    %vm8070 = vcmp.ge.f32.partialorder %v8038, 0.0
    %vm8071 = vcmp.ge.f32.partialorder %v8040, 0.0
    %vm8072 = vcmp.ge.f32.partialorder %v8042, 0.0
    %vm8073 = vcmp.ge.f32.partialorder %v8044, 0.0
    %vm8074 = vcmp.ge.f32.partialorder %v8048, 0.0
    %vm8075 = vcmp.ge.f32.partialorder %v8050, 0.0
    %vm8076 = vcmp.ge.f32.partialorder %v8052, 0.0
    %vm8077 = vcmp.ge.f32.partialorder %v8054, 0.0
    %vm8078 = vcmp.ge.f32.partialorder %v8058, 0.0
    %vm8079 = vcmp.ge.f32.partialorder %v8060, 0.0
    %vm8080 = vcmp.ge.f32.partialorder %v8062, 0.0
    %vm8081 = vcmp.ge.f32.partialorder %v8064, 0.0
    %v8082 = vmul.f32 %v8028, 0.2
    %v8083 = vmul.f32 %v8030, 0.2
    %v8084 = vmul.f32 %v8032, 0.2
    %v8085 = vmul.f32 %v8034, 0.2
    %v8086 = vmul.f32 %v8038, 0.2
    %v8087 = vmul.f32 %v8040, 0.2
    %v8088 = vmul.f32 %v8042, 0.2
    %v8089 = vmul.f32 %v8044, 0.2
    %v8090 = vmul.f32 %v8048, 0.2
    %v8091 = vmul.f32 %v8050, 0.2
    %v8092 = vmul.f32 %v8052, 0.2
    %v8093 = vmul.f32 %v8054, 0.2
    %v8094 = vmul.f32 %v8058, 0.2
    %v8095 = vmul.f32 %v8060, 0.2
    %v8096 = vmul.f32 %v8062, 0.2
    %v8097 = vmul.f32 %v8064, 0.2
    %v8098 = vsel %vm8066, %v8028, %v8082
    %v8099 = vsel %vm8067, %v8030, %v8083
    %v8100 = vsel %vm8068, %v8032, %v8084
    %v8101 = vsel %vm8069, %v8034, %v8085
    %v8102 = vsel %vm8070, %v8038, %v8086
    %v8103 = vsel %vm8071, %v8040, %v8087
    %v8104 = vsel %vm8072, %v8042, %v8088
    %v8105 = vsel %vm8073, %v8044, %v8089
    %v8106 = vsel %vm8074, %v8048, %v8090
    %v8107 = vsel %vm8075, %v8050, %v8091
    %v8108 = vsel %vm8076, %v8052, %v8092
    %v8109 = vsel %vm8077, %v8054, %v8093
    %v8110 = vsel %vm8078, %v8058, %v8094
    %v8111 = vsel %vm8079, %v8060, %v8095
    %v8112 = vsel %vm8080, %v8062, %v8096
    %v8113 = vsel %vm8081, %v8064, %v8097
    %v8114 = vld [vmem:[%s11] sm:$0xf]
    %v8115 = vld [vmem:[%s11 + $0x4] sm:$0xf]
    %v8116 = vpack.c.bf16 %v8100, %v8098
    %v8117 = vpack.c.bf16 %v8101, %v8099
    %v8118 = vpack.c.bf16 %v8104, %v8102
    %v8119 = vpack.c.bf16 %v8105, %v8103
    %v8120 = vpack.c.bf16 %v8108, %v8106
    %v8121 = vpack.c.bf16 %v8109, %v8107
    %v8122 = vpack.c.bf16 %v8112, %v8110
    %v8123 = vpack.c.bf16 %v8113, %v8111
    %v8124 = vld [vmem:[%s12] sm:$0xff]
    %v8125 = vld [vmem:[%s12 + $0x8] sm:$0xff]
    %8127 = vset.pattern.permute.xlu0 0
    %8128 = vperm.xlu0 %8127, %v8124
    %v8129 = vpop.permute.xlu0 %8128
    %8132 = vset.pattern.permute.xlu0 0
    %8133 = vperm.xlu0 %8132, %v8125
    %v8134 = vpop.permute.xlu0 %8133
    %v8138 = vunpack.c.l.b16 %v8114
    %v8139 = vunpack.c.l.b16 %v8115
    %v8140 = vpack.c.b16 %v8139, %v8138
    %vm8141 = vcmask 523264
    %v8143 = vsel %vm8141, %v8140, 0
    %8145 = vmatprep.subr.bf16.mxu0 %v8117
    %8146 = vmatpush1.bf16.msra.mxu0 %v8116
    %8147 = vmatprep.subr.bf16.mxu0 %v8119
    %8148 = vmatpush1.bf16.msra.mxu0 %v8118
    %8149 = vmatprep.subr.bf16.mxu0 %v8121
    %8150 = vmatpush1.bf16.msra.mxu0 %v8120
    %8151 = vmatprep.subr.bf16.mxu0 %v8123
    %8152 = vmatpush1.bf16.msra.mxu0 %v8122
    %8153 = vmatprep.subr.bf16.mxu0 0
    %8154 = vmatpush1.bf16.msra.mxu0 0
    %8155 = vmatprep.subr.bf16.mxu0 0
    %8156 = vmatpush1.bf16.msra.mxu0 0
    %8157 = vmatprep.subr.bf16.mxu0 0
    %8158 = vmatpush1.bf16.msra.mxu0 0
    %8159 = vmatprep.subr.bf16.mxu0 0
    %8160 = vmatpush1.bf16.msra.mxu0 0
    %8161 = vmatprep.subr.bf16.mxu0 0
    %8162 = vmatpush1.bf16.msra.mxu0 0
    %8163 = vmatprep.subr.bf16.mxu0 0
    %8164 = vmatpush1.bf16.msra.mxu0 0
    %8165 = vmatprep.subr.bf16.mxu0 0
    %8166 = vmatpush1.bf16.msra.mxu0 0
    %8167 = vmatprep.subr.bf16.mxu0 0
    %8168 = vmatpush1.bf16.msra.mxu0 0
    %8169 = vmatprep.subr.bf16.mxu0 0
    %8170 = vmatpush1.bf16.msra.mxu0 0
    %8171 = vmatprep.subr.bf16.mxu0 0
    %8172 = vmatpush1.bf16.msra.mxu0 0
    %8173 = vmatprep.subr.bf16.mxu0 0
    %8174 = vmatpush1.bf16.msra.mxu0 0
    %8175 = vmatprep.subr.bf16.mxu0 0
    %8176 = vmatpush1.bf16.msra.mxu0 0
    %8177 = vmatprep.mubr.bf16.mxu0 0
    %8178 = vmatmul.mubr.bf16.gmra.mrb[0].mxu0 %v8143
    %v8179 = vpop.f32.mrb[0].mxu0
    %v8180 = vadd.f32 %v8129, %v8179
    %v8181 = vpop.f32.mrb[0].mxu0
    %v8182 = vadd.f32 %v8129, %v8181
    %v8183 = vpop.f32.mrb[0].mxu0
    %v8184 = vadd.f32 %v8134, %v8183
    %v8185 = vpop.f32.mrb[0].mxu0
    %v8186 = vadd.f32 %v8134, %v8185
    %8187 = vdwg.mxu0
    %vm8188 = vcmp.ge.f32.partialorder %v8180, 0.0
    %vm8189 = vcmp.ge.f32.partialorder %v8182, 0.0
    %vm8190 = vcmp.ge.f32.partialorder %v8184, 0.0
    %vm8191 = vcmp.ge.f32.partialorder %v8186, 0.0
    %v8192 = vmul.f32 %v8180, 0.2
    %v8193 = vmul.f32 %v8182, 0.2
    %v8194 = vmul.f32 %v8184, 0.2
    %v8195 = vmul.f32 %v8186, 0.2
    %v8196 = vsel %vm8188, %v8180, %v8192
    %v8197 = vsel %vm8189, %v8182, %v8193
    %v8198 = vsel %vm8190, %v8184, %v8194
    %v8199 = vsel %vm8191, %v8186, %v8195
    %v8200 = vld [vmem:[%s13] sm:$0xff]
    %v8201 = vld [vmem:[%s13 + $0x8] sm:$0xff]
    %8203 = vset.pattern.permute.xlu0 0
    %8204 = vperm.xlu0 %8203, %v8200
    %v8205 = vpop.permute.xlu0 %8204
    %8208 = vset.pattern.permute.xlu0 0
    %8209 = vperm.xlu0 %8208, %v8201
    %v8210 = vpop.permute.xlu0 %8209
    %v8212 = vmul.f32 %v8196, %v8205
    %v8213 = vmul.f32 %v8197, %v8205
    %v8214 = vmul.f32 %v8198, %v8210
    %v8215 = vmul.f32 %v8199, %v8210
    %v8216 = vadd.f32 %v8212, %v8214
    %v8217 = vrot.slane %v8216, 4
    %v8218 = vadd.f32 %v8216, %v8217
    %v8219 = vrot.slane %v8218, 2
    %v8220 = vadd.f32 %v8218, %v8219
    %v8221 = vrot.slane %v8220, 1
    %v8222 = vadd.f32 %v8220, %v8221
    %v8223 = vadd.f32 %v8213, %v8215
    %v8224 = vrot.slane %v8223, 4
    %v8225 = vadd.f32 %v8223, %v8224
    %v8226 = vrot.slane %v8225, 2
    %v8227 = vadd.f32 %v8225, %v8226
    %v8228 = vrot.slane %v8227, 1
    %v8229 = vadd.f32 %v8227, %v8228
    %v8230 = vld [vmem:[#allocation2] sm:$0x1]
    %8232 = vset.pattern.permute.xlu0 0
    %8233 = vperm.xlu0 %8232, %v8230
    %v8234 = vpop.permute.xlu0 %8233
    %v8236 = vlaneseq
    %v8237 = vshrl.u32 %v8236, 7
    %v8238 = vsub.s32 0, %v8237
    %v8239 = vrot.slane %v8234, %v8238
    %v8240 = vadd.f32 %v8222, %v8239
    %v8241 = vadd.f32 %v8229, %v8239
    %v8244 = vcombine.low %v8240, %v8241
    %v8246 = vunpack.c.l.s4 1966171168
    %v8247 = vunpack.c.0.s8 %v8246
    %v8248 = vlaneseq
    %v8249 = vshrl.u32 %v8248, 7
    %v8250 = vsub.s32 %v8247, %v8249
    %v8251 = vrot.slane %v8244, %v8250
    %v8253 = vunpack.c.l.s4 1966171168
    %v8254 = vunpack.c.0.s8 %v8253
    %v8255 = vlaneseq
    %v8256 = vshrl.u32 %v8255, 7
    %v8257 = vsub.s32 %v8254, %v8256
    %v8258 = vrot.slane %v8251, %v8257
    %v8260 = vlaneseq
    %vm8261 = vcmp.ge.s32.totalorder %v8260, 0
    %vm8262 = vcmp.lt.s32.totalorder %v8260, 256
    %vm8263 = vmand %vm8261, %vm8262
    %8264 = vst.msk [vmem:[#allocation6] sm:$0x3] %vm8263, %v8258
    // Predicated region
    $region66: #{tpu_custom_call.1} parent=1 // pred_check
      _
    $region67: #{tpu_custom_call.1} parent=1 // pred_check_branch
      %8266 = sbr.rel (0) target = $region69
    $region68: #{tpu_custom_call.1} parent=1 // pred_region
      %s8268 = ssub.s32 32, 32
      %8269 = vsyncadd [#allocation5], %s8268
      %s8271 = sshll.u32 [#allocation6], 4
      %s8272 = int_to_ptr.vmem [resolvable:$true] %s8271
      %8274 = dma.vmem_to_hbm [thread:$0]  %s8272, 32, %s15, [#allocation5]
    $region69: #{tpu_custom_call.1} parent=1 // pred_fallthru
      _
    // Predicated region
    $region70: #{tpu_custom_call.1} parent=1 // pred_check
      _
    $region71: #{tpu_custom_call.1} parent=1 // pred_check_branch
      %8276 = sbr.rel (0) target = $region73
    $region72: #{tpu_custom_call.1} parent=1 // pred_region
      %8277 = dma.done [#allocation5], 32
    $region73: #{tpu_custom_call.1} parent=1 // pred_fallthru
      _
    %8278 = vsyncpa [#allocation4], 1
    %8279 = vsyncpa [#allocation5], 1

</llo_original>
